<compile_context>
chip_gen: v7x
topology: tpu7x:2x2x1
jax: 0.10.0
libtpu: 0.0.40
codegen_flags: <defaults>
</compile_context>

<pallas_src>
import functools

import jax
import jax.numpy as jnp
from jax.experimental import pallas as pl
from jax.experimental.pallas import tpu as pltpu


# ----------------------------------- kernel -----------------------------------

def _block17_kernel(x_ref, w0_ref, b0_ref, w1a_ref, b1a_ref,
                    w1b_ref, b1b_ref, w1c_ref, b1c_ref,
                    w2a_ref, w2b_ref, b2_ref,
                    o_ref, padw_ref, padh_ref, *, scale):
    bt, h, w, c = x_ref.shape
    rows = bt * h * w
    c1a = w1a_ref.shape[1]          # 128
    c1b = w1c_ref.shape[1]          # 160
    c1c = w1c_ref.shape[2]          # 192

    # MXU operands in bf16; all accumulation in f32.
    xbf = x_ref[...].reshape(rows, c).astype(jnp.bfloat16)

    # ---- branch0: 1x1 conv (BN folded) + ReLU --------------------------------
    x0 = jnp.dot(xbf, w0_ref[...], preferred_element_type=jnp.float32)
    x0 = jnp.maximum(x0 + b0_ref[...], 0.0)                  # (rows, 192)

    # ---- branch1 stage a: 1x1 conv 1088->128 + ReLU --------------------------
    t1 = jnp.dot(xbf, w1a_ref[...], preferred_element_type=jnp.float32)
    t1 = jnp.maximum(t1 + b1a_ref[...], 0.0)                 # (rows, 128)

    # ---- branch1 stage b: 1x7 conv over W (pad 3) -----------------------------
    # Zero only the 3-column halos (the centre is overwritten every step),
    # then lane-concat the 7 shifted 128-ch windows into one K=896 matmul.
    padw_ref[:, :, 0:3, :] = jnp.zeros((bt, h, 3, c1a), jnp.float32)
    padw_ref[:, :, w + 3:w + 6, :] = jnp.zeros((bt, h, 3, c1a), jnp.float32)
    padw_ref[:, :, 3:3 + w, :] = t1.reshape(bt, h, w, c1a)
    lhs = jnp.concatenate(
        [padw_ref[:, :, t:t + w, :].reshape(rows, c1a) for t in range(7)],
        axis=-1).astype(jnp.bfloat16)                        # (rows, 896)
    acc = jnp.dot(lhs, w1b_ref[...], preferred_element_type=jnp.float32)
    t1 = jnp.maximum(acc + b1b_ref[...], 0.0)                # (rows, 160)

    # ---- branch1 stage c: 7x1 conv over H (pad 3) -----------------------------
    # H is an outer dim, so the 7 shifted windows are tile-aligned; halo-only
    # zeroing, accumulator initialized from the broadcast bias.
    padh_ref[:, 0:3, :, :] = jnp.zeros((bt, 3, w, c1b), jnp.float32)
    padh_ref[:, h + 3:h + 6, :, :] = jnp.zeros((bt, 3, w, c1b), jnp.float32)
    padh_ref[:, 3:3 + h, :, :] = t1.reshape(bt, h, w, c1b)
    acc = jnp.broadcast_to(b1c_ref[...], (rows, c1c))
    for t in range(7):
        win = padh_ref[:, t:t + h, :, :].reshape(rows, c1b).astype(jnp.bfloat16)
        acc = acc + jnp.dot(win, w1c_ref[t], preferred_element_type=jnp.float32)
    x1 = jnp.maximum(acc, 0.0)                               # (rows, 192)

    # ---- final 1x1 conv over cat(x0, x1): split weights, no concat ------------
    up = (jnp.dot(x0.astype(jnp.bfloat16), w2a_ref[...],
                  preferred_element_type=jnp.float32)
          + jnp.dot(x1.astype(jnp.bfloat16), w2b_ref[...],
                    preferred_element_type=jnp.float32)
          + b2_ref[...])                                     # (rows, 1088)

    # ---- residual scale-add + ReLU (x re-read in f32 only here) ---------------
    out = jnp.maximum(up * scale + x_ref[...].reshape(rows, c), 0.0)
    o_ref[...] = out.reshape(bt, h, w, c)


# ----------------------------------- wrapper -----------------------------------

def _pick_b_tile(batch, h, w, target_rows=1024):
    """Largest batch tile with rows/step <= target (VMEM budget), preferring
    >= 2 grid steps so v7x's second TensorCore gets work."""
    rows_per_b = h * w
    max_bt = max(1, target_rows // rows_per_b)
    bt = 1
    for d in range(1, batch + 1):
        if batch % d == 0 and d <= max_bt:
            bt = d
    if bt == batch and batch > 1:            # force at least two grid steps
        for d in range(batch // 2, 0, -1):
            if batch % d == 0:
                bt = d
                break
    return bt


def block17_forward(x_nchw, kparams, *, scale, b_tile=None):
    """x_nchw: (B, 1088, H, W) float32 (PyTorch layout). Returns NCHW.

    NOTE: when stacking many Block17s, keep activations in NHWC across blocks;
    the NCHW<->NHWC transposes here exist only for parity with PyTorch layout.
    """
    (w0, b0, w1a, b1a, w1b, b1b, w1c, b1c, w2a, w2b, b2) = kparams
    x = jnp.transpose(x_nchw, (0, 2, 3, 1))                  # NHWC, C on lanes
    B, H, W, C = x.shape
    if b_tile is None:
        b_tile = _pick_b_tile(B, H, W)
    assert B % b_tile == 0, "batch must be divisible by the batch tile"

    c1a = w1a.shape[1]                                       # 128
    c1b = w1c.shape[1]                                       # 160

    kernel = functools.partial(_block17_kernel, scale=scale)
    const2 = lambda b: (0, 0)
    const3 = lambda b: (0, 0, 0)

    rows_total = B * H * W
    flops = 2 * rows_total * (C * 192 + C * c1a + 7 * c1a * c1b
                              + 7 * c1b * 192 + 192 * C + 192 * C)
    weight_bytes = sum(int(p.size) * p.dtype.itemsize for p in kparams)
    bytes_accessed = 2 * int(x.size) * 4 + weight_bytes

    out = pl.pallas_call(
        kernel,
        grid=(B // b_tile,),
        in_specs=[
            pl.BlockSpec((b_tile, H, W, C), lambda b: (b, 0, 0, 0)),
            # Weight/bias blocks have constant index_maps, so the pipeline
            # DMAs them only once across the whole grid.
            pl.BlockSpec(w0.shape, const2),
            pl.BlockSpec(b0.shape, const2),
            pl.BlockSpec(w1a.shape, const2),
            pl.BlockSpec(b1a.shape, const2),
            pl.BlockSpec(w1b.shape, const2),
            pl.BlockSpec(b1b.shape, const2),
            pl.BlockSpec(w1c.shape, const3),
            pl.BlockSpec(b1c.shape, const2),
            pl.BlockSpec(w2a.shape, const2),
            pl.BlockSpec(w2b.shape, const2),
            pl.BlockSpec(b2.shape, const2),
        ],
        out_specs=pl.BlockSpec((b_tile, H, W, C), lambda b: (b, 0, 0, 0)),
        out_shape=jax.ShapeDtypeStruct((B, H, W, C), jnp.float32),
        scratch_shapes=[
            pltpu.VMEM((b_tile, H, W + 6, c1a), jnp.float32),  # W-halo buffer
            pltpu.VMEM((b_tile, H + 6, W, c1b), jnp.float32),  # H-halo buffer
        ],
        compiler_params=pltpu.CompilerParams(
            dimension_semantics=("parallel",),
            vmem_limit_bytes=48 * 1024 * 1024),              # safe on v7x 64MiB
        cost_estimate=pl.CostEstimate(flops=flops, transcendentals=0,
                                      bytes_accessed=bytes_accessed),
    )(x, w0, b0, w1a, b1a, w1b, b1b, w1c, b1c, w2a, w2b, b2)

    return jnp.transpose(out, (0, 3, 1, 2))                  # back to NCHW


# ----------------------------- parameter handling -----------------------------

def _fold_bn(w_oihw, gamma, beta, mean, var, eps=1e-3):
    s = gamma / jnp.sqrt(var + eps)
    return w_oihw * s[:, None, None, None], beta - mean * s


def prepare_kernel_params(raw):
    """Fold eval-mode BN into the convs; weights laid out (Cin, Cout) in bf16
    (MXU-native), biases kept f32."""
    (w0, g0, be0, m0, v0,
     w1a, g1a, be1a, m1a, v1a,
     w1b, g1b, be1b, m1b, v1b,
     w1c, g1c, be1c, m1c, v1c,
     w2, b2) = raw
    w0f, b0f = _fold_bn(w0, g0, be0, m0, v0)
    w1af, b1af = _fold_bn(w1a, g1a, be1a, m1a, v1a)
    w1bf, b1bf = _fold_bn(w1b, g1b, be1b, m1b, v1b)
    w1cf, b1cf = _fold_bn(w1c, g1c, be1c, m1c, v1c)
    n0 = w0.shape[0]                                         # 192 (branch0 chunk)
    bf = jnp.bfloat16
    c1b_out, c1a_in = w1b.shape[0], w1b.shape[1]             # 160, 128
    # (7, 128, 160) packed to (896, 160): row = tap*128 + cin, matching the
    # lane-concatenated LHS built in the kernel.
    w1b_packed = jnp.transpose(w1bf[:, :, 0, :], (2, 1, 0)).reshape(
        7 * c1a_in, c1b_out)
    return (
        jnp.transpose(w0f[:, :, 0, 0], (1, 0)).astype(bf),  b0f[None, :],
        jnp.transpose(w1af[:, :, 0, 0], (1, 0)).astype(bf), b1af[None, :],
        w1b_packed.astype(bf), b1bf[None, :],
        jnp.transpose(w1cf[:, :, :, 0], (2, 1, 0)).astype(bf), b1cf[None, :],
        jnp.transpose(w2[:, :n0, 0, 0], (1, 0)).astype(bf),  # (192,1088)
        jnp.transpose(w2[:, n0:, 0, 0], (1, 0)).astype(bf),  # (192,1088)
        b2[None, :],                                         # (1,1088)
    )


def init_raw_params(key, std=0.03):
    ks = jax.random.split(key, 10)

    def bn_params(k, c):
        k1, k2, k3, k4 = jax.random.split(k, 4)
        gamma = 1.0 + 0.2 * jax.random.normal(k1, (c,), jnp.float32)
        beta = 0.1 * jax.random.normal(k2, (c,), jnp.float32)
        mean = 0.1 * jax.random.normal(k3, (c,), jnp.float32)
        var = jax.random.uniform(k4, (c,), jnp.float32, minval=0.5, maxval=1.5)
        return gamma, beta, mean, var

    w0 = std * jax.random.normal(ks[0], (192, 1088, 1, 1), jnp.float32)
    w1a = std * jax.random.normal(ks[1], (128, 1088, 1, 1), jnp.float32)
    w1b = std * jax.random.normal(ks[2], (160, 128, 1, 7), jnp.float32)
    w1c = std * jax.random.normal(ks[3], (192, 160, 7, 1), jnp.float32)
    w2 = std * jax.random.normal(ks[4], (1088, 384, 1, 1), jnp.float32)
    b2 = 0.1 * jax.random.normal(ks[5], (1088,), jnp.float32)
    return (w0, *bn_params(ks[6], 192),
            w1a, *bn_params(ks[7], 128),
            w1b, *bn_params(ks[8], 160),
            w1c, *bn_params(ks[9], 192),
            w2, b2)


# ------------------------------ pure-JAX reference -----------------------------

def reference_forward(x_nchw, raw, *, scale, eps=1e-3):
    (w0, g0, be0, m0, v0,
     w1a, g1a, be1a, m1a, v1a,
     w1b, g1b, be1b, m1b, v1b,
     w1c, g1c, be1c, m1c, v1c,
     w2, b2) = raw
    x = jnp.transpose(x_nchw, (0, 2, 3, 1))

    def conv(inp, w_oihw, pad):
        w_hwio = jnp.transpose(w_oihw, (2, 3, 1, 0))
        return jax.lax.conv_general_dilated(
            inp, w_hwio, window_strides=(1, 1), padding=pad,
            dimension_numbers=("NHWC", "HWIO", "NHWC"),
            precision=jax.lax.Precision.HIGHEST)

    def bn_relu(y, g, be, m, v):
        return jnp.maximum((y - m) / jnp.sqrt(v + eps) * g + be, 0.0)

    x0 = bn_relu(conv(x, w0, [(0, 0), (0, 0)]), g0, be0, m0, v0)
    t = bn_relu(conv(x, w1a, [(0, 0), (0, 0)]), g1a, be1a, m1a, v1a)
    t = bn_relu(conv(t, w1b, [(0, 0), (3, 3)]), g1b, be1b, m1b, v1b)
    x1 = bn_relu(conv(t, w1c, [(3, 3), (0, 0)]), g1c, be1c, m1c, v1c)
    cat = jnp.concatenate([x0, x1], axis=-1)
    up = conv(cat, w2, [(0, 0), (0, 0)]) + b2
    out = jnp.maximum(up * scale + x, 0.0)
    return jnp.transpose(out, (0, 3, 1, 2))


if __name__ == "__main__":
    B, C, H, W = 2, 1088, 8, 8      # channels fixed by Block17; small spatial
    SCALE = 0.17                    # scale argument of Block17

    key = jax.random.PRNGKey(0)
    kx, kp = jax.random.split(key)
    x = jax.random.normal(kx, (B, C, H, W), jnp.float32)

    raw = init_raw_params(kp)
    kparams = prepare_kernel_params(raw)

    out = block17_forward(x, kparams, scale=SCALE)
    jax.block_until_ready(out)

    ref = reference_forward(x, raw, scale=SCALE)
    assert out.shape == (B, C, H, W)
    max_err = float(jnp.max(jnp.abs(out - ref)))
    assert bool(jnp.allclose(out, ref, atol=3e-2, rtol=3e-2)), max_err

    print("KERNEL_OK")
</pallas_src>

<mosaic_0001>
module attributes {stable_mosaic.version = 11 : i64} {
  func.func @_block17_kernel(%arg0: i32, %arg1: memref<1x8x8x1088xf32, #tpu.memory_space<vmem>>, %arg2: memref<1088x192xbf16, #tpu.memory_space<vmem>>, %arg3: memref<1x192xf32, #tpu.memory_space<vmem>>, %arg4: memref<1088x128xbf16, #tpu.memory_space<vmem>>, %arg5: memref<1x128xf32, #tpu.memory_space<vmem>>, %arg6: memref<896x160xbf16, #tpu.memory_space<vmem>>, %arg7: memref<1x160xf32, #tpu.memory_space<vmem>>, %arg8: memref<7x160x192xbf16, #tpu.memory_space<vmem>>, %arg9: memref<1x192xf32, #tpu.memory_space<vmem>>, %arg10: memref<192x1088xbf16, #tpu.memory_space<vmem>>, %arg11: memref<192x1088xbf16, #tpu.memory_space<vmem>>, %arg12: memref<1x1088xf32, #tpu.memory_space<vmem>>, %arg13: memref<1x8x8x1088xf32, #tpu.memory_space<vmem>>, %arg14: memref<1x8x14x128xf32, #tpu.memory_space<vmem>>, %arg15: memref<1x14x8x160xf32, #tpu.memory_space<vmem>>) attributes {dimension_semantics = [#tpu.dimension_semantics<parallel>], iteration_bounds = array<i64: 2>, scalar_prefetch = 0 : i64, scratch_operands = 2 : i64, tpu.core_type = #tpu.core_type<tc>, window_params = [{transform_indices = @transform_0, window_bounds = array<i64: 1, 8, 8, 1088>}, {pipeline_mode = #tpu.pipeline_mode<synchronous>, transform_indices = @transform_1, window_bounds = array<i64: 1088, 192>}, {pipeline_mode = #tpu.pipeline_mode<synchronous>, transform_indices = @transform_2, window_bounds = array<i64: 1, 192>}, {pipeline_mode = #tpu.pipeline_mode<synchronous>, transform_indices = @transform_3, window_bounds = array<i64: 1088, 128>}, {pipeline_mode = #tpu.pipeline_mode<synchronous>, transform_indices = @transform_4, window_bounds = array<i64: 1, 128>}, {pipeline_mode = #tpu.pipeline_mode<synchronous>, transform_indices = @transform_5, window_bounds = array<i64: 896, 160>}, {pipeline_mode = #tpu.pipeline_mode<synchronous>, transform_indices = @transform_6, window_bounds = array<i64: 1, 160>}, {pipeline_mode = #tpu.pipeline_mode<synchronous>, transform_indices = @transform_7, window_bounds = array<i64: 7, 160, 192>}, {pipeline_mode = #tpu.pipeline_mode<synchronous>, transform_indices = @transform_8, window_bounds = array<i64: 1, 192>}, {pipeline_mode = #tpu.pipeline_mode<synchronous>, transform_indices = @transform_9, window_bounds = array<i64: 192, 1088>}, {pipeline_mode = #tpu.pipeline_mode<synchronous>, transform_indices = @transform_10, window_bounds = array<i64: 192, 1088>}, {pipeline_mode = #tpu.pipeline_mode<synchronous>, transform_indices = @transform_11, window_bounds = array<i64: 1, 1088>}, {transform_indices = @transform_12, window_bounds = array<i64: 1, 8, 8, 1088>}]} {
    %c0 = arith.constant 0 : index
    %c0_0 = arith.constant 0 : index
    %c0_1 = arith.constant 0 : index
    %c0_2 = arith.constant 0 : index
    %0 = vector.load %arg1[%c0, %c0_0, %c0_1, %c0_2] : memref<1x8x8x1088xf32, #tpu.memory_space<vmem>>, vector<1x8x8x1088xf32>
    %1 = vector.shape_cast %0 : vector<1x8x8x1088xf32> to vector<64x1088xf32>
    %2 = arith.truncf %1 : vector<64x1088xf32> to vector<64x1088xbf16>
    %c0_3 = arith.constant 0 : index
    %c0_4 = arith.constant 0 : index
    %3 = vector.load %arg2[%c0_3, %c0_4] : memref<1088x192xbf16, #tpu.memory_space<vmem>>, vector<1088x192xbf16>
    %cst = arith.constant dense<0.000000e+00> : vector<64x192xf32>
    %4 = tpu.matmul %2, %3, %cst {dimension_numbers = #tpu.dot_dimension_numbers<[1], [0], [0], [1], [0, 0, 1, 1], [], []>} : vector<64x1088xbf16>, vector<1088x192xbf16>, vector<64x192xf32> -> vector<64x192xf32>
    %c0_5 = arith.constant 0 : index
    %c0_6 = arith.constant 0 : index
    %5 = vector.load %arg3[%c0_5, %c0_6] : memref<1x192xf32, #tpu.memory_space<vmem>>, vector<1x192xf32>
    %6 = vector.broadcast %5 : vector<1x192xf32> to vector<64x192xf32>
    %7 = arith.addf %4, %6 : vector<64x192xf32>
    %cst_7 = arith.constant 0.000000e+00 : f32
    %8 = vector.broadcast %cst_7 : f32 to vector<64x192xf32>
    %9 = arith.maximumf %7, %8 : vector<64x192xf32>
    %c0_8 = arith.constant 0 : index
    %c0_9 = arith.constant 0 : index
    %10 = vector.load %arg4[%c0_8, %c0_9] : memref<1088x128xbf16, #tpu.memory_space<vmem>>, vector<1088x128xbf16>
    %cst_10 = arith.constant dense<0.000000e+00> : vector<64x128xf32>
    %11 = tpu.matmul %2, %10, %cst_10 {dimension_numbers = #tpu.dot_dimension_numbers<[1], [0], [0], [1], [0, 0, 1, 1], [], []>} : vector<64x1088xbf16>, vector<1088x128xbf16>, vector<64x128xf32> -> vector<64x128xf32>
    %c0_11 = arith.constant 0 : index
    %c0_12 = arith.constant 0 : index
    %12 = vector.load %arg5[%c0_11, %c0_12] : memref<1x128xf32, #tpu.memory_space<vmem>>, vector<1x128xf32>
    %13 = vector.broadcast %12 : vector<1x128xf32> to vector<64x128xf32>
    %14 = arith.addf %11, %13 : vector<64x128xf32>
    %cst_13 = arith.constant 0.000000e+00 : f32
    %15 = vector.broadcast %cst_13 : f32 to vector<64x128xf32>
    %16 = arith.maximumf %14, %15 : vector<64x128xf32>
    %cst_14 = arith.constant 0.000000e+00 : f32
    %17 = vector.broadcast %cst_14 : f32 to vector<1x8x3x128xf32>
    %c0_15 = arith.constant 0 : index
    %c0_16 = arith.constant 0 : index
    %c0_17 = arith.constant 0 : index
    %c0_18 = arith.constant 0 : index
    %18 = vector.load %arg14[%c0_15, %c0_16, %c0_17, %c0_18] : memref<1x8x14x128xf32, #tpu.memory_space<vmem>>, vector<1x8x3x128xf32>
    tpu.vector_store %arg14[%c0_15, %c0_16, %c0_17, %c0_18], %17 {strides = array<i32>} : memref<1x8x14x128xf32, #tpu.memory_space<vmem>>, vector<1x8x3x128xf32>,
    %cst_19 = arith.constant 0.000000e+00 : f32
    %19 = vector.broadcast %cst_19 : f32 to vector<1x8x3x128xf32>
    %c0_20 = arith.constant 0 : index
    %c0_21 = arith.constant 0 : index
    %c11 = arith.constant 11 : index
    %c0_22 = arith.constant 0 : index
    %20 = vector.load %arg14[%c0_20, %c0_21, %c11, %c0_22] : memref<1x8x14x128xf32, #tpu.memory_space<vmem>>, vector<1x8x3x128xf32>
    tpu.vector_store %arg14[%c0_20, %c0_21, %c11, %c0_22], %19 {strides = array<i32>} : memref<1x8x14x128xf32, #tpu.memory_space<vmem>>, vector<1x8x3x128xf32>,
    %21 = vector.shape_cast %16 : vector<64x128xf32> to vector<1x8x8x128xf32>
    %c0_23 = arith.constant 0 : index
    %c0_24 = arith.constant 0 : index
    %c3 = arith.constant 3 : index
    %c0_25 = arith.constant 0 : index
    %22 = vector.load %arg14[%c0_23, %c0_24, %c3, %c0_25] : memref<1x8x14x128xf32, #tpu.memory_space<vmem>>, vector<1x8x8x128xf32>
    tpu.vector_store %arg14[%c0_23, %c0_24, %c3, %c0_25], %21 {strides = array<i32>} : memref<1x8x14x128xf32, #tpu.memory_space<vmem>>, vector<1x8x8x128xf32>,
    %c0_26 = arith.constant 0 : index
    %c0_27 = arith.constant 0 : index
    %c0_28 = arith.constant 0 : index
    %c0_29 = arith.constant 0 : index
    %23 = vector.load %arg14[%c0_26, %c0_27, %c0_28, %c0_29] : memref<1x8x14x128xf32, #tpu.memory_space<vmem>>, vector<1x8x8x128xf32>
    %24 = vector.shape_cast %23 : vector<1x8x8x128xf32> to vector<64x128xf32>
    %c0_30 = arith.constant 0 : index
    %c0_31 = arith.constant 0 : index
    %c1 = arith.constant 1 : index
    %c0_32 = arith.constant 0 : index
    %25 = vector.load %arg14[%c0_30, %c0_31, %c1, %c0_32] : memref<1x8x14x128xf32, #tpu.memory_space<vmem>>, vector<1x8x8x128xf32>
    %26 = vector.shape_cast %25 : vector<1x8x8x128xf32> to vector<64x128xf32>
    %c0_33 = arith.constant 0 : index
    %c0_34 = arith.constant 0 : index
    %c2 = arith.constant 2 : index
    %c0_35 = arith.constant 0 : index
    %27 = vector.load %arg14[%c0_33, %c0_34, %c2, %c0_35] : memref<1x8x14x128xf32, #tpu.memory_space<vmem>>, vector<1x8x8x128xf32>
    %28 = vector.shape_cast %27 : vector<1x8x8x128xf32> to vector<64x128xf32>
    %c0_36 = arith.constant 0 : index
    %c0_37 = arith.constant 0 : index
    %c3_38 = arith.constant 3 : index
    %c0_39 = arith.constant 0 : index
    %29 = vector.load %arg14[%c0_36, %c0_37, %c3_38, %c0_39] : memref<1x8x14x128xf32, #tpu.memory_space<vmem>>, vector<1x8x8x128xf32>
    %30 = vector.shape_cast %29 : vector<1x8x8x128xf32> to vector<64x128xf32>
    %c0_40 = arith.constant 0 : index
    %c0_41 = arith.constant 0 : index
    %c4 = arith.constant 4 : index
    %c0_42 = arith.constant 0 : index
    %31 = vector.load %arg14[%c0_40, %c0_41, %c4, %c0_42] : memref<1x8x14x128xf32, #tpu.memory_space<vmem>>, vector<1x8x8x128xf32>
    %32 = vector.shape_cast %31 : vector<1x8x8x128xf32> to vector<64x128xf32>
    %c0_43 = arith.constant 0 : index
    %c0_44 = arith.constant 0 : index
    %c5 = arith.constant 5 : index
    %c0_45 = arith.constant 0 : index
    %33 = vector.load %arg14[%c0_43, %c0_44, %c5, %c0_45] : memref<1x8x14x128xf32, #tpu.memory_space<vmem>>, vector<1x8x8x128xf32>
    %34 = vector.shape_cast %33 : vector<1x8x8x128xf32> to vector<64x128xf32>
    %c0_46 = arith.constant 0 : index
    %c0_47 = arith.constant 0 : index
    %c6 = arith.constant 6 : index
    %c0_48 = arith.constant 0 : index
    %35 = vector.load %arg14[%c0_46, %c0_47, %c6, %c0_48] : memref<1x8x14x128xf32, #tpu.memory_space<vmem>>, vector<1x8x8x128xf32>
    %36 = vector.shape_cast %35 : vector<1x8x8x128xf32> to vector<64x128xf32>
    %37 = tpu.concatenate %24, %26, %28, %30, %32, %34, %36 in 1 : vector<64x128xf32>, vector<64x128xf32>, vector<64x128xf32>, vector<64x128xf32>, vector<64x128xf32>, vector<64x128xf32>, vector<64x128xf32> -> vector<64x896xf32>
    %38 = arith.truncf %37 : vector<64x896xf32> to vector<64x896xbf16>
    %c0_49 = arith.constant 0 : index
    %c0_50 = arith.constant 0 : index
    %39 = vector.load %arg6[%c0_49, %c0_50] : memref<896x160xbf16, #tpu.memory_space<vmem>>, vector<896x160xbf16>
    %cst_51 = arith.constant dense<0.000000e+00> : vector<64x160xf32>
    %40 = tpu.matmul %38, %39, %cst_51 {dimension_numbers = #tpu.dot_dimension_numbers<[1], [0], [0], [1], [0, 0, 1, 1], [], []>} : vector<64x896xbf16>, vector<896x160xbf16>, vector<64x160xf32> -> vector<64x160xf32>
    %c0_52 = arith.constant 0 : index
    %c0_53 = arith.constant 0 : index
    %41 = vector.load %arg7[%c0_52, %c0_53] : memref<1x160xf32, #tpu.memory_space<vmem>>, vector<1x160xf32>
    %42 = vector.broadcast %41 : vector<1x160xf32> to vector<64x160xf32>
    %43 = arith.addf %40, %42 : vector<64x160xf32>
    %cst_54 = arith.constant 0.000000e+00 : f32
    %44 = vector.broadcast %cst_54 : f32 to vector<64x160xf32>
    %45 = arith.maximumf %43, %44 : vector<64x160xf32>
    %cst_55 = arith.constant 0.000000e+00 : f32
    %46 = vector.broadcast %cst_55 : f32 to vector<1x3x8x160xf32>
    %c0_56 = arith.constant 0 : index
    %c0_57 = arith.constant 0 : index
    %c0_58 = arith.constant 0 : index
    %c0_59 = arith.constant 0 : index
    %47 = vector.load %arg15[%c0_56, %c0_57, %c0_58, %c0_59] : memref<1x14x8x160xf32, #tpu.memory_space<vmem>>, vector<1x3x8x160xf32>
    tpu.vector_store %arg15[%c0_56, %c0_57, %c0_58, %c0_59], %46 {strides = array<i32>} : memref<1x14x8x160xf32, #tpu.memory_space<vmem>>, vector<1x3x8x160xf32>,
    %cst_60 = arith.constant 0.000000e+00 : f32
    %48 = vector.broadcast %cst_60 : f32 to vector<1x3x8x160xf32>
    %c0_61 = arith.constant 0 : index
    %c11_62 = arith.constant 11 : index
    %c0_63 = arith.constant 0 : index
    %c0_64 = arith.constant 0 : index
    %49 = vector.load %arg15[%c0_61, %c11_62, %c0_63, %c0_64] : memref<1x14x8x160xf32, #tpu.memory_space<vmem>>, vector<1x3x8x160xf32>
    tpu.vector_store %arg15[%c0_61, %c11_62, %c0_63, %c0_64], %48 {strides = array<i32>} : memref<1x14x8x160xf32, #tpu.memory_space<vmem>>, vector<1x3x8x160xf32>,
    %50 = vector.shape_cast %45 : vector<64x160xf32> to vector<1x8x8x160xf32>
    %c0_65 = arith.constant 0 : index
    %c3_66 = arith.constant 3 : index
    %c0_67 = arith.constant 0 : index
    %c0_68 = arith.constant 0 : index
    %51 = vector.load %arg15[%c0_65, %c3_66, %c0_67, %c0_68] : memref<1x14x8x160xf32, #tpu.memory_space<vmem>>, vector<1x8x8x160xf32>
    tpu.vector_store %arg15[%c0_65, %c3_66, %c0_67, %c0_68], %50 {strides = array<i32>} : memref<1x14x8x160xf32, #tpu.memory_space<vmem>>, vector<1x8x8x160xf32>,
    %c0_69 = arith.constant 0 : index
    %c0_70 = arith.constant 0 : index
    %52 = vector.load %arg9[%c0_69, %c0_70] : memref<1x192xf32, #tpu.memory_space<vmem>>, vector<1x192xf32>
    %53 = vector.shape_cast %52 : vector<1x192xf32> to vector<1x192xf32>
    %54 = vector.broadcast %53 : vector<1x192xf32> to vector<64x192xf32>
    %c0_71 = arith.constant 0 : index
    %c0_72 = arith.constant 0 : index
    %c0_73 = arith.constant 0 : index
    %c0_74 = arith.constant 0 : index
    %55 = vector.load %arg15[%c0_71, %c0_72, %c0_73, %c0_74] : memref<1x14x8x160xf32, #tpu.memory_space<vmem>>, vector<1x8x8x160xf32>
    %56 = vector.shape_cast %55 : vector<1x8x8x160xf32> to vector<64x160xf32>
    %57 = arith.truncf %56 : vector<64x160xf32> to vector<64x160xbf16>
    %c0_75 = arith.constant 0 : index
    %c0_76 = arith.constant 0 : index
    %c0_77 = arith.constant 0 : index
    %58 = vector.load %arg8[%c0_75, %c0_76, %c0_77] : memref<7x160x192xbf16, #tpu.memory_space<vmem>>, vector<1x160x192xbf16>
    %59 = vector.shape_cast %58 : vector<1x160x192xbf16> to vector<160x192xbf16>
    %cst_78 = arith.constant dense<0.000000e+00> : vector<64x192xf32>
    %60 = tpu.matmul %57, %59, %cst_78 {dimension_numbers = #tpu.dot_dimension_numbers<[1], [0], [0], [1], [0, 0, 1, 1], [], []>} : vector<64x160xbf16>, vector<160x192xbf16>, vector<64x192xf32> -> vector<64x192xf32>
    %61 = arith.addf %54, %60 : vector<64x192xf32>
    %c0_79 = arith.constant 0 : index
    %c1_80 = arith.constant 1 : index
    %c0_81 = arith.constant 0 : index
    %c0_82 = arith.constant 0 : index
    %62 = vector.load %arg15[%c0_79, %c1_80, %c0_81, %c0_82] : memref<1x14x8x160xf32, #tpu.memory_space<vmem>>, vector<1x8x8x160xf32>
    %63 = vector.shape_cast %62 : vector<1x8x8x160xf32> to vector<64x160xf32>
    %64 = arith.truncf %63 : vector<64x160xf32> to vector<64x160xbf16>
    %c1_83 = arith.constant 1 : index
    %c0_84 = arith.constant 0 : index
    %c0_85 = arith.constant 0 : index
    %65 = vector.load %arg8[%c1_83, %c0_84, %c0_85] : memref<7x160x192xbf16, #tpu.memory_space<vmem>>, vector<1x160x192xbf16>
    %66 = vector.shape_cast %65 : vector<1x160x192xbf16> to vector<160x192xbf16>
    %cst_86 = arith.constant dense<0.000000e+00> : vector<64x192xf32>
    %67 = tpu.matmul %64, %66, %cst_86 {dimension_numbers = #tpu.dot_dimension_numbers<[1], [0], [0], [1], [0, 0, 1, 1], [], []>} : vector<64x160xbf16>, vector<160x192xbf16>, vector<64x192xf32> -> vector<64x192xf32>
    %68 = arith.addf %61, %67 : vector<64x192xf32>
    %c0_87 = arith.constant 0 : index
    %c2_88 = arith.constant 2 : index
    %c0_89 = arith.constant 0 : index
    %c0_90 = arith.constant 0 : index
    %69 = vector.load %arg15[%c0_87, %c2_88, %c0_89, %c0_90] : memref<1x14x8x160xf32, #tpu.memory_space<vmem>>, vector<1x8x8x160xf32>
    %70 = vector.shape_cast %69 : vector<1x8x8x160xf32> to vector<64x160xf32>
    %71 = arith.truncf %70 : vector<64x160xf32> to vector<64x160xbf16>
    %c2_91 = arith.constant 2 : index
    %c0_92 = arith.constant 0 : index
    %c0_93 = arith.constant 0 : index
    %72 = vector.load %arg8[%c2_91, %c0_92, %c0_93] : memref<7x160x192xbf16, #tpu.memory_space<vmem>>, vector<1x160x192xbf16>
    %73 = vector.shape_cast %72 : vector<1x160x192xbf16> to vector<160x192xbf16>
    %cst_94 = arith.constant dense<0.000000e+00> : vector<64x192xf32>
    %74 = tpu.matmul %71, %73, %cst_94 {dimension_numbers = #tpu.dot_dimension_numbers<[1], [0], [0], [1], [0, 0, 1, 1], [], []>} : vector<64x160xbf16>, vector<160x192xbf16>, vector<64x192xf32> -> vector<64x192xf32>
    %75 = arith.addf %68, %74 : vector<64x192xf32>
    %c0_95 = arith.constant 0 : index
    %c3_96 = arith.constant 3 : index
    %c0_97 = arith.constant 0 : index
    %c0_98 = arith.constant 0 : index
    %76 = vector.load %arg15[%c0_95, %c3_96, %c0_97, %c0_98] : memref<1x14x8x160xf32, #tpu.memory_space<vmem>>, vector<1x8x8x160xf32>
    %77 = vector.shape_cast %76 : vector<1x8x8x160xf32> to vector<64x160xf32>
    %78 = arith.truncf %77 : vector<64x160xf32> to vector<64x160xbf16>
    %c3_99 = arith.constant 3 : index
    %c0_100 = arith.constant 0 : index
    %c0_101 = arith.constant 0 : index
    %79 = vector.load %arg8[%c3_99, %c0_100, %c0_101] : memref<7x160x192xbf16, #tpu.memory_space<vmem>>, vector<1x160x192xbf16>
    %80 = vector.shape_cast %79 : vector<1x160x192xbf16> to vector<160x192xbf16>
    %cst_102 = arith.constant dense<0.000000e+00> : vector<64x192xf32>
    %81 = tpu.matmul %78, %80, %cst_102 {dimension_numbers = #tpu.dot_dimension_numbers<[1], [0], [0], [1], [0, 0, 1, 1], [], []>} : vector<64x160xbf16>, vector<160x192xbf16>, vector<64x192xf32> -> vector<64x192xf32>
    %82 = arith.addf %75, %81 : vector<64x192xf32>
    %c0_103 = arith.constant 0 : index
    %c4_104 = arith.constant 4 : index
    %c0_105 = arith.constant 0 : index
    %c0_106 = arith.constant 0 : index
    %83 = vector.load %arg15[%c0_103, %c4_104, %c0_105, %c0_106] : memref<1x14x8x160xf32, #tpu.memory_space<vmem>>, vector<1x8x8x160xf32>
    %84 = vector.shape_cast %83 : vector<1x8x8x160xf32> to vector<64x160xf32>
    %85 = arith.truncf %84 : vector<64x160xf32> to vector<64x160xbf16>
    %c4_107 = arith.constant 4 : index
    %c0_108 = arith.constant 0 : index
    %c0_109 = arith.constant 0 : index
    %86 = vector.load %arg8[%c4_107, %c0_108, %c0_109] : memref<7x160x192xbf16, #tpu.memory_space<vmem>>, vector<1x160x192xbf16>
    %87 = vector.shape_cast %86 : vector<1x160x192xbf16> to vector<160x192xbf16>
    %cst_110 = arith.constant dense<0.000000e+00> : vector<64x192xf32>
    %88 = tpu.matmul %85, %87, %cst_110 {dimension_numbers = #tpu.dot_dimension_numbers<[1], [0], [0], [1], [0, 0, 1, 1], [], []>} : vector<64x160xbf16>, vector<160x192xbf16>, vector<64x192xf32> -> vector<64x192xf32>
    %89 = arith.addf %82, %88 : vector<64x192xf32>
    %c0_111 = arith.constant 0 : index
    %c5_112 = arith.constant 5 : index
    %c0_113 = arith.constant 0 : index
    %c0_114 = arith.constant 0 : index
    %90 = vector.load %arg15[%c0_111, %c5_112, %c0_113, %c0_114] : memref<1x14x8x160xf32, #tpu.memory_space<vmem>>, vector<1x8x8x160xf32>
    %91 = vector.shape_cast %90 : vector<1x8x8x160xf32> to vector<64x160xf32>
    %92 = arith.truncf %91 : vector<64x160xf32> to vector<64x160xbf16>
    %c5_115 = arith.constant 5 : index
    %c0_116 = arith.constant 0 : index
    %c0_117 = arith.constant 0 : index
    %93 = vector.load %arg8[%c5_115, %c0_116, %c0_117] : memref<7x160x192xbf16, #tpu.memory_space<vmem>>, vector<1x160x192xbf16>
    %94 = vector.shape_cast %93 : vector<1x160x192xbf16> to vector<160x192xbf16>
    %cst_118 = arith.constant dense<0.000000e+00> : vector<64x192xf32>
    %95 = tpu.matmul %92, %94, %cst_118 {dimension_numbers = #tpu.dot_dimension_numbers<[1], [0], [0], [1], [0, 0, 1, 1], [], []>} : vector<64x160xbf16>, vector<160x192xbf16>, vector<64x192xf32> -> vector<64x192xf32>
    %96 = arith.addf %89, %95 : vector<64x192xf32>
    %c0_119 = arith.constant 0 : index
    %c6_120 = arith.constant 6 : index
    %c0_121 = arith.constant 0 : index
    %c0_122 = arith.constant 0 : index
    %97 = vector.load %arg15[%c0_119, %c6_120, %c0_121, %c0_122] : memref<1x14x8x160xf32, #tpu.memory_space<vmem>>, vector<1x8x8x160xf32>
    %98 = vector.shape_cast %97 : vector<1x8x8x160xf32> to vector<64x160xf32>
    %99 = arith.truncf %98 : vector<64x160xf32> to vector<64x160xbf16>
    %c6_123 = arith.constant 6 : index
    %c0_124 = arith.constant 0 : index
    %c0_125 = arith.constant 0 : index
    %100 = vector.load %arg8[%c6_123, %c0_124, %c0_125] : memref<7x160x192xbf16, #tpu.memory_space<vmem>>, vector<1x160x192xbf16>
    %101 = vector.shape_cast %100 : vector<1x160x192xbf16> to vector<160x192xbf16>
    %cst_126 = arith.constant dense<0.000000e+00> : vector<64x192xf32>
    %102 = tpu.matmul %99, %101, %cst_126 {dimension_numbers = #tpu.dot_dimension_numbers<[1], [0], [0], [1], [0, 0, 1, 1], [], []>} : vector<64x160xbf16>, vector<160x192xbf16>, vector<64x192xf32> -> vector<64x192xf32>
    %103 = arith.addf %96, %102 : vector<64x192xf32>
    %cst_127 = arith.constant 0.000000e+00 : f32
    %104 = vector.broadcast %cst_127 : f32 to vector<64x192xf32>
    %105 = arith.maximumf %103, %104 : vector<64x192xf32>
    %106 = arith.truncf %9 : vector<64x192xf32> to vector<64x192xbf16>
    %c0_128 = arith.constant 0 : index
    %c0_129 = arith.constant 0 : index
    %107 = vector.load %arg10[%c0_128, %c0_129] : memref<192x1088xbf16, #tpu.memory_space<vmem>>, vector<192x1088xbf16>
    %cst_130 = arith.constant dense<0.000000e+00> : vector<64x1088xf32>
    %108 = tpu.matmul %106, %107, %cst_130 {dimension_numbers = #tpu.dot_dimension_numbers<[1], [0], [0], [1], [0, 0, 1, 1], [], []>} : vector<64x192xbf16>, vector<192x1088xbf16>, vector<64x1088xf32> -> vector<64x1088xf32>
    %109 = arith.truncf %105 : vector<64x192xf32> to vector<64x192xbf16>
    %c0_131 = arith.constant 0 : index
    %c0_132 = arith.constant 0 : index
    %110 = vector.load %arg11[%c0_131, %c0_132] : memref<192x1088xbf16, #tpu.memory_space<vmem>>, vector<192x1088xbf16>
    %cst_133 = arith.constant dense<0.000000e+00> : vector<64x1088xf32>
    %111 = tpu.matmul %109, %110, %cst_133 {dimension_numbers = #tpu.dot_dimension_numbers<[1], [0], [0], [1], [0, 0, 1, 1], [], []>} : vector<64x192xbf16>, vector<192x1088xbf16>, vector<64x1088xf32> -> vector<64x1088xf32>
    %112 = arith.addf %108, %111 : vector<64x1088xf32>
    %c0_134 = arith.constant 0 : index
    %c0_135 = arith.constant 0 : index
    %113 = vector.load %arg12[%c0_134, %c0_135] : memref<1x1088xf32, #tpu.memory_space<vmem>>, vector<1x1088xf32>
    %114 = vector.broadcast %113 : vector<1x1088xf32> to vector<64x1088xf32>
    %115 = arith.addf %112, %114 : vector<64x1088xf32>
    %cst_136 = arith.constant 1.700000e-01 : f32
    %116 = vector.broadcast %cst_136 : f32 to vector<64x1088xf32>
    %117 = arith.mulf %115, %116 : vector<64x1088xf32>
    %c0_137 = arith.constant 0 : index
    %c0_138 = arith.constant 0 : index
    %c0_139 = arith.constant 0 : index
    %c0_140 = arith.constant 0 : index
    %118 = vector.load %arg1[%c0_137, %c0_138, %c0_139, %c0_140] : memref<1x8x8x1088xf32, #tpu.memory_space<vmem>>, vector<1x8x8x1088xf32>
    %119 = vector.shape_cast %118 : vector<1x8x8x1088xf32> to vector<64x1088xf32>
    %120 = arith.addf %117, %119 : vector<64x1088xf32>
    %cst_141 = arith.constant 0.000000e+00 : f32
    %121 = vector.broadcast %cst_141 : f32 to vector<64x1088xf32>
    %122 = arith.maximumf %120, %121 : vector<64x1088xf32>
    %123 = vector.shape_cast %122 : vector<64x1088xf32> to vector<1x8x8x1088xf32>
    %c0_142 = arith.constant 0 : index
    %c0_143 = arith.constant 0 : index
    %c0_144 = arith.constant 0 : index
    %c0_145 = arith.constant 0 : index
    %124 = vector.load %arg13[%c0_142, %c0_143, %c0_144, %c0_145] : memref<1x8x8x1088xf32, #tpu.memory_space<vmem>>, vector<1x8x8x1088xf32>
    tpu.vector_store %arg13[%c0_142, %c0_143, %c0_144, %c0_145], %123 {strides = array<i32>} : memref<1x8x8x1088xf32, #tpu.memory_space<vmem>>, vector<1x8x8x1088xf32>,
    return
  }
  func.func @transform_0(%arg0: i32) -> (i32, i32, i32, i32) {
    %c0_i32 = arith.constant 0 : i32
    %c0_i32_0 = arith.constant 0 : i32
    %c0_i32_1 = arith.constant 0 : i32
    %c0_i32_2 = arith.constant 0 : i32
    return %arg0, %c0_i32, %c0_i32_0, %c0_i32_1 : i32, i32, i32, i32
  }
  func.func @transform_1(%arg0: i32) -> (i32, i32) {
    %c0_i32 = arith.constant 0 : i32
    %c0_i32_0 = arith.constant 0 : i32
    %c0_i32_1 = arith.constant 0 : i32
    return %c0_i32, %c0_i32_0 : i32, i32
  }
  func.func @transform_2(%arg0: i32) -> (i32, i32) {
    %c0_i32 = arith.constant 0 : i32
    %c0_i32_0 = arith.constant 0 : i32
    %c0_i32_1 = arith.constant 0 : i32
    return %c0_i32, %c0_i32_0 : i32, i32
  }
  func.func @transform_3(%arg0: i32) -> (i32, i32) {
    %c0_i32 = arith.constant 0 : i32
    %c0_i32_0 = arith.constant 0 : i32
    %c0_i32_1 = arith.constant 0 : i32
    return %c0_i32, %c0_i32_0 : i32, i32
  }
  func.func @transform_4(%arg0: i32) -> (i32, i32) {
    %c0_i32 = arith.constant 0 : i32
    %c0_i32_0 = arith.constant 0 : i32
    %c0_i32_1 = arith.constant 0 : i32
    return %c0_i32, %c0_i32_0 : i32, i32
  }
  func.func @transform_5(%arg0: i32) -> (i32, i32) {
    %c0_i32 = arith.constant 0 : i32
    %c0_i32_0 = arith.constant 0 : i32
    %c0_i32_1 = arith.constant 0 : i32
    return %c0_i32, %c0_i32_0 : i32, i32
  }
  func.func @transform_6(%arg0: i32) -> (i32, i32) {
    %c0_i32 = arith.constant 0 : i32
    %c0_i32_0 = arith.constant 0 : i32
    %c0_i32_1 = arith.constant 0 : i32
    return %c0_i32, %c0_i32_0 : i32, i32
  }
  func.func @transform_7(%arg0: i32) -> (i32, i32, i32) {
    %c0_i32 = arith.constant 0 : i32
    %c0_i32_0 = arith.constant 0 : i32
    %c0_i32_1 = arith.constant 0 : i32
    %c0_i32_2 = arith.constant 0 : i32
    return %c0_i32, %c0_i32_0, %c0_i32_1 : i32, i32, i32
  }
  func.func @transform_8(%arg0: i32) -> (i32, i32) {
    %c0_i32 = arith.constant 0 : i32
    %c0_i32_0 = arith.constant 0 : i32
    %c0_i32_1 = arith.constant 0 : i32
    return %c0_i32, %c0_i32_0 : i32, i32
  }
  func.func @transform_9(%arg0: i32) -> (i32, i32) {
    %c0_i32 = arith.constant 0 : i32
    %c0_i32_0 = arith.constant 0 : i32
    %c0_i32_1 = arith.constant 0 : i32
    return %c0_i32, %c0_i32_0 : i32, i32
  }
  func.func @transform_10(%arg0: i32) -> (i32, i32) {
    %c0_i32 = arith.constant 0 : i32
    %c0_i32_0 = arith.constant 0 : i32
    %c0_i32_1 = arith.constant 0 : i32
    return %c0_i32, %c0_i32_0 : i32, i32
  }
  func.func @transform_11(%arg0: i32) -> (i32, i32) {
    %c0_i32 = arith.constant 0 : i32
    %c0_i32_0 = arith.constant 0 : i32
    %c0_i32_1 = arith.constant 0 : i32
    return %c0_i32, %c0_i32_0 : i32, i32
  }
  func.func @transform_12(%arg0: i32) -> (i32, i32, i32, i32) {
    %c0_i32 = arith.constant 0 : i32
    %c0_i32_0 = arith.constant 0 : i32
    %c0_i32_1 = arith.constant 0 : i32
    %c0_i32_2 = arith.constant 0 : i32
    return %arg0, %c0_i32, %c0_i32_0, %c0_i32_1 : i32, i32, i32, i32
  }
}

</mosaic_0001>

<llo_original>
// kernel: tpu_custom_call.1
$region0: #{tpu_custom_call.1}
  #allocation0 [shape = 'u32[]', space=smem, size = 0x4, offset = 0x4, fixed_abs, tag = 'smem constant byte address 0x4 - core index']
  #allocation1 [shape = 'u32[144,128]{1,0:T(1,128)}', space=vmem, size = 0x12000, scoped, tag = 'internal scratch']
  #allocation2 [shape = 'f32[1,8,14,128]{3,2,1,0:T(8,128)}', space=vmem, size = 0x10000, scoped, tag = 'scratch operand']
  #allocation3 [shape = 'f32[1,14,8,160]{3,2,1,0:T(8,128)}', space=vmem, size = 0x1c000, scoped, tag = 'scratch operand']
  %s0 = inlined_call_operand.vmem [shape: f32[2,8,8,1088], index: 0, kind: input, shape index: {}]
  %s1 = inlined_call_operand.vmem [shape: bf16[1088,192], index: 1, kind: input, shape index: {}]
  %s2 = inlined_call_operand.vmem [shape: f32[1,192], index: 2, kind: input, shape index: {}]
  %s3 = inlined_call_operand.hbm [shape: bf16[1088,128], index: 3, kind: input, shape index: {}]
  %s4 = inlined_call_operand.vmem [shape: f32[1,128], index: 4, kind: input, shape index: {}]
  %s5 = inlined_call_operand.vmem [shape: bf16[896,160], index: 5, kind: input, shape index: {}]
  %s6 = inlined_call_operand.vmem [shape: f32[1,160], index: 6, kind: input, shape index: {}]
  %s7 = inlined_call_operand.vmem [shape: bf16[7,160,192], index: 7, kind: input, shape index: {}]
  %s8 = inlined_call_operand.vmem [shape: f32[1,192], index: 8, kind: input, shape index: {}]
  %s9 = inlined_call_operand.hbm [shape: bf16[192,1088], index: 9, kind: input, shape index: {}]
  %s10 = inlined_call_operand.hbm [shape: bf16[192,1088], index: 10, kind: input, shape index: {}]
  %s11 = inlined_call_operand.vmem [shape: f32[1,1088], index: 11, kind: input, shape index: {}]
  %s12 = inlined_call_operand.hbm [shape: f32[2,8,8,1088], index: 12, kind: output, shape index: {}]
  %s13 = sld [smem:[#allocation0]]
  $region93: #{tpu_custom_call.1} parent=0
    _
  %s15 = ssub.s32 1, %s13
  %s16 = scalar_select 0, %s15, %s13
  $region1: #{tpu_custom_call.1} parent=0
    #allocation4 [shape = 'u8[278528]{0}', space=vmem, size = 0x44000, scoped, tag = 'input window, operand 3, single buffered']
    #allocation5 [shape = 's32[2]{0}', space=sflag, size = 0x8, scoped, tag = 'scoped memory for tpu_custom_call.1']
    #allocation6 [shape = 's32[2]{0}', space=sflag, size = 0x8, scoped, tag = 'scoped memory for tpu_custom_call.1']
    #allocation7 [shape = 'u8[442368]{0}', space=vmem, size = 0x6c000, scoped, tag = 'input window, operand 9, single buffered']
    #allocation8 [shape = 's32[1]{0}', space=sflag, size = 0x4, scoped, tag = 'scoped memory for tpu_custom_call.1']
    #allocation9 [shape = 'u8[442368]{0}', space=vmem, size = 0x6c000, scoped, tag = 'input window, operand 10, single buffered']
    #allocation10 [shape = 'u8[589824]{0}', space=vmem, size = 0x90000, scoped, tag = 'output window, operand 0']
    %17 = vsyncpa [#allocation5], 0
    %18 = vsyncpa [#allocation8], 0
    %19 = vsyncpa [#allocation6], 0
    %s20 = scalar_lea.sflag [#allocation6], 1
    %21 = vsyncpa %s20, 0
    loop: start=0, step=1, limit=4
    $region2: #{tpu_custom_call.1} parent=1 // loop_pre_header
      _
    $region3: #{tpu_custom_call.1} parent=1 // loop_header
      %s23 = sphi 0, %s27
      %p24 = scmp.ge.s32.totalorder %s23, 4
      %s33 = sphi 0, %s35
      %s36 = sphi 0, %s33
      %s37 = sphi 0, %s36
      %s53 = sphi 0, %s37
      %s57 = sphi 0, %s57
      %s59 = sphi 0, %s57
      %s60 = sphi 0, %s59
      %s74 = sphi 0, %s60
      %s78 = sphi 0, %s78
      %s80 = sphi 0, %s78
      %s81 = sphi 0, %s80
      %s95 = sphi 0, %s81
      %s99 = sphi 0, %s99
      %s101 = sphi 0, %s99
      %s102 = sphi 0, %s101
      %s116 = sphi 0, %s102
      %s120 = sphi 0, %s120
      %s122 = sphi 0, %s120
      %s123 = sphi 0, %s122
      %s137 = sphi 0, %s123
      %s141 = sphi 0, %s141
      %s143 = sphi 0, %s141
      %s144 = sphi 0, %s143
      %s158 = sphi 0, %s144
      %s162 = sphi 0, %s162
      %s164 = sphi 0, %s162
      %s165 = sphi 0, %s164
      %s179 = sphi 0, %s165
      %s183 = sphi 0, %s183
      %s185 = sphi 0, %s183
      %s186 = sphi 0, %s185
      %s200 = sphi 0, %s186
      %s204 = sphi 0, %s204
      %s206 = sphi 0, %s204
      %s207 = sphi 0, %s206
      %s221 = sphi 0, %s207
      %s225 = sphi 0, %s225
      %s227 = sphi 0, %s225
      %s228 = sphi 0, %s227
      %s242 = sphi 0, %s228
      %s246 = sphi 0, %s246
      %s248 = sphi 0, %s246
      %s249 = sphi 0, %s248
      %s263 = sphi 0, %s249
      %s267 = sphi 0, %s267
      %s269 = sphi 0, %s267
      %s270 = sphi 0, %s269
      %s284 = sphi 0, %s270
      %s290 = sphi 0, %s292
      %s293 = sphi 0, %s290
      %s294 = sphi 0, %s293
      %s310 = sphi 0, %s294
    $region4: #{tpu_custom_call.1} parent=1 // loop_header_branch
      %26 = sbr.rel (%p24) target = $region8
    $region5: #{tpu_custom_call.1} parent=1 // loop_body
      %s28 = ssub.s32 %s23, 1
      %s29 = ssub.s32 %s23, 2
      %s30 = sadd.s32 %s23, 1
      %s31 = ssub.s32 %s23, %s30
      %p32 = scmp.eq.s32.totalorder %s31, 0
      %s34 = sadd.s32 %s33, 1
      %s35 = scalar_select %p32, %s33, %s34
      %p38 = pneg %p32
      %p39 = scmp.eq.s32.totalorder %s23, 1
      %p40 = por %p38, %p39
      %p41 = scmp.ne.s32.totalorder %s33, %s36
      %p42 = scmp.eq.s32.totalorder %s23, 0
      %p43 = por %p41, %p42
      %p44 = scmp.ne.s32.totalorder %s33, %s36
      %p45 = scmp.eq.s32.totalorder %s28, 1
      %p46 = por %p44, %p45
      %p47 = scmp.ne.s32.totalorder %s36, %s37
      %p48 = scmp.eq.s32.totalorder %s28, 0
      %p49 = por %p47, %p48
      %p50 = scmp.ne.s32.totalorder %s36, %s37
      %p51 = scmp.eq.s32.totalorder %s29, 1
      %p52 = por %p50, %p51
      %p54 = scmp.ne.s32.totalorder %s37, %s53
      %p55 = scmp.eq.s32.totalorder %s29, 0
      %p56 = por %p54, %p55
      %s58 = sadd.s32 %s57, 1
      %p61 = scmp.eq.s32.totalorder %s23, 1
      %p62 = scmp.ne.s32.totalorder %s57, %s59
      %p63 = scmp.eq.s32.totalorder %s23, 0
      %p64 = por %p62, %p63
      %p65 = scmp.ne.s32.totalorder %s57, %s59
      %p66 = scmp.eq.s32.totalorder %s28, 1
      %p67 = por %p65, %p66
      %p68 = scmp.ne.s32.totalorder %s59, %s60
      %p69 = scmp.eq.s32.totalorder %s28, 0
      %p70 = por %p68, %p69
      %p71 = scmp.ne.s32.totalorder %s59, %s60
      %p72 = scmp.eq.s32.totalorder %s29, 1
      %p73 = por %p71, %p72
      %p75 = scmp.ne.s32.totalorder %s60, %s74
      %p76 = scmp.eq.s32.totalorder %s29, 0
      %p77 = por %p75, %p76
      %s79 = sadd.s32 %s78, 1
      %p82 = scmp.eq.s32.totalorder %s23, 1
      %p83 = scmp.ne.s32.totalorder %s78, %s80
      %p84 = scmp.eq.s32.totalorder %s23, 0
      %p85 = por %p83, %p84
      %p86 = scmp.ne.s32.totalorder %s78, %s80
      %p87 = scmp.eq.s32.totalorder %s28, 1
      %p88 = por %p86, %p87
      %p89 = scmp.ne.s32.totalorder %s80, %s81
      %p90 = scmp.eq.s32.totalorder %s28, 0
      %p91 = por %p89, %p90
      %p92 = scmp.ne.s32.totalorder %s80, %s81
      %p93 = scmp.eq.s32.totalorder %s29, 1
      %p94 = por %p92, %p93
      %p96 = scmp.ne.s32.totalorder %s81, %s95
      %p97 = scmp.eq.s32.totalorder %s29, 0
      %p98 = por %p96, %p97
      %s100 = sadd.s32 %s99, 1
      %p103 = scmp.eq.s32.totalorder %s23, 1
      %p104 = scmp.ne.s32.totalorder %s99, %s101
      %p105 = scmp.eq.s32.totalorder %s23, 0
      %p106 = por %p104, %p105
      %p107 = scmp.ne.s32.totalorder %s99, %s101
      %p108 = scmp.eq.s32.totalorder %s28, 1
      %p109 = por %p107, %p108
      %p110 = scmp.ne.s32.totalorder %s101, %s102
      %p111 = scmp.eq.s32.totalorder %s28, 0
      %p112 = por %p110, %p111
      %p113 = scmp.ne.s32.totalorder %s101, %s102
      %p114 = scmp.eq.s32.totalorder %s29, 1
      %p115 = por %p113, %p114
      %p117 = scmp.ne.s32.totalorder %s102, %s116
      %p118 = scmp.eq.s32.totalorder %s29, 0
      %p119 = por %p117, %p118
      %s121 = sadd.s32 %s120, 1
      %p124 = scmp.eq.s32.totalorder %s23, 1
      %p125 = scmp.ne.s32.totalorder %s120, %s122
      %p126 = scmp.eq.s32.totalorder %s23, 0
      %p127 = por %p125, %p126
      %p128 = scmp.ne.s32.totalorder %s120, %s122
      %p129 = scmp.eq.s32.totalorder %s28, 1
      %p130 = por %p128, %p129
      %p131 = scmp.ne.s32.totalorder %s122, %s123
      %p132 = scmp.eq.s32.totalorder %s28, 0
      %p133 = por %p131, %p132
      %p134 = scmp.ne.s32.totalorder %s122, %s123
      %p135 = scmp.eq.s32.totalorder %s29, 1
      %p136 = por %p134, %p135
      %p138 = scmp.ne.s32.totalorder %s123, %s137
      %p139 = scmp.eq.s32.totalorder %s29, 0
      %p140 = por %p138, %p139
      %s142 = sadd.s32 %s141, 1
      %p145 = scmp.eq.s32.totalorder %s23, 1
      %p146 = scmp.ne.s32.totalorder %s141, %s143
      %p147 = scmp.eq.s32.totalorder %s23, 0
      %p148 = por %p146, %p147
      %p149 = scmp.ne.s32.totalorder %s141, %s143
      %p150 = scmp.eq.s32.totalorder %s28, 1
      %p151 = por %p149, %p150
      %p152 = scmp.ne.s32.totalorder %s143, %s144
      %p153 = scmp.eq.s32.totalorder %s28, 0
      %p154 = por %p152, %p153
      %p155 = scmp.ne.s32.totalorder %s143, %s144
      %p156 = scmp.eq.s32.totalorder %s29, 1
      %p157 = por %p155, %p156
      %p159 = scmp.ne.s32.totalorder %s144, %s158
      %p160 = scmp.eq.s32.totalorder %s29, 0
      %p161 = por %p159, %p160
      %s163 = sadd.s32 %s162, 1
      %p166 = scmp.eq.s32.totalorder %s23, 1
      %p167 = scmp.ne.s32.totalorder %s162, %s164
      %p168 = scmp.eq.s32.totalorder %s23, 0
      %p169 = por %p167, %p168
      %p170 = scmp.ne.s32.totalorder %s162, %s164
      %p171 = scmp.eq.s32.totalorder %s28, 1
      %p172 = por %p170, %p171
      %p173 = scmp.ne.s32.totalorder %s164, %s165
      %p174 = scmp.eq.s32.totalorder %s28, 0
      %p175 = por %p173, %p174
      %p176 = scmp.ne.s32.totalorder %s164, %s165
      %p177 = scmp.eq.s32.totalorder %s29, 1
      %p178 = por %p176, %p177
      %p180 = scmp.ne.s32.totalorder %s165, %s179
      %p181 = scmp.eq.s32.totalorder %s29, 0
      %p182 = por %p180, %p181
      %s184 = sadd.s32 %s183, 1
      %p187 = scmp.eq.s32.totalorder %s23, 1
      %p188 = scmp.ne.s32.totalorder %s183, %s185
      %p189 = scmp.eq.s32.totalorder %s23, 0
      %p190 = por %p188, %p189
      %p191 = scmp.ne.s32.totalorder %s183, %s185
      %p192 = scmp.eq.s32.totalorder %s28, 1
      %p193 = por %p191, %p192
      %p194 = scmp.ne.s32.totalorder %s185, %s186
      %p195 = scmp.eq.s32.totalorder %s28, 0
      %p196 = por %p194, %p195
      %p197 = scmp.ne.s32.totalorder %s185, %s186
      %p198 = scmp.eq.s32.totalorder %s29, 1
      %p199 = por %p197, %p198
      %p201 = scmp.ne.s32.totalorder %s186, %s200
      %p202 = scmp.eq.s32.totalorder %s29, 0
      %p203 = por %p201, %p202
      %s205 = sadd.s32 %s204, 1
      %p208 = scmp.eq.s32.totalorder %s23, 1
      %p209 = scmp.ne.s32.totalorder %s204, %s206
      %p210 = scmp.eq.s32.totalorder %s23, 0
      %p211 = por %p209, %p210
      %p212 = scmp.ne.s32.totalorder %s204, %s206
      %p213 = scmp.eq.s32.totalorder %s28, 1
      %p214 = por %p212, %p213
      %p215 = scmp.ne.s32.totalorder %s206, %s207
      %p216 = scmp.eq.s32.totalorder %s28, 0
      %p217 = por %p215, %p216
      %p218 = scmp.ne.s32.totalorder %s206, %s207
      %p219 = scmp.eq.s32.totalorder %s29, 1
      %p220 = por %p218, %p219
      %p222 = scmp.ne.s32.totalorder %s207, %s221
      %p223 = scmp.eq.s32.totalorder %s29, 0
      %p224 = por %p222, %p223
      %s226 = sadd.s32 %s225, 1
      %p229 = scmp.eq.s32.totalorder %s23, 1
      %p230 = scmp.ne.s32.totalorder %s225, %s227
      %p231 = scmp.eq.s32.totalorder %s23, 0
      %p232 = por %p230, %p231
      %p233 = scmp.ne.s32.totalorder %s225, %s227
      %p234 = scmp.eq.s32.totalorder %s28, 1
      %p235 = por %p233, %p234
      %p236 = scmp.ne.s32.totalorder %s227, %s228
      %p237 = scmp.eq.s32.totalorder %s28, 0
      %p238 = por %p236, %p237
      %p239 = scmp.ne.s32.totalorder %s227, %s228
      %p240 = scmp.eq.s32.totalorder %s29, 1
      %p241 = por %p239, %p240
      %p243 = scmp.ne.s32.totalorder %s228, %s242
      %p244 = scmp.eq.s32.totalorder %s29, 0
      %p245 = por %p243, %p244
      %s247 = sadd.s32 %s246, 1
      %p250 = scmp.eq.s32.totalorder %s23, 1
      %p251 = scmp.ne.s32.totalorder %s246, %s248
      %p252 = scmp.eq.s32.totalorder %s23, 0
      %p253 = por %p251, %p252
      %p254 = scmp.ne.s32.totalorder %s246, %s248
      %p255 = scmp.eq.s32.totalorder %s28, 1
      %p256 = por %p254, %p255
      %p257 = scmp.ne.s32.totalorder %s248, %s249
      %p258 = scmp.eq.s32.totalorder %s28, 0
      %p259 = por %p257, %p258
      %p260 = scmp.ne.s32.totalorder %s248, %s249
      %p261 = scmp.eq.s32.totalorder %s29, 1
      %p262 = por %p260, %p261
      %p264 = scmp.ne.s32.totalorder %s249, %s263
      %p265 = scmp.eq.s32.totalorder %s29, 0
      %p266 = por %p264, %p265
      %s268 = sadd.s32 %s267, 1
      %p271 = scmp.eq.s32.totalorder %s23, 1
      %p272 = scmp.ne.s32.totalorder %s267, %s269
      %p273 = scmp.eq.s32.totalorder %s23, 0
      %p274 = por %p272, %p273
      %p275 = scmp.ne.s32.totalorder %s267, %s269
      %p276 = scmp.eq.s32.totalorder %s28, 1
      %p277 = por %p275, %p276
      %p278 = scmp.ne.s32.totalorder %s269, %s270
      %p279 = scmp.eq.s32.totalorder %s28, 0
      %p280 = por %p278, %p279
      %p281 = scmp.ne.s32.totalorder %s269, %s270
      %p282 = scmp.eq.s32.totalorder %s29, 1
      %p283 = por %p281, %p282
      %p285 = scmp.ne.s32.totalorder %s270, %s284
      %p286 = scmp.eq.s32.totalorder %s29, 0
      %p287 = por %p285, %p286
      %s288 = ssub.s32 %s23, %s30
      %p289 = scmp.eq.s32.totalorder %s288, 0
      %s291 = sadd.s32 %s290, 1
      %s292 = scalar_select %p289, %s290, %s291
      %p295 = pneg %p289
      %p296 = scmp.eq.s32.totalorder %s23, 1
      %p297 = por %p295, %p296
      %p298 = scmp.ne.s32.totalorder %s290, %s293
      %p299 = scmp.eq.s32.totalorder %s23, 0
      %p300 = por %p298, %p299
      %p301 = scmp.ne.s32.totalorder %s290, %s293
      %p302 = scmp.eq.s32.totalorder %s28, 1
      %p303 = por %p301, %p302
      %p304 = scmp.ne.s32.totalorder %s293, %s294
      %p305 = scmp.eq.s32.totalorder %s28, 0
      %p306 = por %p304, %p305
      %p307 = scmp.ne.s32.totalorder %s293, %s294
      %p308 = scmp.eq.s32.totalorder %s29, 1
      %p309 = por %p307, %p308
      %p311 = scmp.ne.s32.totalorder %s294, %s310
      %p312 = scmp.eq.s32.totalorder %s29, 0
      %p313 = por %p311, %p312
      %p314 = scmp.le.s32.totalorder 1, %s23
      %p315 = scmp.lt.s32.totalorder %s23, 3
      %p316 = pnand %p314, %p315
      %p317 = pneg %p316
      // Predicated region
      $region9: #{tpu_custom_call.1} parent=5 // pred_check
        _
      $region10: #{tpu_custom_call.1} parent=5 // pred_check_branch
        %319 = sbr.rel (%p316) target = $region12
      $region11: #{tpu_custom_call.1} parent=5 // pred_region
        %s320 = ssub.s32 %s23, 1
        // Predicated region
        $region13: #{tpu_custom_call.1} parent=11 // pred_check
          %p321 = pneg %p70
        $region14: #{tpu_custom_call.1} parent=11 // pred_check_branch
          %323 = sbr.rel (%p321) target = $region16
        $region15: #{tpu_custom_call.1} parent=11 // pred_region
          _
        $region16: #{tpu_custom_call.1} parent=11 // pred_fallthru
          _
        // Predicated region
        $region17: #{tpu_custom_call.1} parent=11 // pred_check
          %p324 = pneg %p91
        $region18: #{tpu_custom_call.1} parent=11 // pred_check_branch
          %326 = sbr.rel (%p324) target = $region20
        $region19: #{tpu_custom_call.1} parent=11 // pred_region
          _
        $region20: #{tpu_custom_call.1} parent=11 // pred_fallthru
          _
        // Predicated region
        $region21: #{tpu_custom_call.1} parent=11 // pred_check
          %p327 = pneg %p112
        $region22: #{tpu_custom_call.1} parent=11 // pred_check_branch
          %329 = sbr.rel (%p327) target = $region24
        $region23: #{tpu_custom_call.1} parent=11 // pred_region
          %s331 = ssub.s32 8704, 8704
          %332 = vsyncadd [#allocation5], %s331
          %s333 = sshll.u32 [#allocation4], 4
          %s334 = int_to_ptr.vmem [resolvable:$true] %s333
          %339 = dma.hbm_to_vmem [thread:$0]  %s3, 8704, %s334, [#allocation5], 64, 64, 4
        $region24: #{tpu_custom_call.1} parent=11 // pred_fallthru
          _
        // Predicated region
        $region25: #{tpu_custom_call.1} parent=11 // pred_check
          %p340 = pneg %p133
        $region26: #{tpu_custom_call.1} parent=11 // pred_check_branch
          %342 = sbr.rel (%p340) target = $region28
        $region27: #{tpu_custom_call.1} parent=11 // pred_region
          _
        $region28: #{tpu_custom_call.1} parent=11 // pred_fallthru
          _
        // Predicated region
        $region29: #{tpu_custom_call.1} parent=11 // pred_check
          %p343 = pneg %p154
        $region30: #{tpu_custom_call.1} parent=11 // pred_check_branch
          %345 = sbr.rel (%p343) target = $region32
        $region31: #{tpu_custom_call.1} parent=11 // pred_region
          _
        $region32: #{tpu_custom_call.1} parent=11 // pred_fallthru
          _
        // Predicated region
        $region33: #{tpu_custom_call.1} parent=11 // pred_check
          %p346 = pneg %p175
        $region34: #{tpu_custom_call.1} parent=11 // pred_check_branch
          %348 = sbr.rel (%p346) target = $region36
        $region35: #{tpu_custom_call.1} parent=11 // pred_region
          _
        $region36: #{tpu_custom_call.1} parent=11 // pred_fallthru
          _
        // Predicated region
        $region37: #{tpu_custom_call.1} parent=11 // pred_check
          %p349 = pneg %p196
        $region38: #{tpu_custom_call.1} parent=11 // pred_check_branch
          %351 = sbr.rel (%p349) target = $region40
        $region39: #{tpu_custom_call.1} parent=11 // pred_region
          _
        $region40: #{tpu_custom_call.1} parent=11 // pred_fallthru
          _
        // Predicated region
        $region41: #{tpu_custom_call.1} parent=11 // pred_check
          %p352 = pneg %p217
        $region42: #{tpu_custom_call.1} parent=11 // pred_check_branch
          %354 = sbr.rel (%p352) target = $region44
        $region43: #{tpu_custom_call.1} parent=11 // pred_region
          _
        $region44: #{tpu_custom_call.1} parent=11 // pred_fallthru
          _
        // Predicated region
        $region45: #{tpu_custom_call.1} parent=11 // pred_check
          %p355 = pneg %p238
        $region46: #{tpu_custom_call.1} parent=11 // pred_check_branch
          %357 = sbr.rel (%p355) target = $region48
        $region47: #{tpu_custom_call.1} parent=11 // pred_region
          %s359 = ssub.s32 13824, 13824
          %360 = vsyncadd [#allocation8], %s359
          %s361 = sshll.u32 [#allocation7], 4
          %s362 = int_to_ptr.vmem [resolvable:$true] %s361
          %367 = dma.hbm_to_vmem [thread:$0]  %s9, 13824, %s362, [#allocation8], 576, 576, 36
        $region48: #{tpu_custom_call.1} parent=11 // pred_fallthru
          _
        // Predicated region
        $region49: #{tpu_custom_call.1} parent=11 // pred_check
          %p368 = pneg %p259
        $region50: #{tpu_custom_call.1} parent=11 // pred_check_branch
          %370 = sbr.rel (%p368) target = $region52
        $region51: #{tpu_custom_call.1} parent=11 // pred_region
          %s372 = ssub.s32 13824, 13824
          %373 = vsyncadd [#allocation8], %s372
          %s374 = sshll.u32 [#allocation9], 4
          %s375 = int_to_ptr.vmem [resolvable:$true] %s374
          %380 = dma.hbm_to_vmem [thread:$0]  %s10, 13824, %s375, [#allocation8], 576, 576, 36
        $region52: #{tpu_custom_call.1} parent=11 // pred_fallthru
          _
        // Predicated region
        $region53: #{tpu_custom_call.1} parent=11 // pred_check
          %p381 = pneg %p280
        $region54: #{tpu_custom_call.1} parent=11 // pred_check_branch
          %383 = sbr.rel (%p381) target = $region56
        $region55: #{tpu_custom_call.1} parent=11 // pred_region
          _
        $region56: #{tpu_custom_call.1} parent=11 // pred_fallthru
          _
      $region12: #{tpu_custom_call.1} parent=5 // pred_fallthru
        _
      %p384 = scmp.lt.s32.totalorder %s23, 2
      // Predicated region
      $region57: #{tpu_custom_call.1} parent=5 // pred_check
        %p385 = pneg %p384
      $region58: #{tpu_custom_call.1} parent=5 // pred_check_branch
        %387 = sbr.rel (%p385) target = $region60
      $region59: #{tpu_custom_call.1} parent=5 // pred_region
        // Predicated region
        $region61: #{tpu_custom_call.1} parent=59 // pred_check
          %p388 = pneg %p43
        $region62: #{tpu_custom_call.1} parent=59 // pred_check_branch
          %390 = sbr.rel (%p388) target = $region64
        $region63: #{tpu_custom_call.1} parent=59 // pred_region
          %p391 = scmp.lt.s32.totalorder %s23, 1
          %s392 = scalar_select %p391, %s23, 1
          %s393 = smul.addr %s392, 72
          %s394 = smul.addr %s393, 8
          %s395 = scalar_lea.vmem %s0, %s394
        $region64: #{tpu_custom_call.1} parent=59 // pred_fallthru
          _
      $region60: #{tpu_custom_call.1} parent=5 // pred_fallthru
        _
      %p396 = scmp.le.s32.totalorder 1, %s23
      %p397 = scmp.lt.s32.totalorder %s23, 3
      %p398 = pnand %p396, %p397
      %p399 = pneg %p398
      // Predicated region
      $region65: #{tpu_custom_call.1} parent=5 // pred_check
        _
      $region66: #{tpu_custom_call.1} parent=5 // pred_check_branch
        %401 = sbr.rel (%p398) target = $region68
      $region67: #{tpu_custom_call.1} parent=5 // pred_region
        %s402 = ssub.s32 %s23, 1
        // Predicated region
        $region69: #{tpu_custom_call.1} parent=67 // pred_check
          %p403 = pneg %p112
        $region70: #{tpu_custom_call.1} parent=67 // pred_check_branch
          %405 = sbr.rel (%p403) target = $region72
        $region71: #{tpu_custom_call.1} parent=67 // pred_region
          %406 = dma.done [#allocation5], 8704
        $region72: #{tpu_custom_call.1} parent=67 // pred_fallthru
          _
        // Predicated region
        $region73: #{tpu_custom_call.1} parent=67 // pred_check
          %p407 = pneg %p238
        $region74: #{tpu_custom_call.1} parent=67 // pred_check_branch
          %409 = sbr.rel (%p407) target = $region76
        $region75: #{tpu_custom_call.1} parent=67 // pred_region
          %410 = dma.done [#allocation8], 13824
        $region76: #{tpu_custom_call.1} parent=67 // pred_fallthru
          _
        // Predicated region
        $region77: #{tpu_custom_call.1} parent=67 // pred_check
          %p411 = pneg %p259
        $region78: #{tpu_custom_call.1} parent=67 // pred_check_branch
          %413 = sbr.rel (%p411) target = $region80
        $region79: #{tpu_custom_call.1} parent=67 // pred_region
          %414 = dma.done [#allocation8], 13824
        $region80: #{tpu_custom_call.1} parent=67 // pred_fallthru
          _
        %p415 = scmp.lt.s32.totalorder %s28, 1
        %s416 = scalar_select %p415, %s28, 1
        %s417 = smul.addr %s416, 72
        %s418 = smul.addr %s417, 8
        %s419 = scalar_lea.vmem %s0, %s418
        %p420 = pneg %p49
        %p421 = pneg %p46
        %p422 = pneg %p70
        %p423 = pneg %p67
        %p424 = pneg %p91
        %p425 = pneg %p88
        %p426 = pneg %p112
        %p427 = pneg %p109
        %p428 = pneg %p133
        %p429 = pneg %p130
        %p430 = pneg %p154
        %p431 = pneg %p151
        %p432 = pneg %p175
        %p433 = pneg %p172
        %p434 = pneg %p196
        %p435 = pneg %p193
        %p436 = pneg %p217
        %p437 = pneg %p214
        %p438 = pneg %p238
        %p439 = pneg %p235
        %p440 = pneg %p259
        %p441 = pneg %p256
        %p442 = pneg %p280
        %p443 = pneg %p277
        %p444 = pneg %p306
        %p445 = pneg %p303
        %s446 = sand.u32 %s293, 1
        %s447 = scalar_lea.sflag [#allocation6], %s446
        %s448 = sand.u32 %s293, 1
        %s449 = smul.addr %s448, 576
        %s450 = scalar_lea.vmem [#allocation10], %s449
        %p451 = scmp.lt.s32.totalorder %s28, 1
        %s452 = scalar_select %p451, %s28, 1
        %s453 = smul.addr %s452, 72
        %s454 = smul.addr %s453, 8
        %s455 = scalar_lea.vmem %s0, %s454
        %v457 = vld [vmem:[%s455] sm:$0xff]
        %v458 = vld [vmem:[%s455 + $0x8] sm:$0xff]
        %v459 = vld [vmem:[%s455 + $0x10] sm:$0xff]
        %v460 = vld [vmem:[%s455 + $0x18] sm:$0xff]
        %v461 = vld [vmem:[%s455 + $0x20] sm:$0xff]
        %v462 = vld [vmem:[%s455 + $0x28] sm:$0xff]
        %v463 = vld [vmem:[%s455 + $0x30] sm:$0xff]
        %v464 = vld [vmem:[%s455 + $0x38] sm:$0xff]
        %v465 = vld [vmem:[%s455 + $0x40] sm:$0xff]
        %v466 = vld [vmem:[%s455 + $0x48] sm:$0xff]
        %v467 = vld [vmem:[%s455 + $0x50] sm:$0xff]
        %v468 = vld [vmem:[%s455 + $0x58] sm:$0xff]
        %v469 = vld [vmem:[%s455 + $0x60] sm:$0xff]
        %v470 = vld [vmem:[%s455 + $0x68] sm:$0xff]
        %v471 = vld [vmem:[%s455 + $0x70] sm:$0xff]
        %v472 = vld [vmem:[%s455 + $0x78] sm:$0xff]
        %v473 = vld [vmem:[%s455 + $0x80] sm:$0xff]
        %v474 = vld [vmem:[%s455 + $0x88] sm:$0xff]
        %v475 = vld [vmem:[%s455 + $0x90] sm:$0xff]
        %v476 = vld [vmem:[%s455 + $0x98] sm:$0xff]
        %v477 = vld [vmem:[%s455 + $0xa0] sm:$0xff]
        %v478 = vld [vmem:[%s455 + $0xa8] sm:$0xff]
        %v479 = vld [vmem:[%s455 + $0xb0] sm:$0xff]
        %v480 = vld [vmem:[%s455 + $0xb8] sm:$0xff]
        %v481 = vld [vmem:[%s455 + $0xc0] sm:$0xff]
        %v482 = vld [vmem:[%s455 + $0xc8] sm:$0xff]
        %v483 = vld [vmem:[%s455 + $0xd0] sm:$0xff]
        %v484 = vld [vmem:[%s455 + $0xd8] sm:$0xff]
        %v485 = vld [vmem:[%s455 + $0xe0] sm:$0xff]
        %v486 = vld [vmem:[%s455 + $0xe8] sm:$0xff]
        %v487 = vld [vmem:[%s455 + $0xf0] sm:$0xff]
        %v488 = vld [vmem:[%s455 + $0xf8] sm:$0xff]
        %v489 = vld [vmem:[%s455 + $0x100] sm:$0xff]
        %v490 = vld [vmem:[%s455 + $0x108] sm:$0xff]
        %v491 = vld [vmem:[%s455 + $0x110] sm:$0xff]
        %v492 = vld [vmem:[%s455 + $0x118] sm:$0xff]
        %v493 = vld [vmem:[%s455 + $0x120] sm:$0xff]
        %v494 = vld [vmem:[%s455 + $0x128] sm:$0xff]
        %v495 = vld [vmem:[%s455 + $0x130] sm:$0xff]
        %v496 = vld [vmem:[%s455 + $0x138] sm:$0xff]
        %v497 = vld [vmem:[%s455 + $0x140] sm:$0xff]
        %v498 = vld [vmem:[%s455 + $0x148] sm:$0xff]
        %v499 = vld [vmem:[%s455 + $0x150] sm:$0xff]
        %v500 = vld [vmem:[%s455 + $0x158] sm:$0xff]
        %v501 = vld [vmem:[%s455 + $0x160] sm:$0xff]
        %v502 = vld [vmem:[%s455 + $0x168] sm:$0xff]
        %v503 = vld [vmem:[%s455 + $0x170] sm:$0xff]
        %v504 = vld [vmem:[%s455 + $0x178] sm:$0xff]
        %v505 = vld [vmem:[%s455 + $0x180] sm:$0xff]
        %v506 = vld [vmem:[%s455 + $0x188] sm:$0xff]
        %v507 = vld [vmem:[%s455 + $0x190] sm:$0xff]
        %v508 = vld [vmem:[%s455 + $0x198] sm:$0xff]
        %v509 = vld [vmem:[%s455 + $0x1a0] sm:$0xff]
        %v510 = vld [vmem:[%s455 + $0x1a8] sm:$0xff]
        %v511 = vld [vmem:[%s455 + $0x1b0] sm:$0xff]
        %v512 = vld [vmem:[%s455 + $0x1b8] sm:$0xff]
        %v513 = vld [vmem:[%s455 + $0x1c0] sm:$0xff]
        %v514 = vld [vmem:[%s455 + $0x1c8] sm:$0xff]
        %v515 = vld [vmem:[%s455 + $0x1d0] sm:$0xff]
        %v516 = vld [vmem:[%s455 + $0x1d8] sm:$0xff]
        %v517 = vld [vmem:[%s455 + $0x1e0] sm:$0xff]
        %v518 = vld [vmem:[%s455 + $0x1e8] sm:$0xff]
        %v519 = vld [vmem:[%s455 + $0x1f0] sm:$0xff]
        %v520 = vld [vmem:[%s455 + $0x1f8] sm:$0xff]
        %v521 = vld [vmem:[%s455 + $0x200] sm:$0xff]
        %v522 = vld [vmem:[%s455 + $0x208] sm:$0xff]
        %v523 = vld [vmem:[%s455 + $0x210] sm:$0xff]
        %v524 = vld [vmem:[%s455 + $0x218] sm:$0xff]
        %v525 = vld [vmem:[%s455 + $0x220] sm:$0xff]
        %v526 = vld [vmem:[%s455 + $0x228] sm:$0xff]
        %v527 = vld [vmem:[%s455 + $0x230] sm:$0xff]
        %v528 = vld [vmem:[%s455 + $0x238] sm:$0xff]
        %v529 = vpack.c.bf16 %v466, %v457
        %v530 = vpack.c.bf16 %v467, %v458
        %v531 = vpack.c.bf16 %v468, %v459
        %v532 = vpack.c.bf16 %v469, %v460
        %v533 = vpack.c.bf16 %v470, %v461
        %v534 = vpack.c.bf16 %v471, %v462
        %v535 = vpack.c.bf16 %v472, %v463
        %v536 = vpack.c.bf16 %v473, %v464
        %v537 = vpack.c.bf16 %v474, %v465
        %v538 = vpack.c.bf16 %v484, %v475
        %v539 = vpack.c.bf16 %v485, %v476
        %v540 = vpack.c.bf16 %v486, %v477
        %v541 = vpack.c.bf16 %v487, %v478
        %v542 = vpack.c.bf16 %v488, %v479
        %v543 = vpack.c.bf16 %v489, %v480
        %v544 = vpack.c.bf16 %v490, %v481
        %v545 = vpack.c.bf16 %v491, %v482
        %v546 = vpack.c.bf16 %v492, %v483
        %v547 = vpack.c.bf16 %v502, %v493
        %v548 = vpack.c.bf16 %v503, %v494
        %v549 = vpack.c.bf16 %v504, %v495
        %v550 = vpack.c.bf16 %v505, %v496
        %v551 = vpack.c.bf16 %v506, %v497
        %v552 = vpack.c.bf16 %v507, %v498
        %v553 = vpack.c.bf16 %v508, %v499
        %v554 = vpack.c.bf16 %v509, %v500
        %v555 = vpack.c.bf16 %v510, %v501
        %v556 = vpack.c.bf16 %v520, %v511
        %v557 = vpack.c.bf16 %v521, %v512
        %v558 = vpack.c.bf16 %v522, %v513
        %v559 = vpack.c.bf16 %v523, %v514
        %v560 = vpack.c.bf16 %v524, %v515
        %v561 = vpack.c.bf16 %v525, %v516
        %v562 = vpack.c.bf16 %v526, %v517
        %v563 = vpack.c.bf16 %v527, %v518
        %v564 = vpack.c.bf16 %v528, %v519
        %v565 = vld [vmem:[%s1] sm:$0xff]
        %v566 = vld [vmem:[%s1 + $0x8] sm:$0xff]
        %v567 = vld [vmem:[%s1 + $0x10] sm:$0xff]
        %v568 = vld [vmem:[%s1 + $0x18] sm:$0xff]
        %v569 = vld [vmem:[%s1 + $0x20] sm:$0xff]
        %v570 = vld [vmem:[%s1 + $0x28] sm:$0xff]
        %v571 = vld [vmem:[%s1 + $0x30] sm:$0xff]
        %v572 = vld [vmem:[%s1 + $0x38] sm:$0xff]
        %v573 = vld [vmem:[%s1 + $0x40] sm:$0xff]
        %v574 = vld [vmem:[%s1 + $0x48] sm:$0xff]
        %v575 = vld [vmem:[%s1 + $0x50] sm:$0xff]
        %v576 = vld [vmem:[%s1 + $0x58] sm:$0xff]
        %v577 = vld [vmem:[%s1 + $0x60] sm:$0xff]
        %v578 = vld [vmem:[%s1 + $0x68] sm:$0xff]
        %v579 = vld [vmem:[%s1 + $0x70] sm:$0xff]
        %v580 = vld [vmem:[%s1 + $0x78] sm:$0xff]
        %v581 = vld [vmem:[%s1 + $0x80] sm:$0xff]
        %v582 = vld [vmem:[%s1 + $0x88] sm:$0xff]
        %v583 = vld [vmem:[%s1 + $0x90] sm:$0xff]
        %v584 = vld [vmem:[%s1 + $0x98] sm:$0xff]
        %v585 = vld [vmem:[%s1 + $0xa0] sm:$0xff]
        %v586 = vld [vmem:[%s1 + $0xa8] sm:$0xff]
        %v587 = vld [vmem:[%s1 + $0xb0] sm:$0xff]
        %v588 = vld [vmem:[%s1 + $0xb8] sm:$0xff]
        %v589 = vld [vmem:[%s1 + $0xc0] sm:$0xff]
        %v590 = vld [vmem:[%s1 + $0xc8] sm:$0xff]
        %v591 = vld [vmem:[%s1 + $0xd0] sm:$0xff]
        %v592 = vld [vmem:[%s1 + $0xd8] sm:$0xff]
        %v593 = vld [vmem:[%s1 + $0xe0] sm:$0xff]
        %v594 = vld [vmem:[%s1 + $0xe8] sm:$0xff]
        %v595 = vld [vmem:[%s1 + $0xf0] sm:$0xff]
        %v596 = vld [vmem:[%s1 + $0xf8] sm:$0xff]
        %v597 = vld [vmem:[%s1 + $0x100] sm:$0xff]
        %v598 = vld [vmem:[%s1 + $0x108] sm:$0xff]
        %v599 = vld [vmem:[%s1 + $0x110] sm:$0xff]
        %v600 = vld [vmem:[%s1 + $0x118] sm:$0xff]
        %v601 = vld [vmem:[%s1 + $0x120] sm:$0xff]
        %v602 = vld [vmem:[%s1 + $0x128] sm:$0xff]
        %v603 = vld [vmem:[%s1 + $0x130] sm:$0xff]
        %v604 = vld [vmem:[%s1 + $0x138] sm:$0xff]
        %v605 = vld [vmem:[%s1 + $0x140] sm:$0xff]
        %v606 = vld [vmem:[%s1 + $0x148] sm:$0xff]
        %v607 = vld [vmem:[%s1 + $0x150] sm:$0xff]
        %v608 = vld [vmem:[%s1 + $0x158] sm:$0xff]
        %v609 = vld [vmem:[%s1 + $0x160] sm:$0xff]
        %v610 = vld [vmem:[%s1 + $0x168] sm:$0xff]
        %v611 = vld [vmem:[%s1 + $0x170] sm:$0xff]
        %v612 = vld [vmem:[%s1 + $0x178] sm:$0xff]
        %v613 = vld [vmem:[%s1 + $0x180] sm:$0xff]
        %v614 = vld [vmem:[%s1 + $0x188] sm:$0xff]
        %v615 = vld [vmem:[%s1 + $0x190] sm:$0xff]
        %v616 = vld [vmem:[%s1 + $0x198] sm:$0xff]
        %v617 = vld [vmem:[%s1 + $0x1a0] sm:$0xff]
        %v618 = vld [vmem:[%s1 + $0x1a8] sm:$0xff]
        %v619 = vld [vmem:[%s1 + $0x1b0] sm:$0xff]
        %v620 = vld [vmem:[%s1 + $0x1b8] sm:$0xff]
        %v621 = vld [vmem:[%s1 + $0x1c0] sm:$0xff]
        %v622 = vld [vmem:[%s1 + $0x1c8] sm:$0xff]
        %v623 = vld [vmem:[%s1 + $0x1d0] sm:$0xff]
        %v624 = vld [vmem:[%s1 + $0x1d8] sm:$0xff]
        %v625 = vld [vmem:[%s1 + $0x1e0] sm:$0xff]
        %v626 = vld [vmem:[%s1 + $0x1e8] sm:$0xff]
        %v627 = vld [vmem:[%s1 + $0x1f0] sm:$0xff]
        %v628 = vld [vmem:[%s1 + $0x1f8] sm:$0xff]
        %v629 = vld [vmem:[%s1 + $0x200] sm:$0xff]
        %v630 = vld [vmem:[%s1 + $0x208] sm:$0xff]
        %v631 = vld [vmem:[%s1 + $0x210] sm:$0xff]
        %v632 = vld [vmem:[%s1 + $0x218] sm:$0xff]
        %v633 = vld [vmem:[%s1 + $0x220] sm:$0xff]
        %v634 = vld [vmem:[%s1 + $0x228] sm:$0xff]
        %v635 = vld [vmem:[%s1 + $0x230] sm:$0xff]
        %v636 = vld [vmem:[%s1 + $0x238] sm:$0xff]
        %v637 = vld [vmem:[%s1 + $0x240] sm:$0xff]
        %v638 = vld [vmem:[%s1 + $0x248] sm:$0xff]
        %v639 = vld [vmem:[%s1 + $0x250] sm:$0xff]
        %v640 = vld [vmem:[%s1 + $0x258] sm:$0xff]
        %v641 = vld [vmem:[%s1 + $0x260] sm:$0xff]
        %v642 = vld [vmem:[%s1 + $0x268] sm:$0xff]
        %v643 = vld [vmem:[%s1 + $0x270] sm:$0xff]
        %v644 = vld [vmem:[%s1 + $0x278] sm:$0xff]
        %v645 = vld [vmem:[%s1 + $0x280] sm:$0xff]
        %v646 = vld [vmem:[%s1 + $0x288] sm:$0xff]
        %v647 = vld [vmem:[%s1 + $0x290] sm:$0xff]
        %v648 = vld [vmem:[%s1 + $0x298] sm:$0xff]
        %v649 = vld [vmem:[%s1 + $0x2a0] sm:$0xff]
        %v650 = vld [vmem:[%s1 + $0x2a8] sm:$0xff]
        %v651 = vld [vmem:[%s1 + $0x2b0] sm:$0xff]
        %v652 = vld [vmem:[%s1 + $0x2b8] sm:$0xff]
        %v653 = vld [vmem:[%s1 + $0x2c0] sm:$0xff]
        %v654 = vld [vmem:[%s1 + $0x2c8] sm:$0xff]
        %v655 = vld [vmem:[%s1 + $0x2d0] sm:$0xff]
        %v656 = vld [vmem:[%s1 + $0x2d8] sm:$0xff]
        %v657 = vld [vmem:[%s1 + $0x2e0] sm:$0xff]
        %v658 = vld [vmem:[%s1 + $0x2e8] sm:$0xff]
        %v659 = vld [vmem:[%s1 + $0x2f0] sm:$0xff]
        %v660 = vld [vmem:[%s1 + $0x2f8] sm:$0xff]
        %v661 = vld [vmem:[%s1 + $0x300] sm:$0xff]
        %v662 = vld [vmem:[%s1 + $0x308] sm:$0xff]
        %v663 = vld [vmem:[%s1 + $0x310] sm:$0xff]
        %v664 = vld [vmem:[%s1 + $0x318] sm:$0xff]
        %v665 = vld [vmem:[%s1 + $0x320] sm:$0xff]
        %v666 = vld [vmem:[%s1 + $0x328] sm:$0xff]
        %v667 = vld [vmem:[%s1 + $0x330] sm:$0xff]
        %v668 = vld [vmem:[%s1 + $0x338] sm:$0xff]
        %v669 = vld [vmem:[%s1 + $0x340] sm:$0xff]
        %v670 = vld [vmem:[%s1 + $0x348] sm:$0xff]
        %v671 = vld [vmem:[%s1 + $0x350] sm:$0xff]
        %v672 = vld [vmem:[%s1 + $0x358] sm:$0xff]
        %v673 = vld [vmem:[%s1 + $0x360] sm:$0xff]
        %v674 = vld [vmem:[%s1 + $0x368] sm:$0xff]
        %v675 = vld [vmem:[%s1 + $0x370] sm:$0xff]
        %v676 = vld [vmem:[%s1 + $0x378] sm:$0xff]
        %v677 = vld [vmem:[%s1 + $0x380] sm:$0xff]
        %v678 = vld [vmem:[%s1 + $0x388] sm:$0xff]
        %v679 = vld [vmem:[%s1 + $0x390] sm:$0xff]
        %v680 = vld [vmem:[%s1 + $0x398] sm:$0xff]
        %v681 = vld [vmem:[%s1 + $0x3a0] sm:$0xff]
        %v682 = vld [vmem:[%s1 + $0x3a8] sm:$0xff]
        %v683 = vld [vmem:[%s1 + $0x3b0] sm:$0xff]
        %v684 = vld [vmem:[%s1 + $0x3b8] sm:$0xff]
        %v685 = vld [vmem:[%s1 + $0x3c0] sm:$0xff]
        %v686 = vld [vmem:[%s1 + $0x3c8] sm:$0xff]
        %v687 = vld [vmem:[%s1 + $0x3d0] sm:$0xff]
        %v688 = vld [vmem:[%s1 + $0x3d8] sm:$0xff]
        %v689 = vld [vmem:[%s1 + $0x3e0] sm:$0xff]
        %v690 = vld [vmem:[%s1 + $0x3e8] sm:$0xff]
        %v691 = vld [vmem:[%s1 + $0x3f0] sm:$0xff]
        %v692 = vld [vmem:[%s1 + $0x3f8] sm:$0xff]
        %v693 = vld [vmem:[%s1 + $0x400] sm:$0xff]
        %v694 = vld [vmem:[%s1 + $0x408] sm:$0xff]
        %v695 = vld [vmem:[%s1 + $0x410] sm:$0xff]
        %v696 = vld [vmem:[%s1 + $0x418] sm:$0xff]
        %v697 = vld [vmem:[%s1 + $0x420] sm:$0xff]
        %v698 = vld [vmem:[%s1 + $0x428] sm:$0xff]
        %v699 = vld [vmem:[%s1 + $0x430] sm:$0xff]
        %v700 = vld [vmem:[%s1 + $0x438] sm:$0xff]
        %v701 = vld [vmem:[%s2] sm:$0x3]
        %v703 = vlaneseq
        %v704 = vshrl.u32 %v703, 7
        %v705 = vsub.s32 0, %v704
        %v706 = vrot.slane %v701, %v705
        %v707 = vlaneseq
        %v708 = vshrl.u32 %v707, 7
        %v709 = vsub.s32 1, %v708
        %v710 = vrot.slane %v701, %v709
        %v849 = vunpack.c.l.b16 %v565
        %v850 = vunpack.c.h.b16 %v565
        %v851 = vunpack.c.l.b16 %v566
        %v852 = vunpack.c.h.b16 %v566
        %v853 = vunpack.c.l.b16 %v567
        %v854 = vunpack.c.h.b16 %v567
        %v855 = vunpack.c.l.b16 %v568
        %v856 = vunpack.c.h.b16 %v568
        %v857 = vunpack.c.l.b16 %v569
        %v858 = vunpack.c.h.b16 %v569
        %v859 = vunpack.c.l.b16 %v570
        %v860 = vunpack.c.h.b16 %v570
        %v861 = vunpack.c.l.b16 %v571
        %v862 = vunpack.c.h.b16 %v571
        %v863 = vunpack.c.l.b16 %v572
        %v864 = vunpack.c.h.b16 %v572
        %v865 = vunpack.c.l.b16 %v573
        %v866 = vunpack.c.h.b16 %v573
        %v867 = vunpack.c.l.b16 %v574
        %v868 = vunpack.c.h.b16 %v574
        %v869 = vunpack.c.l.b16 %v575
        %v870 = vunpack.c.h.b16 %v575
        %v871 = vunpack.c.l.b16 %v576
        %v872 = vunpack.c.h.b16 %v576
        %v873 = vunpack.c.l.b16 %v577
        %v874 = vunpack.c.h.b16 %v577
        %v875 = vunpack.c.l.b16 %v578
        %v876 = vunpack.c.h.b16 %v578
        %v877 = vunpack.c.l.b16 %v579
        %v878 = vunpack.c.h.b16 %v579
        %v879 = vunpack.c.l.b16 %v580
        %v880 = vunpack.c.h.b16 %v580
        %v881 = vunpack.c.l.b16 %v581
        %v882 = vunpack.c.h.b16 %v581
        %v883 = vunpack.c.l.b16 %v582
        %v884 = vunpack.c.h.b16 %v582
        %v885 = vunpack.c.l.b16 %v583
        %v886 = vunpack.c.h.b16 %v583
        %v887 = vunpack.c.l.b16 %v584
        %v888 = vunpack.c.h.b16 %v584
        %v889 = vunpack.c.l.b16 %v585
        %v890 = vunpack.c.h.b16 %v585
        %v891 = vunpack.c.l.b16 %v586
        %v892 = vunpack.c.h.b16 %v586
        %v893 = vunpack.c.l.b16 %v587
        %v894 = vunpack.c.h.b16 %v587
        %v895 = vunpack.c.l.b16 %v588
        %v896 = vunpack.c.h.b16 %v588
        %v897 = vunpack.c.l.b16 %v589
        %v898 = vunpack.c.h.b16 %v589
        %v899 = vunpack.c.l.b16 %v590
        %v900 = vunpack.c.h.b16 %v590
        %v901 = vunpack.c.l.b16 %v591
        %v902 = vunpack.c.h.b16 %v591
        %v903 = vunpack.c.l.b16 %v592
        %v904 = vunpack.c.h.b16 %v592
        %v905 = vunpack.c.l.b16 %v593
        %v906 = vunpack.c.h.b16 %v593
        %v907 = vunpack.c.l.b16 %v594
        %v908 = vunpack.c.h.b16 %v594
        %v909 = vunpack.c.l.b16 %v595
        %v910 = vunpack.c.h.b16 %v595
        %v911 = vunpack.c.l.b16 %v596
        %v912 = vunpack.c.h.b16 %v596
        %v913 = vunpack.c.l.b16 %v597
        %v914 = vunpack.c.h.b16 %v597
        %v915 = vunpack.c.l.b16 %v598
        %v916 = vunpack.c.h.b16 %v598
        %v917 = vunpack.c.l.b16 %v599
        %v918 = vunpack.c.h.b16 %v599
        %v919 = vunpack.c.l.b16 %v600
        %v920 = vunpack.c.h.b16 %v600
        %v921 = vunpack.c.l.b16 %v601
        %v922 = vunpack.c.h.b16 %v601
        %v923 = vunpack.c.l.b16 %v602
        %v924 = vunpack.c.h.b16 %v602
        %v925 = vunpack.c.l.b16 %v603
        %v926 = vunpack.c.h.b16 %v603
        %v927 = vunpack.c.l.b16 %v604
        %v928 = vunpack.c.h.b16 %v604
        %v929 = vunpack.c.l.b16 %v605
        %v930 = vunpack.c.h.b16 %v605
        %v931 = vunpack.c.l.b16 %v606
        %v932 = vunpack.c.h.b16 %v606
        %v933 = vunpack.c.l.b16 %v607
        %v934 = vunpack.c.h.b16 %v607
        %v935 = vunpack.c.l.b16 %v608
        %v936 = vunpack.c.h.b16 %v608
        %v937 = vunpack.c.l.b16 %v609
        %v938 = vunpack.c.h.b16 %v609
        %v939 = vunpack.c.l.b16 %v610
        %v940 = vunpack.c.h.b16 %v610
        %v941 = vunpack.c.l.b16 %v611
        %v942 = vunpack.c.h.b16 %v611
        %v943 = vunpack.c.l.b16 %v612
        %v944 = vunpack.c.h.b16 %v612
        %v945 = vunpack.c.l.b16 %v613
        %v946 = vunpack.c.h.b16 %v613
        %v947 = vunpack.c.l.b16 %v614
        %v948 = vunpack.c.h.b16 %v614
        %v949 = vunpack.c.l.b16 %v615
        %v950 = vunpack.c.h.b16 %v615
        %v951 = vunpack.c.l.b16 %v616
        %v952 = vunpack.c.h.b16 %v616
        %v953 = vunpack.c.l.b16 %v617
        %v954 = vunpack.c.h.b16 %v617
        %v955 = vunpack.c.l.b16 %v618
        %v956 = vunpack.c.h.b16 %v618
        %v957 = vunpack.c.l.b16 %v619
        %v958 = vunpack.c.h.b16 %v619
        %v959 = vunpack.c.l.b16 %v620
        %v960 = vunpack.c.h.b16 %v620
        %v961 = vunpack.c.l.b16 %v621
        %v962 = vunpack.c.h.b16 %v621
        %v963 = vunpack.c.l.b16 %v622
        %v964 = vunpack.c.h.b16 %v622
        %v965 = vunpack.c.l.b16 %v623
        %v966 = vunpack.c.h.b16 %v623
        %v967 = vunpack.c.l.b16 %v624
        %v968 = vunpack.c.h.b16 %v624
        %v969 = vunpack.c.l.b16 %v625
        %v970 = vunpack.c.h.b16 %v625
        %v971 = vunpack.c.l.b16 %v626
        %v972 = vunpack.c.h.b16 %v626
        %v973 = vunpack.c.l.b16 %v627
        %v974 = vunpack.c.h.b16 %v627
        %v975 = vunpack.c.l.b16 %v628
        %v976 = vunpack.c.h.b16 %v628
        %v977 = vunpack.c.l.b16 %v629
        %v978 = vunpack.c.h.b16 %v629
        %v979 = vunpack.c.l.b16 %v630
        %v980 = vunpack.c.h.b16 %v630
        %v981 = vunpack.c.l.b16 %v631
        %v982 = vunpack.c.h.b16 %v631
        %v983 = vunpack.c.l.b16 %v632
        %v984 = vunpack.c.h.b16 %v632
        %v985 = vunpack.c.l.b16 %v633
        %v986 = vunpack.c.h.b16 %v633
        %v987 = vunpack.c.l.b16 %v634
        %v988 = vunpack.c.h.b16 %v634
        %v989 = vunpack.c.l.b16 %v635
        %v990 = vunpack.c.h.b16 %v635
        %v991 = vunpack.c.l.b16 %v636
        %v992 = vunpack.c.h.b16 %v636
        %v993 = vunpack.c.l.b16 %v637
        %v994 = vunpack.c.h.b16 %v637
        %v995 = vunpack.c.l.b16 %v638
        %v996 = vunpack.c.h.b16 %v638
        %v997 = vunpack.c.l.b16 %v639
        %v998 = vunpack.c.h.b16 %v639
        %v999 = vunpack.c.l.b16 %v640
        %v1000 = vunpack.c.h.b16 %v640
        %v1001 = vunpack.c.l.b16 %v641
        %v1002 = vunpack.c.h.b16 %v641
        %v1003 = vunpack.c.l.b16 %v642
        %v1004 = vunpack.c.h.b16 %v642
        %v1005 = vunpack.c.l.b16 %v643
        %v1006 = vunpack.c.h.b16 %v643
        %v1007 = vunpack.c.l.b16 %v644
        %v1008 = vunpack.c.h.b16 %v644
        %v1009 = vunpack.c.l.b16 %v645
        %v1010 = vunpack.c.h.b16 %v645
        %v1011 = vunpack.c.l.b16 %v646
        %v1012 = vunpack.c.h.b16 %v646
        %v1013 = vunpack.c.l.b16 %v647
        %v1014 = vunpack.c.h.b16 %v647
        %v1015 = vunpack.c.l.b16 %v648
        %v1016 = vunpack.c.h.b16 %v648
        %v1017 = vunpack.c.l.b16 %v649
        %v1018 = vunpack.c.h.b16 %v649
        %v1019 = vunpack.c.l.b16 %v650
        %v1020 = vunpack.c.h.b16 %v650
        %v1021 = vunpack.c.l.b16 %v651
        %v1022 = vunpack.c.h.b16 %v651
        %v1023 = vunpack.c.l.b16 %v652
        %v1024 = vunpack.c.h.b16 %v652
        %v1025 = vunpack.c.l.b16 %v653
        %v1026 = vunpack.c.h.b16 %v653
        %v1027 = vunpack.c.l.b16 %v654
        %v1028 = vunpack.c.h.b16 %v654
        %v1029 = vunpack.c.l.b16 %v655
        %v1030 = vunpack.c.h.b16 %v655
        %v1031 = vunpack.c.l.b16 %v656
        %v1032 = vunpack.c.h.b16 %v656
        %v1033 = vunpack.c.l.b16 %v657
        %v1034 = vunpack.c.h.b16 %v657
        %v1035 = vunpack.c.l.b16 %v658
        %v1036 = vunpack.c.h.b16 %v658
        %v1037 = vunpack.c.l.b16 %v659
        %v1038 = vunpack.c.h.b16 %v659
        %v1039 = vunpack.c.l.b16 %v660
        %v1040 = vunpack.c.h.b16 %v660
        %v1041 = vunpack.c.l.b16 %v661
        %v1042 = vunpack.c.h.b16 %v661
        %v1043 = vunpack.c.l.b16 %v662
        %v1044 = vunpack.c.h.b16 %v662
        %v1045 = vunpack.c.l.b16 %v663
        %v1046 = vunpack.c.h.b16 %v663
        %v1047 = vunpack.c.l.b16 %v664
        %v1048 = vunpack.c.h.b16 %v664
        %v1049 = vunpack.c.l.b16 %v665
        %v1050 = vunpack.c.h.b16 %v665
        %v1051 = vunpack.c.l.b16 %v666
        %v1052 = vunpack.c.h.b16 %v666
        %v1053 = vunpack.c.l.b16 %v667
        %v1054 = vunpack.c.h.b16 %v667
        %v1055 = vunpack.c.l.b16 %v668
        %v1056 = vunpack.c.h.b16 %v668
        %v1057 = vunpack.c.l.b16 %v669
        %v1058 = vunpack.c.h.b16 %v669
        %v1059 = vunpack.c.l.b16 %v670
        %v1060 = vunpack.c.h.b16 %v670
        %v1061 = vunpack.c.l.b16 %v671
        %v1062 = vunpack.c.h.b16 %v671
        %v1063 = vunpack.c.l.b16 %v672
        %v1064 = vunpack.c.h.b16 %v672
        %v1065 = vunpack.c.l.b16 %v673
        %v1066 = vunpack.c.h.b16 %v673
        %v1067 = vunpack.c.l.b16 %v674
        %v1068 = vunpack.c.h.b16 %v674
        %v1069 = vunpack.c.l.b16 %v675
        %v1070 = vunpack.c.h.b16 %v675
        %v1071 = vunpack.c.l.b16 %v676
        %v1072 = vunpack.c.h.b16 %v676
        %v1073 = vunpack.c.l.b16 %v677
        %v1074 = vunpack.c.h.b16 %v677
        %v1075 = vunpack.c.l.b16 %v678
        %v1076 = vunpack.c.h.b16 %v678
        %v1077 = vunpack.c.l.b16 %v679
        %v1078 = vunpack.c.h.b16 %v679
        %v1079 = vunpack.c.l.b16 %v680
        %v1080 = vunpack.c.h.b16 %v680
        %v1081 = vunpack.c.l.b16 %v681
        %v1082 = vunpack.c.h.b16 %v681
        %v1083 = vunpack.c.l.b16 %v682
        %v1084 = vunpack.c.h.b16 %v682
        %v1085 = vunpack.c.l.b16 %v683
        %v1086 = vunpack.c.h.b16 %v683
        %v1087 = vunpack.c.l.b16 %v684
        %v1088 = vunpack.c.h.b16 %v684
        %v1089 = vunpack.c.l.b16 %v685
        %v1090 = vunpack.c.h.b16 %v685
        %v1091 = vunpack.c.l.b16 %v686
        %v1092 = vunpack.c.h.b16 %v686
        %v1093 = vunpack.c.l.b16 %v687
        %v1094 = vunpack.c.h.b16 %v687
        %v1095 = vunpack.c.l.b16 %v688
        %v1096 = vunpack.c.h.b16 %v688
        %v1097 = vunpack.c.l.b16 %v689
        %v1098 = vunpack.c.h.b16 %v689
        %v1099 = vunpack.c.l.b16 %v690
        %v1100 = vunpack.c.h.b16 %v690
        %v1101 = vunpack.c.l.b16 %v691
        %v1102 = vunpack.c.h.b16 %v691
        %v1103 = vunpack.c.l.b16 %v692
        %v1104 = vunpack.c.h.b16 %v692
        %v1105 = vunpack.c.l.b16 %v693
        %v1106 = vunpack.c.h.b16 %v693
        %v1107 = vunpack.c.l.b16 %v694
        %v1108 = vunpack.c.h.b16 %v694
        %v1109 = vunpack.c.l.b16 %v695
        %v1110 = vunpack.c.h.b16 %v695
        %v1111 = vunpack.c.l.b16 %v696
        %v1112 = vunpack.c.h.b16 %v696
        %v1113 = vunpack.c.l.b16 %v697
        %v1114 = vunpack.c.h.b16 %v697
        %v1115 = vunpack.c.l.b16 %v698
        %v1116 = vunpack.c.h.b16 %v698
        %v1117 = vunpack.c.l.b16 %v699
        %v1118 = vunpack.c.h.b16 %v699
        %v1119 = vunpack.c.l.b16 %v700
        %v1120 = vunpack.c.h.b16 %v700
        %v1121 = vpack.c.b16 %v851, %v849
        %v1122 = vpack.c.b16 %v852, %v850
        %v1123 = vpack.c.b16 %v855, %v853
        %v1124 = vpack.c.b16 %v856, %v854
        %v1125 = vpack.c.b16 %v859, %v857
        %v1126 = vpack.c.b16 %v860, %v858
        %v1127 = vpack.c.b16 %v863, %v861
        %v1128 = vpack.c.b16 %v864, %v862
        %v1129 = vpack.c.b16 %v867, %v865
        %v1130 = vpack.c.b16 %v868, %v866
        %v1131 = vpack.c.b16 %v871, %v869
        %v1132 = vpack.c.b16 %v872, %v870
        %v1133 = vpack.c.b16 %v875, %v873
        %v1134 = vpack.c.b16 %v876, %v874
        %v1135 = vpack.c.b16 %v879, %v877
        %v1136 = vpack.c.b16 %v880, %v878
        %v1137 = vpack.c.b16 %v883, %v881
        %v1138 = vpack.c.b16 %v884, %v882
        %v1139 = vpack.c.b16 %v887, %v885
        %v1140 = vpack.c.b16 %v888, %v886
        %v1141 = vpack.c.b16 %v891, %v889
        %v1142 = vpack.c.b16 %v892, %v890
        %v1143 = vpack.c.b16 %v895, %v893
        %v1144 = vpack.c.b16 %v896, %v894
        %v1145 = vpack.c.b16 %v899, %v897
        %v1146 = vpack.c.b16 %v900, %v898
        %v1147 = vpack.c.b16 %v903, %v901
        %v1148 = vpack.c.b16 %v904, %v902
        %v1149 = vpack.c.b16 %v907, %v905
        %v1150 = vpack.c.b16 %v908, %v906
        %v1151 = vpack.c.b16 %v911, %v909
        %v1152 = vpack.c.b16 %v912, %v910
        %v1153 = vpack.c.b16 %v915, %v913
        %v1154 = vpack.c.b16 %v916, %v914
        %v1155 = vpack.c.b16 %v919, %v917
        %v1156 = vpack.c.b16 %v920, %v918
        %v1157 = vpack.c.b16 %v923, %v921
        %v1158 = vpack.c.b16 %v924, %v922
        %v1159 = vpack.c.b16 %v927, %v925
        %v1160 = vpack.c.b16 %v928, %v926
        %v1161 = vpack.c.b16 %v931, %v929
        %v1162 = vpack.c.b16 %v932, %v930
        %v1163 = vpack.c.b16 %v935, %v933
        %v1164 = vpack.c.b16 %v936, %v934
        %v1165 = vpack.c.b16 %v939, %v937
        %v1166 = vpack.c.b16 %v940, %v938
        %v1167 = vpack.c.b16 %v943, %v941
        %v1168 = vpack.c.b16 %v944, %v942
        %v1169 = vpack.c.b16 %v947, %v945
        %v1170 = vpack.c.b16 %v948, %v946
        %v1171 = vpack.c.b16 %v951, %v949
        %v1172 = vpack.c.b16 %v952, %v950
        %v1173 = vpack.c.b16 %v955, %v953
        %v1174 = vpack.c.b16 %v956, %v954
        %v1175 = vpack.c.b16 %v959, %v957
        %v1176 = vpack.c.b16 %v960, %v958
        %v1177 = vpack.c.b16 %v963, %v961
        %v1178 = vpack.c.b16 %v964, %v962
        %v1179 = vpack.c.b16 %v967, %v965
        %v1180 = vpack.c.b16 %v968, %v966
        %v1181 = vpack.c.b16 %v971, %v969
        %v1182 = vpack.c.b16 %v972, %v970
        %v1183 = vpack.c.b16 %v975, %v973
        %v1184 = vpack.c.b16 %v976, %v974
        %v1185 = vpack.c.b16 %v979, %v977
        %v1186 = vpack.c.b16 %v980, %v978
        %v1187 = vpack.c.b16 %v983, %v981
        %v1188 = vpack.c.b16 %v984, %v982
        %v1189 = vpack.c.b16 %v987, %v985
        %v1190 = vpack.c.b16 %v988, %v986
        %v1191 = vpack.c.b16 %v991, %v989
        %v1192 = vpack.c.b16 %v992, %v990
        %v1193 = vpack.c.b16 %v995, %v993
        %v1194 = vpack.c.b16 %v996, %v994
        %v1195 = vpack.c.b16 %v999, %v997
        %v1196 = vpack.c.b16 %v1000, %v998
        %v1197 = vpack.c.b16 %v1003, %v1001
        %v1198 = vpack.c.b16 %v1004, %v1002
        %v1199 = vpack.c.b16 %v1007, %v1005
        %v1200 = vpack.c.b16 %v1008, %v1006
        %v1201 = vpack.c.b16 %v1011, %v1009
        %v1202 = vpack.c.b16 %v1012, %v1010
        %v1203 = vpack.c.b16 %v1015, %v1013
        %v1204 = vpack.c.b16 %v1016, %v1014
        %v1205 = vpack.c.b16 %v1019, %v1017
        %v1206 = vpack.c.b16 %v1020, %v1018
        %v1207 = vpack.c.b16 %v1023, %v1021
        %v1208 = vpack.c.b16 %v1024, %v1022
        %v1209 = vpack.c.b16 %v1027, %v1025
        %v1210 = vpack.c.b16 %v1028, %v1026
        %v1211 = vpack.c.b16 %v1031, %v1029
        %v1212 = vpack.c.b16 %v1032, %v1030
        %v1213 = vpack.c.b16 %v1035, %v1033
        %v1214 = vpack.c.b16 %v1036, %v1034
        %v1215 = vpack.c.b16 %v1039, %v1037
        %v1216 = vpack.c.b16 %v1040, %v1038
        %v1217 = vpack.c.b16 %v1043, %v1041
        %v1218 = vpack.c.b16 %v1044, %v1042
        %v1219 = vpack.c.b16 %v1047, %v1045
        %v1220 = vpack.c.b16 %v1048, %v1046
        %v1221 = vpack.c.b16 %v1051, %v1049
        %v1222 = vpack.c.b16 %v1052, %v1050
        %v1223 = vpack.c.b16 %v1055, %v1053
        %v1224 = vpack.c.b16 %v1056, %v1054
        %v1225 = vpack.c.b16 %v1059, %v1057
        %v1226 = vpack.c.b16 %v1060, %v1058
        %v1227 = vpack.c.b16 %v1063, %v1061
        %v1228 = vpack.c.b16 %v1064, %v1062
        %v1229 = vpack.c.b16 %v1067, %v1065
        %v1230 = vpack.c.b16 %v1068, %v1066
        %v1231 = vpack.c.b16 %v1071, %v1069
        %v1232 = vpack.c.b16 %v1072, %v1070
        %v1233 = vpack.c.b16 %v1075, %v1073
        %v1234 = vpack.c.b16 %v1076, %v1074
        %v1235 = vpack.c.b16 %v1079, %v1077
        %v1236 = vpack.c.b16 %v1080, %v1078
        %v1237 = vpack.c.b16 %v1083, %v1081
        %v1238 = vpack.c.b16 %v1084, %v1082
        %v1239 = vpack.c.b16 %v1087, %v1085
        %v1240 = vpack.c.b16 %v1088, %v1086
        %v1241 = vpack.c.b16 %v1091, %v1089
        %v1242 = vpack.c.b16 %v1092, %v1090
        %v1243 = vpack.c.b16 %v1095, %v1093
        %v1244 = vpack.c.b16 %v1096, %v1094
        %v1245 = vpack.c.b16 %v1099, %v1097
        %v1246 = vpack.c.b16 %v1100, %v1098
        %v1247 = vpack.c.b16 %v1103, %v1101
        %v1248 = vpack.c.b16 %v1104, %v1102
        %v1249 = vpack.c.b16 %v1107, %v1105
        %v1250 = vpack.c.b16 %v1108, %v1106
        %v1251 = vpack.c.b16 %v1111, %v1109
        %v1252 = vpack.c.b16 %v1112, %v1110
        %v1253 = vpack.c.b16 %v1115, %v1113
        %v1254 = vpack.c.b16 %v1116, %v1114
        %v1255 = vpack.c.b16 %v1119, %v1117
        %v1256 = vpack.c.b16 %v1120, %v1118
        %vm1393 = vcmask 523264
        %v1395 = vsel %vm1393, %v537, 0
        %v1398 = vsel %vm1393, %v546, 0
        %v1401 = vsel %vm1393, %v555, 0
        %v1404 = vsel %vm1393, %v564, 0
        %1406 = vmatprep.subr.bf16.mxu0 %v1122
        %1407 = vmatpush1.bf16.msra.mxu0 %v1121
        %1408 = vmatprep.subr.bf16.mxu0 %v1124
        %1409 = vmatpush1.bf16.msra.mxu0 %v1123
        %1410 = vmatprep.subr.bf16.mxu0 %v1126
        %1411 = vmatpush1.bf16.msra.mxu0 %v1125
        %1412 = vmatprep.subr.bf16.mxu0 %v1128
        %1413 = vmatpush1.bf16.msra.mxu0 %v1127
        %1414 = vmatprep.subr.bf16.mxu0 %v1130
        %1415 = vmatpush1.bf16.msra.mxu0 %v1129
        %1416 = vmatprep.subr.bf16.mxu0 %v1132
        %1417 = vmatpush1.bf16.msra.mxu0 %v1131
        %1418 = vmatprep.subr.bf16.mxu0 %v1134
        %1419 = vmatpush1.bf16.msra.mxu0 %v1133
        %1420 = vmatprep.subr.bf16.mxu0 %v1136
        %1421 = vmatpush1.bf16.msra.mxu0 %v1135
        %1422 = vmatprep.subr.bf16.mxu0 %v1138
        %1423 = vmatpush1.bf16.msra.mxu0 %v1137
        %1424 = vmatprep.subr.bf16.mxu0 %v1140
        %1425 = vmatpush1.bf16.msra.mxu0 %v1139
        %1426 = vmatprep.subr.bf16.mxu0 %v1142
        %1427 = vmatpush1.bf16.msra.mxu0 %v1141
        %1428 = vmatprep.subr.bf16.mxu0 %v1144
        %1429 = vmatpush1.bf16.msra.mxu0 %v1143
        %1430 = vmatprep.subr.bf16.mxu0 %v1146
        %1431 = vmatpush1.bf16.msra.mxu0 %v1145
        %1432 = vmatprep.subr.bf16.mxu0 %v1148
        %1433 = vmatpush1.bf16.msra.mxu0 %v1147
        %1434 = vmatprep.subr.bf16.mxu0 %v1150
        %1435 = vmatpush1.bf16.msra.mxu0 %v1149
        %1436 = vmatprep.subr.bf16.mxu0 %v1152
        %1437 = vmatpush1.bf16.msra.mxu0 %v1151
        %1438 = vmatprep.mubr.bf16.mxu0 %v530
        %1439 = vmatmul.mubr.bf16.gmra.mrb[0].mxu0 %v529
        %v1440 = vpop.f32.mrb[0].mxu0
        %v1441 = vadd.f32 %v706, %v1440
        %v1442 = vpop.f32.mrb[0].mxu0
        %v1443 = vadd.f32 %v710, %v1442
        %v1444 = vpop.f32.mrb[0].mxu0
        %v1445 = vadd.f32 %v706, %v1444
        %v1446 = vpop.f32.mrb[0].mxu0
        %v1447 = vadd.f32 %v710, %v1446
        %1448 = vmatprep.mubr.bf16.mxu0 %v539
        %1449 = vmatmul.mubr.bf16.gmra.mrb[0].mxu0 %v538
        %v1450 = vpop.f32.mrb[0].mxu0
        %v1451 = vadd.f32 %v706, %v1450
        %v1452 = vpop.f32.mrb[0].mxu0
        %v1453 = vadd.f32 %v710, %v1452
        %v1454 = vpop.f32.mrb[0].mxu0
        %v1455 = vadd.f32 %v706, %v1454
        %v1456 = vpop.f32.mrb[0].mxu0
        %v1457 = vadd.f32 %v710, %v1456
        %1458 = vmatprep.mubr.bf16.mxu0 %v548
        %1459 = vmatmul.mubr.bf16.gmra.mrb[0].mxu0 %v547
        %v1460 = vpop.f32.mrb[0].mxu0
        %v1461 = vadd.f32 %v706, %v1460
        %v1462 = vpop.f32.mrb[0].mxu0
        %v1463 = vadd.f32 %v710, %v1462
        %v1464 = vpop.f32.mrb[0].mxu0
        %v1465 = vadd.f32 %v706, %v1464
        %v1466 = vpop.f32.mrb[0].mxu0
        %v1467 = vadd.f32 %v710, %v1466
        %1468 = vmatprep.mubr.bf16.mxu0 %v557
        %1469 = vmatmul.mubr.bf16.gmra.mrb[0].mxu0 %v556
        %v1470 = vpop.f32.mrb[0].mxu0
        %v1471 = vadd.f32 %v706, %v1470
        %v1472 = vpop.f32.mrb[0].mxu0
        %v1473 = vadd.f32 %v710, %v1472
        %v1474 = vpop.f32.mrb[0].mxu0
        %v1475 = vadd.f32 %v706, %v1474
        %v1476 = vpop.f32.mrb[0].mxu0
        %v1477 = vadd.f32 %v710, %v1476
        %1478 = vdwg.mxu0
        %1479 = vmatprep.subr.bf16.mxu0 %v1154
        %1480 = vmatpush1.bf16.msra.mxu0 %v1153
        %1481 = vmatprep.subr.bf16.mxu0 %v1156
        %1482 = vmatpush1.bf16.msra.mxu0 %v1155
        %1483 = vmatprep.subr.bf16.mxu0 %v1158
        %1484 = vmatpush1.bf16.msra.mxu0 %v1157
        %1485 = vmatprep.subr.bf16.mxu0 %v1160
        %1486 = vmatpush1.bf16.msra.mxu0 %v1159
        %1487 = vmatprep.subr.bf16.mxu0 %v1162
        %1488 = vmatpush1.bf16.msra.mxu0 %v1161
        %1489 = vmatprep.subr.bf16.mxu0 %v1164
        %1490 = vmatpush1.bf16.msra.mxu0 %v1163
        %1491 = vmatprep.subr.bf16.mxu0 %v1166
        %1492 = vmatpush1.bf16.msra.mxu0 %v1165
        %1493 = vmatprep.subr.bf16.mxu0 %v1168
        %1494 = vmatpush1.bf16.msra.mxu0 %v1167
        %1495 = vmatprep.subr.bf16.mxu0 %v1170
        %1496 = vmatpush1.bf16.msra.mxu0 %v1169
        %1497 = vmatprep.subr.bf16.mxu0 %v1172
        %1498 = vmatpush1.bf16.msra.mxu0 %v1171
        %1499 = vmatprep.subr.bf16.mxu0 %v1174
        %1500 = vmatpush1.bf16.msra.mxu0 %v1173
        %1501 = vmatprep.subr.bf16.mxu0 %v1176
        %1502 = vmatpush1.bf16.msra.mxu0 %v1175
        %1503 = vmatprep.subr.bf16.mxu0 %v1178
        %1504 = vmatpush1.bf16.msra.mxu0 %v1177
        %1505 = vmatprep.subr.bf16.mxu0 %v1180
        %1506 = vmatpush1.bf16.msra.mxu0 %v1179
        %1507 = vmatprep.subr.bf16.mxu0 %v1182
        %1508 = vmatpush1.bf16.msra.mxu0 %v1181
        %1509 = vmatprep.subr.bf16.mxu0 %v1184
        %1510 = vmatpush1.bf16.msra.mxu0 %v1183
        %1511 = vmatprep.mubr.bf16.mxu0 %v532
        %1512 = vmatmul.mubr.bf16.gmra.mrb[0].mxu0 %v531
        %v1513 = vpop.f32.mrb[0].mxu0
        %v1514 = vadd.f32 %v1441, %v1513
        %v1515 = vpop.f32.mrb[0].mxu0
        %v1516 = vadd.f32 %v1443, %v1515
        %v1517 = vpop.f32.mrb[0].mxu0
        %v1518 = vadd.f32 %v1445, %v1517
        %v1519 = vpop.f32.mrb[0].mxu0
        %v1520 = vadd.f32 %v1447, %v1519
        %1521 = vmatprep.mubr.bf16.mxu0 %v541
        %1522 = vmatmul.mubr.bf16.gmra.mrb[0].mxu0 %v540
        %v1523 = vpop.f32.mrb[0].mxu0
        %v1524 = vadd.f32 %v1451, %v1523
        %v1525 = vpop.f32.mrb[0].mxu0
        %v1526 = vadd.f32 %v1453, %v1525
        %v1527 = vpop.f32.mrb[0].mxu0
        %v1528 = vadd.f32 %v1455, %v1527
        %v1529 = vpop.f32.mrb[0].mxu0
        %v1530 = vadd.f32 %v1457, %v1529
        %1531 = vmatprep.mubr.bf16.mxu0 %v550
        %1532 = vmatmul.mubr.bf16.gmra.mrb[0].mxu0 %v549
        %v1533 = vpop.f32.mrb[0].mxu0
        %v1534 = vadd.f32 %v1461, %v1533
        %v1535 = vpop.f32.mrb[0].mxu0
        %v1536 = vadd.f32 %v1463, %v1535
        %v1537 = vpop.f32.mrb[0].mxu0
        %v1538 = vadd.f32 %v1465, %v1537
        %v1539 = vpop.f32.mrb[0].mxu0
        %v1540 = vadd.f32 %v1467, %v1539
        %1541 = vmatprep.mubr.bf16.mxu0 %v559
        %1542 = vmatmul.mubr.bf16.gmra.mrb[0].mxu0 %v558
        %v1543 = vpop.f32.mrb[0].mxu0
        %v1544 = vadd.f32 %v1471, %v1543
        %v1545 = vpop.f32.mrb[0].mxu0
        %v1546 = vadd.f32 %v1473, %v1545
        %v1547 = vpop.f32.mrb[0].mxu0
        %v1548 = vadd.f32 %v1475, %v1547
        %v1549 = vpop.f32.mrb[0].mxu0
        %v1550 = vadd.f32 %v1477, %v1549
        %1551 = vdwg.mxu0
        %1552 = vmatprep.subr.bf16.mxu0 %v1186
        %1553 = vmatpush1.bf16.msra.mxu0 %v1185
        %1554 = vmatprep.subr.bf16.mxu0 %v1188
        %1555 = vmatpush1.bf16.msra.mxu0 %v1187
        %1556 = vmatprep.subr.bf16.mxu0 %v1190
        %1557 = vmatpush1.bf16.msra.mxu0 %v1189
        %1558 = vmatprep.subr.bf16.mxu0 %v1192
        %1559 = vmatpush1.bf16.msra.mxu0 %v1191
        %1560 = vmatprep.subr.bf16.mxu0 %v1194
        %1561 = vmatpush1.bf16.msra.mxu0 %v1193
        %1562 = vmatprep.subr.bf16.mxu0 %v1196
        %1563 = vmatpush1.bf16.msra.mxu0 %v1195
        %1564 = vmatprep.subr.bf16.mxu0 %v1198
        %1565 = vmatpush1.bf16.msra.mxu0 %v1197
        %1566 = vmatprep.subr.bf16.mxu0 %v1200
        %1567 = vmatpush1.bf16.msra.mxu0 %v1199
        %1568 = vmatprep.subr.bf16.mxu0 %v1202
        %1569 = vmatpush1.bf16.msra.mxu0 %v1201
        %1570 = vmatprep.subr.bf16.mxu0 %v1204
        %1571 = vmatpush1.bf16.msra.mxu0 %v1203
        %1572 = vmatprep.subr.bf16.mxu0 %v1206
        %1573 = vmatpush1.bf16.msra.mxu0 %v1205
        %1574 = vmatprep.subr.bf16.mxu0 %v1208
        %1575 = vmatpush1.bf16.msra.mxu0 %v1207
        %1576 = vmatprep.subr.bf16.mxu0 %v1210
        %1577 = vmatpush1.bf16.msra.mxu0 %v1209
        %1578 = vmatprep.subr.bf16.mxu0 %v1212
        %1579 = vmatpush1.bf16.msra.mxu0 %v1211
        %1580 = vmatprep.subr.bf16.mxu0 %v1214
        %1581 = vmatpush1.bf16.msra.mxu0 %v1213
        %1582 = vmatprep.subr.bf16.mxu0 %v1216
        %1583 = vmatpush1.bf16.msra.mxu0 %v1215
        %1584 = vmatprep.mubr.bf16.mxu0 %v534
        %1585 = vmatmul.mubr.bf16.gmra.mrb[0].mxu0 %v533
        %v1586 = vpop.f32.mrb[0].mxu0
        %v1587 = vadd.f32 %v1514, %v1586
        %v1588 = vpop.f32.mrb[0].mxu0
        %v1589 = vadd.f32 %v1516, %v1588
        %v1590 = vpop.f32.mrb[0].mxu0
        %v1591 = vadd.f32 %v1518, %v1590
        %v1592 = vpop.f32.mrb[0].mxu0
        %v1593 = vadd.f32 %v1520, %v1592
        %1594 = vmatprep.mubr.bf16.mxu0 %v543
        %1595 = vmatmul.mubr.bf16.gmra.mrb[0].mxu0 %v542
        %v1596 = vpop.f32.mrb[0].mxu0
        %v1597 = vadd.f32 %v1524, %v1596
        %v1598 = vpop.f32.mrb[0].mxu0
        %v1599 = vadd.f32 %v1526, %v1598
        %v1600 = vpop.f32.mrb[0].mxu0
        %v1601 = vadd.f32 %v1528, %v1600
        %v1602 = vpop.f32.mrb[0].mxu0
        %v1603 = vadd.f32 %v1530, %v1602
        %1604 = vmatprep.mubr.bf16.mxu0 %v552
        %1605 = vmatmul.mubr.bf16.gmra.mrb[0].mxu0 %v551
        %v1606 = vpop.f32.mrb[0].mxu0
        %v1607 = vadd.f32 %v1534, %v1606
        %v1608 = vpop.f32.mrb[0].mxu0
        %v1609 = vadd.f32 %v1536, %v1608
        %v1610 = vpop.f32.mrb[0].mxu0
        %v1611 = vadd.f32 %v1538, %v1610
        %v1612 = vpop.f32.mrb[0].mxu0
        %v1613 = vadd.f32 %v1540, %v1612
        %1614 = vmatprep.mubr.bf16.mxu0 %v561
        %1615 = vmatmul.mubr.bf16.gmra.mrb[0].mxu0 %v560
        %v1616 = vpop.f32.mrb[0].mxu0
        %v1617 = vadd.f32 %v1544, %v1616
        %v1618 = vpop.f32.mrb[0].mxu0
        %v1619 = vadd.f32 %v1546, %v1618
        %v1620 = vpop.f32.mrb[0].mxu0
        %v1621 = vadd.f32 %v1548, %v1620
        %v1622 = vpop.f32.mrb[0].mxu0
        %v1623 = vadd.f32 %v1550, %v1622
        %1624 = vdwg.mxu0
        %1625 = vmatprep.subr.bf16.mxu0 %v1218
        %1626 = vmatpush1.bf16.msra.mxu0 %v1217
        %1627 = vmatprep.subr.bf16.mxu0 %v1220
        %1628 = vmatpush1.bf16.msra.mxu0 %v1219
        %1629 = vmatprep.subr.bf16.mxu0 %v1222
        %1630 = vmatpush1.bf16.msra.mxu0 %v1221
        %1631 = vmatprep.subr.bf16.mxu0 %v1224
        %1632 = vmatpush1.bf16.msra.mxu0 %v1223
        %1633 = vmatprep.subr.bf16.mxu0 %v1226
        %1634 = vmatpush1.bf16.msra.mxu0 %v1225
        %1635 = vmatprep.subr.bf16.mxu0 %v1228
        %1636 = vmatpush1.bf16.msra.mxu0 %v1227
        %1637 = vmatprep.subr.bf16.mxu0 %v1230
        %1638 = vmatpush1.bf16.msra.mxu0 %v1229
        %1639 = vmatprep.subr.bf16.mxu0 %v1232
        %1640 = vmatpush1.bf16.msra.mxu0 %v1231
        %1641 = vmatprep.subr.bf16.mxu0 %v1234
        %1642 = vmatpush1.bf16.msra.mxu0 %v1233
        %1643 = vmatprep.subr.bf16.mxu0 %v1236
        %1644 = vmatpush1.bf16.msra.mxu0 %v1235
        %1645 = vmatprep.subr.bf16.mxu0 %v1238
        %1646 = vmatpush1.bf16.msra.mxu0 %v1237
        %1647 = vmatprep.subr.bf16.mxu0 %v1240
        %1648 = vmatpush1.bf16.msra.mxu0 %v1239
        %1649 = vmatprep.subr.bf16.mxu0 %v1242
        %1650 = vmatpush1.bf16.msra.mxu0 %v1241
        %1651 = vmatprep.subr.bf16.mxu0 %v1244
        %1652 = vmatpush1.bf16.msra.mxu0 %v1243
        %1653 = vmatprep.subr.bf16.mxu0 %v1246
        %1654 = vmatpush1.bf16.msra.mxu0 %v1245
        %1655 = vmatprep.subr.bf16.mxu0 %v1248
        %1656 = vmatpush1.bf16.msra.mxu0 %v1247
        %1657 = vmatprep.mubr.bf16.mxu0 %v536
        %1658 = vmatmul.mubr.bf16.gmra.mrb[0].mxu0 %v535
        %v1659 = vpop.f32.mrb[0].mxu0
        %v1660 = vadd.f32 %v1587, %v1659
        %v1661 = vpop.f32.mrb[0].mxu0
        %v1662 = vadd.f32 %v1589, %v1661
        %v1663 = vpop.f32.mrb[0].mxu0
        %v1664 = vadd.f32 %v1591, %v1663
        %v1665 = vpop.f32.mrb[0].mxu0
        %v1666 = vadd.f32 %v1593, %v1665
        %1667 = vmatprep.mubr.bf16.mxu0 %v545
        %1668 = vmatmul.mubr.bf16.gmra.mrb[0].mxu0 %v544
        %v1669 = vpop.f32.mrb[0].mxu0
        %v1670 = vadd.f32 %v1597, %v1669
        %v1671 = vpop.f32.mrb[0].mxu0
        %v1672 = vadd.f32 %v1599, %v1671
        %v1673 = vpop.f32.mrb[0].mxu0
        %v1674 = vadd.f32 %v1601, %v1673
        %v1675 = vpop.f32.mrb[0].mxu0
        %v1676 = vadd.f32 %v1603, %v1675
        %1677 = vmatprep.mubr.bf16.mxu0 %v554
        %1678 = vmatmul.mubr.bf16.gmra.mrb[0].mxu0 %v553
        %v1679 = vpop.f32.mrb[0].mxu0
        %v1680 = vadd.f32 %v1607, %v1679
        %v1681 = vpop.f32.mrb[0].mxu0
        %v1682 = vadd.f32 %v1609, %v1681
        %v1683 = vpop.f32.mrb[0].mxu0
        %v1684 = vadd.f32 %v1611, %v1683
        %v1685 = vpop.f32.mrb[0].mxu0
        %v1686 = vadd.f32 %v1613, %v1685
        %1687 = vmatprep.mubr.bf16.mxu0 %v563
        %1688 = vmatmul.mubr.bf16.gmra.mrb[0].mxu0 %v562
        %v1689 = vpop.f32.mrb[0].mxu0
        %v1690 = vadd.f32 %v1617, %v1689
        %v1691 = vpop.f32.mrb[0].mxu0
        %v1692 = vadd.f32 %v1619, %v1691
        %v1693 = vpop.f32.mrb[0].mxu0
        %v1694 = vadd.f32 %v1621, %v1693
        %v1695 = vpop.f32.mrb[0].mxu0
        %v1696 = vadd.f32 %v1623, %v1695
        %1697 = vdwg.mxu0
        %1698 = vmatprep.subr.bf16.mxu0 %v1250
        %1699 = vmatpush1.bf16.msra.mxu0 %v1249
        %1700 = vmatprep.subr.bf16.mxu0 %v1252
        %1701 = vmatpush1.bf16.msra.mxu0 %v1251
        %1702 = vmatprep.subr.bf16.mxu0 %v1254
        %1703 = vmatpush1.bf16.msra.mxu0 %v1253
        %1704 = vmatprep.subr.bf16.mxu0 %v1256
        %1705 = vmatpush1.bf16.msra.mxu0 %v1255
        %1706 = vmatprep.subr.bf16.mxu0 0
        %1707 = vmatpush1.bf16.msra.mxu0 0
        %1708 = vmatprep.subr.bf16.mxu0 0
        %1709 = vmatpush1.bf16.msra.mxu0 0
        %1710 = vmatprep.subr.bf16.mxu0 0
        %1711 = vmatpush1.bf16.msra.mxu0 0
        %1712 = vmatprep.subr.bf16.mxu0 0
        %1713 = vmatpush1.bf16.msra.mxu0 0
        %1714 = vmatprep.subr.bf16.mxu0 0
        %1715 = vmatpush1.bf16.msra.mxu0 0
        %1716 = vmatprep.subr.bf16.mxu0 0
        %1717 = vmatpush1.bf16.msra.mxu0 0
        %1718 = vmatprep.subr.bf16.mxu0 0
        %1719 = vmatpush1.bf16.msra.mxu0 0
        %1720 = vmatprep.subr.bf16.mxu0 0
        %1721 = vmatpush1.bf16.msra.mxu0 0
        %1722 = vmatprep.subr.bf16.mxu0 0
        %1723 = vmatpush1.bf16.msra.mxu0 0
        %1724 = vmatprep.subr.bf16.mxu0 0
        %1725 = vmatpush1.bf16.msra.mxu0 0
        %1726 = vmatprep.subr.bf16.mxu0 0
        %1727 = vmatpush1.bf16.msra.mxu0 0
        %1728 = vmatprep.subr.bf16.mxu0 0
        %1729 = vmatpush1.bf16.msra.mxu0 0
        %1730 = vmatprep.mubr.bf16.mxu0 0
        %1731 = vmatmul.mubr.bf16.gmra.mrb[0].mxu0 %v1395
        %v1732 = vpop.f32.mrb[0].mxu0
        %v1733 = vadd.f32 %v1660, %v1732
        %v1734 = vpop.f32.mrb[0].mxu0
        %v1735 = vadd.f32 %v1662, %v1734
        %v1736 = vpop.f32.mrb[0].mxu0
        %v1737 = vadd.f32 %v1664, %v1736
        %v1738 = vpop.f32.mrb[0].mxu0
        %v1739 = vadd.f32 %v1666, %v1738
        %1740 = vmatprep.mubr.bf16.mxu0 0
        %1741 = vmatmul.mubr.bf16.gmra.mrb[0].mxu0 %v1398
        %v1742 = vpop.f32.mrb[0].mxu0
        %v1743 = vadd.f32 %v1670, %v1742
        %v1744 = vpop.f32.mrb[0].mxu0
        %v1745 = vadd.f32 %v1672, %v1744
        %v1746 = vpop.f32.mrb[0].mxu0
        %v1747 = vadd.f32 %v1674, %v1746
        %v1748 = vpop.f32.mrb[0].mxu0
        %v1749 = vadd.f32 %v1676, %v1748
        %1750 = vmatprep.mubr.bf16.mxu0 0
        %1751 = vmatmul.mubr.bf16.gmra.mrb[0].mxu0 %v1401
        %v1752 = vpop.f32.mrb[0].mxu0
        %v1753 = vadd.f32 %v1680, %v1752
        %v1754 = vpop.f32.mrb[0].mxu0
        %v1755 = vadd.f32 %v1682, %v1754
        %v1756 = vpop.f32.mrb[0].mxu0
        %v1757 = vadd.f32 %v1684, %v1756
        %v1758 = vpop.f32.mrb[0].mxu0
        %v1759 = vadd.f32 %v1686, %v1758
        %1760 = vmatprep.mubr.bf16.mxu0 0
        %1761 = vmatmul.mubr.bf16.gmra.mrb[0].mxu0 %v1404
        %v1762 = vpop.f32.mrb[0].mxu0
        %v1763 = vadd.f32 %v1690, %v1762
        %v1764 = vpop.f32.mrb[0].mxu0
        %v1765 = vadd.f32 %v1692, %v1764
        %v1766 = vpop.f32.mrb[0].mxu0
        %v1767 = vadd.f32 %v1694, %v1766
        %v1768 = vpop.f32.mrb[0].mxu0
        %v1769 = vadd.f32 %v1696, %v1768
        %1770 = vdwg.mxu0
        %v1771 = vmax.f32 %v1733, 0.0
        %v1772 = vmax.f32 %v1735, 0.0
        %v1773 = vmax.f32 %v1737, 0.0
        %v1774 = vmax.f32 %v1739, 0.0
        %v1775 = vmax.f32 %v1743, 0.0
        %v1776 = vmax.f32 %v1745, 0.0
        %v1777 = vmax.f32 %v1747, 0.0
        %v1778 = vmax.f32 %v1749, 0.0
        %v1779 = vmax.f32 %v1753, 0.0
        %v1780 = vmax.f32 %v1755, 0.0
        %v1781 = vmax.f32 %v1757, 0.0
        %v1782 = vmax.f32 %v1759, 0.0
        %v1783 = vmax.f32 %v1763, 0.0
        %v1784 = vmax.f32 %v1765, 0.0
        %v1785 = vmax.f32 %v1767, 0.0
        %v1786 = vmax.f32 %v1769, 0.0
        %v1787 = vld [vmem:[#allocation4] sm:$0xf]
        %v1788 = vld [vmem:[#allocation4 + $0x4] sm:$0xf]
        %v1789 = vld [vmem:[#allocation4 + $0x8] sm:$0xf]
        %v1790 = vld [vmem:[#allocation4 + $0xc] sm:$0xf]
        %v1791 = vld [vmem:[#allocation4 + $0x10] sm:$0xf]
        %v1792 = vld [vmem:[#allocation4 + $0x14] sm:$0xf]
        %v1793 = vld [vmem:[#allocation4 + $0x18] sm:$0xf]
        %v1794 = vld [vmem:[#allocation4 + $0x1c] sm:$0xf]
        %v1795 = vld [vmem:[#allocation4 + $0x20] sm:$0xf]
        %v1796 = vld [vmem:[#allocation4 + $0x24] sm:$0xf]
        %v1797 = vld [vmem:[#allocation4 + $0x28] sm:$0xf]
        %v1798 = vld [vmem:[#allocation4 + $0x2c] sm:$0xf]
        %v1799 = vld [vmem:[#allocation4 + $0x30] sm:$0xf]
        %v1800 = vld [vmem:[#allocation4 + $0x34] sm:$0xf]
        %v1801 = vld [vmem:[#allocation4 + $0x38] sm:$0xf]
        %v1802 = vld [vmem:[#allocation4 + $0x3c] sm:$0xf]
        %v1803 = vld [vmem:[#allocation4 + $0x40] sm:$0xf]
        %v1804 = vld [vmem:[#allocation4 + $0x44] sm:$0xf]
        %v1805 = vld [vmem:[#allocation4 + $0x48] sm:$0xf]
        %v1806 = vld [vmem:[#allocation4 + $0x4c] sm:$0xf]
        %v1807 = vld [vmem:[#allocation4 + $0x50] sm:$0xf]
        %v1808 = vld [vmem:[#allocation4 + $0x54] sm:$0xf]
        %v1809 = vld [vmem:[#allocation4 + $0x58] sm:$0xf]
        %v1810 = vld [vmem:[#allocation4 + $0x5c] sm:$0xf]
        %v1811 = vld [vmem:[#allocation4 + $0x60] sm:$0xf]
        %v1812 = vld [vmem:[#allocation4 + $0x64] sm:$0xf]
        %v1813 = vld [vmem:[#allocation4 + $0x68] sm:$0xf]
        %v1814 = vld [vmem:[#allocation4 + $0x6c] sm:$0xf]
        %v1815 = vld [vmem:[#allocation4 + $0x70] sm:$0xf]
        %v1816 = vld [vmem:[#allocation4 + $0x74] sm:$0xf]
        %v1817 = vld [vmem:[#allocation4 + $0x78] sm:$0xf]
        %v1818 = vld [vmem:[#allocation4 + $0x7c] sm:$0xf]
        %v1819 = vld [vmem:[#allocation4 + $0x80] sm:$0xf]
        %v1820 = vld [vmem:[#allocation4 + $0x84] sm:$0xf]
        %v1821 = vld [vmem:[#allocation4 + $0x88] sm:$0xf]
        %v1822 = vld [vmem:[#allocation4 + $0x8c] sm:$0xf]
        %v1823 = vld [vmem:[#allocation4 + $0x90] sm:$0xf]
        %v1824 = vld [vmem:[#allocation4 + $0x94] sm:$0xf]
        %v1825 = vld [vmem:[#allocation4 + $0x98] sm:$0xf]
        %v1826 = vld [vmem:[#allocation4 + $0x9c] sm:$0xf]
        %v1827 = vld [vmem:[#allocation4 + $0xa0] sm:$0xf]
        %v1828 = vld [vmem:[#allocation4 + $0xa4] sm:$0xf]
        %v1829 = vld [vmem:[#allocation4 + $0xa8] sm:$0xf]
        %v1830 = vld [vmem:[#allocation4 + $0xac] sm:$0xf]
        %v1831 = vld [vmem:[#allocation4 + $0xb0] sm:$0xf]
        %v1832 = vld [vmem:[#allocation4 + $0xb4] sm:$0xf]
        %v1833 = vld [vmem:[#allocation4 + $0xb8] sm:$0xf]
        %v1834 = vld [vmem:[#allocation4 + $0xbc] sm:$0xf]
        %v1835 = vld [vmem:[#allocation4 + $0xc0] sm:$0xf]
        %v1836 = vld [vmem:[#allocation4 + $0xc4] sm:$0xf]
        %v1837 = vld [vmem:[#allocation4 + $0xc8] sm:$0xf]
        %v1838 = vld [vmem:[#allocation4 + $0xcc] sm:$0xf]
        %v1839 = vld [vmem:[#allocation4 + $0xd0] sm:$0xf]
        %v1840 = vld [vmem:[#allocation4 + $0xd4] sm:$0xf]
        %v1841 = vld [vmem:[#allocation4 + $0xd8] sm:$0xf]
        %v1842 = vld [vmem:[#allocation4 + $0xdc] sm:$0xf]
        %v1843 = vld [vmem:[#allocation4 + $0xe0] sm:$0xf]
        %v1844 = vld [vmem:[#allocation4 + $0xe4] sm:$0xf]
        %v1845 = vld [vmem:[#allocation4 + $0xe8] sm:$0xf]
        %v1846 = vld [vmem:[#allocation4 + $0xec] sm:$0xf]
        %v1847 = vld [vmem:[#allocation4 + $0xf0] sm:$0xf]
        %v1848 = vld [vmem:[#allocation4 + $0xf4] sm:$0xf]
        %v1849 = vld [vmem:[#allocation4 + $0xf8] sm:$0xf]
        %v1850 = vld [vmem:[#allocation4 + $0xfc] sm:$0xf]
        %v1851 = vld [vmem:[#allocation4 + $0x100] sm:$0xf]
        %v1852 = vld [vmem:[#allocation4 + $0x104] sm:$0xf]
        %v1853 = vld [vmem:[#allocation4 + $0x108] sm:$0xf]
        %v1854 = vld [vmem:[#allocation4 + $0x10c] sm:$0xf]
        %v1855 = vld [vmem:[#allocation4 + $0x110] sm:$0xf]
        %v1856 = vld [vmem:[#allocation4 + $0x114] sm:$0xf]
        %v1857 = vld [vmem:[#allocation4 + $0x118] sm:$0xf]
        %v1858 = vld [vmem:[#allocation4 + $0x11c] sm:$0xf]
        %v1859 = vld [vmem:[#allocation4 + $0x120] sm:$0xf]
        %v1860 = vld [vmem:[#allocation4 + $0x124] sm:$0xf]
        %v1861 = vld [vmem:[#allocation4 + $0x128] sm:$0xf]
        %v1862 = vld [vmem:[#allocation4 + $0x12c] sm:$0xf]
        %v1863 = vld [vmem:[#allocation4 + $0x130] sm:$0xf]
        %v1864 = vld [vmem:[#allocation4 + $0x134] sm:$0xf]
        %v1865 = vld [vmem:[#allocation4 + $0x138] sm:$0xf]
        %v1866 = vld [vmem:[#allocation4 + $0x13c] sm:$0xf]
        %v1867 = vld [vmem:[#allocation4 + $0x140] sm:$0xf]
        %v1868 = vld [vmem:[#allocation4 + $0x144] sm:$0xf]
        %v1869 = vld [vmem:[#allocation4 + $0x148] sm:$0xf]
        %v1870 = vld [vmem:[#allocation4 + $0x14c] sm:$0xf]
        %v1871 = vld [vmem:[#allocation4 + $0x150] sm:$0xf]
        %v1872 = vld [vmem:[#allocation4 + $0x154] sm:$0xf]
        %v1873 = vld [vmem:[#allocation4 + $0x158] sm:$0xf]
        %v1874 = vld [vmem:[#allocation4 + $0x15c] sm:$0xf]
        %v1875 = vld [vmem:[#allocation4 + $0x160] sm:$0xf]
        %v1876 = vld [vmem:[#allocation4 + $0x164] sm:$0xf]
        %v1877 = vld [vmem:[#allocation4 + $0x168] sm:$0xf]
        %v1878 = vld [vmem:[#allocation4 + $0x16c] sm:$0xf]
        %v1879 = vld [vmem:[#allocation4 + $0x170] sm:$0xf]
        %v1880 = vld [vmem:[#allocation4 + $0x174] sm:$0xf]
        %v1881 = vld [vmem:[#allocation4 + $0x178] sm:$0xf]
        %v1882 = vld [vmem:[#allocation4 + $0x17c] sm:$0xf]
        %v1883 = vld [vmem:[#allocation4 + $0x180] sm:$0xf]
        %v1884 = vld [vmem:[#allocation4 + $0x184] sm:$0xf]
        %v1885 = vld [vmem:[#allocation4 + $0x188] sm:$0xf]
        %v1886 = vld [vmem:[#allocation4 + $0x18c] sm:$0xf]
        %v1887 = vld [vmem:[#allocation4 + $0x190] sm:$0xf]
        %v1888 = vld [vmem:[#allocation4 + $0x194] sm:$0xf]
        %v1889 = vld [vmem:[#allocation4 + $0x198] sm:$0xf]
        %v1890 = vld [vmem:[#allocation4 + $0x19c] sm:$0xf]
        %v1891 = vld [vmem:[#allocation4 + $0x1a0] sm:$0xf]
        %v1892 = vld [vmem:[#allocation4 + $0x1a4] sm:$0xf]
        %v1893 = vld [vmem:[#allocation4 + $0x1a8] sm:$0xf]
        %v1894 = vld [vmem:[#allocation4 + $0x1ac] sm:$0xf]
        %v1895 = vld [vmem:[#allocation4 + $0x1b0] sm:$0xf]
        %v1896 = vld [vmem:[#allocation4 + $0x1b4] sm:$0xf]
        %v1897 = vld [vmem:[#allocation4 + $0x1b8] sm:$0xf]
        %v1898 = vld [vmem:[#allocation4 + $0x1bc] sm:$0xf]
        %v1899 = vld [vmem:[#allocation4 + $0x1c0] sm:$0xf]
        %v1900 = vld [vmem:[#allocation4 + $0x1c4] sm:$0xf]
        %v1901 = vld [vmem:[#allocation4 + $0x1c8] sm:$0xf]
        %v1902 = vld [vmem:[#allocation4 + $0x1cc] sm:$0xf]
        %v1903 = vld [vmem:[#allocation4 + $0x1d0] sm:$0xf]
        %v1904 = vld [vmem:[#allocation4 + $0x1d4] sm:$0xf]
        %v1905 = vld [vmem:[#allocation4 + $0x1d8] sm:$0xf]
        %v1906 = vld [vmem:[#allocation4 + $0x1dc] sm:$0xf]
        %v1907 = vld [vmem:[#allocation4 + $0x1e0] sm:$0xf]
        %v1908 = vld [vmem:[#allocation4 + $0x1e4] sm:$0xf]
        %v1909 = vld [vmem:[#allocation4 + $0x1e8] sm:$0xf]
        %v1910 = vld [vmem:[#allocation4 + $0x1ec] sm:$0xf]
        %v1911 = vld [vmem:[#allocation4 + $0x1f0] sm:$0xf]
        %v1912 = vld [vmem:[#allocation4 + $0x1f4] sm:$0xf]
        %v1913 = vld [vmem:[#allocation4 + $0x1f8] sm:$0xf]
        %v1914 = vld [vmem:[#allocation4 + $0x1fc] sm:$0xf]
        %v1915 = vld [vmem:[#allocation4 + $0x200] sm:$0xf]
        %v1916 = vld [vmem:[#allocation4 + $0x204] sm:$0xf]
        %v1917 = vld [vmem:[#allocation4 + $0x208] sm:$0xf]
        %v1918 = vld [vmem:[#allocation4 + $0x20c] sm:$0xf]
        %v1919 = vld [vmem:[#allocation4 + $0x210] sm:$0xf]
        %v1920 = vld [vmem:[#allocation4 + $0x214] sm:$0xf]
        %v1921 = vld [vmem:[#allocation4 + $0x218] sm:$0xf]
        %v1922 = vld [vmem:[#allocation4 + $0x21c] sm:$0xf]
        %v1923 = vld [vmem:[%s4] sm:$0x1]
        %v1925 = vlaneseq
        %v1926 = vshrl.u32 %v1925, 7
        %v1927 = vsub.s32 0, %v1926
        %v1928 = vrot.slane %v1923, %v1927
        %v2066 = vunpack.c.l.b16 %v1787
        %v2067 = vunpack.c.l.b16 %v1788
        %v2068 = vunpack.c.l.b16 %v1789
        %v2069 = vunpack.c.l.b16 %v1790
        %v2070 = vunpack.c.l.b16 %v1791
        %v2071 = vunpack.c.l.b16 %v1792
        %v2072 = vunpack.c.l.b16 %v1793
        %v2073 = vunpack.c.l.b16 %v1794
        %v2074 = vunpack.c.l.b16 %v1795
        %v2075 = vunpack.c.l.b16 %v1796
        %v2076 = vunpack.c.l.b16 %v1797
        %v2077 = vunpack.c.l.b16 %v1798
        %v2078 = vunpack.c.l.b16 %v1799
        %v2079 = vunpack.c.l.b16 %v1800
        %v2080 = vunpack.c.l.b16 %v1801
        %v2081 = vunpack.c.l.b16 %v1802
        %v2082 = vunpack.c.l.b16 %v1803
        %v2083 = vunpack.c.l.b16 %v1804
        %v2084 = vunpack.c.l.b16 %v1805
        %v2085 = vunpack.c.l.b16 %v1806
        %v2086 = vunpack.c.l.b16 %v1807
        %v2087 = vunpack.c.l.b16 %v1808
        %v2088 = vunpack.c.l.b16 %v1809
        %v2089 = vunpack.c.l.b16 %v1810
        %v2090 = vunpack.c.l.b16 %v1811
        %v2091 = vunpack.c.l.b16 %v1812
        %v2092 = vunpack.c.l.b16 %v1813
        %v2093 = vunpack.c.l.b16 %v1814
        %v2094 = vunpack.c.l.b16 %v1815
        %v2095 = vunpack.c.l.b16 %v1816
        %v2096 = vunpack.c.l.b16 %v1817
        %v2097 = vunpack.c.l.b16 %v1818
        %v2098 = vunpack.c.l.b16 %v1819
        %v2099 = vunpack.c.l.b16 %v1820
        %v2100 = vunpack.c.l.b16 %v1821
        %v2101 = vunpack.c.l.b16 %v1822
        %v2102 = vunpack.c.l.b16 %v1823
        %v2103 = vunpack.c.l.b16 %v1824
        %v2104 = vunpack.c.l.b16 %v1825
        %v2105 = vunpack.c.l.b16 %v1826
        %v2106 = vunpack.c.l.b16 %v1827
        %v2107 = vunpack.c.l.b16 %v1828
        %v2108 = vunpack.c.l.b16 %v1829
        %v2109 = vunpack.c.l.b16 %v1830
        %v2110 = vunpack.c.l.b16 %v1831
        %v2111 = vunpack.c.l.b16 %v1832
        %v2112 = vunpack.c.l.b16 %v1833
        %v2113 = vunpack.c.l.b16 %v1834
        %v2114 = vunpack.c.l.b16 %v1835
        %v2115 = vunpack.c.l.b16 %v1836
        %v2116 = vunpack.c.l.b16 %v1837
        %v2117 = vunpack.c.l.b16 %v1838
        %v2118 = vunpack.c.l.b16 %v1839
        %v2119 = vunpack.c.l.b16 %v1840
        %v2120 = vunpack.c.l.b16 %v1841
        %v2121 = vunpack.c.l.b16 %v1842
        %v2122 = vunpack.c.l.b16 %v1843
        %v2123 = vunpack.c.l.b16 %v1844
        %v2124 = vunpack.c.l.b16 %v1845
        %v2125 = vunpack.c.l.b16 %v1846
        %v2126 = vunpack.c.l.b16 %v1847
        %v2127 = vunpack.c.l.b16 %v1848
        %v2128 = vunpack.c.l.b16 %v1849
        %v2129 = vunpack.c.l.b16 %v1850
        %v2130 = vunpack.c.l.b16 %v1851
        %v2131 = vunpack.c.l.b16 %v1852
        %v2132 = vunpack.c.l.b16 %v1853
        %v2133 = vunpack.c.l.b16 %v1854
        %v2134 = vunpack.c.l.b16 %v1855
        %v2135 = vunpack.c.l.b16 %v1856
        %v2136 = vunpack.c.l.b16 %v1857
        %v2137 = vunpack.c.l.b16 %v1858
        %v2138 = vunpack.c.l.b16 %v1859
        %v2139 = vunpack.c.l.b16 %v1860
        %v2140 = vunpack.c.l.b16 %v1861
        %v2141 = vunpack.c.l.b16 %v1862
        %v2142 = vunpack.c.l.b16 %v1863
        %v2143 = vunpack.c.l.b16 %v1864
        %v2144 = vunpack.c.l.b16 %v1865
        %v2145 = vunpack.c.l.b16 %v1866
        %v2146 = vunpack.c.l.b16 %v1867
        %v2147 = vunpack.c.l.b16 %v1868
        %v2148 = vunpack.c.l.b16 %v1869
        %v2149 = vunpack.c.l.b16 %v1870
        %v2150 = vunpack.c.l.b16 %v1871
        %v2151 = vunpack.c.l.b16 %v1872
        %v2152 = vunpack.c.l.b16 %v1873
        %v2153 = vunpack.c.l.b16 %v1874
        %v2154 = vunpack.c.l.b16 %v1875
        %v2155 = vunpack.c.l.b16 %v1876
        %v2156 = vunpack.c.l.b16 %v1877
        %v2157 = vunpack.c.l.b16 %v1878
        %v2158 = vunpack.c.l.b16 %v1879
        %v2159 = vunpack.c.l.b16 %v1880
        %v2160 = vunpack.c.l.b16 %v1881
        %v2161 = vunpack.c.l.b16 %v1882
        %v2162 = vunpack.c.l.b16 %v1883
        %v2163 = vunpack.c.l.b16 %v1884
        %v2164 = vunpack.c.l.b16 %v1885
        %v2165 = vunpack.c.l.b16 %v1886
        %v2166 = vunpack.c.l.b16 %v1887
        %v2167 = vunpack.c.l.b16 %v1888
        %v2168 = vunpack.c.l.b16 %v1889
        %v2169 = vunpack.c.l.b16 %v1890
        %v2170 = vunpack.c.l.b16 %v1891
        %v2171 = vunpack.c.l.b16 %v1892
        %v2172 = vunpack.c.l.b16 %v1893
        %v2173 = vunpack.c.l.b16 %v1894
        %v2174 = vunpack.c.l.b16 %v1895
        %v2175 = vunpack.c.l.b16 %v1896
        %v2176 = vunpack.c.l.b16 %v1897
        %v2177 = vunpack.c.l.b16 %v1898
        %v2178 = vunpack.c.l.b16 %v1899
        %v2179 = vunpack.c.l.b16 %v1900
        %v2180 = vunpack.c.l.b16 %v1901
        %v2181 = vunpack.c.l.b16 %v1902
        %v2182 = vunpack.c.l.b16 %v1903
        %v2183 = vunpack.c.l.b16 %v1904
        %v2184 = vunpack.c.l.b16 %v1905
        %v2185 = vunpack.c.l.b16 %v1906
        %v2186 = vunpack.c.l.b16 %v1907
        %v2187 = vunpack.c.l.b16 %v1908
        %v2188 = vunpack.c.l.b16 %v1909
        %v2189 = vunpack.c.l.b16 %v1910
        %v2190 = vunpack.c.l.b16 %v1911
        %v2191 = vunpack.c.l.b16 %v1912
        %v2192 = vunpack.c.l.b16 %v1913
        %v2193 = vunpack.c.l.b16 %v1914
        %v2194 = vunpack.c.l.b16 %v1915
        %v2195 = vunpack.c.l.b16 %v1916
        %v2196 = vunpack.c.l.b16 %v1917
        %v2197 = vunpack.c.l.b16 %v1918
        %v2198 = vunpack.c.l.b16 %v1919
        %v2199 = vunpack.c.l.b16 %v1920
        %v2200 = vunpack.c.l.b16 %v1921
        %v2201 = vunpack.c.l.b16 %v1922
        %v2202 = vpack.c.b16 %v2067, %v2066
        %v2203 = vpack.c.b16 %v2069, %v2068
        %v2204 = vpack.c.b16 %v2071, %v2070
        %v2205 = vpack.c.b16 %v2073, %v2072
        %v2206 = vpack.c.b16 %v2075, %v2074
        %v2207 = vpack.c.b16 %v2077, %v2076
        %v2208 = vpack.c.b16 %v2079, %v2078
        %v2209 = vpack.c.b16 %v2081, %v2080
        %v2210 = vpack.c.b16 %v2083, %v2082
        %v2211 = vpack.c.b16 %v2085, %v2084
        %v2212 = vpack.c.b16 %v2087, %v2086
        %v2213 = vpack.c.b16 %v2089, %v2088
        %v2214 = vpack.c.b16 %v2091, %v2090
        %v2215 = vpack.c.b16 %v2093, %v2092
        %v2216 = vpack.c.b16 %v2095, %v2094
        %v2217 = vpack.c.b16 %v2097, %v2096
        %v2218 = vpack.c.b16 %v2099, %v2098
        %v2219 = vpack.c.b16 %v2101, %v2100
        %v2220 = vpack.c.b16 %v2103, %v2102
        %v2221 = vpack.c.b16 %v2105, %v2104
        %v2222 = vpack.c.b16 %v2107, %v2106
        %v2223 = vpack.c.b16 %v2109, %v2108
        %v2224 = vpack.c.b16 %v2111, %v2110
        %v2225 = vpack.c.b16 %v2113, %v2112
        %v2226 = vpack.c.b16 %v2115, %v2114
        %v2227 = vpack.c.b16 %v2117, %v2116
        %v2228 = vpack.c.b16 %v2119, %v2118
        %v2229 = vpack.c.b16 %v2121, %v2120
        %v2230 = vpack.c.b16 %v2123, %v2122
        %v2231 = vpack.c.b16 %v2125, %v2124
        %v2232 = vpack.c.b16 %v2127, %v2126
        %v2233 = vpack.c.b16 %v2129, %v2128
        %v2234 = vpack.c.b16 %v2131, %v2130
        %v2235 = vpack.c.b16 %v2133, %v2132
        %v2236 = vpack.c.b16 %v2135, %v2134
        %v2237 = vpack.c.b16 %v2137, %v2136
        %v2238 = vpack.c.b16 %v2139, %v2138
        %v2239 = vpack.c.b16 %v2141, %v2140
        %v2240 = vpack.c.b16 %v2143, %v2142
        %v2241 = vpack.c.b16 %v2145, %v2144
        %v2242 = vpack.c.b16 %v2147, %v2146
        %v2243 = vpack.c.b16 %v2149, %v2148
        %v2244 = vpack.c.b16 %v2151, %v2150
        %v2245 = vpack.c.b16 %v2153, %v2152
        %v2246 = vpack.c.b16 %v2155, %v2154
        %v2247 = vpack.c.b16 %v2157, %v2156
        %v2248 = vpack.c.b16 %v2159, %v2158
        %v2249 = vpack.c.b16 %v2161, %v2160
        %v2250 = vpack.c.b16 %v2163, %v2162
        %v2251 = vpack.c.b16 %v2165, %v2164
        %v2252 = vpack.c.b16 %v2167, %v2166
        %v2253 = vpack.c.b16 %v2169, %v2168
        %v2254 = vpack.c.b16 %v2171, %v2170
        %v2255 = vpack.c.b16 %v2173, %v2172
        %v2256 = vpack.c.b16 %v2175, %v2174
        %v2257 = vpack.c.b16 %v2177, %v2176
        %v2258 = vpack.c.b16 %v2179, %v2178
        %v2259 = vpack.c.b16 %v2181, %v2180
        %v2260 = vpack.c.b16 %v2183, %v2182
        %v2261 = vpack.c.b16 %v2185, %v2184
        %v2262 = vpack.c.b16 %v2187, %v2186
        %v2263 = vpack.c.b16 %v2189, %v2188
        %v2264 = vpack.c.b16 %v2191, %v2190
        %v2265 = vpack.c.b16 %v2193, %v2192
        %v2266 = vpack.c.b16 %v2195, %v2194
        %v2267 = vpack.c.b16 %v2197, %v2196
        %v2268 = vpack.c.b16 %v2199, %v2198
        %v2269 = vpack.c.b16 %v2201, %v2200
        %2338 = vmatprep.subr.bf16.mxu0 0
        %2339 = vmatpush1.bf16.msra.mxu0 %v2202
        %2340 = vmatprep.subr.bf16.mxu0 0
        %2341 = vmatpush1.bf16.msra.mxu0 %v2203
        %2342 = vmatprep.subr.bf16.mxu0 0
        %2343 = vmatpush1.bf16.msra.mxu0 %v2204
        %2344 = vmatprep.subr.bf16.mxu0 0
        %2345 = vmatpush1.bf16.msra.mxu0 %v2205
        %2346 = vmatprep.subr.bf16.mxu0 0
        %2347 = vmatpush1.bf16.msra.mxu0 %v2206
        %2348 = vmatprep.subr.bf16.mxu0 0
        %2349 = vmatpush1.bf16.msra.mxu0 %v2207
        %2350 = vmatprep.subr.bf16.mxu0 0
        %2351 = vmatpush1.bf16.msra.mxu0 %v2208
        %2352 = vmatprep.subr.bf16.mxu0 0
        %2353 = vmatpush1.bf16.msra.mxu0 %v2209
        %2354 = vmatprep.subr.bf16.mxu0 0
        %2355 = vmatpush1.bf16.msra.mxu0 %v2210
        %2356 = vmatprep.subr.bf16.mxu0 0
        %2357 = vmatpush1.bf16.msra.mxu0 %v2211
        %2358 = vmatprep.subr.bf16.mxu0 0
        %2359 = vmatpush1.bf16.msra.mxu0 %v2212
        %2360 = vmatprep.subr.bf16.mxu0 0
        %2361 = vmatpush1.bf16.msra.mxu0 %v2213
        %2362 = vmatprep.subr.bf16.mxu0 0
        %2363 = vmatpush1.bf16.msra.mxu0 %v2214
        %2364 = vmatprep.subr.bf16.mxu0 0
        %2365 = vmatpush1.bf16.msra.mxu0 %v2215
        %2366 = vmatprep.subr.bf16.mxu0 0
        %2367 = vmatpush1.bf16.msra.mxu0 %v2216
        %2368 = vmatprep.subr.bf16.mxu0 0
        %2369 = vmatpush1.bf16.msra.mxu0 %v2217
        %2370 = vmatprep.mubr.bf16.mxu0 %v530
        %2371 = vmatmul.mubr.bf16.gmra.mrb[0].mxu0 %v529
        %v2372 = vpop.f32.mrb[0].mxu0
        %v2373 = vadd.f32 %v1928, %v2372
        %v2374 = vpop.f32.mrb[0].mxu0
        %v2375 = vpop.f32.mrb[0].mxu0
        %v2376 = vadd.f32 %v1928, %v2375
        %v2377 = vpop.f32.mrb[0].mxu0
        %2378 = vmatprep.mubr.bf16.mxu0 %v539
        %2379 = vmatmul.mubr.bf16.gmra.mrb[0].mxu0 %v538
        %v2380 = vpop.f32.mrb[0].mxu0
        %v2381 = vadd.f32 %v1928, %v2380
        %v2382 = vpop.f32.mrb[0].mxu0
        %v2383 = vpop.f32.mrb[0].mxu0
        %v2384 = vadd.f32 %v1928, %v2383
        %v2385 = vpop.f32.mrb[0].mxu0
        %2386 = vmatprep.mubr.bf16.mxu0 %v548
        %2387 = vmatmul.mubr.bf16.gmra.mrb[0].mxu0 %v547
        %v2388 = vpop.f32.mrb[0].mxu0
        %v2389 = vadd.f32 %v1928, %v2388
        %v2390 = vpop.f32.mrb[0].mxu0
        %v2391 = vpop.f32.mrb[0].mxu0
        %v2392 = vadd.f32 %v1928, %v2391
        %v2393 = vpop.f32.mrb[0].mxu0
        %2394 = vmatprep.mubr.bf16.mxu0 %v557
        %2395 = vmatmul.mubr.bf16.gmra.mrb[0].mxu0 %v556
        %v2396 = vpop.f32.mrb[0].mxu0
        %v2397 = vadd.f32 %v1928, %v2396
        %v2398 = vpop.f32.mrb[0].mxu0
        %v2399 = vpop.f32.mrb[0].mxu0
        %v2400 = vadd.f32 %v1928, %v2399
        %v2401 = vpop.f32.mrb[0].mxu0
        %2402 = vdwg.mxu0
        %2403 = vmatprep.subr.bf16.mxu0 0
        %2404 = vmatpush1.bf16.msra.mxu0 %v2218
        %2405 = vmatprep.subr.bf16.mxu0 0
        %2406 = vmatpush1.bf16.msra.mxu0 %v2219
        %2407 = vmatprep.subr.bf16.mxu0 0
        %2408 = vmatpush1.bf16.msra.mxu0 %v2220
        %2409 = vmatprep.subr.bf16.mxu0 0
        %2410 = vmatpush1.bf16.msra.mxu0 %v2221
        %2411 = vmatprep.subr.bf16.mxu0 0
        %2412 = vmatpush1.bf16.msra.mxu0 %v2222
        %2413 = vmatprep.subr.bf16.mxu0 0
        %2414 = vmatpush1.bf16.msra.mxu0 %v2223
        %2415 = vmatprep.subr.bf16.mxu0 0
        %2416 = vmatpush1.bf16.msra.mxu0 %v2224
        %2417 = vmatprep.subr.bf16.mxu0 0
        %2418 = vmatpush1.bf16.msra.mxu0 %v2225
        %2419 = vmatprep.subr.bf16.mxu0 0
        %2420 = vmatpush1.bf16.msra.mxu0 %v2226
        %2421 = vmatprep.subr.bf16.mxu0 0
        %2422 = vmatpush1.bf16.msra.mxu0 %v2227
        %2423 = vmatprep.subr.bf16.mxu0 0
        %2424 = vmatpush1.bf16.msra.mxu0 %v2228
        %2425 = vmatprep.subr.bf16.mxu0 0
        %2426 = vmatpush1.bf16.msra.mxu0 %v2229
        %2427 = vmatprep.subr.bf16.mxu0 0
        %2428 = vmatpush1.bf16.msra.mxu0 %v2230
        %2429 = vmatprep.subr.bf16.mxu0 0
        %2430 = vmatpush1.bf16.msra.mxu0 %v2231
        %2431 = vmatprep.subr.bf16.mxu0 0
        %2432 = vmatpush1.bf16.msra.mxu0 %v2232
        %2433 = vmatprep.subr.bf16.mxu0 0
        %2434 = vmatpush1.bf16.msra.mxu0 %v2233
        %2435 = vmatprep.mubr.bf16.mxu0 %v532
        %2436 = vmatmul.mubr.bf16.gmra.mrb[0].mxu0 %v531
        %v2437 = vpop.f32.mrb[0].mxu0
        %v2438 = vadd.f32 %v2373, %v2437
        %v2439 = vpop.f32.mrb[0].mxu0
        %v2440 = vpop.f32.mrb[0].mxu0
        %v2441 = vadd.f32 %v2376, %v2440
        %v2442 = vpop.f32.mrb[0].mxu0
        %2443 = vmatprep.mubr.bf16.mxu0 %v541
        %2444 = vmatmul.mubr.bf16.gmra.mrb[0].mxu0 %v540
        %v2445 = vpop.f32.mrb[0].mxu0
        %v2446 = vadd.f32 %v2381, %v2445
        %v2447 = vpop.f32.mrb[0].mxu0
        %v2448 = vpop.f32.mrb[0].mxu0
        %v2449 = vadd.f32 %v2384, %v2448
        %v2450 = vpop.f32.mrb[0].mxu0
        %2451 = vmatprep.mubr.bf16.mxu0 %v550
        %2452 = vmatmul.mubr.bf16.gmra.mrb[0].mxu0 %v549
        %v2453 = vpop.f32.mrb[0].mxu0
        %v2454 = vadd.f32 %v2389, %v2453
        %v2455 = vpop.f32.mrb[0].mxu0
        %v2456 = vpop.f32.mrb[0].mxu0
        %v2457 = vadd.f32 %v2392, %v2456
        %v2458 = vpop.f32.mrb[0].mxu0
        %2459 = vmatprep.mubr.bf16.mxu0 %v559
        %2460 = vmatmul.mubr.bf16.gmra.mrb[0].mxu0 %v558
        %v2461 = vpop.f32.mrb[0].mxu0
        %v2462 = vadd.f32 %v2397, %v2461
        %v2463 = vpop.f32.mrb[0].mxu0
        %v2464 = vpop.f32.mrb[0].mxu0
        %v2465 = vadd.f32 %v2400, %v2464
        %v2466 = vpop.f32.mrb[0].mxu0
        %2467 = vdwg.mxu0
        %2468 = vmatprep.subr.bf16.mxu0 0
        %2469 = vmatpush1.bf16.msra.mxu0 %v2234
        %2470 = vmatprep.subr.bf16.mxu0 0
        %2471 = vmatpush1.bf16.msra.mxu0 %v2235
        %2472 = vmatprep.subr.bf16.mxu0 0
        %2473 = vmatpush1.bf16.msra.mxu0 %v2236
        %2474 = vmatprep.subr.bf16.mxu0 0
        %2475 = vmatpush1.bf16.msra.mxu0 %v2237
        %2476 = vmatprep.subr.bf16.mxu0 0
        %2477 = vmatpush1.bf16.msra.mxu0 %v2238
        %2478 = vmatprep.subr.bf16.mxu0 0
        %2479 = vmatpush1.bf16.msra.mxu0 %v2239
        %2480 = vmatprep.subr.bf16.mxu0 0
        %2481 = vmatpush1.bf16.msra.mxu0 %v2240
        %2482 = vmatprep.subr.bf16.mxu0 0
        %2483 = vmatpush1.bf16.msra.mxu0 %v2241
        %2484 = vmatprep.subr.bf16.mxu0 0
        %2485 = vmatpush1.bf16.msra.mxu0 %v2242
        %2486 = vmatprep.subr.bf16.mxu0 0
        %2487 = vmatpush1.bf16.msra.mxu0 %v2243
        %2488 = vmatprep.subr.bf16.mxu0 0
        %2489 = vmatpush1.bf16.msra.mxu0 %v2244
        %2490 = vmatprep.subr.bf16.mxu0 0
        %2491 = vmatpush1.bf16.msra.mxu0 %v2245
        %2492 = vmatprep.subr.bf16.mxu0 0
        %2493 = vmatpush1.bf16.msra.mxu0 %v2246
        %2494 = vmatprep.subr.bf16.mxu0 0
        %2495 = vmatpush1.bf16.msra.mxu0 %v2247
        %2496 = vmatprep.subr.bf16.mxu0 0
        %2497 = vmatpush1.bf16.msra.mxu0 %v2248
        %2498 = vmatprep.subr.bf16.mxu0 0
        %2499 = vmatpush1.bf16.msra.mxu0 %v2249
        %2500 = vmatprep.mubr.bf16.mxu0 %v534
        %2501 = vmatmul.mubr.bf16.gmra.mrb[0].mxu0 %v533
        %v2502 = vpop.f32.mrb[0].mxu0
        %v2503 = vadd.f32 %v2438, %v2502
        %v2504 = vpop.f32.mrb[0].mxu0
        %v2505 = vpop.f32.mrb[0].mxu0
        %v2506 = vadd.f32 %v2441, %v2505
        %v2507 = vpop.f32.mrb[0].mxu0
        %2508 = vmatprep.mubr.bf16.mxu0 %v543
        %2509 = vmatmul.mubr.bf16.gmra.mrb[0].mxu0 %v542
        %v2510 = vpop.f32.mrb[0].mxu0
        %v2511 = vadd.f32 %v2446, %v2510
        %v2512 = vpop.f32.mrb[0].mxu0
        %v2513 = vpop.f32.mrb[0].mxu0
        %v2514 = vadd.f32 %v2449, %v2513
        %v2515 = vpop.f32.mrb[0].mxu0
        %2516 = vmatprep.mubr.bf16.mxu0 %v552
        %2517 = vmatmul.mubr.bf16.gmra.mrb[0].mxu0 %v551
        %v2518 = vpop.f32.mrb[0].mxu0
        %v2519 = vadd.f32 %v2454, %v2518
        %v2520 = vpop.f32.mrb[0].mxu0
        %v2521 = vpop.f32.mrb[0].mxu0
        %v2522 = vadd.f32 %v2457, %v2521
        %v2523 = vpop.f32.mrb[0].mxu0
        %2524 = vmatprep.mubr.bf16.mxu0 %v561
        %2525 = vmatmul.mubr.bf16.gmra.mrb[0].mxu0 %v560
        %v2526 = vpop.f32.mrb[0].mxu0
        %v2527 = vadd.f32 %v2462, %v2526
        %v2528 = vpop.f32.mrb[0].mxu0
        %v2529 = vpop.f32.mrb[0].mxu0
        %v2530 = vadd.f32 %v2465, %v2529
        %v2531 = vpop.f32.mrb[0].mxu0
        %2532 = vdwg.mxu0
        %2533 = vmatprep.subr.bf16.mxu0 0
        %2534 = vmatpush1.bf16.msra.mxu0 %v2250
        %2535 = vmatprep.subr.bf16.mxu0 0
        %2536 = vmatpush1.bf16.msra.mxu0 %v2251
        %2537 = vmatprep.subr.bf16.mxu0 0
        %2538 = vmatpush1.bf16.msra.mxu0 %v2252
        %2539 = vmatprep.subr.bf16.mxu0 0
        %2540 = vmatpush1.bf16.msra.mxu0 %v2253
        %2541 = vmatprep.subr.bf16.mxu0 0
        %2542 = vmatpush1.bf16.msra.mxu0 %v2254
        %2543 = vmatprep.subr.bf16.mxu0 0
        %2544 = vmatpush1.bf16.msra.mxu0 %v2255
        %2545 = vmatprep.subr.bf16.mxu0 0
        %2546 = vmatpush1.bf16.msra.mxu0 %v2256
        %2547 = vmatprep.subr.bf16.mxu0 0
        %2548 = vmatpush1.bf16.msra.mxu0 %v2257
        %2549 = vmatprep.subr.bf16.mxu0 0
        %2550 = vmatpush1.bf16.msra.mxu0 %v2258
        %2551 = vmatprep.subr.bf16.mxu0 0
        %2552 = vmatpush1.bf16.msra.mxu0 %v2259
        %2553 = vmatprep.subr.bf16.mxu0 0
        %2554 = vmatpush1.bf16.msra.mxu0 %v2260
        %2555 = vmatprep.subr.bf16.mxu0 0
        %2556 = vmatpush1.bf16.msra.mxu0 %v2261
        %2557 = vmatprep.subr.bf16.mxu0 0
        %2558 = vmatpush1.bf16.msra.mxu0 %v2262
        %2559 = vmatprep.subr.bf16.mxu0 0
        %2560 = vmatpush1.bf16.msra.mxu0 %v2263
        %2561 = vmatprep.subr.bf16.mxu0 0
        %2562 = vmatpush1.bf16.msra.mxu0 %v2264
        %2563 = vmatprep.subr.bf16.mxu0 0
        %2564 = vmatpush1.bf16.msra.mxu0 %v2265
        %2565 = vmatprep.mubr.bf16.mxu0 %v536
        %2566 = vmatmul.mubr.bf16.gmra.mrb[0].mxu0 %v535
        %v2567 = vpop.f32.mrb[0].mxu0
        %v2568 = vadd.f32 %v2503, %v2567
        %v2569 = vpop.f32.mrb[0].mxu0
        %v2570 = vpop.f32.mrb[0].mxu0
        %v2571 = vadd.f32 %v2506, %v2570
        %v2572 = vpop.f32.mrb[0].mxu0
        %2573 = vmatprep.mubr.bf16.mxu0 %v545
        %2574 = vmatmul.mubr.bf16.gmra.mrb[0].mxu0 %v544
        %v2575 = vpop.f32.mrb[0].mxu0
        %v2576 = vadd.f32 %v2511, %v2575
        %v2577 = vpop.f32.mrb[0].mxu0
        %v2578 = vpop.f32.mrb[0].mxu0
        %v2579 = vadd.f32 %v2514, %v2578
        %v2580 = vpop.f32.mrb[0].mxu0
        %2581 = vmatprep.mubr.bf16.mxu0 %v554
        %2582 = vmatmul.mubr.bf16.gmra.mrb[0].mxu0 %v553
        %v2583 = vpop.f32.mrb[0].mxu0
        %v2584 = vadd.f32 %v2519, %v2583
        %v2585 = vpop.f32.mrb[0].mxu0
        %v2586 = vpop.f32.mrb[0].mxu0
        %v2587 = vadd.f32 %v2522, %v2586
        %v2588 = vpop.f32.mrb[0].mxu0
        %2589 = vmatprep.mubr.bf16.mxu0 %v563
        %2590 = vmatmul.mubr.bf16.gmra.mrb[0].mxu0 %v562
        %v2591 = vpop.f32.mrb[0].mxu0
        %v2592 = vadd.f32 %v2527, %v2591
        %v2593 = vpop.f32.mrb[0].mxu0
        %v2594 = vpop.f32.mrb[0].mxu0
        %v2595 = vadd.f32 %v2530, %v2594
        %v2596 = vpop.f32.mrb[0].mxu0
        %2597 = vdwg.mxu0
        %2598 = vmatprep.subr.bf16.mxu0 0
        %2599 = vmatpush1.bf16.msra.mxu0 %v2266
        %2600 = vmatprep.subr.bf16.mxu0 0
        %2601 = vmatpush1.bf16.msra.mxu0 %v2267
        %2602 = vmatprep.subr.bf16.mxu0 0
        %2603 = vmatpush1.bf16.msra.mxu0 %v2268
        %2604 = vmatprep.subr.bf16.mxu0 0
        %2605 = vmatpush1.bf16.msra.mxu0 %v2269
        %2606 = vmatprep.subr.bf16.mxu0 0
        %2607 = vmatpush1.bf16.msra.mxu0 0
        %2608 = vmatprep.subr.bf16.mxu0 0
        %2609 = vmatpush1.bf16.msra.mxu0 0
        %2610 = vmatprep.subr.bf16.mxu0 0
        %2611 = vmatpush1.bf16.msra.mxu0 0
        %2612 = vmatprep.subr.bf16.mxu0 0
        %2613 = vmatpush1.bf16.msra.mxu0 0
        %2614 = vmatprep.subr.bf16.mxu0 0
        %2615 = vmatpush1.bf16.msra.mxu0 0
        %2616 = vmatprep.subr.bf16.mxu0 0
        %2617 = vmatpush1.bf16.msra.mxu0 0
        %2618 = vmatprep.subr.bf16.mxu0 0
        %2619 = vmatpush1.bf16.msra.mxu0 0
        %2620 = vmatprep.subr.bf16.mxu0 0
        %2621 = vmatpush1.bf16.msra.mxu0 0
        %2622 = vmatprep.subr.bf16.mxu0 0
        %2623 = vmatpush1.bf16.msra.mxu0 0
        %2624 = vmatprep.subr.bf16.mxu0 0
        %2625 = vmatpush1.bf16.msra.mxu0 0
        %2626 = vmatprep.subr.bf16.mxu0 0
        %2627 = vmatpush1.bf16.msra.mxu0 0
        %2628 = vmatprep.subr.bf16.mxu0 0
        %2629 = vmatpush1.bf16.msra.mxu0 0
        %2630 = vmatprep.mubr.bf16.mxu0 0
        %2631 = vmatmul.mubr.bf16.gmra.mrb[0].mxu0 %v1395
        %v2632 = vpop.f32.mrb[0].mxu0
        %v2633 = vadd.f32 %v2568, %v2632
        %v2634 = vpop.f32.mrb[0].mxu0
        %v2635 = vpop.f32.mrb[0].mxu0
        %v2636 = vadd.f32 %v2571, %v2635
        %v2637 = vpop.f32.mrb[0].mxu0
        %2638 = vmatprep.mubr.bf16.mxu0 0
        %2639 = vmatmul.mubr.bf16.gmra.mrb[0].mxu0 %v1398
        %v2640 = vpop.f32.mrb[0].mxu0
        %v2641 = vadd.f32 %v2576, %v2640
        %v2642 = vpop.f32.mrb[0].mxu0
        %v2643 = vpop.f32.mrb[0].mxu0
        %v2644 = vadd.f32 %v2579, %v2643
        %v2645 = vpop.f32.mrb[0].mxu0
        %2646 = vmatprep.mubr.bf16.mxu0 0
        %2647 = vmatmul.mubr.bf16.gmra.mrb[0].mxu0 %v1401
        %v2648 = vpop.f32.mrb[0].mxu0
        %v2649 = vadd.f32 %v2584, %v2648
        %v2650 = vpop.f32.mrb[0].mxu0
        %v2651 = vpop.f32.mrb[0].mxu0
        %v2652 = vadd.f32 %v2587, %v2651
        %v2653 = vpop.f32.mrb[0].mxu0
        %2654 = vmatprep.mubr.bf16.mxu0 0
        %2655 = vmatmul.mubr.bf16.gmra.mrb[0].mxu0 %v1404
        %v2656 = vpop.f32.mrb[0].mxu0
        %v2657 = vadd.f32 %v2592, %v2656
        %v2658 = vpop.f32.mrb[0].mxu0
        %v2659 = vpop.f32.mrb[0].mxu0
        %v2660 = vadd.f32 %v2595, %v2659
        %v2661 = vpop.f32.mrb[0].mxu0
        %2662 = vdwg.mxu0
        %v2663 = vmax.f32 %v2633, 0.0
        %v2664 = vmax.f32 %v2636, 0.0
        %v2665 = vmax.f32 %v2641, 0.0
        %v2666 = vmax.f32 %v2644, 0.0
        %v2667 = vmax.f32 %v2649, 0.0
        %v2668 = vmax.f32 %v2652, 0.0
        %v2669 = vmax.f32 %v2657, 0.0
        %v2670 = vmax.f32 %v2660, 0.0
        %2671 = vst [vmem:[#allocation2] sm:$0x7] 0.0
        %2672 = vst [vmem:[#allocation2 + $0x10] sm:$0x7] 0.0
        %2673 = vst [vmem:[#allocation2 + $0x20] sm:$0x7] 0.0
        %2674 = vst [vmem:[#allocation2 + $0x30] sm:$0x7] 0.0
        %2675 = vst [vmem:[#allocation2 + $0x40] sm:$0x7] 0.0
        %2676 = vst [vmem:[#allocation2 + $0x50] sm:$0x7] 0.0
        %2677 = vst [vmem:[#allocation2 + $0x60] sm:$0x7] 0.0
        %2678 = vst [vmem:[#allocation2 + $0x70] sm:$0x7] 0.0
        %2679 = vst [vmem:[#allocation2 + $0xb] sm:$0x7] 0.0
        %2680 = vst [vmem:[#allocation2 + $0x1b] sm:$0x7] 0.0
        %2681 = vst [vmem:[#allocation2 + $0x2b] sm:$0x7] 0.0
        %2682 = vst [vmem:[#allocation2 + $0x3b] sm:$0x7] 0.0
        %2683 = vst [vmem:[#allocation2 + $0x4b] sm:$0x7] 0.0
        %2684 = vst [vmem:[#allocation2 + $0x5b] sm:$0x7] 0.0
        %2685 = vst [vmem:[#allocation2 + $0x6b] sm:$0x7] 0.0
        %2686 = vst [vmem:[#allocation2 + $0x7b] sm:$0x7] 0.0
        %2687 = vst [vmem:[#allocation2 + $0x3] sm:$0xff] %v2663
        %2688 = vst [vmem:[#allocation2 + $0x13] sm:$0xff] %v2664
        %2689 = vst [vmem:[#allocation2 + $0x23] sm:$0xff] %v2665
        %2690 = vst [vmem:[#allocation2 + $0x33] sm:$0xff] %v2666
        %2691 = vst [vmem:[#allocation2 + $0x43] sm:$0xff] %v2667
        %2692 = vst [vmem:[#allocation2 + $0x53] sm:$0xff] %v2668
        %2693 = vst [vmem:[#allocation2 + $0x63] sm:$0xff] %v2669
        %2694 = vst [vmem:[#allocation2 + $0x73] sm:$0xff] %v2670
        %v2695 = vld [vmem:[#allocation2] sm:$0xff]
        %v2696 = vld [vmem:[#allocation2 + $0x10] sm:$0xff]
        %v2697 = vld [vmem:[#allocation2 + $0x20] sm:$0xff]
        %v2698 = vld [vmem:[#allocation2 + $0x30] sm:$0xff]
        %v2699 = vld [vmem:[#allocation2 + $0x40] sm:$0xff]
        %v2700 = vld [vmem:[#allocation2 + $0x50] sm:$0xff]
        %v2701 = vld [vmem:[#allocation2 + $0x60] sm:$0xff]
        %v2702 = vld [vmem:[#allocation2 + $0x70] sm:$0xff]
        %v2703 = vld [vmem:[#allocation2 + $0x1] sm:$0xff]
        %v2704 = vld [vmem:[#allocation2 + $0x11] sm:$0xff]
        %v2705 = vld [vmem:[#allocation2 + $0x21] sm:$0xff]
        %v2706 = vld [vmem:[#allocation2 + $0x31] sm:$0xff]
        %v2707 = vld [vmem:[#allocation2 + $0x41] sm:$0xff]
        %v2708 = vld [vmem:[#allocation2 + $0x51] sm:$0xff]
        %v2709 = vld [vmem:[#allocation2 + $0x61] sm:$0xff]
        %v2710 = vld [vmem:[#allocation2 + $0x71] sm:$0xff]
        %v2711 = vld [vmem:[#allocation2 + $0x2] sm:$0xff]
        %v2712 = vld [vmem:[#allocation2 + $0x12] sm:$0xff]
        %v2713 = vld [vmem:[#allocation2 + $0x22] sm:$0xff]
        %v2714 = vld [vmem:[#allocation2 + $0x32] sm:$0xff]
        %v2715 = vld [vmem:[#allocation2 + $0x42] sm:$0xff]
        %v2716 = vld [vmem:[#allocation2 + $0x52] sm:$0xff]
        %v2717 = vld [vmem:[#allocation2 + $0x62] sm:$0xff]
        %v2718 = vld [vmem:[#allocation2 + $0x72] sm:$0xff]
        %v2719 = vld [vmem:[#allocation2 + $0x3] sm:$0xff]
        %v2720 = vld [vmem:[#allocation2 + $0x13] sm:$0xff]
        %v2721 = vld [vmem:[#allocation2 + $0x23] sm:$0xff]
        %v2722 = vld [vmem:[#allocation2 + $0x33] sm:$0xff]
        %v2723 = vld [vmem:[#allocation2 + $0x43] sm:$0xff]
        %v2724 = vld [vmem:[#allocation2 + $0x53] sm:$0xff]
        %v2725 = vld [vmem:[#allocation2 + $0x63] sm:$0xff]
        %v2726 = vld [vmem:[#allocation2 + $0x73] sm:$0xff]
        %v2727 = vld [vmem:[#allocation2 + $0x4] sm:$0xff]
        %v2728 = vld [vmem:[#allocation2 + $0x14] sm:$0xff]
        %v2729 = vld [vmem:[#allocation2 + $0x24] sm:$0xff]
        %v2730 = vld [vmem:[#allocation2 + $0x34] sm:$0xff]
        %v2731 = vld [vmem:[#allocation2 + $0x44] sm:$0xff]
        %v2732 = vld [vmem:[#allocation2 + $0x54] sm:$0xff]
        %v2733 = vld [vmem:[#allocation2 + $0x64] sm:$0xff]
        %v2734 = vld [vmem:[#allocation2 + $0x74] sm:$0xff]
        %v2735 = vld [vmem:[#allocation2 + $0x5] sm:$0xff]
        %v2736 = vld [vmem:[#allocation2 + $0x15] sm:$0xff]
        %v2737 = vld [vmem:[#allocation2 + $0x25] sm:$0xff]
        %v2738 = vld [vmem:[#allocation2 + $0x35] sm:$0xff]
        %v2739 = vld [vmem:[#allocation2 + $0x45] sm:$0xff]
        %v2740 = vld [vmem:[#allocation2 + $0x55] sm:$0xff]
        %v2741 = vld [vmem:[#allocation2 + $0x65] sm:$0xff]
        %v2742 = vld [vmem:[#allocation2 + $0x75] sm:$0xff]
        %v2743 = vld [vmem:[#allocation2 + $0x6] sm:$0xff]
        %v2744 = vld [vmem:[#allocation2 + $0x16] sm:$0xff]
        %v2745 = vld [vmem:[#allocation2 + $0x26] sm:$0xff]
        %v2746 = vld [vmem:[#allocation2 + $0x36] sm:$0xff]
        %v2747 = vld [vmem:[#allocation2 + $0x46] sm:$0xff]
        %v2748 = vld [vmem:[#allocation2 + $0x56] sm:$0xff]
        %v2749 = vld [vmem:[#allocation2 + $0x66] sm:$0xff]
        %v2750 = vld [vmem:[#allocation2 + $0x76] sm:$0xff]
        %v2751 = vpack.c.bf16 %v2696, %v2695
        %v2752 = vpack.c.bf16 %v2704, %v2703
        %v2753 = vpack.c.bf16 %v2712, %v2711
        %v2754 = vpack.c.bf16 %v2720, %v2719
        %v2755 = vpack.c.bf16 %v2728, %v2727
        %v2756 = vpack.c.bf16 %v2736, %v2735
        %v2757 = vpack.c.bf16 %v2744, %v2743
        %v2758 = vpack.c.bf16 %v2698, %v2697
        %v2759 = vpack.c.bf16 %v2706, %v2705
        %v2760 = vpack.c.bf16 %v2714, %v2713
        %v2761 = vpack.c.bf16 %v2722, %v2721
        %v2762 = vpack.c.bf16 %v2730, %v2729
        %v2763 = vpack.c.bf16 %v2738, %v2737
        %v2764 = vpack.c.bf16 %v2746, %v2745
        %v2765 = vpack.c.bf16 %v2700, %v2699
        %v2766 = vpack.c.bf16 %v2708, %v2707
        %v2767 = vpack.c.bf16 %v2716, %v2715
        %v2768 = vpack.c.bf16 %v2724, %v2723
        %v2769 = vpack.c.bf16 %v2732, %v2731
        %v2770 = vpack.c.bf16 %v2740, %v2739
        %v2771 = vpack.c.bf16 %v2748, %v2747
        %v2772 = vpack.c.bf16 %v2702, %v2701
        %v2773 = vpack.c.bf16 %v2710, %v2709
        %v2774 = vpack.c.bf16 %v2718, %v2717
        %v2775 = vpack.c.bf16 %v2726, %v2725
        %v2776 = vpack.c.bf16 %v2734, %v2733
        %v2777 = vpack.c.bf16 %v2742, %v2741
        %v2778 = vpack.c.bf16 %v2750, %v2749
        %v2779 = vld [vmem:[%s5] sm:$0xff]
        %v2780 = vld [vmem:[%s5 + $0x8] sm:$0xff]
        %v2781 = vld [vmem:[%s5 + $0x10] sm:$0xff]
        %v2782 = vld [vmem:[%s5 + $0x18] sm:$0xff]
        %v2783 = vld [vmem:[%s5 + $0x20] sm:$0xff]
        %v2784 = vld [vmem:[%s5 + $0x28] sm:$0xff]
        %v2785 = vld [vmem:[%s5 + $0x30] sm:$0xff]
        %v2786 = vld [vmem:[%s5 + $0x38] sm:$0xff]
        %v2787 = vld [vmem:[%s5 + $0x40] sm:$0xff]
        %v2788 = vld [vmem:[%s5 + $0x48] sm:$0xff]
        %v2789 = vld [vmem:[%s5 + $0x50] sm:$0xff]
        %v2790 = vld [vmem:[%s5 + $0x58] sm:$0xff]
        %v2791 = vld [vmem:[%s5 + $0x60] sm:$0xff]
        %v2792 = vld [vmem:[%s5 + $0x68] sm:$0xff]
        %v2793 = vld [vmem:[%s5 + $0x70] sm:$0xff]
        %v2794 = vld [vmem:[%s5 + $0x78] sm:$0xff]
        %v2795 = vld [vmem:[%s5 + $0x80] sm:$0xff]
        %v2796 = vld [vmem:[%s5 + $0x88] sm:$0xff]
        %v2797 = vld [vmem:[%s5 + $0x90] sm:$0xff]
        %v2798 = vld [vmem:[%s5 + $0x98] sm:$0xff]
        %v2799 = vld [vmem:[%s5 + $0xa0] sm:$0xff]
        %v2800 = vld [vmem:[%s5 + $0xa8] sm:$0xff]
        %v2801 = vld [vmem:[%s5 + $0xb0] sm:$0xff]
        %v2802 = vld [vmem:[%s5 + $0xb8] sm:$0xff]
        %v2803 = vld [vmem:[%s5 + $0xc0] sm:$0xff]
        %v2804 = vld [vmem:[%s5 + $0xc8] sm:$0xff]
        %v2805 = vld [vmem:[%s5 + $0xd0] sm:$0xff]
        %v2806 = vld [vmem:[%s5 + $0xd8] sm:$0xff]
        %v2807 = vld [vmem:[%s5 + $0xe0] sm:$0xff]
        %v2808 = vld [vmem:[%s5 + $0xe8] sm:$0xff]
        %v2809 = vld [vmem:[%s5 + $0xf0] sm:$0xff]
        %v2810 = vld [vmem:[%s5 + $0xf8] sm:$0xff]
        %v2811 = vld [vmem:[%s5 + $0x100] sm:$0xff]
        %v2812 = vld [vmem:[%s5 + $0x108] sm:$0xff]
        %v2813 = vld [vmem:[%s5 + $0x110] sm:$0xff]
        %v2814 = vld [vmem:[%s5 + $0x118] sm:$0xff]
        %v2815 = vld [vmem:[%s5 + $0x120] sm:$0xff]
        %v2816 = vld [vmem:[%s5 + $0x128] sm:$0xff]
        %v2817 = vld [vmem:[%s5 + $0x130] sm:$0xff]
        %v2818 = vld [vmem:[%s5 + $0x138] sm:$0xff]
        %v2819 = vld [vmem:[%s5 + $0x140] sm:$0xff]
        %v2820 = vld [vmem:[%s5 + $0x148] sm:$0xff]
        %v2821 = vld [vmem:[%s5 + $0x150] sm:$0xff]
        %v2822 = vld [vmem:[%s5 + $0x158] sm:$0xff]
        %v2823 = vld [vmem:[%s5 + $0x160] sm:$0xff]
        %v2824 = vld [vmem:[%s5 + $0x168] sm:$0xff]
        %v2825 = vld [vmem:[%s5 + $0x170] sm:$0xff]
        %v2826 = vld [vmem:[%s5 + $0x178] sm:$0xff]
        %v2827 = vld [vmem:[%s5 + $0x180] sm:$0xff]
        %v2828 = vld [vmem:[%s5 + $0x188] sm:$0xff]
        %v2829 = vld [vmem:[%s5 + $0x190] sm:$0xff]
        %v2830 = vld [vmem:[%s5 + $0x198] sm:$0xff]
        %v2831 = vld [vmem:[%s5 + $0x1a0] sm:$0xff]
        %v2832 = vld [vmem:[%s5 + $0x1a8] sm:$0xff]
        %v2833 = vld [vmem:[%s5 + $0x1b0] sm:$0xff]
        %v2834 = vld [vmem:[%s5 + $0x1b8] sm:$0xff]
        %v2835 = vld [vmem:[%s5 + $0x1c0] sm:$0xff]
        %v2836 = vld [vmem:[%s5 + $0x1c8] sm:$0xff]
        %v2837 = vld [vmem:[%s5 + $0x1d0] sm:$0xff]
        %v2838 = vld [vmem:[%s5 + $0x1d8] sm:$0xff]
        %v2839 = vld [vmem:[%s5 + $0x1e0] sm:$0xff]
        %v2840 = vld [vmem:[%s5 + $0x1e8] sm:$0xff]
        %v2841 = vld [vmem:[%s5 + $0x1f0] sm:$0xff]
        %v2842 = vld [vmem:[%s5 + $0x1f8] sm:$0xff]
        %v2843 = vld [vmem:[%s5 + $0x200] sm:$0xff]
        %v2844 = vld [vmem:[%s5 + $0x208] sm:$0xff]
        %v2845 = vld [vmem:[%s5 + $0x210] sm:$0xff]
        %v2846 = vld [vmem:[%s5 + $0x218] sm:$0xff]
        %v2847 = vld [vmem:[%s5 + $0x220] sm:$0xff]
        %v2848 = vld [vmem:[%s5 + $0x228] sm:$0xff]
        %v2849 = vld [vmem:[%s5 + $0x230] sm:$0xff]
        %v2850 = vld [vmem:[%s5 + $0x238] sm:$0xff]
        %v2851 = vld [vmem:[%s5 + $0x240] sm:$0xff]
        %v2852 = vld [vmem:[%s5 + $0x248] sm:$0xff]
        %v2853 = vld [vmem:[%s5 + $0x250] sm:$0xff]
        %v2854 = vld [vmem:[%s5 + $0x258] sm:$0xff]
        %v2855 = vld [vmem:[%s5 + $0x260] sm:$0xff]
        %v2856 = vld [vmem:[%s5 + $0x268] sm:$0xff]
        %v2857 = vld [vmem:[%s5 + $0x270] sm:$0xff]
        %v2858 = vld [vmem:[%s5 + $0x278] sm:$0xff]
        %v2859 = vld [vmem:[%s5 + $0x280] sm:$0xff]
        %v2860 = vld [vmem:[%s5 + $0x288] sm:$0xff]
        %v2861 = vld [vmem:[%s5 + $0x290] sm:$0xff]
        %v2862 = vld [vmem:[%s5 + $0x298] sm:$0xff]
        %v2863 = vld [vmem:[%s5 + $0x2a0] sm:$0xff]
        %v2864 = vld [vmem:[%s5 + $0x2a8] sm:$0xff]
        %v2865 = vld [vmem:[%s5 + $0x2b0] sm:$0xff]
        %v2866 = vld [vmem:[%s5 + $0x2b8] sm:$0xff]
        %v2867 = vld [vmem:[%s5 + $0x2c0] sm:$0xff]
        %v2868 = vld [vmem:[%s5 + $0x2c8] sm:$0xff]
        %v2869 = vld [vmem:[%s5 + $0x2d0] sm:$0xff]
        %v2870 = vld [vmem:[%s5 + $0x2d8] sm:$0xff]
        %v2871 = vld [vmem:[%s5 + $0x2e0] sm:$0xff]
        %v2872 = vld [vmem:[%s5 + $0x2e8] sm:$0xff]
        %v2873 = vld [vmem:[%s5 + $0x2f0] sm:$0xff]
        %v2874 = vld [vmem:[%s5 + $0x2f8] sm:$0xff]
        %v2875 = vld [vmem:[%s5 + $0x300] sm:$0xff]
        %v2876 = vld [vmem:[%s5 + $0x308] sm:$0xff]
        %v2877 = vld [vmem:[%s5 + $0x310] sm:$0xff]
        %v2878 = vld [vmem:[%s5 + $0x318] sm:$0xff]
        %v2879 = vld [vmem:[%s5 + $0x320] sm:$0xff]
        %v2880 = vld [vmem:[%s5 + $0x328] sm:$0xff]
        %v2881 = vld [vmem:[%s5 + $0x330] sm:$0xff]
        %v2882 = vld [vmem:[%s5 + $0x338] sm:$0xff]
        %v2883 = vld [vmem:[%s5 + $0x340] sm:$0xff]
        %v2884 = vld [vmem:[%s5 + $0x348] sm:$0xff]
        %v2885 = vld [vmem:[%s5 + $0x350] sm:$0xff]
        %v2886 = vld [vmem:[%s5 + $0x358] sm:$0xff]
        %v2887 = vld [vmem:[%s5 + $0x360] sm:$0xff]
        %v2888 = vld [vmem:[%s5 + $0x368] sm:$0xff]
        %v2889 = vld [vmem:[%s5 + $0x370] sm:$0xff]
        %v2890 = vld [vmem:[%s5 + $0x378] sm:$0xff]
        %v2891 = vld [vmem:[%s6] sm:$0x3]
        %v2893 = vlaneseq
        %v2894 = vshrl.u32 %v2893, 7
        %v2895 = vsub.s32 0, %v2894
        %v2896 = vrot.slane %v2891, %v2895
        %v2897 = vlaneseq
        %v2898 = vshrl.u32 %v2897, 7
        %v2899 = vsub.s32 1, %v2898
        %v2900 = vrot.slane %v2891, %v2899
        %v3015 = vunpack.c.l.b16 %v2779
        %v3016 = vunpack.c.h.b16 %v2779
        %v3017 = vunpack.c.l.b16 %v2780
        %v3018 = vunpack.c.h.b16 %v2780
        %v3019 = vunpack.c.l.b16 %v2781
        %v3020 = vunpack.c.h.b16 %v2781
        %v3021 = vunpack.c.l.b16 %v2782
        %v3022 = vunpack.c.h.b16 %v2782
        %v3023 = vunpack.c.l.b16 %v2783
        %v3024 = vunpack.c.h.b16 %v2783
        %v3025 = vunpack.c.l.b16 %v2784
        %v3026 = vunpack.c.h.b16 %v2784
        %v3027 = vunpack.c.l.b16 %v2785
        %v3028 = vunpack.c.h.b16 %v2785
        %v3029 = vunpack.c.l.b16 %v2786
        %v3030 = vunpack.c.h.b16 %v2786
        %v3031 = vunpack.c.l.b16 %v2787
        %v3032 = vunpack.c.h.b16 %v2787
        %v3033 = vunpack.c.l.b16 %v2788
        %v3034 = vunpack.c.h.b16 %v2788
        %v3035 = vunpack.c.l.b16 %v2789
        %v3036 = vunpack.c.h.b16 %v2789
        %v3037 = vunpack.c.l.b16 %v2790
        %v3038 = vunpack.c.h.b16 %v2790
        %v3039 = vunpack.c.l.b16 %v2791
        %v3040 = vunpack.c.h.b16 %v2791
        %v3041 = vunpack.c.l.b16 %v2792
        %v3042 = vunpack.c.h.b16 %v2792
        %v3043 = vunpack.c.l.b16 %v2793
        %v3044 = vunpack.c.h.b16 %v2793
        %v3045 = vunpack.c.l.b16 %v2794
        %v3046 = vunpack.c.h.b16 %v2794
        %v3047 = vunpack.c.l.b16 %v2795
        %v3048 = vunpack.c.h.b16 %v2795
        %v3049 = vunpack.c.l.b16 %v2796
        %v3050 = vunpack.c.h.b16 %v2796
        %v3051 = vunpack.c.l.b16 %v2797
        %v3052 = vunpack.c.h.b16 %v2797
        %v3053 = vunpack.c.l.b16 %v2798
        %v3054 = vunpack.c.h.b16 %v2798
        %v3055 = vunpack.c.l.b16 %v2799
        %v3056 = vunpack.c.h.b16 %v2799
        %v3057 = vunpack.c.l.b16 %v2800
        %v3058 = vunpack.c.h.b16 %v2800
        %v3059 = vunpack.c.l.b16 %v2801
        %v3060 = vunpack.c.h.b16 %v2801
        %v3061 = vunpack.c.l.b16 %v2802
        %v3062 = vunpack.c.h.b16 %v2802
        %v3063 = vunpack.c.l.b16 %v2803
        %v3064 = vunpack.c.h.b16 %v2803
        %v3065 = vunpack.c.l.b16 %v2804
        %v3066 = vunpack.c.h.b16 %v2804
        %v3067 = vunpack.c.l.b16 %v2805
        %v3068 = vunpack.c.h.b16 %v2805
        %v3069 = vunpack.c.l.b16 %v2806
        %v3070 = vunpack.c.h.b16 %v2806
        %v3071 = vunpack.c.l.b16 %v2807
        %v3072 = vunpack.c.h.b16 %v2807
        %v3073 = vunpack.c.l.b16 %v2808
        %v3074 = vunpack.c.h.b16 %v2808
        %v3075 = vunpack.c.l.b16 %v2809
        %v3076 = vunpack.c.h.b16 %v2809
        %v3077 = vunpack.c.l.b16 %v2810
        %v3078 = vunpack.c.h.b16 %v2810
        %v3079 = vunpack.c.l.b16 %v2811
        %v3080 = vunpack.c.h.b16 %v2811
        %v3081 = vunpack.c.l.b16 %v2812
        %v3082 = vunpack.c.h.b16 %v2812
        %v3083 = vunpack.c.l.b16 %v2813
        %v3084 = vunpack.c.h.b16 %v2813
        %v3085 = vunpack.c.l.b16 %v2814
        %v3086 = vunpack.c.h.b16 %v2814
        %v3087 = vunpack.c.l.b16 %v2815
        %v3088 = vunpack.c.h.b16 %v2815
        %v3089 = vunpack.c.l.b16 %v2816
        %v3090 = vunpack.c.h.b16 %v2816
        %v3091 = vunpack.c.l.b16 %v2817
        %v3092 = vunpack.c.h.b16 %v2817
        %v3093 = vunpack.c.l.b16 %v2818
        %v3094 = vunpack.c.h.b16 %v2818
        %v3095 = vunpack.c.l.b16 %v2819
        %v3096 = vunpack.c.h.b16 %v2819
        %v3097 = vunpack.c.l.b16 %v2820
        %v3098 = vunpack.c.h.b16 %v2820
        %v3099 = vunpack.c.l.b16 %v2821
        %v3100 = vunpack.c.h.b16 %v2821
        %v3101 = vunpack.c.l.b16 %v2822
        %v3102 = vunpack.c.h.b16 %v2822
        %v3103 = vunpack.c.l.b16 %v2823
        %v3104 = vunpack.c.h.b16 %v2823
        %v3105 = vunpack.c.l.b16 %v2824
        %v3106 = vunpack.c.h.b16 %v2824
        %v3107 = vunpack.c.l.b16 %v2825
        %v3108 = vunpack.c.h.b16 %v2825
        %v3109 = vunpack.c.l.b16 %v2826
        %v3110 = vunpack.c.h.b16 %v2826
        %v3111 = vunpack.c.l.b16 %v2827
        %v3112 = vunpack.c.h.b16 %v2827
        %v3113 = vunpack.c.l.b16 %v2828
        %v3114 = vunpack.c.h.b16 %v2828
        %v3115 = vunpack.c.l.b16 %v2829
        %v3116 = vunpack.c.h.b16 %v2829
        %v3117 = vunpack.c.l.b16 %v2830
        %v3118 = vunpack.c.h.b16 %v2830
        %v3119 = vunpack.c.l.b16 %v2831
        %v3120 = vunpack.c.h.b16 %v2831
        %v3121 = vunpack.c.l.b16 %v2832
        %v3122 = vunpack.c.h.b16 %v2832
        %v3123 = vunpack.c.l.b16 %v2833
        %v3124 = vunpack.c.h.b16 %v2833
        %v3125 = vunpack.c.l.b16 %v2834
        %v3126 = vunpack.c.h.b16 %v2834
        %v3127 = vunpack.c.l.b16 %v2835
        %v3128 = vunpack.c.h.b16 %v2835
        %v3129 = vunpack.c.l.b16 %v2836
        %v3130 = vunpack.c.h.b16 %v2836
        %v3131 = vunpack.c.l.b16 %v2837
        %v3132 = vunpack.c.h.b16 %v2837
        %v3133 = vunpack.c.l.b16 %v2838
        %v3134 = vunpack.c.h.b16 %v2838
        %v3135 = vunpack.c.l.b16 %v2839
        %v3136 = vunpack.c.h.b16 %v2839
        %v3137 = vunpack.c.l.b16 %v2840
        %v3138 = vunpack.c.h.b16 %v2840
        %v3139 = vunpack.c.l.b16 %v2841
        %v3140 = vunpack.c.h.b16 %v2841
        %v3141 = vunpack.c.l.b16 %v2842
        %v3142 = vunpack.c.h.b16 %v2842
        %v3143 = vunpack.c.l.b16 %v2843
        %v3144 = vunpack.c.h.b16 %v2843
        %v3145 = vunpack.c.l.b16 %v2844
        %v3146 = vunpack.c.h.b16 %v2844
        %v3147 = vunpack.c.l.b16 %v2845
        %v3148 = vunpack.c.h.b16 %v2845
        %v3149 = vunpack.c.l.b16 %v2846
        %v3150 = vunpack.c.h.b16 %v2846
        %v3151 = vunpack.c.l.b16 %v2847
        %v3152 = vunpack.c.h.b16 %v2847
        %v3153 = vunpack.c.l.b16 %v2848
        %v3154 = vunpack.c.h.b16 %v2848
        %v3155 = vunpack.c.l.b16 %v2849
        %v3156 = vunpack.c.h.b16 %v2849
        %v3157 = vunpack.c.l.b16 %v2850
        %v3158 = vunpack.c.h.b16 %v2850
        %v3159 = vunpack.c.l.b16 %v2851
        %v3160 = vunpack.c.h.b16 %v2851
        %v3161 = vunpack.c.l.b16 %v2852
        %v3162 = vunpack.c.h.b16 %v2852
        %v3163 = vunpack.c.l.b16 %v2853
        %v3164 = vunpack.c.h.b16 %v2853
        %v3165 = vunpack.c.l.b16 %v2854
        %v3166 = vunpack.c.h.b16 %v2854
        %v3167 = vunpack.c.l.b16 %v2855
        %v3168 = vunpack.c.h.b16 %v2855
        %v3169 = vunpack.c.l.b16 %v2856
        %v3170 = vunpack.c.h.b16 %v2856
        %v3171 = vunpack.c.l.b16 %v2857
        %v3172 = vunpack.c.h.b16 %v2857
        %v3173 = vunpack.c.l.b16 %v2858
        %v3174 = vunpack.c.h.b16 %v2858
        %v3175 = vunpack.c.l.b16 %v2859
        %v3176 = vunpack.c.h.b16 %v2859
        %v3177 = vunpack.c.l.b16 %v2860
        %v3178 = vunpack.c.h.b16 %v2860
        %v3179 = vunpack.c.l.b16 %v2861
        %v3180 = vunpack.c.h.b16 %v2861
        %v3181 = vunpack.c.l.b16 %v2862
        %v3182 = vunpack.c.h.b16 %v2862
        %v3183 = vunpack.c.l.b16 %v2863
        %v3184 = vunpack.c.h.b16 %v2863
        %v3185 = vunpack.c.l.b16 %v2864
        %v3186 = vunpack.c.h.b16 %v2864
        %v3187 = vunpack.c.l.b16 %v2865
        %v3188 = vunpack.c.h.b16 %v2865
        %v3189 = vunpack.c.l.b16 %v2866
        %v3190 = vunpack.c.h.b16 %v2866
        %v3191 = vunpack.c.l.b16 %v2867
        %v3192 = vunpack.c.h.b16 %v2867
        %v3193 = vunpack.c.l.b16 %v2868
        %v3194 = vunpack.c.h.b16 %v2868
        %v3195 = vunpack.c.l.b16 %v2869
        %v3196 = vunpack.c.h.b16 %v2869
        %v3197 = vunpack.c.l.b16 %v2870
        %v3198 = vunpack.c.h.b16 %v2870
        %v3199 = vunpack.c.l.b16 %v2871
        %v3200 = vunpack.c.h.b16 %v2871
        %v3201 = vunpack.c.l.b16 %v2872
        %v3202 = vunpack.c.h.b16 %v2872
        %v3203 = vunpack.c.l.b16 %v2873
        %v3204 = vunpack.c.h.b16 %v2873
        %v3205 = vunpack.c.l.b16 %v2874
        %v3206 = vunpack.c.h.b16 %v2874
        %v3207 = vunpack.c.l.b16 %v2875
        %v3208 = vunpack.c.h.b16 %v2875
        %v3209 = vunpack.c.l.b16 %v2876
        %v3210 = vunpack.c.h.b16 %v2876
        %v3211 = vunpack.c.l.b16 %v2877
        %v3212 = vunpack.c.h.b16 %v2877
        %v3213 = vunpack.c.l.b16 %v2878
        %v3214 = vunpack.c.h.b16 %v2878
        %v3215 = vunpack.c.l.b16 %v2879
        %v3216 = vunpack.c.h.b16 %v2879
        %v3217 = vunpack.c.l.b16 %v2880
        %v3218 = vunpack.c.h.b16 %v2880
        %v3219 = vunpack.c.l.b16 %v2881
        %v3220 = vunpack.c.h.b16 %v2881
        %v3221 = vunpack.c.l.b16 %v2882
        %v3222 = vunpack.c.h.b16 %v2882
        %v3223 = vunpack.c.l.b16 %v2883
        %v3224 = vunpack.c.h.b16 %v2883
        %v3225 = vunpack.c.l.b16 %v2884
        %v3226 = vunpack.c.h.b16 %v2884
        %v3227 = vunpack.c.l.b16 %v2885
        %v3228 = vunpack.c.h.b16 %v2885
        %v3229 = vunpack.c.l.b16 %v2886
        %v3230 = vunpack.c.h.b16 %v2886
        %v3231 = vunpack.c.l.b16 %v2887
        %v3232 = vunpack.c.h.b16 %v2887
        %v3233 = vunpack.c.l.b16 %v2888
        %v3234 = vunpack.c.h.b16 %v2888
        %v3235 = vunpack.c.l.b16 %v2889
        %v3236 = vunpack.c.h.b16 %v2889
        %v3237 = vunpack.c.l.b16 %v2890
        %v3238 = vunpack.c.h.b16 %v2890
        %v3239 = vpack.c.b16 %v3017, %v3015
        %v3240 = vpack.c.b16 %v3018, %v3016
        %v3241 = vpack.c.b16 %v3021, %v3019
        %v3242 = vpack.c.b16 %v3022, %v3020
        %v3243 = vpack.c.b16 %v3025, %v3023
        %v3244 = vpack.c.b16 %v3026, %v3024
        %v3245 = vpack.c.b16 %v3029, %v3027
        %v3246 = vpack.c.b16 %v3030, %v3028
        %v3247 = vpack.c.b16 %v3033, %v3031
        %v3248 = vpack.c.b16 %v3034, %v3032
        %v3249 = vpack.c.b16 %v3037, %v3035
        %v3250 = vpack.c.b16 %v3038, %v3036
        %v3251 = vpack.c.b16 %v3041, %v3039
        %v3252 = vpack.c.b16 %v3042, %v3040
        %v3253 = vpack.c.b16 %v3045, %v3043
        %v3254 = vpack.c.b16 %v3046, %v3044
        %v3255 = vpack.c.b16 %v3049, %v3047
        %v3256 = vpack.c.b16 %v3050, %v3048
        %v3257 = vpack.c.b16 %v3053, %v3051
        %v3258 = vpack.c.b16 %v3054, %v3052
        %v3259 = vpack.c.b16 %v3057, %v3055
        %v3260 = vpack.c.b16 %v3058, %v3056
        %v3261 = vpack.c.b16 %v3061, %v3059
        %v3262 = vpack.c.b16 %v3062, %v3060
        %v3263 = vpack.c.b16 %v3065, %v3063
        %v3264 = vpack.c.b16 %v3066, %v3064
        %v3265 = vpack.c.b16 %v3069, %v3067
        %v3266 = vpack.c.b16 %v3070, %v3068
        %v3267 = vpack.c.b16 %v3073, %v3071
        %v3268 = vpack.c.b16 %v3074, %v3072
        %v3269 = vpack.c.b16 %v3077, %v3075
        %v3270 = vpack.c.b16 %v3078, %v3076
        %v3271 = vpack.c.b16 %v3081, %v3079
        %v3272 = vpack.c.b16 %v3082, %v3080
        %v3273 = vpack.c.b16 %v3085, %v3083
        %v3274 = vpack.c.b16 %v3086, %v3084
        %v3275 = vpack.c.b16 %v3089, %v3087
        %v3276 = vpack.c.b16 %v3090, %v3088
        %v3277 = vpack.c.b16 %v3093, %v3091
        %v3278 = vpack.c.b16 %v3094, %v3092
        %v3279 = vpack.c.b16 %v3097, %v3095
        %v3280 = vpack.c.b16 %v3098, %v3096
        %v3281 = vpack.c.b16 %v3101, %v3099
        %v3282 = vpack.c.b16 %v3102, %v3100
        %v3283 = vpack.c.b16 %v3105, %v3103
        %v3284 = vpack.c.b16 %v3106, %v3104
        %v3285 = vpack.c.b16 %v3109, %v3107
        %v3286 = vpack.c.b16 %v3110, %v3108
        %v3287 = vpack.c.b16 %v3113, %v3111
        %v3288 = vpack.c.b16 %v3114, %v3112
        %v3289 = vpack.c.b16 %v3117, %v3115
        %v3290 = vpack.c.b16 %v3118, %v3116
        %v3291 = vpack.c.b16 %v3121, %v3119
        %v3292 = vpack.c.b16 %v3122, %v3120
        %v3293 = vpack.c.b16 %v3125, %v3123
        %v3294 = vpack.c.b16 %v3126, %v3124
        %v3295 = vpack.c.b16 %v3129, %v3127
        %v3296 = vpack.c.b16 %v3130, %v3128
        %v3297 = vpack.c.b16 %v3133, %v3131
        %v3298 = vpack.c.b16 %v3134, %v3132
        %v3299 = vpack.c.b16 %v3137, %v3135
        %v3300 = vpack.c.b16 %v3138, %v3136
        %v3301 = vpack.c.b16 %v3141, %v3139
        %v3302 = vpack.c.b16 %v3142, %v3140
        %v3303 = vpack.c.b16 %v3145, %v3143
        %v3304 = vpack.c.b16 %v3146, %v3144
        %v3305 = vpack.c.b16 %v3149, %v3147
        %v3306 = vpack.c.b16 %v3150, %v3148
        %v3307 = vpack.c.b16 %v3153, %v3151
        %v3308 = vpack.c.b16 %v3154, %v3152
        %v3309 = vpack.c.b16 %v3157, %v3155
        %v3310 = vpack.c.b16 %v3158, %v3156
        %v3311 = vpack.c.b16 %v3161, %v3159
        %v3312 = vpack.c.b16 %v3162, %v3160
        %v3313 = vpack.c.b16 %v3165, %v3163
        %v3314 = vpack.c.b16 %v3166, %v3164
        %v3315 = vpack.c.b16 %v3169, %v3167
        %v3316 = vpack.c.b16 %v3170, %v3168
        %v3317 = vpack.c.b16 %v3173, %v3171
        %v3318 = vpack.c.b16 %v3174, %v3172
        %v3319 = vpack.c.b16 %v3177, %v3175
        %v3320 = vpack.c.b16 %v3178, %v3176
        %v3321 = vpack.c.b16 %v3181, %v3179
        %v3322 = vpack.c.b16 %v3182, %v3180
        %v3323 = vpack.c.b16 %v3185, %v3183
        %v3324 = vpack.c.b16 %v3186, %v3184
        %v3325 = vpack.c.b16 %v3189, %v3187
        %v3326 = vpack.c.b16 %v3190, %v3188
        %v3327 = vpack.c.b16 %v3193, %v3191
        %v3328 = vpack.c.b16 %v3194, %v3192
        %v3329 = vpack.c.b16 %v3197, %v3195
        %v3330 = vpack.c.b16 %v3198, %v3196
        %v3331 = vpack.c.b16 %v3201, %v3199
        %v3332 = vpack.c.b16 %v3202, %v3200
        %v3333 = vpack.c.b16 %v3205, %v3203
        %v3334 = vpack.c.b16 %v3206, %v3204
        %v3335 = vpack.c.b16 %v3209, %v3207
        %v3336 = vpack.c.b16 %v3210, %v3208
        %v3337 = vpack.c.b16 %v3213, %v3211
        %v3338 = vpack.c.b16 %v3214, %v3212
        %v3339 = vpack.c.b16 %v3217, %v3215
        %v3340 = vpack.c.b16 %v3218, %v3216
        %v3341 = vpack.c.b16 %v3221, %v3219
        %v3342 = vpack.c.b16 %v3222, %v3220
        %v3343 = vpack.c.b16 %v3225, %v3223
        %v3344 = vpack.c.b16 %v3226, %v3224
        %v3345 = vpack.c.b16 %v3229, %v3227
        %v3346 = vpack.c.b16 %v3230, %v3228
        %v3347 = vpack.c.b16 %v3233, %v3231
        %v3348 = vpack.c.b16 %v3234, %v3232
        %v3349 = vpack.c.b16 %v3237, %v3235
        %v3350 = vpack.c.b16 %v3238, %v3236
        %3463 = vmatprep.subr.bf16.mxu0 %v3240
        %3464 = vmatpush1.bf16.msra.mxu0 %v3239
        %3465 = vmatprep.subr.bf16.mxu0 %v3242
        %3466 = vmatpush1.bf16.msra.mxu0 %v3241
        %3467 = vmatprep.subr.bf16.mxu0 %v3244
        %3468 = vmatpush1.bf16.msra.mxu0 %v3243
        %3469 = vmatprep.subr.bf16.mxu0 %v3246
        %3470 = vmatpush1.bf16.msra.mxu0 %v3245
        %3471 = vmatprep.subr.bf16.mxu0 %v3248
        %3472 = vmatpush1.bf16.msra.mxu0 %v3247
        %3473 = vmatprep.subr.bf16.mxu0 %v3250
        %3474 = vmatpush1.bf16.msra.mxu0 %v3249
        %3475 = vmatprep.subr.bf16.mxu0 %v3252
        %3476 = vmatpush1.bf16.msra.mxu0 %v3251
        %3477 = vmatprep.subr.bf16.mxu0 %v3254
        %3478 = vmatpush1.bf16.msra.mxu0 %v3253
        %3479 = vmatprep.subr.bf16.mxu0 %v3256
        %3480 = vmatpush1.bf16.msra.mxu0 %v3255
        %3481 = vmatprep.subr.bf16.mxu0 %v3258
        %3482 = vmatpush1.bf16.msra.mxu0 %v3257
        %3483 = vmatprep.subr.bf16.mxu0 %v3260
        %3484 = vmatpush1.bf16.msra.mxu0 %v3259
        %3485 = vmatprep.subr.bf16.mxu0 %v3262
        %3486 = vmatpush1.bf16.msra.mxu0 %v3261
        %3487 = vmatprep.subr.bf16.mxu0 %v3264
        %3488 = vmatpush1.bf16.msra.mxu0 %v3263
        %3489 = vmatprep.subr.bf16.mxu0 %v3266
        %3490 = vmatpush1.bf16.msra.mxu0 %v3265
        %3491 = vmatprep.subr.bf16.mxu0 %v3268
        %3492 = vmatpush1.bf16.msra.mxu0 %v3267
        %3493 = vmatprep.subr.bf16.mxu0 %v3270
        %3494 = vmatpush1.bf16.msra.mxu0 %v3269
        %3495 = vmatprep.mubr.bf16.mxu0 %v2752
        %3496 = vmatmul.mubr.bf16.gmra.mrb[0].mxu0 %v2751
        %v3497 = vpop.f32.mrb[0].mxu0
        %v3498 = vadd.f32 %v2896, %v3497
        %v3499 = vpop.f32.mrb[0].mxu0
        %v3500 = vadd.f32 %v2900, %v3499
        %v3501 = vpop.f32.mrb[0].mxu0
        %v3502 = vadd.f32 %v2896, %v3501
        %v3503 = vpop.f32.mrb[0].mxu0
        %v3504 = vadd.f32 %v2900, %v3503
        %3505 = vmatprep.mubr.bf16.mxu0 %v2759
        %3506 = vmatmul.mubr.bf16.gmra.mrb[0].mxu0 %v2758
        %v3507 = vpop.f32.mrb[0].mxu0
        %v3508 = vadd.f32 %v2896, %v3507
        %v3509 = vpop.f32.mrb[0].mxu0
        %v3510 = vadd.f32 %v2900, %v3509
        %v3511 = vpop.f32.mrb[0].mxu0
        %v3512 = vadd.f32 %v2896, %v3511
        %v3513 = vpop.f32.mrb[0].mxu0
        %v3514 = vadd.f32 %v2900, %v3513
        %3515 = vmatprep.mubr.bf16.mxu0 %v2766
        %3516 = vmatmul.mubr.bf16.gmra.mrb[0].mxu0 %v2765
        %v3517 = vpop.f32.mrb[0].mxu0
        %v3518 = vadd.f32 %v2896, %v3517
        %v3519 = vpop.f32.mrb[0].mxu0
        %v3520 = vadd.f32 %v2900, %v3519
        %v3521 = vpop.f32.mrb[0].mxu0
        %v3522 = vadd.f32 %v2896, %v3521
        %v3523 = vpop.f32.mrb[0].mxu0
        %v3524 = vadd.f32 %v2900, %v3523
        %3525 = vmatprep.mubr.bf16.mxu0 %v2773
        %3526 = vmatmul.mubr.bf16.gmra.mrb[0].mxu0 %v2772
        %v3527 = vpop.f32.mrb[0].mxu0
        %v3528 = vadd.f32 %v2896, %v3527
        %v3529 = vpop.f32.mrb[0].mxu0
        %v3530 = vadd.f32 %v2900, %v3529
        %v3531 = vpop.f32.mrb[0].mxu0
        %v3532 = vadd.f32 %v2896, %v3531
        %v3533 = vpop.f32.mrb[0].mxu0
        %v3534 = vadd.f32 %v2900, %v3533
        %3535 = vdwg.mxu0
        %3536 = vmatprep.subr.bf16.mxu0 %v3272
        %3537 = vmatpush1.bf16.msra.mxu0 %v3271
        %3538 = vmatprep.subr.bf16.mxu0 %v3274
        %3539 = vmatpush1.bf16.msra.mxu0 %v3273
        %3540 = vmatprep.subr.bf16.mxu0 %v3276
        %3541 = vmatpush1.bf16.msra.mxu0 %v3275
        %3542 = vmatprep.subr.bf16.mxu0 %v3278
        %3543 = vmatpush1.bf16.msra.mxu0 %v3277
        %3544 = vmatprep.subr.bf16.mxu0 %v3280
        %3545 = vmatpush1.bf16.msra.mxu0 %v3279
        %3546 = vmatprep.subr.bf16.mxu0 %v3282
        %3547 = vmatpush1.bf16.msra.mxu0 %v3281
        %3548 = vmatprep.subr.bf16.mxu0 %v3284
        %3549 = vmatpush1.bf16.msra.mxu0 %v3283
        %3550 = vmatprep.subr.bf16.mxu0 %v3286
        %3551 = vmatpush1.bf16.msra.mxu0 %v3285
        %3552 = vmatprep.subr.bf16.mxu0 %v3288
        %3553 = vmatpush1.bf16.msra.mxu0 %v3287
        %3554 = vmatprep.subr.bf16.mxu0 %v3290
        %3555 = vmatpush1.bf16.msra.mxu0 %v3289
        %3556 = vmatprep.subr.bf16.mxu0 %v3292
        %3557 = vmatpush1.bf16.msra.mxu0 %v3291
        %3558 = vmatprep.subr.bf16.mxu0 %v3294
        %3559 = vmatpush1.bf16.msra.mxu0 %v3293
        %3560 = vmatprep.subr.bf16.mxu0 %v3296
        %3561 = vmatpush1.bf16.msra.mxu0 %v3295
        %3562 = vmatprep.subr.bf16.mxu0 %v3298
        %3563 = vmatpush1.bf16.msra.mxu0 %v3297
        %3564 = vmatprep.subr.bf16.mxu0 %v3300
        %3565 = vmatpush1.bf16.msra.mxu0 %v3299
        %3566 = vmatprep.subr.bf16.mxu0 %v3302
        %3567 = vmatpush1.bf16.msra.mxu0 %v3301
        %3568 = vmatprep.mubr.bf16.mxu0 %v2754
        %3569 = vmatmul.mubr.bf16.gmra.mrb[0].mxu0 %v2753
        %v3570 = vpop.f32.mrb[0].mxu0
        %v3571 = vadd.f32 %v3498, %v3570
        %v3572 = vpop.f32.mrb[0].mxu0
        %v3573 = vadd.f32 %v3500, %v3572
        %v3574 = vpop.f32.mrb[0].mxu0
        %v3575 = vadd.f32 %v3502, %v3574
        %v3576 = vpop.f32.mrb[0].mxu0
        %v3577 = vadd.f32 %v3504, %v3576
        %3578 = vmatprep.mubr.bf16.mxu0 %v2761
        %3579 = vmatmul.mubr.bf16.gmra.mrb[0].mxu0 %v2760
        %v3580 = vpop.f32.mrb[0].mxu0
        %v3581 = vadd.f32 %v3508, %v3580
        %v3582 = vpop.f32.mrb[0].mxu0
        %v3583 = vadd.f32 %v3510, %v3582
        %v3584 = vpop.f32.mrb[0].mxu0
        %v3585 = vadd.f32 %v3512, %v3584
        %v3586 = vpop.f32.mrb[0].mxu0
        %v3587 = vadd.f32 %v3514, %v3586
        %3588 = vmatprep.mubr.bf16.mxu0 %v2768
        %3589 = vmatmul.mubr.bf16.gmra.mrb[0].mxu0 %v2767
        %v3590 = vpop.f32.mrb[0].mxu0
        %v3591 = vadd.f32 %v3518, %v3590
        %v3592 = vpop.f32.mrb[0].mxu0
        %v3593 = vadd.f32 %v3520, %v3592
        %v3594 = vpop.f32.mrb[0].mxu0
        %v3595 = vadd.f32 %v3522, %v3594
        %v3596 = vpop.f32.mrb[0].mxu0
        %v3597 = vadd.f32 %v3524, %v3596
        %3598 = vmatprep.mubr.bf16.mxu0 %v2775
        %3599 = vmatmul.mubr.bf16.gmra.mrb[0].mxu0 %v2774
        %v3600 = vpop.f32.mrb[0].mxu0
        %v3601 = vadd.f32 %v3528, %v3600
        %v3602 = vpop.f32.mrb[0].mxu0
        %v3603 = vadd.f32 %v3530, %v3602
        %v3604 = vpop.f32.mrb[0].mxu0
        %v3605 = vadd.f32 %v3532, %v3604
        %v3606 = vpop.f32.mrb[0].mxu0
        %v3607 = vadd.f32 %v3534, %v3606
        %3608 = vdwg.mxu0
        %3609 = vmatprep.subr.bf16.mxu0 %v3304
        %3610 = vmatpush1.bf16.msra.mxu0 %v3303
        %3611 = vmatprep.subr.bf16.mxu0 %v3306
        %3612 = vmatpush1.bf16.msra.mxu0 %v3305
        %3613 = vmatprep.subr.bf16.mxu0 %v3308
        %3614 = vmatpush1.bf16.msra.mxu0 %v3307
        %3615 = vmatprep.subr.bf16.mxu0 %v3310
        %3616 = vmatpush1.bf16.msra.mxu0 %v3309
        %3617 = vmatprep.subr.bf16.mxu0 %v3312
        %3618 = vmatpush1.bf16.msra.mxu0 %v3311
        %3619 = vmatprep.subr.bf16.mxu0 %v3314
        %3620 = vmatpush1.bf16.msra.mxu0 %v3313
        %3621 = vmatprep.subr.bf16.mxu0 %v3316
        %3622 = vmatpush1.bf16.msra.mxu0 %v3315
        %3623 = vmatprep.subr.bf16.mxu0 %v3318
        %3624 = vmatpush1.bf16.msra.mxu0 %v3317
        %3625 = vmatprep.subr.bf16.mxu0 %v3320
        %3626 = vmatpush1.bf16.msra.mxu0 %v3319
        %3627 = vmatprep.subr.bf16.mxu0 %v3322
        %3628 = vmatpush1.bf16.msra.mxu0 %v3321
        %3629 = vmatprep.subr.bf16.mxu0 %v3324
        %3630 = vmatpush1.bf16.msra.mxu0 %v3323
        %3631 = vmatprep.subr.bf16.mxu0 %v3326
        %3632 = vmatpush1.bf16.msra.mxu0 %v3325
        %3633 = vmatprep.subr.bf16.mxu0 %v3328
        %3634 = vmatpush1.bf16.msra.mxu0 %v3327
        %3635 = vmatprep.subr.bf16.mxu0 %v3330
        %3636 = vmatpush1.bf16.msra.mxu0 %v3329
        %3637 = vmatprep.subr.bf16.mxu0 %v3332
        %3638 = vmatpush1.bf16.msra.mxu0 %v3331
        %3639 = vmatprep.subr.bf16.mxu0 %v3334
        %3640 = vmatpush1.bf16.msra.mxu0 %v3333
        %3641 = vmatprep.mubr.bf16.mxu0 %v2756
        %3642 = vmatmul.mubr.bf16.gmra.mrb[0].mxu0 %v2755
        %v3643 = vpop.f32.mrb[0].mxu0
        %v3644 = vadd.f32 %v3571, %v3643
        %v3645 = vpop.f32.mrb[0].mxu0
        %v3646 = vadd.f32 %v3573, %v3645
        %v3647 = vpop.f32.mrb[0].mxu0
        %v3648 = vadd.f32 %v3575, %v3647
        %v3649 = vpop.f32.mrb[0].mxu0
        %v3650 = vadd.f32 %v3577, %v3649
        %3651 = vmatprep.mubr.bf16.mxu0 %v2763
        %3652 = vmatmul.mubr.bf16.gmra.mrb[0].mxu0 %v2762
        %v3653 = vpop.f32.mrb[0].mxu0
        %v3654 = vadd.f32 %v3581, %v3653
        %v3655 = vpop.f32.mrb[0].mxu0
        %v3656 = vadd.f32 %v3583, %v3655
        %v3657 = vpop.f32.mrb[0].mxu0
        %v3658 = vadd.f32 %v3585, %v3657
        %v3659 = vpop.f32.mrb[0].mxu0
        %v3660 = vadd.f32 %v3587, %v3659
        %3661 = vmatprep.mubr.bf16.mxu0 %v2770
        %3662 = vmatmul.mubr.bf16.gmra.mrb[0].mxu0 %v2769
        %v3663 = vpop.f32.mrb[0].mxu0
        %v3664 = vadd.f32 %v3591, %v3663
        %v3665 = vpop.f32.mrb[0].mxu0
        %v3666 = vadd.f32 %v3593, %v3665
        %v3667 = vpop.f32.mrb[0].mxu0
        %v3668 = vadd.f32 %v3595, %v3667
        %v3669 = vpop.f32.mrb[0].mxu0
        %v3670 = vadd.f32 %v3597, %v3669
        %3671 = vmatprep.mubr.bf16.mxu0 %v2777
        %3672 = vmatmul.mubr.bf16.gmra.mrb[0].mxu0 %v2776
        %v3673 = vpop.f32.mrb[0].mxu0
        %v3674 = vadd.f32 %v3601, %v3673
        %v3675 = vpop.f32.mrb[0].mxu0
        %v3676 = vadd.f32 %v3603, %v3675
        %v3677 = vpop.f32.mrb[0].mxu0
        %v3678 = vadd.f32 %v3605, %v3677
        %v3679 = vpop.f32.mrb[0].mxu0
        %v3680 = vadd.f32 %v3607, %v3679
        %3681 = vdwg.mxu0
        %3682 = vmatprep.subr.bf16.mxu0 %v3336
        %3683 = vmatpush1.bf16.msra.mxu0 %v3335
        %3684 = vmatprep.subr.bf16.mxu0 %v3338
        %3685 = vmatpush1.bf16.msra.mxu0 %v3337
        %3686 = vmatprep.subr.bf16.mxu0 %v3340
        %3687 = vmatpush1.bf16.msra.mxu0 %v3339
        %3688 = vmatprep.subr.bf16.mxu0 %v3342
        %3689 = vmatpush1.bf16.msra.mxu0 %v3341
        %3690 = vmatprep.subr.bf16.mxu0 %v3344
        %3691 = vmatpush1.bf16.msra.mxu0 %v3343
        %3692 = vmatprep.subr.bf16.mxu0 %v3346
        %3693 = vmatpush1.bf16.msra.mxu0 %v3345
        %3694 = vmatprep.subr.bf16.mxu0 %v3348
        %3695 = vmatpush1.bf16.msra.mxu0 %v3347
        %3696 = vmatprep.subr.bf16.mxu0 %v3350
        %3697 = vmatpush1.bf16.msra.mxu0 %v3349
        %3698 = vmatprep.subr.bf16.mxu0 0
        %3699 = vmatpush1.bf16.msra.mxu0 0
        %3700 = vmatprep.subr.bf16.mxu0 0
        %3701 = vmatpush1.bf16.msra.mxu0 0
        %3702 = vmatprep.subr.bf16.mxu0 0
        %3703 = vmatpush1.bf16.msra.mxu0 0
        %3704 = vmatprep.subr.bf16.mxu0 0
        %3705 = vmatpush1.bf16.msra.mxu0 0
        %3706 = vmatprep.subr.bf16.mxu0 0
        %3707 = vmatpush1.bf16.msra.mxu0 0
        %3708 = vmatprep.subr.bf16.mxu0 0
        %3709 = vmatpush1.bf16.msra.mxu0 0
        %3710 = vmatprep.subr.bf16.mxu0 0
        %3711 = vmatpush1.bf16.msra.mxu0 0
        %3712 = vmatprep.subr.bf16.mxu0 0
        %3713 = vmatpush1.bf16.msra.mxu0 0
        %3714 = vmatprep.mubr.bf16.mxu0 0
        %3715 = vmatmul.mubr.bf16.gmra.mrb[0].mxu0 %v2757
        %v3716 = vpop.f32.mrb[0].mxu0
        %v3717 = vadd.f32 %v3644, %v3716
        %v3718 = vpop.f32.mrb[0].mxu0
        %v3719 = vadd.f32 %v3646, %v3718
        %v3720 = vpop.f32.mrb[0].mxu0
        %v3721 = vadd.f32 %v3648, %v3720
        %v3722 = vpop.f32.mrb[0].mxu0
        %v3723 = vadd.f32 %v3650, %v3722
        %3724 = vmatprep.mubr.bf16.mxu0 0
        %3725 = vmatmul.mubr.bf16.gmra.mrb[0].mxu0 %v2764
        %v3726 = vpop.f32.mrb[0].mxu0
        %v3727 = vadd.f32 %v3654, %v3726
        %v3728 = vpop.f32.mrb[0].mxu0
        %v3729 = vadd.f32 %v3656, %v3728
        %v3730 = vpop.f32.mrb[0].mxu0
        %v3731 = vadd.f32 %v3658, %v3730
        %v3732 = vpop.f32.mrb[0].mxu0
        %v3733 = vadd.f32 %v3660, %v3732
        %3734 = vmatprep.mubr.bf16.mxu0 0
        %3735 = vmatmul.mubr.bf16.gmra.mrb[0].mxu0 %v2771
        %v3736 = vpop.f32.mrb[0].mxu0
        %v3737 = vadd.f32 %v3664, %v3736
        %v3738 = vpop.f32.mrb[0].mxu0
        %v3739 = vadd.f32 %v3666, %v3738
        %v3740 = vpop.f32.mrb[0].mxu0
        %v3741 = vadd.f32 %v3668, %v3740
        %v3742 = vpop.f32.mrb[0].mxu0
        %v3743 = vadd.f32 %v3670, %v3742
        %3744 = vmatprep.mubr.bf16.mxu0 0
        %3745 = vmatmul.mubr.bf16.gmra.mrb[0].mxu0 %v2778
        %v3746 = vpop.f32.mrb[0].mxu0
        %v3747 = vadd.f32 %v3674, %v3746
        %v3748 = vpop.f32.mrb[0].mxu0
        %v3749 = vadd.f32 %v3676, %v3748
        %v3750 = vpop.f32.mrb[0].mxu0
        %v3751 = vadd.f32 %v3678, %v3750
        %v3752 = vpop.f32.mrb[0].mxu0
        %v3753 = vadd.f32 %v3680, %v3752
        %3754 = vdwg.mxu0
        %v3755 = vmax.f32 %v3717, 0.0
        %v3756 = vmax.f32 %v3719, 0.0
        %v3757 = vmax.f32 %v3721, 0.0
        %v3758 = vmax.f32 %v3723, 0.0
        %v3759 = vmax.f32 %v3727, 0.0
        %v3760 = vmax.f32 %v3729, 0.0
        %v3761 = vmax.f32 %v3731, 0.0
        %v3762 = vmax.f32 %v3733, 0.0
        %v3763 = vmax.f32 %v3737, 0.0
        %v3764 = vmax.f32 %v3739, 0.0
        %v3765 = vmax.f32 %v3741, 0.0
        %v3766 = vmax.f32 %v3743, 0.0
        %v3767 = vmax.f32 %v3747, 0.0
        %v3768 = vmax.f32 %v3749, 0.0
        %v3769 = vmax.f32 %v3751, 0.0
        %v3770 = vmax.f32 %v3753, 0.0
        %3771 = vst [vmem:[#allocation3] sm:$0xff] 0.0
        %vm3772 = vcmask 261120
        %3773 = vst.msk [vmem:[#allocation3 + $0x8] sm:$0xff] %vm3772, 0.0
        %3774 = vst [vmem:[#allocation3 + $0x10] sm:$0xff] 0.0
        %3775 = vst.msk [vmem:[#allocation3 + $0x18] sm:$0xff] %vm3772, 0.0
        %3776 = vst [vmem:[#allocation3 + $0x20] sm:$0xff] 0.0
        %3777 = vst.msk [vmem:[#allocation3 + $0x28] sm:$0xff] %vm3772, 0.0
        %s3778 = scalar_lea.vmem [#allocation3], 176
        %3779 = vst [vmem:[%s3778] sm:$0xff] 0.0
        %3780 = vst.msk [vmem:[%s3778 + $0x8] sm:$0xff] %vm3772, 0.0
        %3781 = vst [vmem:[%s3778 + $0x10] sm:$0xff] 0.0
        %3782 = vst.msk [vmem:[%s3778 + $0x18] sm:$0xff] %vm3772, 0.0
        %3783 = vst [vmem:[%s3778 + $0x20] sm:$0xff] 0.0
        %3784 = vst.msk [vmem:[%s3778 + $0x28] sm:$0xff] %vm3772, 0.0
        %s3785 = scalar_lea.vmem [#allocation3], 48
        %3786 = vst [vmem:[%s3785] sm:$0xff] %v3755
        %3787 = vst.msk [vmem:[%s3785 + $0x8] sm:$0xff] %vm3772, %v3756
        %3788 = vst [vmem:[%s3785 + $0x10] sm:$0xff] %v3757
        %3789 = vst.msk [vmem:[%s3785 + $0x18] sm:$0xff] %vm3772, %v3758
        %3790 = vst [vmem:[%s3785 + $0x20] sm:$0xff] %v3759
        %3791 = vst.msk [vmem:[%s3785 + $0x28] sm:$0xff] %vm3772, %v3760
        %3792 = vst [vmem:[%s3785 + $0x30] sm:$0xff] %v3761
        %3793 = vst.msk [vmem:[%s3785 + $0x38] sm:$0xff] %vm3772, %v3762
        %3794 = vst [vmem:[%s3785 + $0x40] sm:$0xff] %v3763
        %3795 = vst.msk [vmem:[%s3785 + $0x48] sm:$0xff] %vm3772, %v3764
        %3796 = vst [vmem:[%s3785 + $0x50] sm:$0xff] %v3765
        %3797 = vst.msk [vmem:[%s3785 + $0x58] sm:$0xff] %vm3772, %v3766
        %3798 = vst [vmem:[%s3785 + $0x60] sm:$0xff] %v3767
        %3799 = vst.msk [vmem:[%s3785 + $0x68] sm:$0xff] %vm3772, %v3768
        %3800 = vst [vmem:[%s3785 + $0x70] sm:$0xff] %v3769
        %3801 = vst.msk [vmem:[%s3785 + $0x78] sm:$0xff] %vm3772, %v3770
        %v3802 = vld [vmem:[%s8] sm:$0x3]
        %v3804 = vlaneseq
        %v3805 = vshrl.u32 %v3804, 7
        %v3806 = vsub.s32 0, %v3805
        %v3807 = vrot.slane %v3802, %v3806
        %v3808 = vlaneseq
        %v3809 = vshrl.u32 %v3808, 7
        %v3810 = vsub.s32 1, %v3809
        %v3811 = vrot.slane %v3802, %v3810
        %v3814 = vld [vmem:[#allocation3] sm:$0xff]
        %v3815 = vld [vmem:[#allocation3 + $0x8] sm:$0xff]
        %v3816 = vld [vmem:[#allocation3 + $0x10] sm:$0xff]
        %v3817 = vld [vmem:[#allocation3 + $0x18] sm:$0xff]
        %v3818 = vld [vmem:[#allocation3 + $0x20] sm:$0xff]
        %v3819 = vld [vmem:[#allocation3 + $0x28] sm:$0xff]
        %v3820 = vld [vmem:[#allocation3 + $0x30] sm:$0xff]
        %v3821 = vld [vmem:[#allocation3 + $0x38] sm:$0xff]
        %v3822 = vld [vmem:[#allocation3 + $0x40] sm:$0xff]
        %v3823 = vld [vmem:[#allocation3 + $0x48] sm:$0xff]
        %v3824 = vld [vmem:[#allocation3 + $0x50] sm:$0xff]
        %v3825 = vld [vmem:[#allocation3 + $0x58] sm:$0xff]
        %v3826 = vld [vmem:[#allocation3 + $0x60] sm:$0xff]
        %v3827 = vld [vmem:[#allocation3 + $0x68] sm:$0xff]
        %v3828 = vld [vmem:[#allocation3 + $0x70] sm:$0xff]
        %v3829 = vld [vmem:[#allocation3 + $0x78] sm:$0xff]
        %v3830 = vpack.c.bf16 %v3816, %v3814
        %v3831 = vpack.c.bf16 %v3817, %v3815
        %v3832 = vpack.c.bf16 %v3820, %v3818
        %v3833 = vpack.c.bf16 %v3821, %v3819
        %v3834 = vpack.c.bf16 %v3824, %v3822
        %v3835 = vpack.c.bf16 %v3825, %v3823
        %v3836 = vpack.c.bf16 %v3828, %v3826
        %v3837 = vpack.c.bf16 %v3829, %v3827
        %v3838 = vld [vmem:[%s7] sm:$0xff]
        %v3839 = vld [vmem:[%s7 + $0x8] sm:$0xff]
        %v3840 = vld [vmem:[%s7 + $0x10] sm:$0xff]
        %v3841 = vld [vmem:[%s7 + $0x18] sm:$0xff]
        %v3842 = vld [vmem:[%s7 + $0x20] sm:$0xff]
        %v3843 = vld [vmem:[%s7 + $0x28] sm:$0xff]
        %v3844 = vld [vmem:[%s7 + $0x30] sm:$0xff]
        %v3845 = vld [vmem:[%s7 + $0x38] sm:$0xff]
        %v3846 = vld [vmem:[%s7 + $0x40] sm:$0xff]
        %v3847 = vld [vmem:[%s7 + $0x48] sm:$0xff]
        %v3848 = vld [vmem:[%s7 + $0x50] sm:$0xff]
        %v3849 = vld [vmem:[%s7 + $0x58] sm:$0xff]
        %v3850 = vld [vmem:[%s7 + $0x60] sm:$0xff]
        %v3851 = vld [vmem:[%s7 + $0x68] sm:$0xff]
        %v3852 = vld [vmem:[%s7 + $0x70] sm:$0xff]
        %v3853 = vld [vmem:[%s7 + $0x78] sm:$0xff]
        %v3854 = vld [vmem:[%s7 + $0x80] sm:$0xff]
        %v3855 = vld [vmem:[%s7 + $0x88] sm:$0xff]
        %v3856 = vld [vmem:[%s7 + $0x90] sm:$0xff]
        %v3857 = vld [vmem:[%s7 + $0x98] sm:$0xff]
        %v3878 = vunpack.c.l.b16 %v3838
        %v3879 = vunpack.c.h.b16 %v3838
        %v3880 = vunpack.c.l.b16 %v3839
        %v3881 = vunpack.c.h.b16 %v3839
        %v3882 = vunpack.c.l.b16 %v3840
        %v3883 = vunpack.c.h.b16 %v3840
        %v3884 = vunpack.c.l.b16 %v3841
        %v3885 = vunpack.c.h.b16 %v3841
        %v3886 = vunpack.c.l.b16 %v3842
        %v3887 = vunpack.c.h.b16 %v3842
        %v3888 = vunpack.c.l.b16 %v3843
        %v3889 = vunpack.c.h.b16 %v3843
        %v3890 = vunpack.c.l.b16 %v3844
        %v3891 = vunpack.c.h.b16 %v3844
        %v3892 = vunpack.c.l.b16 %v3845
        %v3893 = vunpack.c.h.b16 %v3845
        %v3894 = vunpack.c.l.b16 %v3846
        %v3895 = vunpack.c.h.b16 %v3846
        %v3896 = vunpack.c.l.b16 %v3847
        %v3897 = vunpack.c.h.b16 %v3847
        %v3898 = vunpack.c.l.b16 %v3848
        %v3899 = vunpack.c.h.b16 %v3848
        %v3900 = vunpack.c.l.b16 %v3849
        %v3901 = vunpack.c.h.b16 %v3849
        %v3902 = vunpack.c.l.b16 %v3850
        %v3903 = vunpack.c.h.b16 %v3850
        %v3904 = vunpack.c.l.b16 %v3851
        %v3905 = vunpack.c.h.b16 %v3851
        %v3906 = vunpack.c.l.b16 %v3852
        %v3907 = vunpack.c.h.b16 %v3852
        %v3908 = vunpack.c.l.b16 %v3853
        %v3909 = vunpack.c.h.b16 %v3853
        %v3910 = vunpack.c.l.b16 %v3854
        %v3911 = vunpack.c.h.b16 %v3854
        %v3912 = vunpack.c.l.b16 %v3855
        %v3913 = vunpack.c.h.b16 %v3855
        %v3914 = vunpack.c.l.b16 %v3856
        %v3915 = vunpack.c.h.b16 %v3856
        %v3916 = vunpack.c.l.b16 %v3857
        %v3917 = vunpack.c.h.b16 %v3857
        %v3918 = vpack.c.b16 %v3880, %v3878
        %v3919 = vpack.c.b16 %v3881, %v3879
        %v3920 = vpack.c.b16 %v3884, %v3882
        %v3921 = vpack.c.b16 %v3885, %v3883
        %v3922 = vpack.c.b16 %v3888, %v3886
        %v3923 = vpack.c.b16 %v3889, %v3887
        %v3924 = vpack.c.b16 %v3892, %v3890
        %v3925 = vpack.c.b16 %v3893, %v3891
        %v3926 = vpack.c.b16 %v3896, %v3894
        %v3927 = vpack.c.b16 %v3897, %v3895
        %v3928 = vpack.c.b16 %v3900, %v3898
        %v3929 = vpack.c.b16 %v3901, %v3899
        %v3930 = vpack.c.b16 %v3904, %v3902
        %v3931 = vpack.c.b16 %v3905, %v3903
        %v3932 = vpack.c.b16 %v3908, %v3906
        %v3933 = vpack.c.b16 %v3909, %v3907
        %v3934 = vpack.c.b16 %v3912, %v3910
        %v3935 = vpack.c.b16 %v3913, %v3911
        %v3936 = vpack.c.b16 %v3916, %v3914
        %v3937 = vpack.c.b16 %v3917, %v3915
        %v3959 = vsel %vm3772, %v3831, 0
        %v3962 = vsel %vm3772, %v3833, 0
        %v3965 = vsel %vm3772, %v3835, 0
        %v3968 = vsel %vm3772, %v3837, 0
        %3970 = vmatprep.subr.bf16.mxu0 %v3919
        %3971 = vmatpush1.bf16.msra.mxu0 %v3918
        %3972 = vmatprep.subr.bf16.mxu0 %v3921
        %3973 = vmatpush1.bf16.msra.mxu0 %v3920
        %3974 = vmatprep.subr.bf16.mxu0 %v3923
        %3975 = vmatpush1.bf16.msra.mxu0 %v3922
        %3976 = vmatprep.subr.bf16.mxu0 %v3925
        %3977 = vmatpush1.bf16.msra.mxu0 %v3924
        %3978 = vmatprep.subr.bf16.mxu0 %v3927
        %3979 = vmatpush1.bf16.msra.mxu0 %v3926
        %3980 = vmatprep.subr.bf16.mxu0 %v3929
        %3981 = vmatpush1.bf16.msra.mxu0 %v3928
        %3982 = vmatprep.subr.bf16.mxu0 %v3931
        %3983 = vmatpush1.bf16.msra.mxu0 %v3930
        %3984 = vmatprep.subr.bf16.mxu0 %v3933
        %3985 = vmatpush1.bf16.msra.mxu0 %v3932
        %3986 = vmatprep.subr.bf16.mxu0 %v3935
        %3987 = vmatpush1.bf16.msra.mxu0 %v3934
        %3988 = vmatprep.subr.bf16.mxu0 %v3937
        %3989 = vmatpush1.bf16.msra.mxu0 %v3936
        %3990 = vmatprep.subr.bf16.mxu0 0
        %3991 = vmatpush1.bf16.msra.mxu0 0
        %3992 = vmatprep.subr.bf16.mxu0 0
        %3993 = vmatpush1.bf16.msra.mxu0 0
        %3994 = vmatprep.subr.bf16.mxu0 0
        %3995 = vmatpush1.bf16.msra.mxu0 0
        %3996 = vmatprep.subr.bf16.mxu0 0
        %3997 = vmatpush1.bf16.msra.mxu0 0
        %3998 = vmatprep.subr.bf16.mxu0 0
        %3999 = vmatpush1.bf16.msra.mxu0 0
        %4000 = vmatprep.subr.bf16.mxu0 0
        %4001 = vmatpush1.bf16.msra.mxu0 0
        %4002 = vmatprep.mubr.bf16.mxu0 %v3959
        %4003 = vmatmul.mubr.bf16.gmra.mrb[0].mxu0 %v3830
        %v4004 = vpop.f32.mrb[0].mxu0
        %v4005 = vadd.f32 0.0, %v4004
        %v4006 = vpop.f32.mrb[0].mxu0
        %v4007 = vadd.f32 0.0, %v4006
        %v4008 = vpop.f32.mrb[0].mxu0
        %v4009 = vadd.f32 0.0, %v4008
        %v4010 = vpop.f32.mrb[0].mxu0
        %v4011 = vadd.f32 0.0, %v4010
        %4012 = vmatprep.mubr.bf16.mxu0 %v3962
        %4013 = vmatmul.mubr.bf16.gmra.mrb[0].mxu0 %v3832
        %v4014 = vpop.f32.mrb[0].mxu0
        %v4015 = vadd.f32 0.0, %v4014
        %v4016 = vpop.f32.mrb[0].mxu0
        %v4017 = vadd.f32 0.0, %v4016
        %v4018 = vpop.f32.mrb[0].mxu0
        %v4019 = vadd.f32 0.0, %v4018
        %v4020 = vpop.f32.mrb[0].mxu0
        %v4021 = vadd.f32 0.0, %v4020
        %4022 = vmatprep.mubr.bf16.mxu0 %v3965
        %4023 = vmatmul.mubr.bf16.gmra.mrb[0].mxu0 %v3834
        %v4024 = vpop.f32.mrb[0].mxu0
        %v4025 = vadd.f32 0.0, %v4024
        %v4026 = vpop.f32.mrb[0].mxu0
        %v4027 = vadd.f32 0.0, %v4026
        %v4028 = vpop.f32.mrb[0].mxu0
        %v4029 = vadd.f32 0.0, %v4028
        %v4030 = vpop.f32.mrb[0].mxu0
        %v4031 = vadd.f32 0.0, %v4030
        %4032 = vmatprep.mubr.bf16.mxu0 %v3968
        %4033 = vmatmul.mubr.bf16.gmra.mrb[0].mxu0 %v3836
        %v4034 = vpop.f32.mrb[0].mxu0
        %v4035 = vadd.f32 0.0, %v4034
        %v4036 = vpop.f32.mrb[0].mxu0
        %v4037 = vadd.f32 0.0, %v4036
        %v4038 = vpop.f32.mrb[0].mxu0
        %v4039 = vadd.f32 0.0, %v4038
        %v4040 = vpop.f32.mrb[0].mxu0
        %v4041 = vadd.f32 0.0, %v4040
        %4042 = vdwg.mxu0
        %v4043 = vadd.f32 %v3807, %v4005
        %v4044 = vadd.f32 %v3811, %v4007
        %v4045 = vadd.f32 %v3807, %v4009
        %v4046 = vadd.f32 %v3811, %v4011
        %v4047 = vadd.f32 %v3807, %v4015
        %v4048 = vadd.f32 %v3811, %v4017
        %v4049 = vadd.f32 %v3807, %v4019
        %v4050 = vadd.f32 %v3811, %v4021
        %v4051 = vadd.f32 %v3807, %v4025
        %v4052 = vadd.f32 %v3811, %v4027
        %v4053 = vadd.f32 %v3807, %v4029
        %v4054 = vadd.f32 %v3811, %v4031
        %v4055 = vadd.f32 %v3807, %v4035
        %v4056 = vadd.f32 %v3811, %v4037
        %v4057 = vadd.f32 %v3807, %v4039
        %v4058 = vadd.f32 %v3811, %v4041
        %s4059 = scalar_lea.vmem [#allocation3], 16
        %v4060 = vld [vmem:[%s4059] sm:$0xff]
        %v4061 = vld [vmem:[%s4059 + $0x8] sm:$0xff]
        %v4062 = vld [vmem:[%s4059 + $0x10] sm:$0xff]
        %v4063 = vld [vmem:[%s4059 + $0x18] sm:$0xff]
        %v4064 = vld [vmem:[%s4059 + $0x20] sm:$0xff]
        %v4065 = vld [vmem:[%s4059 + $0x28] sm:$0xff]
        %v4066 = vld [vmem:[%s4059 + $0x30] sm:$0xff]
        %v4067 = vld [vmem:[%s4059 + $0x38] sm:$0xff]
        %v4068 = vld [vmem:[%s4059 + $0x40] sm:$0xff]
        %v4069 = vld [vmem:[%s4059 + $0x48] sm:$0xff]
        %v4070 = vld [vmem:[%s4059 + $0x50] sm:$0xff]
        %v4071 = vld [vmem:[%s4059 + $0x58] sm:$0xff]
        %v4072 = vld [vmem:[%s4059 + $0x60] sm:$0xff]
        %v4073 = vld [vmem:[%s4059 + $0x68] sm:$0xff]
        %v4074 = vld [vmem:[%s4059 + $0x70] sm:$0xff]
        %v4075 = vld [vmem:[%s4059 + $0x78] sm:$0xff]
        %v4076 = vpack.c.bf16 %v4062, %v4060
        %v4077 = vpack.c.bf16 %v4063, %v4061
        %v4078 = vpack.c.bf16 %v4066, %v4064
        %v4079 = vpack.c.bf16 %v4067, %v4065
        %v4080 = vpack.c.bf16 %v4070, %v4068
        %v4081 = vpack.c.bf16 %v4071, %v4069
        %v4082 = vpack.c.bf16 %v4074, %v4072
        %v4083 = vpack.c.bf16 %v4075, %v4073
        %s4084 = scalar_lea.vmem %s7, 160
        %v4085 = vld [vmem:[%s4084] sm:$0xff]
        %v4086 = vld [vmem:[%s4084 + $0x8] sm:$0xff]
        %v4087 = vld [vmem:[%s4084 + $0x10] sm:$0xff]
        %v4088 = vld [vmem:[%s4084 + $0x18] sm:$0xff]
        %v4089 = vld [vmem:[%s4084 + $0x20] sm:$0xff]
        %v4090 = vld [vmem:[%s4084 + $0x28] sm:$0xff]
        %v4091 = vld [vmem:[%s4084 + $0x30] sm:$0xff]
        %v4092 = vld [vmem:[%s4084 + $0x38] sm:$0xff]
        %v4093 = vld [vmem:[%s4084 + $0x40] sm:$0xff]
        %v4094 = vld [vmem:[%s4084 + $0x48] sm:$0xff]
        %v4095 = vld [vmem:[%s4084 + $0x50] sm:$0xff]
        %v4096 = vld [vmem:[%s4084 + $0x58] sm:$0xff]
        %v4097 = vld [vmem:[%s4084 + $0x60] sm:$0xff]
        %v4098 = vld [vmem:[%s4084 + $0x68] sm:$0xff]
        %v4099 = vld [vmem:[%s4084 + $0x70] sm:$0xff]
        %v4100 = vld [vmem:[%s4084 + $0x78] sm:$0xff]
        %v4101 = vld [vmem:[%s4084 + $0x80] sm:$0xff]
        %v4102 = vld [vmem:[%s4084 + $0x88] sm:$0xff]
        %v4103 = vld [vmem:[%s4084 + $0x90] sm:$0xff]
        %v4104 = vld [vmem:[%s4084 + $0x98] sm:$0xff]
        %v4125 = vunpack.c.l.b16 %v4085
        %v4126 = vunpack.c.h.b16 %v4085
        %v4127 = vunpack.c.l.b16 %v4086
        %v4128 = vunpack.c.h.b16 %v4086
        %v4129 = vunpack.c.l.b16 %v4087
        %v4130 = vunpack.c.h.b16 %v4087
        %v4131 = vunpack.c.l.b16 %v4088
        %v4132 = vunpack.c.h.b16 %v4088
        %v4133 = vunpack.c.l.b16 %v4089
        %v4134 = vunpack.c.h.b16 %v4089
        %v4135 = vunpack.c.l.b16 %v4090
        %v4136 = vunpack.c.h.b16 %v4090
        %v4137 = vunpack.c.l.b16 %v4091
        %v4138 = vunpack.c.h.b16 %v4091
        %v4139 = vunpack.c.l.b16 %v4092
        %v4140 = vunpack.c.h.b16 %v4092
        %v4141 = vunpack.c.l.b16 %v4093
        %v4142 = vunpack.c.h.b16 %v4093
        %v4143 = vunpack.c.l.b16 %v4094
        %v4144 = vunpack.c.h.b16 %v4094
        %v4145 = vunpack.c.l.b16 %v4095
        %v4146 = vunpack.c.h.b16 %v4095
        %v4147 = vunpack.c.l.b16 %v4096
        %v4148 = vunpack.c.h.b16 %v4096
        %v4149 = vunpack.c.l.b16 %v4097
        %v4150 = vunpack.c.h.b16 %v4097
        %v4151 = vunpack.c.l.b16 %v4098
        %v4152 = vunpack.c.h.b16 %v4098
        %v4153 = vunpack.c.l.b16 %v4099
        %v4154 = vunpack.c.h.b16 %v4099
        %v4155 = vunpack.c.l.b16 %v4100
        %v4156 = vunpack.c.h.b16 %v4100
        %v4157 = vunpack.c.l.b16 %v4101
        %v4158 = vunpack.c.h.b16 %v4101
        %v4159 = vunpack.c.l.b16 %v4102
        %v4160 = vunpack.c.h.b16 %v4102
        %v4161 = vunpack.c.l.b16 %v4103
        %v4162 = vunpack.c.h.b16 %v4103
        %v4163 = vunpack.c.l.b16 %v4104
        %v4164 = vunpack.c.h.b16 %v4104
        %v4165 = vpack.c.b16 %v4127, %v4125
        %v4166 = vpack.c.b16 %v4128, %v4126
        %v4167 = vpack.c.b16 %v4131, %v4129
        %v4168 = vpack.c.b16 %v4132, %v4130
        %v4169 = vpack.c.b16 %v4135, %v4133
        %v4170 = vpack.c.b16 %v4136, %v4134
        %v4171 = vpack.c.b16 %v4139, %v4137
        %v4172 = vpack.c.b16 %v4140, %v4138
        %v4173 = vpack.c.b16 %v4143, %v4141
        %v4174 = vpack.c.b16 %v4144, %v4142
        %v4175 = vpack.c.b16 %v4147, %v4145
        %v4176 = vpack.c.b16 %v4148, %v4146
        %v4177 = vpack.c.b16 %v4151, %v4149
        %v4178 = vpack.c.b16 %v4152, %v4150
        %v4179 = vpack.c.b16 %v4155, %v4153
        %v4180 = vpack.c.b16 %v4156, %v4154
        %v4181 = vpack.c.b16 %v4159, %v4157
        %v4182 = vpack.c.b16 %v4160, %v4158
        %v4183 = vpack.c.b16 %v4163, %v4161
        %v4184 = vpack.c.b16 %v4164, %v4162
        %v4206 = vsel %vm3772, %v4077, 0
        %v4209 = vsel %vm3772, %v4079, 0
        %v4212 = vsel %vm3772, %v4081, 0
        %v4215 = vsel %vm3772, %v4083, 0
        %4217 = vmatprep.subr.bf16.mxu0 %v4166
        %4218 = vmatpush1.bf16.msra.mxu0 %v4165
        %4219 = vmatprep.subr.bf16.mxu0 %v4168
        %4220 = vmatpush1.bf16.msra.mxu0 %v4167
        %4221 = vmatprep.subr.bf16.mxu0 %v4170
        %4222 = vmatpush1.bf16.msra.mxu0 %v4169
        %4223 = vmatprep.subr.bf16.mxu0 %v4172
        %4224 = vmatpush1.bf16.msra.mxu0 %v4171
        %4225 = vmatprep.subr.bf16.mxu0 %v4174
        %4226 = vmatpush1.bf16.msra.mxu0 %v4173
        %4227 = vmatprep.subr.bf16.mxu0 %v4176
        %4228 = vmatpush1.bf16.msra.mxu0 %v4175
        %4229 = vmatprep.subr.bf16.mxu0 %v4178
        %4230 = vmatpush1.bf16.msra.mxu0 %v4177
        %4231 = vmatprep.subr.bf16.mxu0 %v4180
        %4232 = vmatpush1.bf16.msra.mxu0 %v4179
        %4233 = vmatprep.subr.bf16.mxu0 %v4182
        %4234 = vmatpush1.bf16.msra.mxu0 %v4181
        %4235 = vmatprep.subr.bf16.mxu0 %v4184
        %4236 = vmatpush1.bf16.msra.mxu0 %v4183
        %4237 = vmatprep.subr.bf16.mxu0 0
        %4238 = vmatpush1.bf16.msra.mxu0 0
        %4239 = vmatprep.subr.bf16.mxu0 0
        %4240 = vmatpush1.bf16.msra.mxu0 0
        %4241 = vmatprep.subr.bf16.mxu0 0
        %4242 = vmatpush1.bf16.msra.mxu0 0
        %4243 = vmatprep.subr.bf16.mxu0 0
        %4244 = vmatpush1.bf16.msra.mxu0 0
        %4245 = vmatprep.subr.bf16.mxu0 0
        %4246 = vmatpush1.bf16.msra.mxu0 0
        %4247 = vmatprep.subr.bf16.mxu0 0
        %4248 = vmatpush1.bf16.msra.mxu0 0
        %4249 = vmatprep.mubr.bf16.mxu0 %v4206
        %4250 = vmatmul.mubr.bf16.gmra.mrb[0].mxu0 %v4076
        %v4251 = vpop.f32.mrb[0].mxu0
        %v4252 = vadd.f32 0.0, %v4251
        %v4253 = vpop.f32.mrb[0].mxu0
        %v4254 = vadd.f32 0.0, %v4253
        %v4255 = vpop.f32.mrb[0].mxu0
        %v4256 = vadd.f32 0.0, %v4255
        %v4257 = vpop.f32.mrb[0].mxu0
        %v4258 = vadd.f32 0.0, %v4257
        %4259 = vmatprep.mubr.bf16.mxu0 %v4209
        %4260 = vmatmul.mubr.bf16.gmra.mrb[0].mxu0 %v4078
        %v4261 = vpop.f32.mrb[0].mxu0
        %v4262 = vadd.f32 0.0, %v4261
        %v4263 = vpop.f32.mrb[0].mxu0
        %v4264 = vadd.f32 0.0, %v4263
        %v4265 = vpop.f32.mrb[0].mxu0
        %v4266 = vadd.f32 0.0, %v4265
        %v4267 = vpop.f32.mrb[0].mxu0
        %v4268 = vadd.f32 0.0, %v4267
        %4269 = vmatprep.mubr.bf16.mxu0 %v4212
        %4270 = vmatmul.mubr.bf16.gmra.mrb[0].mxu0 %v4080
        %v4271 = vpop.f32.mrb[0].mxu0
        %v4272 = vadd.f32 0.0, %v4271
        %v4273 = vpop.f32.mrb[0].mxu0
        %v4274 = vadd.f32 0.0, %v4273
        %v4275 = vpop.f32.mrb[0].mxu0
        %v4276 = vadd.f32 0.0, %v4275
        %v4277 = vpop.f32.mrb[0].mxu0
        %v4278 = vadd.f32 0.0, %v4277
        %4279 = vmatprep.mubr.bf16.mxu0 %v4215
        %4280 = vmatmul.mubr.bf16.gmra.mrb[0].mxu0 %v4082
        %v4281 = vpop.f32.mrb[0].mxu0
        %v4282 = vadd.f32 0.0, %v4281
        %v4283 = vpop.f32.mrb[0].mxu0
        %v4284 = vadd.f32 0.0, %v4283
        %v4285 = vpop.f32.mrb[0].mxu0
        %v4286 = vadd.f32 0.0, %v4285
        %v4287 = vpop.f32.mrb[0].mxu0
        %v4288 = vadd.f32 0.0, %v4287
        %4289 = vdwg.mxu0
        %v4290 = vadd.f32 %v4043, %v4252
        %v4291 = vadd.f32 %v4044, %v4254
        %v4292 = vadd.f32 %v4045, %v4256
        %v4293 = vadd.f32 %v4046, %v4258
        %v4294 = vadd.f32 %v4047, %v4262
        %v4295 = vadd.f32 %v4048, %v4264
        %v4296 = vadd.f32 %v4049, %v4266
        %v4297 = vadd.f32 %v4050, %v4268
        %v4298 = vadd.f32 %v4051, %v4272
        %v4299 = vadd.f32 %v4052, %v4274
        %v4300 = vadd.f32 %v4053, %v4276
        %v4301 = vadd.f32 %v4054, %v4278
        %v4302 = vadd.f32 %v4055, %v4282
        %v4303 = vadd.f32 %v4056, %v4284
        %v4304 = vadd.f32 %v4057, %v4286
        %v4305 = vadd.f32 %v4058, %v4288
        %s4306 = scalar_lea.vmem [#allocation3], 32
        %v4307 = vld [vmem:[%s4306] sm:$0xff]
        %v4308 = vld [vmem:[%s4306 + $0x8] sm:$0xff]
        %v4309 = vld [vmem:[%s4306 + $0x10] sm:$0xff]
        %v4310 = vld [vmem:[%s4306 + $0x18] sm:$0xff]
        %v4311 = vld [vmem:[%s4306 + $0x20] sm:$0xff]
        %v4312 = vld [vmem:[%s4306 + $0x28] sm:$0xff]
        %v4313 = vld [vmem:[%s4306 + $0x30] sm:$0xff]
        %v4314 = vld [vmem:[%s4306 + $0x38] sm:$0xff]
        %v4315 = vld [vmem:[%s4306 + $0x40] sm:$0xff]
        %v4316 = vld [vmem:[%s4306 + $0x48] sm:$0xff]
        %v4317 = vld [vmem:[%s4306 + $0x50] sm:$0xff]
        %v4318 = vld [vmem:[%s4306 + $0x58] sm:$0xff]
        %v4319 = vld [vmem:[%s4306 + $0x60] sm:$0xff]
        %v4320 = vld [vmem:[%s4306 + $0x68] sm:$0xff]
        %v4321 = vld [vmem:[%s4306 + $0x70] sm:$0xff]
        %v4322 = vld [vmem:[%s4306 + $0x78] sm:$0xff]
        %v4323 = vpack.c.bf16 %v4309, %v4307
        %v4324 = vpack.c.bf16 %v4310, %v4308
        %v4325 = vpack.c.bf16 %v4313, %v4311
        %v4326 = vpack.c.bf16 %v4314, %v4312
        %v4327 = vpack.c.bf16 %v4317, %v4315
        %v4328 = vpack.c.bf16 %v4318, %v4316
        %v4329 = vpack.c.bf16 %v4321, %v4319
        %v4330 = vpack.c.bf16 %v4322, %v4320
        %s4331 = scalar_lea.vmem %s7, 320
        %v4332 = vld [vmem:[%s4331] sm:$0xff]
        %v4333 = vld [vmem:[%s4331 + $0x8] sm:$0xff]
        %v4334 = vld [vmem:[%s4331 + $0x10] sm:$0xff]
        %v4335 = vld [vmem:[%s4331 + $0x18] sm:$0xff]
        %v4336 = vld [vmem:[%s4331 + $0x20] sm:$0xff]
        %v4337 = vld [vmem:[%s4331 + $0x28] sm:$0xff]
        %v4338 = vld [vmem:[%s4331 + $0x30] sm:$0xff]
        %v4339 = vld [vmem:[%s4331 + $0x38] sm:$0xff]
        %v4340 = vld [vmem:[%s4331 + $0x40] sm:$0xff]
        %v4341 = vld [vmem:[%s4331 + $0x48] sm:$0xff]
        %v4342 = vld [vmem:[%s4331 + $0x50] sm:$0xff]
        %v4343 = vld [vmem:[%s4331 + $0x58] sm:$0xff]
        %v4344 = vld [vmem:[%s4331 + $0x60] sm:$0xff]
        %v4345 = vld [vmem:[%s4331 + $0x68] sm:$0xff]
        %v4346 = vld [vmem:[%s4331 + $0x70] sm:$0xff]
        %v4347 = vld [vmem:[%s4331 + $0x78] sm:$0xff]
        %v4348 = vld [vmem:[%s4331 + $0x80] sm:$0xff]
        %v4349 = vld [vmem:[%s4331 + $0x88] sm:$0xff]
        %v4350 = vld [vmem:[%s4331 + $0x90] sm:$0xff]
        %v4351 = vld [vmem:[%s4331 + $0x98] sm:$0xff]
        %v4372 = vunpack.c.l.b16 %v4332
        %v4373 = vunpack.c.h.b16 %v4332
        %v4374 = vunpack.c.l.b16 %v4333
        %v4375 = vunpack.c.h.b16 %v4333
        %v4376 = vunpack.c.l.b16 %v4334
        %v4377 = vunpack.c.h.b16 %v4334
        %v4378 = vunpack.c.l.b16 %v4335
        %v4379 = vunpack.c.h.b16 %v4335
        %v4380 = vunpack.c.l.b16 %v4336
        %v4381 = vunpack.c.h.b16 %v4336
        %v4382 = vunpack.c.l.b16 %v4337
        %v4383 = vunpack.c.h.b16 %v4337
        %v4384 = vunpack.c.l.b16 %v4338
        %v4385 = vunpack.c.h.b16 %v4338
        %v4386 = vunpack.c.l.b16 %v4339
        %v4387 = vunpack.c.h.b16 %v4339
        %v4388 = vunpack.c.l.b16 %v4340
        %v4389 = vunpack.c.h.b16 %v4340
        %v4390 = vunpack.c.l.b16 %v4341
        %v4391 = vunpack.c.h.b16 %v4341
        %v4392 = vunpack.c.l.b16 %v4342
        %v4393 = vunpack.c.h.b16 %v4342
        %v4394 = vunpack.c.l.b16 %v4343
        %v4395 = vunpack.c.h.b16 %v4343
        %v4396 = vunpack.c.l.b16 %v4344
        %v4397 = vunpack.c.h.b16 %v4344
        %v4398 = vunpack.c.l.b16 %v4345
        %v4399 = vunpack.c.h.b16 %v4345
        %v4400 = vunpack.c.l.b16 %v4346
        %v4401 = vunpack.c.h.b16 %v4346
        %v4402 = vunpack.c.l.b16 %v4347
        %v4403 = vunpack.c.h.b16 %v4347
        %v4404 = vunpack.c.l.b16 %v4348
        %v4405 = vunpack.c.h.b16 %v4348
        %v4406 = vunpack.c.l.b16 %v4349
        %v4407 = vunpack.c.h.b16 %v4349
        %v4408 = vunpack.c.l.b16 %v4350
        %v4409 = vunpack.c.h.b16 %v4350
        %v4410 = vunpack.c.l.b16 %v4351
        %v4411 = vunpack.c.h.b16 %v4351
        %v4412 = vpack.c.b16 %v4374, %v4372
        %v4413 = vpack.c.b16 %v4375, %v4373
        %v4414 = vpack.c.b16 %v4378, %v4376
        %v4415 = vpack.c.b16 %v4379, %v4377
        %v4416 = vpack.c.b16 %v4382, %v4380
        %v4417 = vpack.c.b16 %v4383, %v4381
        %v4418 = vpack.c.b16 %v4386, %v4384
        %v4419 = vpack.c.b16 %v4387, %v4385
        %v4420 = vpack.c.b16 %v4390, %v4388
        %v4421 = vpack.c.b16 %v4391, %v4389
        %v4422 = vpack.c.b16 %v4394, %v4392
        %v4423 = vpack.c.b16 %v4395, %v4393
        %v4424 = vpack.c.b16 %v4398, %v4396
        %v4425 = vpack.c.b16 %v4399, %v4397
        %v4426 = vpack.c.b16 %v4402, %v4400
        %v4427 = vpack.c.b16 %v4403, %v4401
        %v4428 = vpack.c.b16 %v4406, %v4404
        %v4429 = vpack.c.b16 %v4407, %v4405
        %v4430 = vpack.c.b16 %v4410, %v4408
        %v4431 = vpack.c.b16 %v4411, %v4409
        %v4453 = vsel %vm3772, %v4324, 0
        %v4456 = vsel %vm3772, %v4326, 0
        %v4459 = vsel %vm3772, %v4328, 0
        %v4462 = vsel %vm3772, %v4330, 0
        %4464 = vmatprep.subr.bf16.mxu0 %v4413
        %4465 = vmatpush1.bf16.msra.mxu0 %v4412
        %4466 = vmatprep.subr.bf16.mxu0 %v4415
        %4467 = vmatpush1.bf16.msra.mxu0 %v4414
        %4468 = vmatprep.subr.bf16.mxu0 %v4417
        %4469 = vmatpush1.bf16.msra.mxu0 %v4416
        %4470 = vmatprep.subr.bf16.mxu0 %v4419
        %4471 = vmatpush1.bf16.msra.mxu0 %v4418
        %4472 = vmatprep.subr.bf16.mxu0 %v4421
        %4473 = vmatpush1.bf16.msra.mxu0 %v4420
        %4474 = vmatprep.subr.bf16.mxu0 %v4423
        %4475 = vmatpush1.bf16.msra.mxu0 %v4422
        %4476 = vmatprep.subr.bf16.mxu0 %v4425
        %4477 = vmatpush1.bf16.msra.mxu0 %v4424
        %4478 = vmatprep.subr.bf16.mxu0 %v4427
        %4479 = vmatpush1.bf16.msra.mxu0 %v4426
        %4480 = vmatprep.subr.bf16.mxu0 %v4429
        %4481 = vmatpush1.bf16.msra.mxu0 %v4428
        %4482 = vmatprep.subr.bf16.mxu0 %v4431
        %4483 = vmatpush1.bf16.msra.mxu0 %v4430
        %4484 = vmatprep.subr.bf16.mxu0 0
        %4485 = vmatpush1.bf16.msra.mxu0 0
        %4486 = vmatprep.subr.bf16.mxu0 0
        %4487 = vmatpush1.bf16.msra.mxu0 0
        %4488 = vmatprep.subr.bf16.mxu0 0
        %4489 = vmatpush1.bf16.msra.mxu0 0
        %4490 = vmatprep.subr.bf16.mxu0 0
        %4491 = vmatpush1.bf16.msra.mxu0 0
        %4492 = vmatprep.subr.bf16.mxu0 0
        %4493 = vmatpush1.bf16.msra.mxu0 0
        %4494 = vmatprep.subr.bf16.mxu0 0
        %4495 = vmatpush1.bf16.msra.mxu0 0
        %4496 = vmatprep.mubr.bf16.mxu0 %v4453
        %4497 = vmatmul.mubr.bf16.gmra.mrb[0].mxu0 %v4323
        %v4498 = vpop.f32.mrb[0].mxu0
        %v4499 = vadd.f32 0.0, %v4498
        %v4500 = vpop.f32.mrb[0].mxu0
        %v4501 = vadd.f32 0.0, %v4500
        %v4502 = vpop.f32.mrb[0].mxu0
        %v4503 = vadd.f32 0.0, %v4502
        %v4504 = vpop.f32.mrb[0].mxu0
        %v4505 = vadd.f32 0.0, %v4504
        %4506 = vmatprep.mubr.bf16.mxu0 %v4456
        %4507 = vmatmul.mubr.bf16.gmra.mrb[0].mxu0 %v4325
        %v4508 = vpop.f32.mrb[0].mxu0
        %v4509 = vadd.f32 0.0, %v4508
        %v4510 = vpop.f32.mrb[0].mxu0
        %v4511 = vadd.f32 0.0, %v4510
        %v4512 = vpop.f32.mrb[0].mxu0
        %v4513 = vadd.f32 0.0, %v4512
        %v4514 = vpop.f32.mrb[0].mxu0
        %v4515 = vadd.f32 0.0, %v4514
        %4516 = vmatprep.mubr.bf16.mxu0 %v4459
        %4517 = vmatmul.mubr.bf16.gmra.mrb[0].mxu0 %v4327
        %v4518 = vpop.f32.mrb[0].mxu0
        %v4519 = vadd.f32 0.0, %v4518
        %v4520 = vpop.f32.mrb[0].mxu0
        %v4521 = vadd.f32 0.0, %v4520
        %v4522 = vpop.f32.mrb[0].mxu0
        %v4523 = vadd.f32 0.0, %v4522
        %v4524 = vpop.f32.mrb[0].mxu0
        %v4525 = vadd.f32 0.0, %v4524
        %4526 = vmatprep.mubr.bf16.mxu0 %v4462
        %4527 = vmatmul.mubr.bf16.gmra.mrb[0].mxu0 %v4329
        %v4528 = vpop.f32.mrb[0].mxu0
        %v4529 = vadd.f32 0.0, %v4528
        %v4530 = vpop.f32.mrb[0].mxu0
        %v4531 = vadd.f32 0.0, %v4530
        %v4532 = vpop.f32.mrb[0].mxu0
        %v4533 = vadd.f32 0.0, %v4532
        %v4534 = vpop.f32.mrb[0].mxu0
        %v4535 = vadd.f32 0.0, %v4534
        %4536 = vdwg.mxu0
        %v4537 = vadd.f32 %v4290, %v4499
        %v4538 = vadd.f32 %v4291, %v4501
        %v4539 = vadd.f32 %v4292, %v4503
        %v4540 = vadd.f32 %v4293, %v4505
        %v4541 = vadd.f32 %v4294, %v4509
        %v4542 = vadd.f32 %v4295, %v4511
        %v4543 = vadd.f32 %v4296, %v4513
        %v4544 = vadd.f32 %v4297, %v4515
        %v4545 = vadd.f32 %v4298, %v4519
        %v4546 = vadd.f32 %v4299, %v4521
        %v4547 = vadd.f32 %v4300, %v4523
        %v4548 = vadd.f32 %v4301, %v4525
        %v4549 = vadd.f32 %v4302, %v4529
        %v4550 = vadd.f32 %v4303, %v4531
        %v4551 = vadd.f32 %v4304, %v4533
        %v4552 = vadd.f32 %v4305, %v4535
        %v4553 = vld [vmem:[%s3785] sm:$0xff]
        %v4554 = vld [vmem:[%s3785 + $0x8] sm:$0xff]
        %v4555 = vld [vmem:[%s3785 + $0x10] sm:$0xff]
        %v4556 = vld [vmem:[%s3785 + $0x18] sm:$0xff]
        %v4557 = vld [vmem:[%s3785 + $0x20] sm:$0xff]
        %v4558 = vld [vmem:[%s3785 + $0x28] sm:$0xff]
        %v4559 = vld [vmem:[%s3785 + $0x30] sm:$0xff]
        %v4560 = vld [vmem:[%s3785 + $0x38] sm:$0xff]
        %v4561 = vld [vmem:[%s3785 + $0x40] sm:$0xff]
        %v4562 = vld [vmem:[%s3785 + $0x48] sm:$0xff]
        %v4563 = vld [vmem:[%s3785 + $0x50] sm:$0xff]
        %v4564 = vld [vmem:[%s3785 + $0x58] sm:$0xff]
        %v4565 = vld [vmem:[%s3785 + $0x60] sm:$0xff]
        %v4566 = vld [vmem:[%s3785 + $0x68] sm:$0xff]
        %v4567 = vld [vmem:[%s3785 + $0x70] sm:$0xff]
        %v4568 = vld [vmem:[%s3785 + $0x78] sm:$0xff]
        %v4569 = vpack.c.bf16 %v4555, %v4553
        %v4570 = vpack.c.bf16 %v4556, %v4554
        %v4571 = vpack.c.bf16 %v4559, %v4557
        %v4572 = vpack.c.bf16 %v4560, %v4558
        %v4573 = vpack.c.bf16 %v4563, %v4561
        %v4574 = vpack.c.bf16 %v4564, %v4562
        %v4575 = vpack.c.bf16 %v4567, %v4565
        %v4576 = vpack.c.bf16 %v4568, %v4566
        %s4577 = scalar_lea.vmem %s7, 480
        %v4578 = vld [vmem:[%s4577] sm:$0xff]
        %v4579 = vld [vmem:[%s4577 + $0x8] sm:$0xff]
        %v4580 = vld [vmem:[%s4577 + $0x10] sm:$0xff]
        %v4581 = vld [vmem:[%s4577 + $0x18] sm:$0xff]
        %v4582 = vld [vmem:[%s4577 + $0x20] sm:$0xff]
        %v4583 = vld [vmem:[%s4577 + $0x28] sm:$0xff]
        %v4584 = vld [vmem:[%s4577 + $0x30] sm:$0xff]
        %v4585 = vld [vmem:[%s4577 + $0x38] sm:$0xff]
        %v4586 = vld [vmem:[%s4577 + $0x40] sm:$0xff]
        %v4587 = vld [vmem:[%s4577 + $0x48] sm:$0xff]
        %v4588 = vld [vmem:[%s4577 + $0x50] sm:$0xff]
        %v4589 = vld [vmem:[%s4577 + $0x58] sm:$0xff]
        %v4590 = vld [vmem:[%s4577 + $0x60] sm:$0xff]
        %v4591 = vld [vmem:[%s4577 + $0x68] sm:$0xff]
        %v4592 = vld [vmem:[%s4577 + $0x70] sm:$0xff]
        %v4593 = vld [vmem:[%s4577 + $0x78] sm:$0xff]
        %v4594 = vld [vmem:[%s4577 + $0x80] sm:$0xff]
        %v4595 = vld [vmem:[%s4577 + $0x88] sm:$0xff]
        %v4596 = vld [vmem:[%s4577 + $0x90] sm:$0xff]
        %v4597 = vld [vmem:[%s4577 + $0x98] sm:$0xff]
        %v4618 = vunpack.c.l.b16 %v4578
        %v4619 = vunpack.c.h.b16 %v4578
        %v4620 = vunpack.c.l.b16 %v4579
        %v4621 = vunpack.c.h.b16 %v4579
        %v4622 = vunpack.c.l.b16 %v4580
        %v4623 = vunpack.c.h.b16 %v4580
        %v4624 = vunpack.c.l.b16 %v4581
        %v4625 = vunpack.c.h.b16 %v4581
        %v4626 = vunpack.c.l.b16 %v4582
        %v4627 = vunpack.c.h.b16 %v4582
        %v4628 = vunpack.c.l.b16 %v4583
        %v4629 = vunpack.c.h.b16 %v4583
        %v4630 = vunpack.c.l.b16 %v4584
        %v4631 = vunpack.c.h.b16 %v4584
        %v4632 = vunpack.c.l.b16 %v4585
        %v4633 = vunpack.c.h.b16 %v4585
        %v4634 = vunpack.c.l.b16 %v4586
        %v4635 = vunpack.c.h.b16 %v4586
        %v4636 = vunpack.c.l.b16 %v4587
        %v4637 = vunpack.c.h.b16 %v4587
        %v4638 = vunpack.c.l.b16 %v4588
        %v4639 = vunpack.c.h.b16 %v4588
        %v4640 = vunpack.c.l.b16 %v4589
        %v4641 = vunpack.c.h.b16 %v4589
        %v4642 = vunpack.c.l.b16 %v4590
        %v4643 = vunpack.c.h.b16 %v4590
        %v4644 = vunpack.c.l.b16 %v4591
        %v4645 = vunpack.c.h.b16 %v4591
        %v4646 = vunpack.c.l.b16 %v4592
        %v4647 = vunpack.c.h.b16 %v4592
        %v4648 = vunpack.c.l.b16 %v4593
        %v4649 = vunpack.c.h.b16 %v4593
        %v4650 = vunpack.c.l.b16 %v4594
        %v4651 = vunpack.c.h.b16 %v4594
        %v4652 = vunpack.c.l.b16 %v4595
        %v4653 = vunpack.c.h.b16 %v4595
        %v4654 = vunpack.c.l.b16 %v4596
        %v4655 = vunpack.c.h.b16 %v4596
        %v4656 = vunpack.c.l.b16 %v4597
        %v4657 = vunpack.c.h.b16 %v4597
        %v4658 = vpack.c.b16 %v4620, %v4618
        %v4659 = vpack.c.b16 %v4621, %v4619
        %v4660 = vpack.c.b16 %v4624, %v4622
        %v4661 = vpack.c.b16 %v4625, %v4623
        %v4662 = vpack.c.b16 %v4628, %v4626
        %v4663 = vpack.c.b16 %v4629, %v4627
        %v4664 = vpack.c.b16 %v4632, %v4630
        %v4665 = vpack.c.b16 %v4633, %v4631
        %v4666 = vpack.c.b16 %v4636, %v4634
        %v4667 = vpack.c.b16 %v4637, %v4635
        %v4668 = vpack.c.b16 %v4640, %v4638
        %v4669 = vpack.c.b16 %v4641, %v4639
        %v4670 = vpack.c.b16 %v4644, %v4642
        %v4671 = vpack.c.b16 %v4645, %v4643
        %v4672 = vpack.c.b16 %v4648, %v4646
        %v4673 = vpack.c.b16 %v4649, %v4647
        %v4674 = vpack.c.b16 %v4652, %v4650
        %v4675 = vpack.c.b16 %v4653, %v4651
        %v4676 = vpack.c.b16 %v4656, %v4654
        %v4677 = vpack.c.b16 %v4657, %v4655
        %v4699 = vsel %vm3772, %v4570, 0
        %v4702 = vsel %vm3772, %v4572, 0
        %v4705 = vsel %vm3772, %v4574, 0
        %v4708 = vsel %vm3772, %v4576, 0
        %4710 = vmatprep.subr.bf16.mxu0 %v4659
        %4711 = vmatpush1.bf16.msra.mxu0 %v4658
        %4712 = vmatprep.subr.bf16.mxu0 %v4661
        %4713 = vmatpush1.bf16.msra.mxu0 %v4660
        %4714 = vmatprep.subr.bf16.mxu0 %v4663
        %4715 = vmatpush1.bf16.msra.mxu0 %v4662
        %4716 = vmatprep.subr.bf16.mxu0 %v4665
        %4717 = vmatpush1.bf16.msra.mxu0 %v4664
        %4718 = vmatprep.subr.bf16.mxu0 %v4667
        %4719 = vmatpush1.bf16.msra.mxu0 %v4666
        %4720 = vmatprep.subr.bf16.mxu0 %v4669
        %4721 = vmatpush1.bf16.msra.mxu0 %v4668
        %4722 = vmatprep.subr.bf16.mxu0 %v4671
        %4723 = vmatpush1.bf16.msra.mxu0 %v4670
        %4724 = vmatprep.subr.bf16.mxu0 %v4673
        %4725 = vmatpush1.bf16.msra.mxu0 %v4672
        %4726 = vmatprep.subr.bf16.mxu0 %v4675
        %4727 = vmatpush1.bf16.msra.mxu0 %v4674
        %4728 = vmatprep.subr.bf16.mxu0 %v4677
        %4729 = vmatpush1.bf16.msra.mxu0 %v4676
        %4730 = vmatprep.subr.bf16.mxu0 0
        %4731 = vmatpush1.bf16.msra.mxu0 0
        %4732 = vmatprep.subr.bf16.mxu0 0
        %4733 = vmatpush1.bf16.msra.mxu0 0
        %4734 = vmatprep.subr.bf16.mxu0 0
        %4735 = vmatpush1.bf16.msra.mxu0 0
        %4736 = vmatprep.subr.bf16.mxu0 0
        %4737 = vmatpush1.bf16.msra.mxu0 0
        %4738 = vmatprep.subr.bf16.mxu0 0
        %4739 = vmatpush1.bf16.msra.mxu0 0
        %4740 = vmatprep.subr.bf16.mxu0 0
        %4741 = vmatpush1.bf16.msra.mxu0 0
        %4742 = vmatprep.mubr.bf16.mxu0 %v4699
        %4743 = vmatmul.mubr.bf16.gmra.mrb[0].mxu0 %v4569
        %v4744 = vpop.f32.mrb[0].mxu0
        %v4745 = vadd.f32 0.0, %v4744
        %v4746 = vpop.f32.mrb[0].mxu0
        %v4747 = vadd.f32 0.0, %v4746
        %v4748 = vpop.f32.mrb[0].mxu0
        %v4749 = vadd.f32 0.0, %v4748
        %v4750 = vpop.f32.mrb[0].mxu0
        %v4751 = vadd.f32 0.0, %v4750
        %4752 = vmatprep.mubr.bf16.mxu0 %v4702
        %4753 = vmatmul.mubr.bf16.gmra.mrb[0].mxu0 %v4571
        %v4754 = vpop.f32.mrb[0].mxu0
        %v4755 = vadd.f32 0.0, %v4754
        %v4756 = vpop.f32.mrb[0].mxu0
        %v4757 = vadd.f32 0.0, %v4756
        %v4758 = vpop.f32.mrb[0].mxu0
        %v4759 = vadd.f32 0.0, %v4758
        %v4760 = vpop.f32.mrb[0].mxu0
        %v4761 = vadd.f32 0.0, %v4760
        %4762 = vmatprep.mubr.bf16.mxu0 %v4705
        %4763 = vmatmul.mubr.bf16.gmra.mrb[0].mxu0 %v4573
        %v4764 = vpop.f32.mrb[0].mxu0
        %v4765 = vadd.f32 0.0, %v4764
        %v4766 = vpop.f32.mrb[0].mxu0
        %v4767 = vadd.f32 0.0, %v4766
        %v4768 = vpop.f32.mrb[0].mxu0
        %v4769 = vadd.f32 0.0, %v4768
        %v4770 = vpop.f32.mrb[0].mxu0
        %v4771 = vadd.f32 0.0, %v4770
        %4772 = vmatprep.mubr.bf16.mxu0 %v4708
        %4773 = vmatmul.mubr.bf16.gmra.mrb[0].mxu0 %v4575
        %v4774 = vpop.f32.mrb[0].mxu0
        %v4775 = vadd.f32 0.0, %v4774
        %v4776 = vpop.f32.mrb[0].mxu0
        %v4777 = vadd.f32 0.0, %v4776
        %v4778 = vpop.f32.mrb[0].mxu0
        %v4779 = vadd.f32 0.0, %v4778
        %v4780 = vpop.f32.mrb[0].mxu0
        %v4781 = vadd.f32 0.0, %v4780
        %4782 = vdwg.mxu0
        %v4783 = vadd.f32 %v4537, %v4745
        %v4784 = vadd.f32 %v4538, %v4747
        %v4785 = vadd.f32 %v4539, %v4749
        %v4786 = vadd.f32 %v4540, %v4751
        %v4787 = vadd.f32 %v4541, %v4755
        %v4788 = vadd.f32 %v4542, %v4757
        %v4789 = vadd.f32 %v4543, %v4759
        %v4790 = vadd.f32 %v4544, %v4761
        %v4791 = vadd.f32 %v4545, %v4765
        %v4792 = vadd.f32 %v4546, %v4767
        %v4793 = vadd.f32 %v4547, %v4769
        %v4794 = vadd.f32 %v4548, %v4771
        %v4795 = vadd.f32 %v4549, %v4775
        %v4796 = vadd.f32 %v4550, %v4777
        %v4797 = vadd.f32 %v4551, %v4779
        %v4798 = vadd.f32 %v4552, %v4781
        %s4799 = scalar_lea.vmem [#allocation3], 64
        %v4800 = vld [vmem:[%s4799] sm:$0xff]
        %v4801 = vld [vmem:[%s4799 + $0x8] sm:$0xff]
        %v4802 = vld [vmem:[%s4799 + $0x10] sm:$0xff]
        %v4803 = vld [vmem:[%s4799 + $0x18] sm:$0xff]
        %v4804 = vld [vmem:[%s4799 + $0x20] sm:$0xff]
        %v4805 = vld [vmem:[%s4799 + $0x28] sm:$0xff]
        %v4806 = vld [vmem:[%s4799 + $0x30] sm:$0xff]
        %v4807 = vld [vmem:[%s4799 + $0x38] sm:$0xff]
        %v4808 = vld [vmem:[%s4799 + $0x40] sm:$0xff]
        %v4809 = vld [vmem:[%s4799 + $0x48] sm:$0xff]
        %v4810 = vld [vmem:[%s4799 + $0x50] sm:$0xff]
        %v4811 = vld [vmem:[%s4799 + $0x58] sm:$0xff]
        %v4812 = vld [vmem:[%s4799 + $0x60] sm:$0xff]
        %v4813 = vld [vmem:[%s4799 + $0x68] sm:$0xff]
        %v4814 = vld [vmem:[%s4799 + $0x70] sm:$0xff]
        %v4815 = vld [vmem:[%s4799 + $0x78] sm:$0xff]
        %v4816 = vpack.c.bf16 %v4802, %v4800
        %v4817 = vpack.c.bf16 %v4803, %v4801
        %v4818 = vpack.c.bf16 %v4806, %v4804
        %v4819 = vpack.c.bf16 %v4807, %v4805
        %v4820 = vpack.c.bf16 %v4810, %v4808
        %v4821 = vpack.c.bf16 %v4811, %v4809
        %v4822 = vpack.c.bf16 %v4814, %v4812
        %v4823 = vpack.c.bf16 %v4815, %v4813
        %s4824 = scalar_lea.vmem %s7, 640
        %v4825 = vld [vmem:[%s4824] sm:$0xff]
        %v4826 = vld [vmem:[%s4824 + $0x8] sm:$0xff]
        %v4827 = vld [vmem:[%s4824 + $0x10] sm:$0xff]
        %v4828 = vld [vmem:[%s4824 + $0x18] sm:$0xff]
        %v4829 = vld [vmem:[%s4824 + $0x20] sm:$0xff]
        %v4830 = vld [vmem:[%s4824 + $0x28] sm:$0xff]
        %v4831 = vld [vmem:[%s4824 + $0x30] sm:$0xff]
        %v4832 = vld [vmem:[%s4824 + $0x38] sm:$0xff]
        %v4833 = vld [vmem:[%s4824 + $0x40] sm:$0xff]
        %v4834 = vld [vmem:[%s4824 + $0x48] sm:$0xff]
        %v4835 = vld [vmem:[%s4824 + $0x50] sm:$0xff]
        %v4836 = vld [vmem:[%s4824 + $0x58] sm:$0xff]
        %v4837 = vld [vmem:[%s4824 + $0x60] sm:$0xff]
        %v4838 = vld [vmem:[%s4824 + $0x68] sm:$0xff]
        %v4839 = vld [vmem:[%s4824 + $0x70] sm:$0xff]
        %v4840 = vld [vmem:[%s4824 + $0x78] sm:$0xff]
        %v4841 = vld [vmem:[%s4824 + $0x80] sm:$0xff]
        %v4842 = vld [vmem:[%s4824 + $0x88] sm:$0xff]
        %v4843 = vld [vmem:[%s4824 + $0x90] sm:$0xff]
        %v4844 = vld [vmem:[%s4824 + $0x98] sm:$0xff]
        %v4865 = vunpack.c.l.b16 %v4825
        %v4866 = vunpack.c.h.b16 %v4825
        %v4867 = vunpack.c.l.b16 %v4826
        %v4868 = vunpack.c.h.b16 %v4826
        %v4869 = vunpack.c.l.b16 %v4827
        %v4870 = vunpack.c.h.b16 %v4827
        %v4871 = vunpack.c.l.b16 %v4828
        %v4872 = vunpack.c.h.b16 %v4828
        %v4873 = vunpack.c.l.b16 %v4829
        %v4874 = vunpack.c.h.b16 %v4829
        %v4875 = vunpack.c.l.b16 %v4830
        %v4876 = vunpack.c.h.b16 %v4830
        %v4877 = vunpack.c.l.b16 %v4831
        %v4878 = vunpack.c.h.b16 %v4831
        %v4879 = vunpack.c.l.b16 %v4832
        %v4880 = vunpack.c.h.b16 %v4832
        %v4881 = vunpack.c.l.b16 %v4833
        %v4882 = vunpack.c.h.b16 %v4833
        %v4883 = vunpack.c.l.b16 %v4834
        %v4884 = vunpack.c.h.b16 %v4834
        %v4885 = vunpack.c.l.b16 %v4835
        %v4886 = vunpack.c.h.b16 %v4835
        %v4887 = vunpack.c.l.b16 %v4836
        %v4888 = vunpack.c.h.b16 %v4836
        %v4889 = vunpack.c.l.b16 %v4837
        %v4890 = vunpack.c.h.b16 %v4837
        %v4891 = vunpack.c.l.b16 %v4838
        %v4892 = vunpack.c.h.b16 %v4838
        %v4893 = vunpack.c.l.b16 %v4839
        %v4894 = vunpack.c.h.b16 %v4839
        %v4895 = vunpack.c.l.b16 %v4840
        %v4896 = vunpack.c.h.b16 %v4840
        %v4897 = vunpack.c.l.b16 %v4841
        %v4898 = vunpack.c.h.b16 %v4841
        %v4899 = vunpack.c.l.b16 %v4842
        %v4900 = vunpack.c.h.b16 %v4842
        %v4901 = vunpack.c.l.b16 %v4843
        %v4902 = vunpack.c.h.b16 %v4843
        %v4903 = vunpack.c.l.b16 %v4844
        %v4904 = vunpack.c.h.b16 %v4844
        %v4905 = vpack.c.b16 %v4867, %v4865
        %v4906 = vpack.c.b16 %v4868, %v4866
        %v4907 = vpack.c.b16 %v4871, %v4869
        %v4908 = vpack.c.b16 %v4872, %v4870
        %v4909 = vpack.c.b16 %v4875, %v4873
        %v4910 = vpack.c.b16 %v4876, %v4874
        %v4911 = vpack.c.b16 %v4879, %v4877
        %v4912 = vpack.c.b16 %v4880, %v4878
        %v4913 = vpack.c.b16 %v4883, %v4881
        %v4914 = vpack.c.b16 %v4884, %v4882
        %v4915 = vpack.c.b16 %v4887, %v4885
        %v4916 = vpack.c.b16 %v4888, %v4886
        %v4917 = vpack.c.b16 %v4891, %v4889
        %v4918 = vpack.c.b16 %v4892, %v4890
        %v4919 = vpack.c.b16 %v4895, %v4893
        %v4920 = vpack.c.b16 %v4896, %v4894
        %v4921 = vpack.c.b16 %v4899, %v4897
        %v4922 = vpack.c.b16 %v4900, %v4898
        %v4923 = vpack.c.b16 %v4903, %v4901
        %v4924 = vpack.c.b16 %v4904, %v4902
        %v4946 = vsel %vm3772, %v4817, 0
        %v4949 = vsel %vm3772, %v4819, 0
        %v4952 = vsel %vm3772, %v4821, 0
        %v4955 = vsel %vm3772, %v4823, 0
        %4957 = vmatprep.subr.bf16.mxu0 %v4906
        %4958 = vmatpush1.bf16.msra.mxu0 %v4905
        %4959 = vmatprep.subr.bf16.mxu0 %v4908
        %4960 = vmatpush1.bf16.msra.mxu0 %v4907
        %4961 = vmatprep.subr.bf16.mxu0 %v4910
        %4962 = vmatpush1.bf16.msra.mxu0 %v4909
        %4963 = vmatprep.subr.bf16.mxu0 %v4912
        %4964 = vmatpush1.bf16.msra.mxu0 %v4911
        %4965 = vmatprep.subr.bf16.mxu0 %v4914
        %4966 = vmatpush1.bf16.msra.mxu0 %v4913
        %4967 = vmatprep.subr.bf16.mxu0 %v4916
        %4968 = vmatpush1.bf16.msra.mxu0 %v4915
        %4969 = vmatprep.subr.bf16.mxu0 %v4918
        %4970 = vmatpush1.bf16.msra.mxu0 %v4917
        %4971 = vmatprep.subr.bf16.mxu0 %v4920
        %4972 = vmatpush1.bf16.msra.mxu0 %v4919
        %4973 = vmatprep.subr.bf16.mxu0 %v4922
        %4974 = vmatpush1.bf16.msra.mxu0 %v4921
        %4975 = vmatprep.subr.bf16.mxu0 %v4924
        %4976 = vmatpush1.bf16.msra.mxu0 %v4923
        %4977 = vmatprep.subr.bf16.mxu0 0
        %4978 = vmatpush1.bf16.msra.mxu0 0
        %4979 = vmatprep.subr.bf16.mxu0 0
        %4980 = vmatpush1.bf16.msra.mxu0 0
        %4981 = vmatprep.subr.bf16.mxu0 0
        %4982 = vmatpush1.bf16.msra.mxu0 0
        %4983 = vmatprep.subr.bf16.mxu0 0
        %4984 = vmatpush1.bf16.msra.mxu0 0
        %4985 = vmatprep.subr.bf16.mxu0 0
        %4986 = vmatpush1.bf16.msra.mxu0 0
        %4987 = vmatprep.subr.bf16.mxu0 0
        %4988 = vmatpush1.bf16.msra.mxu0 0
        %4989 = vmatprep.mubr.bf16.mxu0 %v4946
        %4990 = vmatmul.mubr.bf16.gmra.mrb[0].mxu0 %v4816
        %v4991 = vpop.f32.mrb[0].mxu0
        %v4992 = vadd.f32 0.0, %v4991
        %v4993 = vpop.f32.mrb[0].mxu0
        %v4994 = vadd.f32 0.0, %v4993
        %v4995 = vpop.f32.mrb[0].mxu0
        %v4996 = vadd.f32 0.0, %v4995
        %v4997 = vpop.f32.mrb[0].mxu0
        %v4998 = vadd.f32 0.0, %v4997
        %4999 = vmatprep.mubr.bf16.mxu0 %v4949
        %5000 = vmatmul.mubr.bf16.gmra.mrb[0].mxu0 %v4818
        %v5001 = vpop.f32.mrb[0].mxu0
        %v5002 = vadd.f32 0.0, %v5001
        %v5003 = vpop.f32.mrb[0].mxu0
        %v5004 = vadd.f32 0.0, %v5003
        %v5005 = vpop.f32.mrb[0].mxu0
        %v5006 = vadd.f32 0.0, %v5005
        %v5007 = vpop.f32.mrb[0].mxu0
        %v5008 = vadd.f32 0.0, %v5007
        %5009 = vmatprep.mubr.bf16.mxu0 %v4952
        %5010 = vmatmul.mubr.bf16.gmra.mrb[0].mxu0 %v4820
        %v5011 = vpop.f32.mrb[0].mxu0
        %v5012 = vadd.f32 0.0, %v5011
        %v5013 = vpop.f32.mrb[0].mxu0
        %v5014 = vadd.f32 0.0, %v5013
        %v5015 = vpop.f32.mrb[0].mxu0
        %v5016 = vadd.f32 0.0, %v5015
        %v5017 = vpop.f32.mrb[0].mxu0
        %v5018 = vadd.f32 0.0, %v5017
        %5019 = vmatprep.mubr.bf16.mxu0 %v4955
        %5020 = vmatmul.mubr.bf16.gmra.mrb[0].mxu0 %v4822
        %v5021 = vpop.f32.mrb[0].mxu0
        %v5022 = vadd.f32 0.0, %v5021
        %v5023 = vpop.f32.mrb[0].mxu0
        %v5024 = vadd.f32 0.0, %v5023
        %v5025 = vpop.f32.mrb[0].mxu0
        %v5026 = vadd.f32 0.0, %v5025
        %v5027 = vpop.f32.mrb[0].mxu0
        %v5028 = vadd.f32 0.0, %v5027
        %5029 = vdwg.mxu0
        %v5030 = vadd.f32 %v4783, %v4992
        %v5031 = vadd.f32 %v4784, %v4994
        %v5032 = vadd.f32 %v4785, %v4996
        %v5033 = vadd.f32 %v4786, %v4998
        %v5034 = vadd.f32 %v4787, %v5002
        %v5035 = vadd.f32 %v4788, %v5004
        %v5036 = vadd.f32 %v4789, %v5006
        %v5037 = vadd.f32 %v4790, %v5008
        %v5038 = vadd.f32 %v4791, %v5012
        %v5039 = vadd.f32 %v4792, %v5014
        %v5040 = vadd.f32 %v4793, %v5016
        %v5041 = vadd.f32 %v4794, %v5018
        %v5042 = vadd.f32 %v4795, %v5022
        %v5043 = vadd.f32 %v4796, %v5024
        %v5044 = vadd.f32 %v4797, %v5026
        %v5045 = vadd.f32 %v4798, %v5028
        %s5046 = scalar_lea.vmem [#allocation3], 80
        %v5047 = vld [vmem:[%s5046] sm:$0xff]
        %v5048 = vld [vmem:[%s5046 + $0x8] sm:$0xff]
        %v5049 = vld [vmem:[%s5046 + $0x10] sm:$0xff]
        %v5050 = vld [vmem:[%s5046 + $0x18] sm:$0xff]
        %v5051 = vld [vmem:[%s5046 + $0x20] sm:$0xff]
        %v5052 = vld [vmem:[%s5046 + $0x28] sm:$0xff]
        %v5053 = vld [vmem:[%s5046 + $0x30] sm:$0xff]
        %v5054 = vld [vmem:[%s5046 + $0x38] sm:$0xff]
        %v5055 = vld [vmem:[%s5046 + $0x40] sm:$0xff]
        %v5056 = vld [vmem:[%s5046 + $0x48] sm:$0xff]
        %v5057 = vld [vmem:[%s5046 + $0x50] sm:$0xff]
        %v5058 = vld [vmem:[%s5046 + $0x58] sm:$0xff]
        %v5059 = vld [vmem:[%s5046 + $0x60] sm:$0xff]
        %v5060 = vld [vmem:[%s5046 + $0x68] sm:$0xff]
        %v5061 = vld [vmem:[%s5046 + $0x70] sm:$0xff]
        %v5062 = vld [vmem:[%s5046 + $0x78] sm:$0xff]
        %v5063 = vpack.c.bf16 %v5049, %v5047
        %v5064 = vpack.c.bf16 %v5050, %v5048
        %v5065 = vpack.c.bf16 %v5053, %v5051
        %v5066 = vpack.c.bf16 %v5054, %v5052
        %v5067 = vpack.c.bf16 %v5057, %v5055
        %v5068 = vpack.c.bf16 %v5058, %v5056
        %v5069 = vpack.c.bf16 %v5061, %v5059
        %v5070 = vpack.c.bf16 %v5062, %v5060
        %s5071 = scalar_lea.vmem %s7, 800
        %v5072 = vld [vmem:[%s5071] sm:$0xff]
        %v5073 = vld [vmem:[%s5071 + $0x8] sm:$0xff]
        %v5074 = vld [vmem:[%s5071 + $0x10] sm:$0xff]
        %v5075 = vld [vmem:[%s5071 + $0x18] sm:$0xff]
        %v5076 = vld [vmem:[%s5071 + $0x20] sm:$0xff]
        %v5077 = vld [vmem:[%s5071 + $0x28] sm:$0xff]
        %v5078 = vld [vmem:[%s5071 + $0x30] sm:$0xff]
        %v5079 = vld [vmem:[%s5071 + $0x38] sm:$0xff]
        %v5080 = vld [vmem:[%s5071 + $0x40] sm:$0xff]
        %v5081 = vld [vmem:[%s5071 + $0x48] sm:$0xff]
        %v5082 = vld [vmem:[%s5071 + $0x50] sm:$0xff]
        %v5083 = vld [vmem:[%s5071 + $0x58] sm:$0xff]
        %v5084 = vld [vmem:[%s5071 + $0x60] sm:$0xff]
        %v5085 = vld [vmem:[%s5071 + $0x68] sm:$0xff]
        %v5086 = vld [vmem:[%s5071 + $0x70] sm:$0xff]
        %v5087 = vld [vmem:[%s5071 + $0x78] sm:$0xff]
        %v5088 = vld [vmem:[%s5071 + $0x80] sm:$0xff]
        %v5089 = vld [vmem:[%s5071 + $0x88] sm:$0xff]
        %v5090 = vld [vmem:[%s5071 + $0x90] sm:$0xff]
        %v5091 = vld [vmem:[%s5071 + $0x98] sm:$0xff]
        %v5112 = vunpack.c.l.b16 %v5072
        %v5113 = vunpack.c.h.b16 %v5072
        %v5114 = vunpack.c.l.b16 %v5073
        %v5115 = vunpack.c.h.b16 %v5073
        %v5116 = vunpack.c.l.b16 %v5074
        %v5117 = vunpack.c.h.b16 %v5074
        %v5118 = vunpack.c.l.b16 %v5075
        %v5119 = vunpack.c.h.b16 %v5075
        %v5120 = vunpack.c.l.b16 %v5076
        %v5121 = vunpack.c.h.b16 %v5076
        %v5122 = vunpack.c.l.b16 %v5077
        %v5123 = vunpack.c.h.b16 %v5077
        %v5124 = vunpack.c.l.b16 %v5078
        %v5125 = vunpack.c.h.b16 %v5078
        %v5126 = vunpack.c.l.b16 %v5079
        %v5127 = vunpack.c.h.b16 %v5079
        %v5128 = vunpack.c.l.b16 %v5080
        %v5129 = vunpack.c.h.b16 %v5080
        %v5130 = vunpack.c.l.b16 %v5081
        %v5131 = vunpack.c.h.b16 %v5081
        %v5132 = vunpack.c.l.b16 %v5082
        %v5133 = vunpack.c.h.b16 %v5082
        %v5134 = vunpack.c.l.b16 %v5083
        %v5135 = vunpack.c.h.b16 %v5083
        %v5136 = vunpack.c.l.b16 %v5084
        %v5137 = vunpack.c.h.b16 %v5084
        %v5138 = vunpack.c.l.b16 %v5085
        %v5139 = vunpack.c.h.b16 %v5085
        %v5140 = vunpack.c.l.b16 %v5086
        %v5141 = vunpack.c.h.b16 %v5086
        %v5142 = vunpack.c.l.b16 %v5087
        %v5143 = vunpack.c.h.b16 %v5087
        %v5144 = vunpack.c.l.b16 %v5088
        %v5145 = vunpack.c.h.b16 %v5088
        %v5146 = vunpack.c.l.b16 %v5089
        %v5147 = vunpack.c.h.b16 %v5089
        %v5148 = vunpack.c.l.b16 %v5090
        %v5149 = vunpack.c.h.b16 %v5090
        %v5150 = vunpack.c.l.b16 %v5091
        %v5151 = vunpack.c.h.b16 %v5091
        %v5152 = vpack.c.b16 %v5114, %v5112
        %v5153 = vpack.c.b16 %v5115, %v5113
        %v5154 = vpack.c.b16 %v5118, %v5116
        %v5155 = vpack.c.b16 %v5119, %v5117
        %v5156 = vpack.c.b16 %v5122, %v5120
        %v5157 = vpack.c.b16 %v5123, %v5121
        %v5158 = vpack.c.b16 %v5126, %v5124
        %v5159 = vpack.c.b16 %v5127, %v5125
        %v5160 = vpack.c.b16 %v5130, %v5128
        %v5161 = vpack.c.b16 %v5131, %v5129
        %v5162 = vpack.c.b16 %v5134, %v5132
        %v5163 = vpack.c.b16 %v5135, %v5133
        %v5164 = vpack.c.b16 %v5138, %v5136
        %v5165 = vpack.c.b16 %v5139, %v5137
        %v5166 = vpack.c.b16 %v5142, %v5140
        %v5167 = vpack.c.b16 %v5143, %v5141
        %v5168 = vpack.c.b16 %v5146, %v5144
        %v5169 = vpack.c.b16 %v5147, %v5145
        %v5170 = vpack.c.b16 %v5150, %v5148
        %v5171 = vpack.c.b16 %v5151, %v5149
        %v5193 = vsel %vm3772, %v5064, 0
        %v5196 = vsel %vm3772, %v5066, 0
        %v5199 = vsel %vm3772, %v5068, 0
        %v5202 = vsel %vm3772, %v5070, 0
        %5204 = vmatprep.subr.bf16.mxu0 %v5153
        %5205 = vmatpush1.bf16.msra.mxu0 %v5152
        %5206 = vmatprep.subr.bf16.mxu0 %v5155
        %5207 = vmatpush1.bf16.msra.mxu0 %v5154
        %5208 = vmatprep.subr.bf16.mxu0 %v5157
        %5209 = vmatpush1.bf16.msra.mxu0 %v5156
        %5210 = vmatprep.subr.bf16.mxu0 %v5159
        %5211 = vmatpush1.bf16.msra.mxu0 %v5158
        %5212 = vmatprep.subr.bf16.mxu0 %v5161
        %5213 = vmatpush1.bf16.msra.mxu0 %v5160
        %5214 = vmatprep.subr.bf16.mxu0 %v5163
        %5215 = vmatpush1.bf16.msra.mxu0 %v5162
        %5216 = vmatprep.subr.bf16.mxu0 %v5165
        %5217 = vmatpush1.bf16.msra.mxu0 %v5164
        %5218 = vmatprep.subr.bf16.mxu0 %v5167
        %5219 = vmatpush1.bf16.msra.mxu0 %v5166
        %5220 = vmatprep.subr.bf16.mxu0 %v5169
        %5221 = vmatpush1.bf16.msra.mxu0 %v5168
        %5222 = vmatprep.subr.bf16.mxu0 %v5171
        %5223 = vmatpush1.bf16.msra.mxu0 %v5170
        %5224 = vmatprep.subr.bf16.mxu0 0
        %5225 = vmatpush1.bf16.msra.mxu0 0
        %5226 = vmatprep.subr.bf16.mxu0 0
        %5227 = vmatpush1.bf16.msra.mxu0 0
        %5228 = vmatprep.subr.bf16.mxu0 0
        %5229 = vmatpush1.bf16.msra.mxu0 0
        %5230 = vmatprep.subr.bf16.mxu0 0
        %5231 = vmatpush1.bf16.msra.mxu0 0
        %5232 = vmatprep.subr.bf16.mxu0 0
        %5233 = vmatpush1.bf16.msra.mxu0 0
        %5234 = vmatprep.subr.bf16.mxu0 0
        %5235 = vmatpush1.bf16.msra.mxu0 0
        %5236 = vmatprep.mubr.bf16.mxu0 %v5193
        %5237 = vmatmul.mubr.bf16.gmra.mrb[0].mxu0 %v5063
        %v5238 = vpop.f32.mrb[0].mxu0
        %v5239 = vadd.f32 0.0, %v5238
        %v5240 = vpop.f32.mrb[0].mxu0
        %v5241 = vadd.f32 0.0, %v5240
        %v5242 = vpop.f32.mrb[0].mxu0
        %v5243 = vadd.f32 0.0, %v5242
        %v5244 = vpop.f32.mrb[0].mxu0
        %v5245 = vadd.f32 0.0, %v5244
        %5246 = vmatprep.mubr.bf16.mxu0 %v5196
        %5247 = vmatmul.mubr.bf16.gmra.mrb[0].mxu0 %v5065
        %v5248 = vpop.f32.mrb[0].mxu0
        %v5249 = vadd.f32 0.0, %v5248
        %v5250 = vpop.f32.mrb[0].mxu0
        %v5251 = vadd.f32 0.0, %v5250
        %v5252 = vpop.f32.mrb[0].mxu0
        %v5253 = vadd.f32 0.0, %v5252
        %v5254 = vpop.f32.mrb[0].mxu0
        %v5255 = vadd.f32 0.0, %v5254
        %5256 = vmatprep.mubr.bf16.mxu0 %v5199
        %5257 = vmatmul.mubr.bf16.gmra.mrb[0].mxu0 %v5067
        %v5258 = vpop.f32.mrb[0].mxu0
        %v5259 = vadd.f32 0.0, %v5258
        %v5260 = vpop.f32.mrb[0].mxu0
        %v5261 = vadd.f32 0.0, %v5260
        %v5262 = vpop.f32.mrb[0].mxu0
        %v5263 = vadd.f32 0.0, %v5262
        %v5264 = vpop.f32.mrb[0].mxu0
        %v5265 = vadd.f32 0.0, %v5264
        %5266 = vmatprep.mubr.bf16.mxu0 %v5202
        %5267 = vmatmul.mubr.bf16.gmra.mrb[0].mxu0 %v5069
        %v5268 = vpop.f32.mrb[0].mxu0
        %v5269 = vadd.f32 0.0, %v5268
        %v5270 = vpop.f32.mrb[0].mxu0
        %v5271 = vadd.f32 0.0, %v5270
        %v5272 = vpop.f32.mrb[0].mxu0
        %v5273 = vadd.f32 0.0, %v5272
        %v5274 = vpop.f32.mrb[0].mxu0
        %v5275 = vadd.f32 0.0, %v5274
        %5276 = vdwg.mxu0
        %v5277 = vadd.f32 %v5030, %v5239
        %v5278 = vadd.f32 %v5031, %v5241
        %v5279 = vadd.f32 %v5032, %v5243
        %v5280 = vadd.f32 %v5033, %v5245
        %v5281 = vadd.f32 %v5034, %v5249
        %v5282 = vadd.f32 %v5035, %v5251
        %v5283 = vadd.f32 %v5036, %v5253
        %v5284 = vadd.f32 %v5037, %v5255
        %v5285 = vadd.f32 %v5038, %v5259
        %v5286 = vadd.f32 %v5039, %v5261
        %v5287 = vadd.f32 %v5040, %v5263
        %v5288 = vadd.f32 %v5041, %v5265
        %v5289 = vadd.f32 %v5042, %v5269
        %v5290 = vadd.f32 %v5043, %v5271
        %v5291 = vadd.f32 %v5044, %v5273
        %v5292 = vadd.f32 %v5045, %v5275
        %s5293 = scalar_lea.vmem [#allocation3], 96
        %v5294 = vld [vmem:[%s5293] sm:$0xff]
        %v5295 = vld [vmem:[%s5293 + $0x8] sm:$0xff]
        %v5296 = vld [vmem:[%s5293 + $0x10] sm:$0xff]
        %v5297 = vld [vmem:[%s5293 + $0x18] sm:$0xff]
        %v5298 = vld [vmem:[%s5293 + $0x20] sm:$0xff]
        %v5299 = vld [vmem:[%s5293 + $0x28] sm:$0xff]
        %v5300 = vld [vmem:[%s5293 + $0x30] sm:$0xff]
        %v5301 = vld [vmem:[%s5293 + $0x38] sm:$0xff]
        %v5302 = vld [vmem:[%s5293 + $0x40] sm:$0xff]
        %v5303 = vld [vmem:[%s5293 + $0x48] sm:$0xff]
        %v5304 = vld [vmem:[%s5293 + $0x50] sm:$0xff]
        %v5305 = vld [vmem:[%s5293 + $0x58] sm:$0xff]
        %v5306 = vld [vmem:[%s5293 + $0x60] sm:$0xff]
        %v5307 = vld [vmem:[%s5293 + $0x68] sm:$0xff]
        %v5308 = vld [vmem:[%s5293 + $0x70] sm:$0xff]
        %v5309 = vld [vmem:[%s5293 + $0x78] sm:$0xff]
        %v5310 = vpack.c.bf16 %v5296, %v5294
        %v5311 = vpack.c.bf16 %v5297, %v5295
        %v5312 = vpack.c.bf16 %v5300, %v5298
        %v5313 = vpack.c.bf16 %v5301, %v5299
        %v5314 = vpack.c.bf16 %v5304, %v5302
        %v5315 = vpack.c.bf16 %v5305, %v5303
        %v5316 = vpack.c.bf16 %v5308, %v5306
        %v5317 = vpack.c.bf16 %v5309, %v5307
        %s5318 = scalar_lea.vmem %s7, 960
        %v5319 = vld [vmem:[%s5318] sm:$0xff]
        %v5320 = vld [vmem:[%s5318 + $0x8] sm:$0xff]
        %v5321 = vld [vmem:[%s5318 + $0x10] sm:$0xff]
        %v5322 = vld [vmem:[%s5318 + $0x18] sm:$0xff]
        %v5323 = vld [vmem:[%s5318 + $0x20] sm:$0xff]
        %v5324 = vld [vmem:[%s5318 + $0x28] sm:$0xff]
        %v5325 = vld [vmem:[%s5318 + $0x30] sm:$0xff]
        %v5326 = vld [vmem:[%s5318 + $0x38] sm:$0xff]
        %v5327 = vld [vmem:[%s5318 + $0x40] sm:$0xff]
        %v5328 = vld [vmem:[%s5318 + $0x48] sm:$0xff]
        %v5329 = vld [vmem:[%s5318 + $0x50] sm:$0xff]
        %v5330 = vld [vmem:[%s5318 + $0x58] sm:$0xff]
        %v5331 = vld [vmem:[%s5318 + $0x60] sm:$0xff]
        %v5332 = vld [vmem:[%s5318 + $0x68] sm:$0xff]
        %v5333 = vld [vmem:[%s5318 + $0x70] sm:$0xff]
        %v5334 = vld [vmem:[%s5318 + $0x78] sm:$0xff]
        %v5335 = vld [vmem:[%s5318 + $0x80] sm:$0xff]
        %v5336 = vld [vmem:[%s5318 + $0x88] sm:$0xff]
        %v5337 = vld [vmem:[%s5318 + $0x90] sm:$0xff]
        %v5338 = vld [vmem:[%s5318 + $0x98] sm:$0xff]
        %v5359 = vunpack.c.l.b16 %v5319
        %v5360 = vunpack.c.h.b16 %v5319
        %v5361 = vunpack.c.l.b16 %v5320
        %v5362 = vunpack.c.h.b16 %v5320
        %v5363 = vunpack.c.l.b16 %v5321
        %v5364 = vunpack.c.h.b16 %v5321
        %v5365 = vunpack.c.l.b16 %v5322
        %v5366 = vunpack.c.h.b16 %v5322
        %v5367 = vunpack.c.l.b16 %v5323
        %v5368 = vunpack.c.h.b16 %v5323
        %v5369 = vunpack.c.l.b16 %v5324
        %v5370 = vunpack.c.h.b16 %v5324
        %v5371 = vunpack.c.l.b16 %v5325
        %v5372 = vunpack.c.h.b16 %v5325
        %v5373 = vunpack.c.l.b16 %v5326
        %v5374 = vunpack.c.h.b16 %v5326
        %v5375 = vunpack.c.l.b16 %v5327
        %v5376 = vunpack.c.h.b16 %v5327
        %v5377 = vunpack.c.l.b16 %v5328
        %v5378 = vunpack.c.h.b16 %v5328
        %v5379 = vunpack.c.l.b16 %v5329
        %v5380 = vunpack.c.h.b16 %v5329
        %v5381 = vunpack.c.l.b16 %v5330
        %v5382 = vunpack.c.h.b16 %v5330
        %v5383 = vunpack.c.l.b16 %v5331
        %v5384 = vunpack.c.h.b16 %v5331
        %v5385 = vunpack.c.l.b16 %v5332
        %v5386 = vunpack.c.h.b16 %v5332
        %v5387 = vunpack.c.l.b16 %v5333
        %v5388 = vunpack.c.h.b16 %v5333
        %v5389 = vunpack.c.l.b16 %v5334
        %v5390 = vunpack.c.h.b16 %v5334
        %v5391 = vunpack.c.l.b16 %v5335
        %v5392 = vunpack.c.h.b16 %v5335
        %v5393 = vunpack.c.l.b16 %v5336
        %v5394 = vunpack.c.h.b16 %v5336
        %v5395 = vunpack.c.l.b16 %v5337
        %v5396 = vunpack.c.h.b16 %v5337
        %v5397 = vunpack.c.l.b16 %v5338
        %v5398 = vunpack.c.h.b16 %v5338
        %v5399 = vpack.c.b16 %v5361, %v5359
        %v5400 = vpack.c.b16 %v5362, %v5360
        %v5401 = vpack.c.b16 %v5365, %v5363
        %v5402 = vpack.c.b16 %v5366, %v5364
        %v5403 = vpack.c.b16 %v5369, %v5367
        %v5404 = vpack.c.b16 %v5370, %v5368
        %v5405 = vpack.c.b16 %v5373, %v5371
        %v5406 = vpack.c.b16 %v5374, %v5372
        %v5407 = vpack.c.b16 %v5377, %v5375
        %v5408 = vpack.c.b16 %v5378, %v5376
        %v5409 = vpack.c.b16 %v5381, %v5379
        %v5410 = vpack.c.b16 %v5382, %v5380
        %v5411 = vpack.c.b16 %v5385, %v5383
        %v5412 = vpack.c.b16 %v5386, %v5384
        %v5413 = vpack.c.b16 %v5389, %v5387
        %v5414 = vpack.c.b16 %v5390, %v5388
        %v5415 = vpack.c.b16 %v5393, %v5391
        %v5416 = vpack.c.b16 %v5394, %v5392
        %v5417 = vpack.c.b16 %v5397, %v5395
        %v5418 = vpack.c.b16 %v5398, %v5396
        %v5440 = vsel %vm3772, %v5311, 0
        %v5443 = vsel %vm3772, %v5313, 0
        %v5446 = vsel %vm3772, %v5315, 0
        %v5449 = vsel %vm3772, %v5317, 0
        %5451 = vmatprep.subr.bf16.mxu0 %v5400
        %5452 = vmatpush1.bf16.msra.mxu0 %v5399
        %5453 = vmatprep.subr.bf16.mxu0 %v5402
        %5454 = vmatpush1.bf16.msra.mxu0 %v5401
        %5455 = vmatprep.subr.bf16.mxu0 %v5404
        %5456 = vmatpush1.bf16.msra.mxu0 %v5403
        %5457 = vmatprep.subr.bf16.mxu0 %v5406
        %5458 = vmatpush1.bf16.msra.mxu0 %v5405
        %5459 = vmatprep.subr.bf16.mxu0 %v5408
        %5460 = vmatpush1.bf16.msra.mxu0 %v5407
        %5461 = vmatprep.subr.bf16.mxu0 %v5410
        %5462 = vmatpush1.bf16.msra.mxu0 %v5409
        %5463 = vmatprep.subr.bf16.mxu0 %v5412
        %5464 = vmatpush1.bf16.msra.mxu0 %v5411
        %5465 = vmatprep.subr.bf16.mxu0 %v5414
        %5466 = vmatpush1.bf16.msra.mxu0 %v5413
        %5467 = vmatprep.subr.bf16.mxu0 %v5416
        %5468 = vmatpush1.bf16.msra.mxu0 %v5415
        %5469 = vmatprep.subr.bf16.mxu0 %v5418
        %5470 = vmatpush1.bf16.msra.mxu0 %v5417
        %5471 = vmatprep.subr.bf16.mxu0 0
        %5472 = vmatpush1.bf16.msra.mxu0 0
        %5473 = vmatprep.subr.bf16.mxu0 0
        %5474 = vmatpush1.bf16.msra.mxu0 0
        %5475 = vmatprep.subr.bf16.mxu0 0
        %5476 = vmatpush1.bf16.msra.mxu0 0
        %5477 = vmatprep.subr.bf16.mxu0 0
        %5478 = vmatpush1.bf16.msra.mxu0 0
        %5479 = vmatprep.subr.bf16.mxu0 0
        %5480 = vmatpush1.bf16.msra.mxu0 0
        %5481 = vmatprep.subr.bf16.mxu0 0
        %5482 = vmatpush1.bf16.msra.mxu0 0
        %5483 = vmatprep.mubr.bf16.mxu0 %v5440
        %5484 = vmatmul.mubr.bf16.gmra.mrb[0].mxu0 %v5310
        %v5485 = vpop.f32.mrb[0].mxu0
        %v5486 = vadd.f32 0.0, %v5485
        %v5487 = vpop.f32.mrb[0].mxu0
        %v5488 = vadd.f32 0.0, %v5487
        %v5489 = vpop.f32.mrb[0].mxu0
        %v5490 = vadd.f32 0.0, %v5489
        %v5491 = vpop.f32.mrb[0].mxu0
        %v5492 = vadd.f32 0.0, %v5491
        %5493 = vmatprep.mubr.bf16.mxu0 %v5443
        %5494 = vmatmul.mubr.bf16.gmra.mrb[0].mxu0 %v5312
        %v5495 = vpop.f32.mrb[0].mxu0
        %v5496 = vadd.f32 0.0, %v5495
        %v5497 = vpop.f32.mrb[0].mxu0
        %v5498 = vadd.f32 0.0, %v5497
        %v5499 = vpop.f32.mrb[0].mxu0
        %v5500 = vadd.f32 0.0, %v5499
        %v5501 = vpop.f32.mrb[0].mxu0
        %v5502 = vadd.f32 0.0, %v5501
        %5503 = vmatprep.mubr.bf16.mxu0 %v5446
        %5504 = vmatmul.mubr.bf16.gmra.mrb[0].mxu0 %v5314
        %v5505 = vpop.f32.mrb[0].mxu0
        %v5506 = vadd.f32 0.0, %v5505
        %v5507 = vpop.f32.mrb[0].mxu0
        %v5508 = vadd.f32 0.0, %v5507
        %v5509 = vpop.f32.mrb[0].mxu0
        %v5510 = vadd.f32 0.0, %v5509
        %v5511 = vpop.f32.mrb[0].mxu0
        %v5512 = vadd.f32 0.0, %v5511
        %5513 = vmatprep.mubr.bf16.mxu0 %v5449
        %5514 = vmatmul.mubr.bf16.gmra.mrb[0].mxu0 %v5316
        %v5515 = vpop.f32.mrb[0].mxu0
        %v5516 = vadd.f32 0.0, %v5515
        %v5517 = vpop.f32.mrb[0].mxu0
        %v5518 = vadd.f32 0.0, %v5517
        %v5519 = vpop.f32.mrb[0].mxu0
        %v5520 = vadd.f32 0.0, %v5519
        %v5521 = vpop.f32.mrb[0].mxu0
        %v5522 = vadd.f32 0.0, %v5521
        %5523 = vdwg.mxu0
        %v5524 = vadd.f32 %v5277, %v5486
        %v5525 = vadd.f32 %v5278, %v5488
        %v5526 = vadd.f32 %v5279, %v5490
        %v5527 = vadd.f32 %v5280, %v5492
        %v5528 = vadd.f32 %v5281, %v5496
        %v5529 = vadd.f32 %v5282, %v5498
        %v5530 = vadd.f32 %v5283, %v5500
        %v5531 = vadd.f32 %v5284, %v5502
        %v5532 = vadd.f32 %v5285, %v5506
        %v5533 = vadd.f32 %v5286, %v5508
        %v5534 = vadd.f32 %v5287, %v5510
        %v5535 = vadd.f32 %v5288, %v5512
        %v5536 = vadd.f32 %v5289, %v5516
        %v5537 = vadd.f32 %v5290, %v5518
        %v5538 = vadd.f32 %v5291, %v5520
        %v5539 = vadd.f32 %v5292, %v5522
        %v5540 = vmax.f32 %v5524, 0.0
        %v5541 = vmax.f32 %v5525, 0.0
        %v5542 = vmax.f32 %v5526, 0.0
        %v5543 = vmax.f32 %v5527, 0.0
        %v5544 = vmax.f32 %v5528, 0.0
        %v5545 = vmax.f32 %v5529, 0.0
        %v5546 = vmax.f32 %v5530, 0.0
        %v5547 = vmax.f32 %v5531, 0.0
        %v5548 = vmax.f32 %v5532, 0.0
        %v5549 = vmax.f32 %v5533, 0.0
        %v5550 = vmax.f32 %v5534, 0.0
        %v5551 = vmax.f32 %v5535, 0.0
        %v5552 = vmax.f32 %v5536, 0.0
        %v5553 = vmax.f32 %v5537, 0.0
        %v5554 = vmax.f32 %v5538, 0.0
        %v5555 = vmax.f32 %v5539, 0.0
        %v5556 = vpack.c.bf16 %v1773, %v1771
        %v5557 = vpack.c.bf16 %v1774, %v1772
        %v5558 = vpack.c.bf16 %v1777, %v1775
        %v5559 = vpack.c.bf16 %v1778, %v1776
        %v5560 = vpack.c.bf16 %v1781, %v1779
        %v5561 = vpack.c.bf16 %v1782, %v1780
        %v5562 = vpack.c.bf16 %v1785, %v1783
        %v5563 = vpack.c.bf16 %v1786, %v1784
        %v5564 = vld [vmem:[#allocation7] sm:$0xff]
        %v5565 = vld [vmem:[#allocation7 + $0x8] sm:$0xff]
        %v5566 = vld [vmem:[#allocation7 + $0x10] sm:$0xff]
        %v5567 = vld [vmem:[#allocation7 + $0x18] sm:$0xff]
        %v5568 = vld [vmem:[#allocation7 + $0x20] sm:$0xf]
        %v5569 = vld [vmem:[#allocation7 + $0x24] sm:$0xff]
        %v5570 = vld [vmem:[#allocation7 + $0x2c] sm:$0xff]
        %v5571 = vld [vmem:[#allocation7 + $0x34] sm:$0xff]
        %v5572 = vld [vmem:[#allocation7 + $0x3c] sm:$0xff]
        %v5573 = vld [vmem:[#allocation7 + $0x44] sm:$0xf]
        %v5574 = vld [vmem:[#allocation7 + $0x48] sm:$0xff]
        %v5575 = vld [vmem:[#allocation7 + $0x50] sm:$0xff]
        %v5576 = vld [vmem:[#allocation7 + $0x58] sm:$0xff]
        %v5577 = vld [vmem:[#allocation7 + $0x60] sm:$0xff]
        %v5578 = vld [vmem:[#allocation7 + $0x68] sm:$0xf]
        %v5579 = vld [vmem:[#allocation7 + $0x6c] sm:$0xff]
        %v5580 = vld [vmem:[#allocation7 + $0x74] sm:$0xff]
        %v5581 = vld [vmem:[#allocation7 + $0x7c] sm:$0xff]
        %v5582 = vld [vmem:[#allocation7 + $0x84] sm:$0xff]
        %v5583 = vld [vmem:[#allocation7 + $0x8c] sm:$0xf]
        %v5584 = vld [vmem:[#allocation7 + $0x90] sm:$0xff]
        %v5585 = vld [vmem:[#allocation7 + $0x98] sm:$0xff]
        %v5586 = vld [vmem:[#allocation7 + $0xa0] sm:$0xff]
        %v5587 = vld [vmem:[#allocation7 + $0xa8] sm:$0xff]
        %v5588 = vld [vmem:[#allocation7 + $0xb0] sm:$0xf]
        %v5589 = vld [vmem:[#allocation7 + $0xb4] sm:$0xff]
        %v5590 = vld [vmem:[#allocation7 + $0xbc] sm:$0xff]
        %v5591 = vld [vmem:[#allocation7 + $0xc4] sm:$0xff]
        %v5592 = vld [vmem:[#allocation7 + $0xcc] sm:$0xff]
        %v5593 = vld [vmem:[#allocation7 + $0xd4] sm:$0xf]
        %v5594 = vld [vmem:[#allocation7 + $0xd8] sm:$0xff]
        %v5595 = vld [vmem:[#allocation7 + $0xe0] sm:$0xff]
        %v5596 = vld [vmem:[#allocation7 + $0xe8] sm:$0xff]
        %v5597 = vld [vmem:[#allocation7 + $0xf0] sm:$0xff]
        %v5598 = vld [vmem:[#allocation7 + $0xf8] sm:$0xf]
        %v5599 = vld [vmem:[#allocation7 + $0xfc] sm:$0xff]
        %v5600 = vld [vmem:[#allocation7 + $0x104] sm:$0xff]
        %v5601 = vld [vmem:[#allocation7 + $0x10c] sm:$0xff]
        %v5602 = vld [vmem:[#allocation7 + $0x114] sm:$0xff]
        %v5603 = vld [vmem:[#allocation7 + $0x11c] sm:$0xf]
        %v5604 = vld [vmem:[#allocation7 + $0x120] sm:$0xff]
        %v5605 = vld [vmem:[#allocation7 + $0x128] sm:$0xff]
        %v5606 = vld [vmem:[#allocation7 + $0x130] sm:$0xff]
        %v5607 = vld [vmem:[#allocation7 + $0x138] sm:$0xff]
        %v5608 = vld [vmem:[#allocation7 + $0x140] sm:$0xf]
        %v5609 = vld [vmem:[#allocation7 + $0x144] sm:$0xff]
        %v5610 = vld [vmem:[#allocation7 + $0x14c] sm:$0xff]
        %v5611 = vld [vmem:[#allocation7 + $0x154] sm:$0xff]
        %v5612 = vld [vmem:[#allocation7 + $0x15c] sm:$0xff]
        %v5613 = vld [vmem:[#allocation7 + $0x164] sm:$0xf]
        %v5614 = vld [vmem:[#allocation7 + $0x168] sm:$0xff]
        %v5615 = vld [vmem:[#allocation7 + $0x170] sm:$0xff]
        %v5616 = vld [vmem:[#allocation7 + $0x178] sm:$0xff]
        %v5617 = vld [vmem:[#allocation7 + $0x180] sm:$0xff]
        %v5618 = vld [vmem:[#allocation7 + $0x188] sm:$0xf]
        %v5619 = vld [vmem:[#allocation7 + $0x18c] sm:$0xff]
        %v5620 = vld [vmem:[#allocation7 + $0x194] sm:$0xff]
        %v5621 = vld [vmem:[#allocation7 + $0x19c] sm:$0xff]
        %v5622 = vld [vmem:[#allocation7 + $0x1a4] sm:$0xff]
        %v5623 = vld [vmem:[#allocation7 + $0x1ac] sm:$0xf]
        %v5624 = vld [vmem:[#allocation7 + $0x1b0] sm:$0xff]
        %v5625 = vld [vmem:[#allocation7 + $0x1b8] sm:$0xff]
        %v5626 = vld [vmem:[#allocation7 + $0x1c0] sm:$0xff]
        %v5627 = vld [vmem:[#allocation7 + $0x1c8] sm:$0xff]
        %v5628 = vld [vmem:[#allocation7 + $0x1d0] sm:$0xf]
        %v5629 = vld [vmem:[#allocation7 + $0x1d4] sm:$0xff]
        %v5630 = vld [vmem:[#allocation7 + $0x1dc] sm:$0xff]
        %v5631 = vld [vmem:[#allocation7 + $0x1e4] sm:$0xff]
        %v5632 = vld [vmem:[#allocation7 + $0x1ec] sm:$0xff]
        %v5633 = vld [vmem:[#allocation7 + $0x1f4] sm:$0xf]
        %v5634 = vld [vmem:[#allocation7 + $0x1f8] sm:$0xff]
        %v5635 = vld [vmem:[#allocation7 + $0x200] sm:$0xff]
        %v5636 = vld [vmem:[#allocation7 + $0x208] sm:$0xff]
        %v5637 = vld [vmem:[#allocation7 + $0x210] sm:$0xff]
        %v5638 = vld [vmem:[#allocation7 + $0x218] sm:$0xf]
        %v5639 = vld [vmem:[#allocation7 + $0x21c] sm:$0xff]
        %v5640 = vld [vmem:[#allocation7 + $0x224] sm:$0xff]
        %v5641 = vld [vmem:[#allocation7 + $0x22c] sm:$0xff]
        %v5642 = vld [vmem:[#allocation7 + $0x234] sm:$0xff]
        %v5643 = vld [vmem:[#allocation7 + $0x23c] sm:$0xf]
        %v5644 = vld [vmem:[#allocation7 + $0x240] sm:$0xff]
        %v5645 = vld [vmem:[#allocation7 + $0x248] sm:$0xff]
        %v5646 = vld [vmem:[#allocation7 + $0x250] sm:$0xff]
        %v5647 = vld [vmem:[#allocation7 + $0x258] sm:$0xff]
        %v5648 = vld [vmem:[#allocation7 + $0x260] sm:$0xf]
        %v5649 = vld [vmem:[#allocation7 + $0x264] sm:$0xff]
        %v5650 = vld [vmem:[#allocation7 + $0x26c] sm:$0xff]
        %v5651 = vld [vmem:[#allocation7 + $0x274] sm:$0xff]
        %v5652 = vld [vmem:[#allocation7 + $0x27c] sm:$0xff]
        %v5653 = vld [vmem:[#allocation7 + $0x284] sm:$0xf]
        %v5654 = vld [vmem:[#allocation7 + $0x288] sm:$0xff]
        %v5655 = vld [vmem:[#allocation7 + $0x290] sm:$0xff]
        %v5656 = vld [vmem:[#allocation7 + $0x298] sm:$0xff]
        %v5657 = vld [vmem:[#allocation7 + $0x2a0] sm:$0xff]
        %v5658 = vld [vmem:[#allocation7 + $0x2a8] sm:$0xf]
        %v5659 = vld [vmem:[#allocation7 + $0x2ac] sm:$0xff]
        %v5660 = vld [vmem:[#allocation7 + $0x2b4] sm:$0xff]
        %v5661 = vld [vmem:[#allocation7 + $0x2bc] sm:$0xff]
        %v5662 = vld [vmem:[#allocation7 + $0x2c4] sm:$0xff]
        %v5663 = vld [vmem:[#allocation7 + $0x2cc] sm:$0xf]
        %v5664 = vld [vmem:[#allocation7 + $0x2d0] sm:$0xff]
        %v5665 = vld [vmem:[#allocation7 + $0x2d8] sm:$0xff]
        %v5666 = vld [vmem:[#allocation7 + $0x2e0] sm:$0xff]
        %v5667 = vld [vmem:[#allocation7 + $0x2e8] sm:$0xff]
        %v5668 = vld [vmem:[#allocation7 + $0x2f0] sm:$0xf]
        %v5669 = vld [vmem:[#allocation7 + $0x2f4] sm:$0xff]
        %v5670 = vld [vmem:[#allocation7 + $0x2fc] sm:$0xff]
        %v5671 = vld [vmem:[#allocation7 + $0x304] sm:$0xff]
        %v5672 = vld [vmem:[#allocation7 + $0x30c] sm:$0xff]
        %v5673 = vld [vmem:[#allocation7 + $0x314] sm:$0xf]
        %v5674 = vld [vmem:[#allocation7 + $0x318] sm:$0xff]
        %v5675 = vld [vmem:[#allocation7 + $0x320] sm:$0xff]
        %v5676 = vld [vmem:[#allocation7 + $0x328] sm:$0xff]
        %v5677 = vld [vmem:[#allocation7 + $0x330] sm:$0xff]
        %v5678 = vld [vmem:[#allocation7 + $0x338] sm:$0xf]
        %v5679 = vld [vmem:[#allocation7 + $0x33c] sm:$0xff]
        %v5680 = vld [vmem:[#allocation7 + $0x344] sm:$0xff]
        %v5681 = vld [vmem:[#allocation7 + $0x34c] sm:$0xff]
        %v5682 = vld [vmem:[#allocation7 + $0x354] sm:$0xff]
        %v5683 = vld [vmem:[#allocation7 + $0x35c] sm:$0xf]
        %v5684 = vpack.c.bf16 %v5542, %v5540
        %v5685 = vpack.c.bf16 %v5543, %v5541
        %v5686 = vpack.c.bf16 %v5546, %v5544
        %v5687 = vpack.c.bf16 %v5547, %v5545
        %v5688 = vpack.c.bf16 %v5550, %v5548
        %v5689 = vpack.c.bf16 %v5551, %v5549
        %v5690 = vpack.c.bf16 %v5554, %v5552
        %v5691 = vpack.c.bf16 %v5555, %v5553
        %v5692 = vld [vmem:[#allocation9] sm:$0xff]
        %v5693 = vld [vmem:[#allocation9 + $0x8] sm:$0xff]
        %v5694 = vld [vmem:[#allocation9 + $0x10] sm:$0xff]
        %v5695 = vld [vmem:[#allocation9 + $0x18] sm:$0xff]
        %v5696 = vld [vmem:[#allocation9 + $0x20] sm:$0xf]
        %v5697 = vld [vmem:[#allocation9 + $0x24] sm:$0xff]
        %v5698 = vld [vmem:[#allocation9 + $0x2c] sm:$0xff]
        %v5699 = vld [vmem:[#allocation9 + $0x34] sm:$0xff]
        %v5700 = vld [vmem:[#allocation9 + $0x3c] sm:$0xff]
        %v5701 = vld [vmem:[#allocation9 + $0x44] sm:$0xf]
        %v5702 = vld [vmem:[#allocation9 + $0x48] sm:$0xff]
        %v5703 = vld [vmem:[#allocation9 + $0x50] sm:$0xff]
        %v5704 = vld [vmem:[#allocation9 + $0x58] sm:$0xff]
        %v5705 = vld [vmem:[#allocation9 + $0x60] sm:$0xff]
        %v5706 = vld [vmem:[#allocation9 + $0x68] sm:$0xf]
        %v5707 = vld [vmem:[#allocation9 + $0x6c] sm:$0xff]
        %v5708 = vld [vmem:[#allocation9 + $0x74] sm:$0xff]
        %v5709 = vld [vmem:[#allocation9 + $0x7c] sm:$0xff]
        %v5710 = vld [vmem:[#allocation9 + $0x84] sm:$0xff]
        %v5711 = vld [vmem:[#allocation9 + $0x8c] sm:$0xf]
        %v5712 = vld [vmem:[#allocation9 + $0x90] sm:$0xff]
        %v5713 = vld [vmem:[#allocation9 + $0x98] sm:$0xff]
        %v5714 = vld [vmem:[#allocation9 + $0xa0] sm:$0xff]
        %v5715 = vld [vmem:[#allocation9 + $0xa8] sm:$0xff]
        %v5716 = vld [vmem:[#allocation9 + $0xb0] sm:$0xf]
        %v5717 = vld [vmem:[#allocation9 + $0xb4] sm:$0xff]
        %v5718 = vld [vmem:[#allocation9 + $0xbc] sm:$0xff]
        %v5719 = vld [vmem:[#allocation9 + $0xc4] sm:$0xff]
        %v5720 = vld [vmem:[#allocation9 + $0xcc] sm:$0xff]
        %v5721 = vld [vmem:[#allocation9 + $0xd4] sm:$0xf]
        %v5722 = vld [vmem:[#allocation9 + $0xd8] sm:$0xff]
        %v5723 = vld [vmem:[#allocation9 + $0xe0] sm:$0xff]
        %v5724 = vld [vmem:[#allocation9 + $0xe8] sm:$0xff]
        %v5725 = vld [vmem:[#allocation9 + $0xf0] sm:$0xff]
        %v5726 = vld [vmem:[#allocation9 + $0xf8] sm:$0xf]
        %v5727 = vld [vmem:[#allocation9 + $0xfc] sm:$0xff]
        %v5728 = vld [vmem:[#allocation9 + $0x104] sm:$0xff]
        %v5729 = vld [vmem:[#allocation9 + $0x10c] sm:$0xff]
        %v5730 = vld [vmem:[#allocation9 + $0x114] sm:$0xff]
        %v5731 = vld [vmem:[#allocation9 + $0x11c] sm:$0xf]
        %v5732 = vld [vmem:[#allocation9 + $0x120] sm:$0xff]
        %v5733 = vld [vmem:[#allocation9 + $0x128] sm:$0xff]
        %v5734 = vld [vmem:[#allocation9 + $0x130] sm:$0xff]
        %v5735 = vld [vmem:[#allocation9 + $0x138] sm:$0xff]
        %v5736 = vld [vmem:[#allocation9 + $0x140] sm:$0xf]
        %v5737 = vld [vmem:[#allocation9 + $0x144] sm:$0xff]
        %v5738 = vld [vmem:[#allocation9 + $0x14c] sm:$0xff]
        %v5739 = vld [vmem:[#allocation9 + $0x154] sm:$0xff]
        %v5740 = vld [vmem:[#allocation9 + $0x15c] sm:$0xff]
        %v5741 = vld [vmem:[#allocation9 + $0x164] sm:$0xf]
        %v5742 = vld [vmem:[#allocation9 + $0x168] sm:$0xff]
        %v5743 = vld [vmem:[#allocation9 + $0x170] sm:$0xff]
        %v5744 = vld [vmem:[#allocation9 + $0x178] sm:$0xff]
        %v5745 = vld [vmem:[#allocation9 + $0x180] sm:$0xff]
        %v5746 = vld [vmem:[#allocation9 + $0x188] sm:$0xf]
        %v5747 = vld [vmem:[#allocation9 + $0x18c] sm:$0xff]
        %v5748 = vld [vmem:[#allocation9 + $0x194] sm:$0xff]
        %v5749 = vld [vmem:[#allocation9 + $0x19c] sm:$0xff]
        %v5750 = vld [vmem:[#allocation9 + $0x1a4] sm:$0xff]
        %v5751 = vld [vmem:[#allocation9 + $0x1ac] sm:$0xf]
        %v5752 = vld [vmem:[#allocation9 + $0x1b0] sm:$0xff]
        %v5753 = vld [vmem:[#allocation9 + $0x1b8] sm:$0xff]
        %v5754 = vld [vmem:[#allocation9 + $0x1c0] sm:$0xff]
        %v5755 = vld [vmem:[#allocation9 + $0x1c8] sm:$0xff]
        %v5756 = vld [vmem:[#allocation9 + $0x1d0] sm:$0xf]
        %v5757 = vld [vmem:[#allocation9 + $0x1d4] sm:$0xff]
        %v5758 = vld [vmem:[#allocation9 + $0x1dc] sm:$0xff]
        %v5759 = vld [vmem:[#allocation9 + $0x1e4] sm:$0xff]
        %v5760 = vld [vmem:[#allocation9 + $0x1ec] sm:$0xff]
        %v5761 = vld [vmem:[#allocation9 + $0x1f4] sm:$0xf]
        %v5762 = vld [vmem:[#allocation9 + $0x1f8] sm:$0xff]
        %v5763 = vld [vmem:[#allocation9 + $0x200] sm:$0xff]
        %v5764 = vld [vmem:[#allocation9 + $0x208] sm:$0xff]
        %v5765 = vld [vmem:[#allocation9 + $0x210] sm:$0xff]
        %v5766 = vld [vmem:[#allocation9 + $0x218] sm:$0xf]
        %v5767 = vld [vmem:[#allocation9 + $0x21c] sm:$0xff]
        %v5768 = vld [vmem:[#allocation9 + $0x224] sm:$0xff]
        %v5769 = vld [vmem:[#allocation9 + $0x22c] sm:$0xff]
        %v5770 = vld [vmem:[#allocation9 + $0x234] sm:$0xff]
        %v5771 = vld [vmem:[#allocation9 + $0x23c] sm:$0xf]
        %v5772 = vld [vmem:[#allocation9 + $0x240] sm:$0xff]
        %v5773 = vld [vmem:[#allocation9 + $0x248] sm:$0xff]
        %v5774 = vld [vmem:[#allocation9 + $0x250] sm:$0xff]
        %v5775 = vld [vmem:[#allocation9 + $0x258] sm:$0xff]
        %v5776 = vld [vmem:[#allocation9 + $0x260] sm:$0xf]
        %v5777 = vld [vmem:[#allocation9 + $0x264] sm:$0xff]
        %v5778 = vld [vmem:[#allocation9 + $0x26c] sm:$0xff]
        %v5779 = vld [vmem:[#allocation9 + $0x274] sm:$0xff]
        %v5780 = vld [vmem:[#allocation9 + $0x27c] sm:$0xff]
        %v5781 = vld [vmem:[#allocation9 + $0x284] sm:$0xf]
        %v5782 = vld [vmem:[#allocation9 + $0x288] sm:$0xff]
        %v5783 = vld [vmem:[#allocation9 + $0x290] sm:$0xff]
        %v5784 = vld [vmem:[#allocation9 + $0x298] sm:$0xff]
        %v5785 = vld [vmem:[#allocation9 + $0x2a0] sm:$0xff]
        %v5786 = vld [vmem:[#allocation9 + $0x2a8] sm:$0xf]
        %v5787 = vld [vmem:[#allocation9 + $0x2ac] sm:$0xff]
        %v5788 = vld [vmem:[#allocation9 + $0x2b4] sm:$0xff]
        %v5789 = vld [vmem:[#allocation9 + $0x2bc] sm:$0xff]
        %v5790 = vld [vmem:[#allocation9 + $0x2c4] sm:$0xff]
        %v5791 = vld [vmem:[#allocation9 + $0x2cc] sm:$0xf]
        %v5792 = vld [vmem:[#allocation9 + $0x2d0] sm:$0xff]
        %v5793 = vld [vmem:[#allocation9 + $0x2d8] sm:$0xff]
        %v5794 = vld [vmem:[#allocation9 + $0x2e0] sm:$0xff]
        %v5795 = vld [vmem:[#allocation9 + $0x2e8] sm:$0xff]
        %v5796 = vld [vmem:[#allocation9 + $0x2f0] sm:$0xf]
        %v5797 = vld [vmem:[#allocation9 + $0x2f4] sm:$0xff]
        %v5798 = vld [vmem:[#allocation9 + $0x2fc] sm:$0xff]
        %v5799 = vld [vmem:[#allocation9 + $0x304] sm:$0xff]
        %v5800 = vld [vmem:[#allocation9 + $0x30c] sm:$0xff]
        %v5801 = vld [vmem:[#allocation9 + $0x314] sm:$0xf]
        %v5802 = vld [vmem:[#allocation9 + $0x318] sm:$0xff]
        %v5803 = vld [vmem:[#allocation9 + $0x320] sm:$0xff]
        %v5804 = vld [vmem:[#allocation9 + $0x328] sm:$0xff]
        %v5805 = vld [vmem:[#allocation9 + $0x330] sm:$0xff]
        %v5806 = vld [vmem:[#allocation9 + $0x338] sm:$0xf]
        %v5807 = vld [vmem:[#allocation9 + $0x33c] sm:$0xff]
        %v5808 = vld [vmem:[#allocation9 + $0x344] sm:$0xff]
        %v5809 = vld [vmem:[#allocation9 + $0x34c] sm:$0xff]
        %v5810 = vld [vmem:[#allocation9 + $0x354] sm:$0xff]
        %v5811 = vld [vmem:[#allocation9 + $0x35c] sm:$0xf]
        %v5932 = vunpack.c.l.b16 %v5692
        %v5933 = vunpack.c.h.b16 %v5692
        %v5934 = vunpack.c.l.b16 %v5693
        %v5935 = vunpack.c.h.b16 %v5693
        %v5936 = vunpack.c.l.b16 %v5694
        %v5937 = vunpack.c.h.b16 %v5694
        %v5938 = vunpack.c.l.b16 %v5695
        %v5939 = vunpack.c.h.b16 %v5695
        %v5940 = vunpack.c.l.b16 %v5696
        %v5941 = vunpack.c.l.b16 %v5697
        %v5942 = vunpack.c.h.b16 %v5697
        %v5943 = vunpack.c.l.b16 %v5698
        %v5944 = vunpack.c.h.b16 %v5698
        %v5945 = vunpack.c.l.b16 %v5699
        %v5946 = vunpack.c.h.b16 %v5699
        %v5947 = vunpack.c.l.b16 %v5700
        %v5948 = vunpack.c.h.b16 %v5700
        %v5949 = vunpack.c.l.b16 %v5701
        %v5950 = vunpack.c.l.b16 %v5702
        %v5951 = vunpack.c.h.b16 %v5702
        %v5952 = vunpack.c.l.b16 %v5703
        %v5953 = vunpack.c.h.b16 %v5703
        %v5954 = vunpack.c.l.b16 %v5704
        %v5955 = vunpack.c.h.b16 %v5704
        %v5956 = vunpack.c.l.b16 %v5705
        %v5957 = vunpack.c.h.b16 %v5705
        %v5958 = vunpack.c.l.b16 %v5706
        %v5959 = vunpack.c.l.b16 %v5707
        %v5960 = vunpack.c.h.b16 %v5707
        %v5961 = vunpack.c.l.b16 %v5708
        %v5962 = vunpack.c.h.b16 %v5708
        %v5963 = vunpack.c.l.b16 %v5709
        %v5964 = vunpack.c.h.b16 %v5709
        %v5965 = vunpack.c.l.b16 %v5710
        %v5966 = vunpack.c.h.b16 %v5710
        %v5967 = vunpack.c.l.b16 %v5711
        %v5968 = vunpack.c.l.b16 %v5712
        %v5969 = vunpack.c.h.b16 %v5712
        %v5970 = vunpack.c.l.b16 %v5713
        %v5971 = vunpack.c.h.b16 %v5713
        %v5972 = vunpack.c.l.b16 %v5714
        %v5973 = vunpack.c.h.b16 %v5714
        %v5974 = vunpack.c.l.b16 %v5715
        %v5975 = vunpack.c.h.b16 %v5715
        %v5976 = vunpack.c.l.b16 %v5716
        %v5977 = vunpack.c.l.b16 %v5717
        %v5978 = vunpack.c.h.b16 %v5717
        %v5979 = vunpack.c.l.b16 %v5718
        %v5980 = vunpack.c.h.b16 %v5718
        %v5981 = vunpack.c.l.b16 %v5719
        %v5982 = vunpack.c.h.b16 %v5719
        %v5983 = vunpack.c.l.b16 %v5720
        %v5984 = vunpack.c.h.b16 %v5720
        %v5985 = vunpack.c.l.b16 %v5721
        %v5986 = vunpack.c.l.b16 %v5722
        %v5987 = vunpack.c.h.b16 %v5722
        %v5988 = vunpack.c.l.b16 %v5723
        %v5989 = vunpack.c.h.b16 %v5723
        %v5990 = vunpack.c.l.b16 %v5724
        %v5991 = vunpack.c.h.b16 %v5724
        %v5992 = vunpack.c.l.b16 %v5725
        %v5993 = vunpack.c.h.b16 %v5725
        %v5994 = vunpack.c.l.b16 %v5726
        %v5995 = vunpack.c.l.b16 %v5727
        %v5996 = vunpack.c.h.b16 %v5727
        %v5997 = vunpack.c.l.b16 %v5728
        %v5998 = vunpack.c.h.b16 %v5728
        %v5999 = vunpack.c.l.b16 %v5729
        %v6000 = vunpack.c.h.b16 %v5729
        %v6001 = vunpack.c.l.b16 %v5730
        %v6002 = vunpack.c.h.b16 %v5730
        %v6003 = vunpack.c.l.b16 %v5731
        %v6004 = vunpack.c.l.b16 %v5732
        %v6005 = vunpack.c.h.b16 %v5732
        %v6006 = vunpack.c.l.b16 %v5733
        %v6007 = vunpack.c.h.b16 %v5733
        %v6008 = vunpack.c.l.b16 %v5734
        %v6009 = vunpack.c.h.b16 %v5734
        %v6010 = vunpack.c.l.b16 %v5735
        %v6011 = vunpack.c.h.b16 %v5735
        %v6012 = vunpack.c.l.b16 %v5736
        %v6013 = vunpack.c.l.b16 %v5737
        %v6014 = vunpack.c.h.b16 %v5737
        %v6015 = vunpack.c.l.b16 %v5738
        %v6016 = vunpack.c.h.b16 %v5738
        %v6017 = vunpack.c.l.b16 %v5739
        %v6018 = vunpack.c.h.b16 %v5739
        %v6019 = vunpack.c.l.b16 %v5740
        %v6020 = vunpack.c.h.b16 %v5740
        %v6021 = vunpack.c.l.b16 %v5741
        %v6022 = vunpack.c.l.b16 %v5742
        %v6023 = vunpack.c.h.b16 %v5742
        %v6024 = vunpack.c.l.b16 %v5743
        %v6025 = vunpack.c.h.b16 %v5743
        %v6026 = vunpack.c.l.b16 %v5744
        %v6027 = vunpack.c.h.b16 %v5744
        %v6028 = vunpack.c.l.b16 %v5745
        %v6029 = vunpack.c.h.b16 %v5745
        %v6030 = vunpack.c.l.b16 %v5746
        %v6031 = vunpack.c.l.b16 %v5747
        %v6032 = vunpack.c.h.b16 %v5747
        %v6033 = vunpack.c.l.b16 %v5748
        %v6034 = vunpack.c.h.b16 %v5748
        %v6035 = vunpack.c.l.b16 %v5749
        %v6036 = vunpack.c.h.b16 %v5749
        %v6037 = vunpack.c.l.b16 %v5750
        %v6038 = vunpack.c.h.b16 %v5750
        %v6039 = vunpack.c.l.b16 %v5751
        %v6040 = vunpack.c.l.b16 %v5752
        %v6041 = vunpack.c.h.b16 %v5752
        %v6042 = vunpack.c.l.b16 %v5753
        %v6043 = vunpack.c.h.b16 %v5753
        %v6044 = vunpack.c.l.b16 %v5754
        %v6045 = vunpack.c.h.b16 %v5754
        %v6046 = vunpack.c.l.b16 %v5755
        %v6047 = vunpack.c.h.b16 %v5755
        %v6048 = vunpack.c.l.b16 %v5756
        %v6049 = vunpack.c.l.b16 %v5757
        %v6050 = vunpack.c.h.b16 %v5757
        %v6051 = vunpack.c.l.b16 %v5758
        %v6052 = vunpack.c.h.b16 %v5758
        %v6053 = vunpack.c.l.b16 %v5759
        %v6054 = vunpack.c.h.b16 %v5759
        %v6055 = vunpack.c.l.b16 %v5760
        %v6056 = vunpack.c.h.b16 %v5760
        %v6057 = vunpack.c.l.b16 %v5761
        %v6058 = vunpack.c.l.b16 %v5762
        %v6059 = vunpack.c.h.b16 %v5762
        %v6060 = vunpack.c.l.b16 %v5763
        %v6061 = vunpack.c.h.b16 %v5763
        %v6062 = vunpack.c.l.b16 %v5764
        %v6063 = vunpack.c.h.b16 %v5764
        %v6064 = vunpack.c.l.b16 %v5765
        %v6065 = vunpack.c.h.b16 %v5765
        %v6066 = vunpack.c.l.b16 %v5766
        %v6067 = vunpack.c.l.b16 %v5767
        %v6068 = vunpack.c.h.b16 %v5767
        %v6069 = vunpack.c.l.b16 %v5768
        %v6070 = vunpack.c.h.b16 %v5768
        %v6071 = vunpack.c.l.b16 %v5769
        %v6072 = vunpack.c.h.b16 %v5769
        %v6073 = vunpack.c.l.b16 %v5770
        %v6074 = vunpack.c.h.b16 %v5770
        %v6075 = vunpack.c.l.b16 %v5771
        %v6076 = vunpack.c.l.b16 %v5772
        %v6077 = vunpack.c.h.b16 %v5772
        %v6078 = vunpack.c.l.b16 %v5773
        %v6079 = vunpack.c.h.b16 %v5773
        %v6080 = vunpack.c.l.b16 %v5774
        %v6081 = vunpack.c.h.b16 %v5774
        %v6082 = vunpack.c.l.b16 %v5775
        %v6083 = vunpack.c.h.b16 %v5775
        %v6084 = vunpack.c.l.b16 %v5776
        %v6085 = vunpack.c.l.b16 %v5777
        %v6086 = vunpack.c.h.b16 %v5777
        %v6087 = vunpack.c.l.b16 %v5778
        %v6088 = vunpack.c.h.b16 %v5778
        %v6089 = vunpack.c.l.b16 %v5779
        %v6090 = vunpack.c.h.b16 %v5779
        %v6091 = vunpack.c.l.b16 %v5780
        %v6092 = vunpack.c.h.b16 %v5780
        %v6093 = vunpack.c.l.b16 %v5781
        %v6094 = vunpack.c.l.b16 %v5782
        %v6095 = vunpack.c.h.b16 %v5782
        %v6096 = vunpack.c.l.b16 %v5783
        %v6097 = vunpack.c.h.b16 %v5783
        %v6098 = vunpack.c.l.b16 %v5784
        %v6099 = vunpack.c.h.b16 %v5784
        %v6100 = vunpack.c.l.b16 %v5785
        %v6101 = vunpack.c.h.b16 %v5785
        %v6102 = vunpack.c.l.b16 %v5786
        %v6103 = vunpack.c.l.b16 %v5787
        %v6104 = vunpack.c.h.b16 %v5787
        %v6105 = vunpack.c.l.b16 %v5788
        %v6106 = vunpack.c.h.b16 %v5788
        %v6107 = vunpack.c.l.b16 %v5789
        %v6108 = vunpack.c.h.b16 %v5789
        %v6109 = vunpack.c.l.b16 %v5790
        %v6110 = vunpack.c.h.b16 %v5790
        %v6111 = vunpack.c.l.b16 %v5791
        %v6112 = vunpack.c.l.b16 %v5792
        %v6113 = vunpack.c.h.b16 %v5792
        %v6114 = vunpack.c.l.b16 %v5793
        %v6115 = vunpack.c.h.b16 %v5793
        %v6116 = vunpack.c.l.b16 %v5794
        %v6117 = vunpack.c.h.b16 %v5794
        %v6118 = vunpack.c.l.b16 %v5795
        %v6119 = vunpack.c.h.b16 %v5795
        %v6120 = vunpack.c.l.b16 %v5796
        %v6121 = vunpack.c.l.b16 %v5797
        %v6122 = vunpack.c.h.b16 %v5797
        %v6123 = vunpack.c.l.b16 %v5798
        %v6124 = vunpack.c.h.b16 %v5798
        %v6125 = vunpack.c.l.b16 %v5799
        %v6126 = vunpack.c.h.b16 %v5799
        %v6127 = vunpack.c.l.b16 %v5800
        %v6128 = vunpack.c.h.b16 %v5800
        %v6129 = vunpack.c.l.b16 %v5801
        %v6130 = vunpack.c.l.b16 %v5802
        %v6131 = vunpack.c.h.b16 %v5802
        %v6132 = vunpack.c.l.b16 %v5803
        %v6133 = vunpack.c.h.b16 %v5803
        %v6134 = vunpack.c.l.b16 %v5804
        %v6135 = vunpack.c.h.b16 %v5804
        %v6136 = vunpack.c.l.b16 %v5805
        %v6137 = vunpack.c.h.b16 %v5805
        %v6138 = vunpack.c.l.b16 %v5806
        %v6139 = vunpack.c.l.b16 %v5807
        %v6140 = vunpack.c.h.b16 %v5807
        %v6141 = vunpack.c.l.b16 %v5808
        %v6142 = vunpack.c.h.b16 %v5808
        %v6143 = vunpack.c.l.b16 %v5809
        %v6144 = vunpack.c.h.b16 %v5809
        %v6145 = vunpack.c.l.b16 %v5810
        %v6146 = vunpack.c.h.b16 %v5810
        %v6147 = vunpack.c.l.b16 %v5811
        %v6148 = vpack.c.b16 %v5941, %v5932
        %v6149 = vpack.c.b16 %v5942, %v5933
        %v6150 = vpack.c.b16 %v5943, %v5934
        %v6151 = vpack.c.b16 %v5944, %v5935
        %v6152 = vpack.c.b16 %v5945, %v5936
        %v6153 = vpack.c.b16 %v5946, %v5937
        %v6154 = vpack.c.b16 %v5947, %v5938
        %v6155 = vpack.c.b16 %v5948, %v5939
        %v6156 = vpack.c.b16 %v5949, %v5940
        %v6157 = vpack.c.b16 %v5959, %v5950
        %v6158 = vpack.c.b16 %v5960, %v5951
        %v6159 = vpack.c.b16 %v5961, %v5952
        %v6160 = vpack.c.b16 %v5962, %v5953
        %v6161 = vpack.c.b16 %v5963, %v5954
        %v6162 = vpack.c.b16 %v5964, %v5955
        %v6163 = vpack.c.b16 %v5965, %v5956
        %v6164 = vpack.c.b16 %v5966, %v5957
        %v6165 = vpack.c.b16 %v5967, %v5958
        %v6166 = vpack.c.b16 %v5977, %v5968
        %v6167 = vpack.c.b16 %v5978, %v5969
        %v6168 = vpack.c.b16 %v5979, %v5970
        %v6169 = vpack.c.b16 %v5980, %v5971
        %v6170 = vpack.c.b16 %v5981, %v5972
        %v6171 = vpack.c.b16 %v5982, %v5973
        %v6172 = vpack.c.b16 %v5983, %v5974
        %v6173 = vpack.c.b16 %v5984, %v5975
        %v6174 = vpack.c.b16 %v5985, %v5976
        %v6175 = vpack.c.b16 %v5995, %v5986
        %v6176 = vpack.c.b16 %v5996, %v5987
        %v6177 = vpack.c.b16 %v5997, %v5988
        %v6178 = vpack.c.b16 %v5998, %v5989
        %v6179 = vpack.c.b16 %v5999, %v5990
        %v6180 = vpack.c.b16 %v6000, %v5991
        %v6181 = vpack.c.b16 %v6001, %v5992
        %v6182 = vpack.c.b16 %v6002, %v5993
        %v6183 = vpack.c.b16 %v6003, %v5994
        %v6184 = vpack.c.b16 %v6013, %v6004
        %v6185 = vpack.c.b16 %v6014, %v6005
        %v6186 = vpack.c.b16 %v6015, %v6006
        %v6187 = vpack.c.b16 %v6016, %v6007
        %v6188 = vpack.c.b16 %v6017, %v6008
        %v6189 = vpack.c.b16 %v6018, %v6009
        %v6190 = vpack.c.b16 %v6019, %v6010
        %v6191 = vpack.c.b16 %v6020, %v6011
        %v6192 = vpack.c.b16 %v6021, %v6012
        %v6193 = vpack.c.b16 %v6031, %v6022
        %v6194 = vpack.c.b16 %v6032, %v6023
        %v6195 = vpack.c.b16 %v6033, %v6024
        %v6196 = vpack.c.b16 %v6034, %v6025
        %v6197 = vpack.c.b16 %v6035, %v6026
        %v6198 = vpack.c.b16 %v6036, %v6027
        %v6199 = vpack.c.b16 %v6037, %v6028
        %v6200 = vpack.c.b16 %v6038, %v6029
        %v6201 = vpack.c.b16 %v6039, %v6030
        %v6202 = vpack.c.b16 %v6049, %v6040
        %v6203 = vpack.c.b16 %v6050, %v6041
        %v6204 = vpack.c.b16 %v6051, %v6042
        %v6205 = vpack.c.b16 %v6052, %v6043
        %v6206 = vpack.c.b16 %v6053, %v6044
        %v6207 = vpack.c.b16 %v6054, %v6045
        %v6208 = vpack.c.b16 %v6055, %v6046
        %v6209 = vpack.c.b16 %v6056, %v6047
        %v6210 = vpack.c.b16 %v6057, %v6048
        %v6211 = vpack.c.b16 %v6067, %v6058
        %v6212 = vpack.c.b16 %v6068, %v6059
        %v6213 = vpack.c.b16 %v6069, %v6060
        %v6214 = vpack.c.b16 %v6070, %v6061
        %v6215 = vpack.c.b16 %v6071, %v6062
        %v6216 = vpack.c.b16 %v6072, %v6063
        %v6217 = vpack.c.b16 %v6073, %v6064
        %v6218 = vpack.c.b16 %v6074, %v6065
        %v6219 = vpack.c.b16 %v6075, %v6066
        %v6220 = vpack.c.b16 %v6085, %v6076
        %v6221 = vpack.c.b16 %v6086, %v6077
        %v6222 = vpack.c.b16 %v6087, %v6078
        %v6223 = vpack.c.b16 %v6088, %v6079
        %v6224 = vpack.c.b16 %v6089, %v6080
        %v6225 = vpack.c.b16 %v6090, %v6081
        %v6226 = vpack.c.b16 %v6091, %v6082
        %v6227 = vpack.c.b16 %v6092, %v6083
        %v6228 = vpack.c.b16 %v6093, %v6084
        %v6229 = vpack.c.b16 %v6103, %v6094
        %v6230 = vpack.c.b16 %v6104, %v6095
        %v6231 = vpack.c.b16 %v6105, %v6096
        %v6232 = vpack.c.b16 %v6106, %v6097
        %v6233 = vpack.c.b16 %v6107, %v6098
        %v6234 = vpack.c.b16 %v6108, %v6099
        %v6235 = vpack.c.b16 %v6109, %v6100
        %v6236 = vpack.c.b16 %v6110, %v6101
        %v6237 = vpack.c.b16 %v6111, %v6102
        %v6238 = vpack.c.b16 %v6121, %v6112
        %v6239 = vpack.c.b16 %v6122, %v6113
        %v6240 = vpack.c.b16 %v6123, %v6114
        %v6241 = vpack.c.b16 %v6124, %v6115
        %v6242 = vpack.c.b16 %v6125, %v6116
        %v6243 = vpack.c.b16 %v6126, %v6117
        %v6244 = vpack.c.b16 %v6127, %v6118
        %v6245 = vpack.c.b16 %v6128, %v6119
        %v6246 = vpack.c.b16 %v6129, %v6120
        %v6247 = vpack.c.b16 %v6139, %v6130
        %v6248 = vpack.c.b16 %v6140, %v6131
        %v6249 = vpack.c.b16 %v6141, %v6132
        %v6250 = vpack.c.b16 %v6142, %v6133
        %v6251 = vpack.c.b16 %v6143, %v6134
        %v6252 = vpack.c.b16 %v6144, %v6135
        %v6253 = vpack.c.b16 %v6145, %v6136
        %v6254 = vpack.c.b16 %v6146, %v6137
        %v6255 = vpack.c.b16 %v6147, %v6138
        %v6365 = vsel %vm1393, %v5685, 0
        %v6368 = vsel %vm1393, %v5687, 0
        %v6371 = vsel %vm1393, %v5689, 0
        %v6374 = vsel %vm1393, %v5691, 0
        %6376 = vmatprep.subr.bf16.mxu0 %v6149
        %6377 = vmatpush1.bf16.msra.mxu0 %v6148
        %6378 = vmatprep.subr.bf16.mxu0 %v6158
        %6379 = vmatpush1.bf16.msra.mxu0 %v6157
        %6380 = vmatprep.subr.bf16.mxu0 %v6167
        %6381 = vmatpush1.bf16.msra.mxu0 %v6166
        %6382 = vmatprep.subr.bf16.mxu0 %v6176
        %6383 = vmatpush1.bf16.msra.mxu0 %v6175
        %6384 = vmatprep.subr.bf16.mxu0 %v6185
        %6385 = vmatpush1.bf16.msra.mxu0 %v6184
        %6386 = vmatprep.subr.bf16.mxu0 %v6194
        %6387 = vmatpush1.bf16.msra.mxu0 %v6193
        %6388 = vmatprep.subr.bf16.mxu0 %v6203
        %6389 = vmatpush1.bf16.msra.mxu0 %v6202
        %6390 = vmatprep.subr.bf16.mxu0 %v6212
        %6391 = vmatpush1.bf16.msra.mxu0 %v6211
        %6392 = vmatprep.subr.bf16.mxu0 %v6221
        %6393 = vmatpush1.bf16.msra.mxu0 %v6220
        %6394 = vmatprep.subr.bf16.mxu0 %v6230
        %6395 = vmatpush1.bf16.msra.mxu0 %v6229
        %6396 = vmatprep.subr.bf16.mxu0 %v6239
        %6397 = vmatpush1.bf16.msra.mxu0 %v6238
        %6398 = vmatprep.subr.bf16.mxu0 %v6248
        %6399 = vmatpush1.bf16.msra.mxu0 %v6247
        %6400 = vmatprep.subr.bf16.mxu0 0
        %6401 = vmatpush1.bf16.msra.mxu0 0
        %6402 = vmatprep.subr.bf16.mxu0 0
        %6403 = vmatpush1.bf16.msra.mxu0 0
        %6404 = vmatprep.subr.bf16.mxu0 0
        %6405 = vmatpush1.bf16.msra.mxu0 0
        %6406 = vmatprep.subr.bf16.mxu0 0
        %6407 = vmatpush1.bf16.msra.mxu0 0
        %6408 = vmatprep.mubr.bf16.mxu0 %v6365
        %6409 = vmatmul.mubr.bf16.gmra.mrb[0].mxu0 %v5684
        %v6410 = vpop.f32.mrb[0].mxu0
        %v6411 = vadd.f32 0.0, %v6410
        %v6412 = vpop.f32.mrb[0].mxu0
        %v6413 = vadd.f32 0.0, %v6412
        %v6414 = vpop.f32.mrb[0].mxu0
        %v6415 = vadd.f32 0.0, %v6414
        %v6416 = vpop.f32.mrb[0].mxu0
        %v6417 = vadd.f32 0.0, %v6416
        %6418 = vmatprep.mubr.bf16.mxu0 %v6368
        %6419 = vmatmul.mubr.bf16.gmra.mrb[0].mxu0 %v5686
        %v6420 = vpop.f32.mrb[0].mxu0
        %v6421 = vadd.f32 0.0, %v6420
        %v6422 = vpop.f32.mrb[0].mxu0
        %v6423 = vadd.f32 0.0, %v6422
        %v6424 = vpop.f32.mrb[0].mxu0
        %v6425 = vadd.f32 0.0, %v6424
        %v6426 = vpop.f32.mrb[0].mxu0
        %v6427 = vadd.f32 0.0, %v6426
        %6428 = vmatprep.mubr.bf16.mxu0 %v6371
        %6429 = vmatmul.mubr.bf16.gmra.mrb[0].mxu0 %v5688
        %v6430 = vpop.f32.mrb[0].mxu0
        %v6431 = vadd.f32 0.0, %v6430
        %v6432 = vpop.f32.mrb[0].mxu0
        %v6433 = vadd.f32 0.0, %v6432
        %v6434 = vpop.f32.mrb[0].mxu0
        %v6435 = vadd.f32 0.0, %v6434
        %v6436 = vpop.f32.mrb[0].mxu0
        %v6437 = vadd.f32 0.0, %v6436
        %6438 = vmatprep.mubr.bf16.mxu0 %v6374
        %6439 = vmatmul.mubr.bf16.gmra.mrb[0].mxu0 %v5690
        %v6440 = vpop.f32.mrb[0].mxu0
        %v6441 = vadd.f32 0.0, %v6440
        %v6442 = vpop.f32.mrb[0].mxu0
        %v6443 = vadd.f32 0.0, %v6442
        %v6444 = vpop.f32.mrb[0].mxu0
        %v6445 = vadd.f32 0.0, %v6444
        %v6446 = vpop.f32.mrb[0].mxu0
        %v6447 = vadd.f32 0.0, %v6446
        %6448 = vdwg.mxu0
        %6449 = vmatprep.subr.bf16.mxu0 %v6151
        %6450 = vmatpush1.bf16.msra.mxu0 %v6150
        %6451 = vmatprep.subr.bf16.mxu0 %v6160
        %6452 = vmatpush1.bf16.msra.mxu0 %v6159
        %6453 = vmatprep.subr.bf16.mxu0 %v6169
        %6454 = vmatpush1.bf16.msra.mxu0 %v6168
        %6455 = vmatprep.subr.bf16.mxu0 %v6178
        %6456 = vmatpush1.bf16.msra.mxu0 %v6177
        %6457 = vmatprep.subr.bf16.mxu0 %v6187
        %6458 = vmatpush1.bf16.msra.mxu0 %v6186
        %6459 = vmatprep.subr.bf16.mxu0 %v6196
        %6460 = vmatpush1.bf16.msra.mxu0 %v6195
        %6461 = vmatprep.subr.bf16.mxu0 %v6205
        %6462 = vmatpush1.bf16.msra.mxu0 %v6204
        %6463 = vmatprep.subr.bf16.mxu0 %v6214
        %6464 = vmatpush1.bf16.msra.mxu0 %v6213
        %6465 = vmatprep.subr.bf16.mxu0 %v6223
        %6466 = vmatpush1.bf16.msra.mxu0 %v6222
        %6467 = vmatprep.subr.bf16.mxu0 %v6232
        %6468 = vmatpush1.bf16.msra.mxu0 %v6231
        %6469 = vmatprep.subr.bf16.mxu0 %v6241
        %6470 = vmatpush1.bf16.msra.mxu0 %v6240
        %6471 = vmatprep.subr.bf16.mxu0 %v6250
        %6472 = vmatpush1.bf16.msra.mxu0 %v6249
        %6473 = vmatprep.subr.bf16.mxu0 0
        %6474 = vmatpush1.bf16.msra.mxu0 0
        %6475 = vmatprep.subr.bf16.mxu0 0
        %6476 = vmatpush1.bf16.msra.mxu0 0
        %6477 = vmatprep.subr.bf16.mxu0 0
        %6478 = vmatpush1.bf16.msra.mxu0 0
        %6479 = vmatprep.subr.bf16.mxu0 0
        %6480 = vmatpush1.bf16.msra.mxu0 0
        %6481 = vmatprep.mubr.bf16.mxu0 %v6365
        %6482 = vmatmul.mubr.bf16.gmra.mrb[0].mxu0 %v5684
        %v6483 = vpop.f32.mrb[0].mxu0
        %v6484 = vadd.f32 0.0, %v6483
        %v6485 = vpop.f32.mrb[0].mxu0
        %v6486 = vadd.f32 0.0, %v6485
        %v6487 = vpop.f32.mrb[0].mxu0
        %v6488 = vadd.f32 0.0, %v6487
        %v6489 = vpop.f32.mrb[0].mxu0
        %v6490 = vadd.f32 0.0, %v6489
        %6491 = vmatprep.mubr.bf16.mxu0 %v6368
        %6492 = vmatmul.mubr.bf16.gmra.mrb[0].mxu0 %v5686
        %v6493 = vpop.f32.mrb[0].mxu0
        %v6494 = vadd.f32 0.0, %v6493
        %v6495 = vpop.f32.mrb[0].mxu0
        %v6496 = vadd.f32 0.0, %v6495
        %v6497 = vpop.f32.mrb[0].mxu0
        %v6498 = vadd.f32 0.0, %v6497
        %v6499 = vpop.f32.mrb[0].mxu0
        %v6500 = vadd.f32 0.0, %v6499
        %6501 = vmatprep.mubr.bf16.mxu0 %v6371
        %6502 = vmatmul.mubr.bf16.gmra.mrb[0].mxu0 %v5688
        %v6503 = vpop.f32.mrb[0].mxu0
        %v6504 = vadd.f32 0.0, %v6503
        %v6505 = vpop.f32.mrb[0].mxu0
        %v6506 = vadd.f32 0.0, %v6505
        %v6507 = vpop.f32.mrb[0].mxu0
        %v6508 = vadd.f32 0.0, %v6507
        %v6509 = vpop.f32.mrb[0].mxu0
        %v6510 = vadd.f32 0.0, %v6509
        %6511 = vmatprep.mubr.bf16.mxu0 %v6374
        %6512 = vmatmul.mubr.bf16.gmra.mrb[0].mxu0 %v5690
        %v6513 = vpop.f32.mrb[0].mxu0
        %v6514 = vadd.f32 0.0, %v6513
        %v6515 = vpop.f32.mrb[0].mxu0
        %v6516 = vadd.f32 0.0, %v6515
        %v6517 = vpop.f32.mrb[0].mxu0
        %v6518 = vadd.f32 0.0, %v6517
        %v6519 = vpop.f32.mrb[0].mxu0
        %v6520 = vadd.f32 0.0, %v6519
        %6521 = vdwg.mxu0
        %6522 = vmatprep.subr.bf16.mxu0 %v6153
        %6523 = vmatpush1.bf16.msra.mxu0 %v6152
        %6524 = vmatprep.subr.bf16.mxu0 %v6162
        %6525 = vmatpush1.bf16.msra.mxu0 %v6161
        %6526 = vmatprep.subr.bf16.mxu0 %v6171
        %6527 = vmatpush1.bf16.msra.mxu0 %v6170
        %6528 = vmatprep.subr.bf16.mxu0 %v6180
        %6529 = vmatpush1.bf16.msra.mxu0 %v6179
        %6530 = vmatprep.subr.bf16.mxu0 %v6189
        %6531 = vmatpush1.bf16.msra.mxu0 %v6188
        %6532 = vmatprep.subr.bf16.mxu0 %v6198
        %6533 = vmatpush1.bf16.msra.mxu0 %v6197
        %6534 = vmatprep.subr.bf16.mxu0 %v6207
        %6535 = vmatpush1.bf16.msra.mxu0 %v6206
        %6536 = vmatprep.subr.bf16.mxu0 %v6216
        %6537 = vmatpush1.bf16.msra.mxu0 %v6215
        %6538 = vmatprep.subr.bf16.mxu0 %v6225
        %6539 = vmatpush1.bf16.msra.mxu0 %v6224
        %6540 = vmatprep.subr.bf16.mxu0 %v6234
        %6541 = vmatpush1.bf16.msra.mxu0 %v6233
        %6542 = vmatprep.subr.bf16.mxu0 %v6243
        %6543 = vmatpush1.bf16.msra.mxu0 %v6242
        %6544 = vmatprep.subr.bf16.mxu0 %v6252
        %6545 = vmatpush1.bf16.msra.mxu0 %v6251
        %6546 = vmatprep.subr.bf16.mxu0 0
        %6547 = vmatpush1.bf16.msra.mxu0 0
        %6548 = vmatprep.subr.bf16.mxu0 0
        %6549 = vmatpush1.bf16.msra.mxu0 0
        %6550 = vmatprep.subr.bf16.mxu0 0
        %6551 = vmatpush1.bf16.msra.mxu0 0
        %6552 = vmatprep.subr.bf16.mxu0 0
        %6553 = vmatpush1.bf16.msra.mxu0 0
        %6554 = vmatprep.mubr.bf16.mxu0 %v6365
        %6555 = vmatmul.mubr.bf16.gmra.mrb[0].mxu0 %v5684
        %v6556 = vpop.f32.mrb[0].mxu0
        %v6557 = vadd.f32 0.0, %v6556
        %v6558 = vpop.f32.mrb[0].mxu0
        %v6559 = vadd.f32 0.0, %v6558
        %v6560 = vpop.f32.mrb[0].mxu0
        %v6561 = vadd.f32 0.0, %v6560
        %v6562 = vpop.f32.mrb[0].mxu0
        %v6563 = vadd.f32 0.0, %v6562
        %6564 = vmatprep.mubr.bf16.mxu0 %v6368
        %6565 = vmatmul.mubr.bf16.gmra.mrb[0].mxu0 %v5686
        %v6566 = vpop.f32.mrb[0].mxu0
        %v6567 = vadd.f32 0.0, %v6566
        %v6568 = vpop.f32.mrb[0].mxu0
        %v6569 = vadd.f32 0.0, %v6568
        %v6570 = vpop.f32.mrb[0].mxu0
        %v6571 = vadd.f32 0.0, %v6570
        %v6572 = vpop.f32.mrb[0].mxu0
        %v6573 = vadd.f32 0.0, %v6572
        %6574 = vmatprep.mubr.bf16.mxu0 %v6371
        %6575 = vmatmul.mubr.bf16.gmra.mrb[0].mxu0 %v5688
        %v6576 = vpop.f32.mrb[0].mxu0
        %v6577 = vadd.f32 0.0, %v6576
        %v6578 = vpop.f32.mrb[0].mxu0
        %v6579 = vadd.f32 0.0, %v6578
        %v6580 = vpop.f32.mrb[0].mxu0
        %v6581 = vadd.f32 0.0, %v6580
        %v6582 = vpop.f32.mrb[0].mxu0
        %v6583 = vadd.f32 0.0, %v6582
        %6584 = vmatprep.mubr.bf16.mxu0 %v6374
        %6585 = vmatmul.mubr.bf16.gmra.mrb[0].mxu0 %v5690
        %v6586 = vpop.f32.mrb[0].mxu0
        %v6587 = vadd.f32 0.0, %v6586
        %v6588 = vpop.f32.mrb[0].mxu0
        %v6589 = vadd.f32 0.0, %v6588
        %v6590 = vpop.f32.mrb[0].mxu0
        %v6591 = vadd.f32 0.0, %v6590
        %v6592 = vpop.f32.mrb[0].mxu0
        %v6593 = vadd.f32 0.0, %v6592
        %6594 = vdwg.mxu0
        %6595 = vmatprep.subr.bf16.mxu0 %v6155
        %6596 = vmatpush1.bf16.msra.mxu0 %v6154
        %6597 = vmatprep.subr.bf16.mxu0 %v6164
        %6598 = vmatpush1.bf16.msra.mxu0 %v6163
        %6599 = vmatprep.subr.bf16.mxu0 %v6173
        %6600 = vmatpush1.bf16.msra.mxu0 %v6172
        %6601 = vmatprep.subr.bf16.mxu0 %v6182
        %6602 = vmatpush1.bf16.msra.mxu0 %v6181
        %6603 = vmatprep.subr.bf16.mxu0 %v6191
        %6604 = vmatpush1.bf16.msra.mxu0 %v6190
        %6605 = vmatprep.subr.bf16.mxu0 %v6200
        %6606 = vmatpush1.bf16.msra.mxu0 %v6199
        %6607 = vmatprep.subr.bf16.mxu0 %v6209
        %6608 = vmatpush1.bf16.msra.mxu0 %v6208
        %6609 = vmatprep.subr.bf16.mxu0 %v6218
        %6610 = vmatpush1.bf16.msra.mxu0 %v6217
        %6611 = vmatprep.subr.bf16.mxu0 %v6227
        %6612 = vmatpush1.bf16.msra.mxu0 %v6226
        %6613 = vmatprep.subr.bf16.mxu0 %v6236
        %6614 = vmatpush1.bf16.msra.mxu0 %v6235
        %6615 = vmatprep.subr.bf16.mxu0 %v6245
        %6616 = vmatpush1.bf16.msra.mxu0 %v6244
        %6617 = vmatprep.subr.bf16.mxu0 %v6254
        %6618 = vmatpush1.bf16.msra.mxu0 %v6253
        %6619 = vmatprep.subr.bf16.mxu0 0
        %6620 = vmatpush1.bf16.msra.mxu0 0
        %6621 = vmatprep.subr.bf16.mxu0 0
        %6622 = vmatpush1.bf16.msra.mxu0 0
        %6623 = vmatprep.subr.bf16.mxu0 0
        %6624 = vmatpush1.bf16.msra.mxu0 0
        %6625 = vmatprep.subr.bf16.mxu0 0
        %6626 = vmatpush1.bf16.msra.mxu0 0
        %6627 = vmatprep.mubr.bf16.mxu0 %v6365
        %6628 = vmatmul.mubr.bf16.gmra.mrb[0].mxu0 %v5684
        %v6629 = vpop.f32.mrb[0].mxu0
        %v6630 = vadd.f32 0.0, %v6629
        %v6631 = vpop.f32.mrb[0].mxu0
        %v6632 = vadd.f32 0.0, %v6631
        %v6633 = vpop.f32.mrb[0].mxu0
        %v6634 = vadd.f32 0.0, %v6633
        %v6635 = vpop.f32.mrb[0].mxu0
        %v6636 = vadd.f32 0.0, %v6635
        %6637 = vmatprep.mubr.bf16.mxu0 %v6368
        %6638 = vmatmul.mubr.bf16.gmra.mrb[0].mxu0 %v5686
        %v6639 = vpop.f32.mrb[0].mxu0
        %v6640 = vadd.f32 0.0, %v6639
        %v6641 = vpop.f32.mrb[0].mxu0
        %v6642 = vadd.f32 0.0, %v6641
        %v6643 = vpop.f32.mrb[0].mxu0
        %v6644 = vadd.f32 0.0, %v6643
        %v6645 = vpop.f32.mrb[0].mxu0
        %v6646 = vadd.f32 0.0, %v6645
        %6647 = vmatprep.mubr.bf16.mxu0 %v6371
        %6648 = vmatmul.mubr.bf16.gmra.mrb[0].mxu0 %v5688
        %v6649 = vpop.f32.mrb[0].mxu0
        %v6650 = vadd.f32 0.0, %v6649
        %v6651 = vpop.f32.mrb[0].mxu0
        %v6652 = vadd.f32 0.0, %v6651
        %v6653 = vpop.f32.mrb[0].mxu0
        %v6654 = vadd.f32 0.0, %v6653
        %v6655 = vpop.f32.mrb[0].mxu0
        %v6656 = vadd.f32 0.0, %v6655
        %6657 = vmatprep.mubr.bf16.mxu0 %v6374
        %6658 = vmatmul.mubr.bf16.gmra.mrb[0].mxu0 %v5690
        %v6659 = vpop.f32.mrb[0].mxu0
        %v6660 = vadd.f32 0.0, %v6659
        %v6661 = vpop.f32.mrb[0].mxu0
        %v6662 = vadd.f32 0.0, %v6661
        %v6663 = vpop.f32.mrb[0].mxu0
        %v6664 = vadd.f32 0.0, %v6663
        %v6665 = vpop.f32.mrb[0].mxu0
        %v6666 = vadd.f32 0.0, %v6665
        %6667 = vdwg.mxu0
        %6668 = vmatprep.subr.bf16.mxu0 0
        %6669 = vmatpush1.bf16.msra.mxu0 %v6156
        %6670 = vmatprep.subr.bf16.mxu0 0
        %6671 = vmatpush1.bf16.msra.mxu0 %v6165
        %6672 = vmatprep.subr.bf16.mxu0 0
        %6673 = vmatpush1.bf16.msra.mxu0 %v6174
        %6674 = vmatprep.subr.bf16.mxu0 0
        %6675 = vmatpush1.bf16.msra.mxu0 %v6183
        %6676 = vmatprep.subr.bf16.mxu0 0
        %6677 = vmatpush1.bf16.msra.mxu0 %v6192
        %6678 = vmatprep.subr.bf16.mxu0 0
        %6679 = vmatpush1.bf16.msra.mxu0 %v6201
        %6680 = vmatprep.subr.bf16.mxu0 0
        %6681 = vmatpush1.bf16.msra.mxu0 %v6210
        %6682 = vmatprep.subr.bf16.mxu0 0
        %6683 = vmatpush1.bf16.msra.mxu0 %v6219
        %6684 = vmatprep.subr.bf16.mxu0 0
        %6685 = vmatpush1.bf16.msra.mxu0 %v6228
        %6686 = vmatprep.subr.bf16.mxu0 0
        %6687 = vmatpush1.bf16.msra.mxu0 %v6237
        %6688 = vmatprep.subr.bf16.mxu0 0
        %6689 = vmatpush1.bf16.msra.mxu0 %v6246
        %6690 = vmatprep.subr.bf16.mxu0 0
        %6691 = vmatpush1.bf16.msra.mxu0 %v6255
        %6692 = vmatprep.subr.bf16.mxu0 0
        %6693 = vmatpush1.bf16.msra.mxu0 0
        %6694 = vmatprep.subr.bf16.mxu0 0
        %6695 = vmatpush1.bf16.msra.mxu0 0
        %6696 = vmatprep.subr.bf16.mxu0 0
        %6697 = vmatpush1.bf16.msra.mxu0 0
        %6698 = vmatprep.subr.bf16.mxu0 0
        %6699 = vmatpush1.bf16.msra.mxu0 0
        %6700 = vmatprep.mubr.bf16.mxu0 %v6365
        %6701 = vmatmul.mubr.bf16.gmra.mrb[0].mxu0 %v5684
        %v6702 = vpop.f32.mrb[0].mxu0
        %v6703 = vadd.f32 0.0, %v6702
        %v6704 = vpop.f32.mrb[0].mxu0
        %v6705 = vpop.f32.mrb[0].mxu0
        %v6706 = vadd.f32 0.0, %v6705
        %v6707 = vpop.f32.mrb[0].mxu0
        %6708 = vmatprep.mubr.bf16.mxu0 %v6368
        %6709 = vmatmul.mubr.bf16.gmra.mrb[0].mxu0 %v5686
        %v6710 = vpop.f32.mrb[0].mxu0
        %v6711 = vadd.f32 0.0, %v6710
        %v6712 = vpop.f32.mrb[0].mxu0
        %v6713 = vpop.f32.mrb[0].mxu0
        %v6714 = vadd.f32 0.0, %v6713
        %v6715 = vpop.f32.mrb[0].mxu0
        %6716 = vmatprep.mubr.bf16.mxu0 %v6371
        %6717 = vmatmul.mubr.bf16.gmra.mrb[0].mxu0 %v5688
        %v6718 = vpop.f32.mrb[0].mxu0
        %v6719 = vadd.f32 0.0, %v6718
        %v6720 = vpop.f32.mrb[0].mxu0
        %v6721 = vpop.f32.mrb[0].mxu0
        %v6722 = vadd.f32 0.0, %v6721
        %v6723 = vpop.f32.mrb[0].mxu0
        %6724 = vmatprep.mubr.bf16.mxu0 %v6374
        %6725 = vmatmul.mubr.bf16.gmra.mrb[0].mxu0 %v5690
        %v6726 = vpop.f32.mrb[0].mxu0
        %v6727 = vadd.f32 0.0, %v6726
        %v6728 = vpop.f32.mrb[0].mxu0
        %v6729 = vpop.f32.mrb[0].mxu0
        %v6730 = vadd.f32 0.0, %v6729
        %v6731 = vpop.f32.mrb[0].mxu0
        %6732 = vdwg.mxu0
        %v6853 = vunpack.c.l.b16 %v5564
        %v6854 = vunpack.c.h.b16 %v5564
        %v6855 = vunpack.c.l.b16 %v5565
        %v6856 = vunpack.c.h.b16 %v5565
        %v6857 = vunpack.c.l.b16 %v5566
        %v6858 = vunpack.c.h.b16 %v5566
        %v6859 = vunpack.c.l.b16 %v5567
        %v6860 = vunpack.c.h.b16 %v5567
        %v6861 = vunpack.c.l.b16 %v5568
        %v6862 = vunpack.c.l.b16 %v5569
        %v6863 = vunpack.c.h.b16 %v5569
        %v6864 = vunpack.c.l.b16 %v5570
        %v6865 = vunpack.c.h.b16 %v5570
        %v6866 = vunpack.c.l.b16 %v5571
        %v6867 = vunpack.c.h.b16 %v5571
        %v6868 = vunpack.c.l.b16 %v5572
        %v6869 = vunpack.c.h.b16 %v5572
        %v6870 = vunpack.c.l.b16 %v5573
        %v6871 = vunpack.c.l.b16 %v5574
        %v6872 = vunpack.c.h.b16 %v5574
        %v6873 = vunpack.c.l.b16 %v5575
        %v6874 = vunpack.c.h.b16 %v5575
        %v6875 = vunpack.c.l.b16 %v5576
        %v6876 = vunpack.c.h.b16 %v5576
        %v6877 = vunpack.c.l.b16 %v5577
        %v6878 = vunpack.c.h.b16 %v5577
        %v6879 = vunpack.c.l.b16 %v5578
        %v6880 = vunpack.c.l.b16 %v5579
        %v6881 = vunpack.c.h.b16 %v5579
        %v6882 = vunpack.c.l.b16 %v5580
        %v6883 = vunpack.c.h.b16 %v5580
        %v6884 = vunpack.c.l.b16 %v5581
        %v6885 = vunpack.c.h.b16 %v5581
        %v6886 = vunpack.c.l.b16 %v5582
        %v6887 = vunpack.c.h.b16 %v5582
        %v6888 = vunpack.c.l.b16 %v5583
        %v6889 = vunpack.c.l.b16 %v5584
        %v6890 = vunpack.c.h.b16 %v5584
        %v6891 = vunpack.c.l.b16 %v5585
        %v6892 = vunpack.c.h.b16 %v5585
        %v6893 = vunpack.c.l.b16 %v5586
        %v6894 = vunpack.c.h.b16 %v5586
        %v6895 = vunpack.c.l.b16 %v5587
        %v6896 = vunpack.c.h.b16 %v5587
        %v6897 = vunpack.c.l.b16 %v5588
        %v6898 = vunpack.c.l.b16 %v5589
        %v6899 = vunpack.c.h.b16 %v5589
        %v6900 = vunpack.c.l.b16 %v5590
        %v6901 = vunpack.c.h.b16 %v5590
        %v6902 = vunpack.c.l.b16 %v5591
        %v6903 = vunpack.c.h.b16 %v5591
        %v6904 = vunpack.c.l.b16 %v5592
        %v6905 = vunpack.c.h.b16 %v5592
        %v6906 = vunpack.c.l.b16 %v5593
        %v6907 = vunpack.c.l.b16 %v5594
        %v6908 = vunpack.c.h.b16 %v5594
        %v6909 = vunpack.c.l.b16 %v5595
        %v6910 = vunpack.c.h.b16 %v5595
        %v6911 = vunpack.c.l.b16 %v5596
        %v6912 = vunpack.c.h.b16 %v5596
        %v6913 = vunpack.c.l.b16 %v5597
        %v6914 = vunpack.c.h.b16 %v5597
        %v6915 = vunpack.c.l.b16 %v5598
        %v6916 = vunpack.c.l.b16 %v5599
        %v6917 = vunpack.c.h.b16 %v5599
        %v6918 = vunpack.c.l.b16 %v5600
        %v6919 = vunpack.c.h.b16 %v5600
        %v6920 = vunpack.c.l.b16 %v5601
        %v6921 = vunpack.c.h.b16 %v5601
        %v6922 = vunpack.c.l.b16 %v5602
        %v6923 = vunpack.c.h.b16 %v5602
        %v6924 = vunpack.c.l.b16 %v5603
        %v6925 = vunpack.c.l.b16 %v5604
        %v6926 = vunpack.c.h.b16 %v5604
        %v6927 = vunpack.c.l.b16 %v5605
        %v6928 = vunpack.c.h.b16 %v5605
        %v6929 = vunpack.c.l.b16 %v5606
        %v6930 = vunpack.c.h.b16 %v5606
        %v6931 = vunpack.c.l.b16 %v5607
        %v6932 = vunpack.c.h.b16 %v5607
        %v6933 = vunpack.c.l.b16 %v5608
        %v6934 = vunpack.c.l.b16 %v5609
        %v6935 = vunpack.c.h.b16 %v5609
        %v6936 = vunpack.c.l.b16 %v5610
        %v6937 = vunpack.c.h.b16 %v5610
        %v6938 = vunpack.c.l.b16 %v5611
        %v6939 = vunpack.c.h.b16 %v5611
        %v6940 = vunpack.c.l.b16 %v5612
        %v6941 = vunpack.c.h.b16 %v5612
        %v6942 = vunpack.c.l.b16 %v5613
        %v6943 = vunpack.c.l.b16 %v5614
        %v6944 = vunpack.c.h.b16 %v5614
        %v6945 = vunpack.c.l.b16 %v5615
        %v6946 = vunpack.c.h.b16 %v5615
        %v6947 = vunpack.c.l.b16 %v5616
        %v6948 = vunpack.c.h.b16 %v5616
        %v6949 = vunpack.c.l.b16 %v5617
        %v6950 = vunpack.c.h.b16 %v5617
        %v6951 = vunpack.c.l.b16 %v5618
        %v6952 = vunpack.c.l.b16 %v5619
        %v6953 = vunpack.c.h.b16 %v5619
        %v6954 = vunpack.c.l.b16 %v5620
        %v6955 = vunpack.c.h.b16 %v5620
        %v6956 = vunpack.c.l.b16 %v5621
        %v6957 = vunpack.c.h.b16 %v5621
        %v6958 = vunpack.c.l.b16 %v5622
        %v6959 = vunpack.c.h.b16 %v5622
        %v6960 = vunpack.c.l.b16 %v5623
        %v6961 = vunpack.c.l.b16 %v5624
        %v6962 = vunpack.c.h.b16 %v5624
        %v6963 = vunpack.c.l.b16 %v5625
        %v6964 = vunpack.c.h.b16 %v5625
        %v6965 = vunpack.c.l.b16 %v5626
        %v6966 = vunpack.c.h.b16 %v5626
        %v6967 = vunpack.c.l.b16 %v5627
        %v6968 = vunpack.c.h.b16 %v5627
        %v6969 = vunpack.c.l.b16 %v5628
        %v6970 = vunpack.c.l.b16 %v5629
        %v6971 = vunpack.c.h.b16 %v5629
        %v6972 = vunpack.c.l.b16 %v5630
        %v6973 = vunpack.c.h.b16 %v5630
        %v6974 = vunpack.c.l.b16 %v5631
        %v6975 = vunpack.c.h.b16 %v5631
        %v6976 = vunpack.c.l.b16 %v5632
        %v6977 = vunpack.c.h.b16 %v5632
        %v6978 = vunpack.c.l.b16 %v5633
        %v6979 = vunpack.c.l.b16 %v5634
        %v6980 = vunpack.c.h.b16 %v5634
        %v6981 = vunpack.c.l.b16 %v5635
        %v6982 = vunpack.c.h.b16 %v5635
        %v6983 = vunpack.c.l.b16 %v5636
        %v6984 = vunpack.c.h.b16 %v5636
        %v6985 = vunpack.c.l.b16 %v5637
        %v6986 = vunpack.c.h.b16 %v5637
        %v6987 = vunpack.c.l.b16 %v5638
        %v6988 = vunpack.c.l.b16 %v5639
        %v6989 = vunpack.c.h.b16 %v5639
        %v6990 = vunpack.c.l.b16 %v5640
        %v6991 = vunpack.c.h.b16 %v5640
        %v6992 = vunpack.c.l.b16 %v5641
        %v6993 = vunpack.c.h.b16 %v5641
        %v6994 = vunpack.c.l.b16 %v5642
        %v6995 = vunpack.c.h.b16 %v5642
        %v6996 = vunpack.c.l.b16 %v5643
        %v6997 = vunpack.c.l.b16 %v5644
        %v6998 = vunpack.c.h.b16 %v5644
        %v6999 = vunpack.c.l.b16 %v5645
        %v7000 = vunpack.c.h.b16 %v5645
        %v7001 = vunpack.c.l.b16 %v5646
        %v7002 = vunpack.c.h.b16 %v5646
        %v7003 = vunpack.c.l.b16 %v5647
        %v7004 = vunpack.c.h.b16 %v5647
        %v7005 = vunpack.c.l.b16 %v5648
        %v7006 = vunpack.c.l.b16 %v5649
        %v7007 = vunpack.c.h.b16 %v5649
        %v7008 = vunpack.c.l.b16 %v5650
        %v7009 = vunpack.c.h.b16 %v5650
        %v7010 = vunpack.c.l.b16 %v5651
        %v7011 = vunpack.c.h.b16 %v5651
        %v7012 = vunpack.c.l.b16 %v5652
        %v7013 = vunpack.c.h.b16 %v5652
        %v7014 = vunpack.c.l.b16 %v5653
        %v7015 = vunpack.c.l.b16 %v5654
        %v7016 = vunpack.c.h.b16 %v5654
        %v7017 = vunpack.c.l.b16 %v5655
        %v7018 = vunpack.c.h.b16 %v5655
        %v7019 = vunpack.c.l.b16 %v5656
        %v7020 = vunpack.c.h.b16 %v5656
        %v7021 = vunpack.c.l.b16 %v5657
        %v7022 = vunpack.c.h.b16 %v5657
        %v7023 = vunpack.c.l.b16 %v5658
        %v7024 = vunpack.c.l.b16 %v5659
        %v7025 = vunpack.c.h.b16 %v5659
        %v7026 = vunpack.c.l.b16 %v5660
        %v7027 = vunpack.c.h.b16 %v5660
        %v7028 = vunpack.c.l.b16 %v5661
        %v7029 = vunpack.c.h.b16 %v5661
        %v7030 = vunpack.c.l.b16 %v5662
        %v7031 = vunpack.c.h.b16 %v5662
        %v7032 = vunpack.c.l.b16 %v5663
        %v7033 = vunpack.c.l.b16 %v5664
        %v7034 = vunpack.c.h.b16 %v5664
        %v7035 = vunpack.c.l.b16 %v5665
        %v7036 = vunpack.c.h.b16 %v5665
        %v7037 = vunpack.c.l.b16 %v5666
        %v7038 = vunpack.c.h.b16 %v5666
        %v7039 = vunpack.c.l.b16 %v5667
        %v7040 = vunpack.c.h.b16 %v5667
        %v7041 = vunpack.c.l.b16 %v5668
        %v7042 = vunpack.c.l.b16 %v5669
        %v7043 = vunpack.c.h.b16 %v5669
        %v7044 = vunpack.c.l.b16 %v5670
        %v7045 = vunpack.c.h.b16 %v5670
        %v7046 = vunpack.c.l.b16 %v5671
        %v7047 = vunpack.c.h.b16 %v5671
        %v7048 = vunpack.c.l.b16 %v5672
        %v7049 = vunpack.c.h.b16 %v5672
        %v7050 = vunpack.c.l.b16 %v5673
        %v7051 = vunpack.c.l.b16 %v5674
        %v7052 = vunpack.c.h.b16 %v5674
        %v7053 = vunpack.c.l.b16 %v5675
        %v7054 = vunpack.c.h.b16 %v5675
        %v7055 = vunpack.c.l.b16 %v5676
        %v7056 = vunpack.c.h.b16 %v5676
        %v7057 = vunpack.c.l.b16 %v5677
        %v7058 = vunpack.c.h.b16 %v5677
        %v7059 = vunpack.c.l.b16 %v5678
        %v7060 = vunpack.c.l.b16 %v5679
        %v7061 = vunpack.c.h.b16 %v5679
        %v7062 = vunpack.c.l.b16 %v5680
        %v7063 = vunpack.c.h.b16 %v5680
        %v7064 = vunpack.c.l.b16 %v5681
        %v7065 = vunpack.c.h.b16 %v5681
        %v7066 = vunpack.c.l.b16 %v5682
        %v7067 = vunpack.c.h.b16 %v5682
        %v7068 = vunpack.c.l.b16 %v5683
        %v7069 = vpack.c.b16 %v6862, %v6853
        %v7070 = vpack.c.b16 %v6863, %v6854
        %v7071 = vpack.c.b16 %v6864, %v6855
        %v7072 = vpack.c.b16 %v6865, %v6856
        %v7073 = vpack.c.b16 %v6866, %v6857
        %v7074 = vpack.c.b16 %v6867, %v6858
        %v7075 = vpack.c.b16 %v6868, %v6859
        %v7076 = vpack.c.b16 %v6869, %v6860
        %v7077 = vpack.c.b16 %v6870, %v6861
        %v7078 = vpack.c.b16 %v6880, %v6871
        %v7079 = vpack.c.b16 %v6881, %v6872
        %v7080 = vpack.c.b16 %v6882, %v6873
        %v7081 = vpack.c.b16 %v6883, %v6874
        %v7082 = vpack.c.b16 %v6884, %v6875
        %v7083 = vpack.c.b16 %v6885, %v6876
        %v7084 = vpack.c.b16 %v6886, %v6877
        %v7085 = vpack.c.b16 %v6887, %v6878
        %v7086 = vpack.c.b16 %v6888, %v6879
        %v7087 = vpack.c.b16 %v6898, %v6889
        %v7088 = vpack.c.b16 %v6899, %v6890
        %v7089 = vpack.c.b16 %v6900, %v6891
        %v7090 = vpack.c.b16 %v6901, %v6892
        %v7091 = vpack.c.b16 %v6902, %v6893
        %v7092 = vpack.c.b16 %v6903, %v6894
        %v7093 = vpack.c.b16 %v6904, %v6895
        %v7094 = vpack.c.b16 %v6905, %v6896
        %v7095 = vpack.c.b16 %v6906, %v6897
        %v7096 = vpack.c.b16 %v6916, %v6907
        %v7097 = vpack.c.b16 %v6917, %v6908
        %v7098 = vpack.c.b16 %v6918, %v6909
        %v7099 = vpack.c.b16 %v6919, %v6910
        %v7100 = vpack.c.b16 %v6920, %v6911
        %v7101 = vpack.c.b16 %v6921, %v6912
        %v7102 = vpack.c.b16 %v6922, %v6913
        %v7103 = vpack.c.b16 %v6923, %v6914
        %v7104 = vpack.c.b16 %v6924, %v6915
        %v7105 = vpack.c.b16 %v6934, %v6925
        %v7106 = vpack.c.b16 %v6935, %v6926
        %v7107 = vpack.c.b16 %v6936, %v6927
        %v7108 = vpack.c.b16 %v6937, %v6928
        %v7109 = vpack.c.b16 %v6938, %v6929
        %v7110 = vpack.c.b16 %v6939, %v6930
        %v7111 = vpack.c.b16 %v6940, %v6931
        %v7112 = vpack.c.b16 %v6941, %v6932
        %v7113 = vpack.c.b16 %v6942, %v6933
        %v7114 = vpack.c.b16 %v6952, %v6943
        %v7115 = vpack.c.b16 %v6953, %v6944
        %v7116 = vpack.c.b16 %v6954, %v6945
        %v7117 = vpack.c.b16 %v6955, %v6946
        %v7118 = vpack.c.b16 %v6956, %v6947
        %v7119 = vpack.c.b16 %v6957, %v6948
        %v7120 = vpack.c.b16 %v6958, %v6949
        %v7121 = vpack.c.b16 %v6959, %v6950
        %v7122 = vpack.c.b16 %v6960, %v6951
        %v7123 = vpack.c.b16 %v6970, %v6961
        %v7124 = vpack.c.b16 %v6971, %v6962
        %v7125 = vpack.c.b16 %v6972, %v6963
        %v7126 = vpack.c.b16 %v6973, %v6964
        %v7127 = vpack.c.b16 %v6974, %v6965
        %v7128 = vpack.c.b16 %v6975, %v6966
        %v7129 = vpack.c.b16 %v6976, %v6967
        %v7130 = vpack.c.b16 %v6977, %v6968
        %v7131 = vpack.c.b16 %v6978, %v6969
        %v7132 = vpack.c.b16 %v6988, %v6979
        %v7133 = vpack.c.b16 %v6989, %v6980
        %v7134 = vpack.c.b16 %v6990, %v6981
        %v7135 = vpack.c.b16 %v6991, %v6982
        %v7136 = vpack.c.b16 %v6992, %v6983
        %v7137 = vpack.c.b16 %v6993, %v6984
        %v7138 = vpack.c.b16 %v6994, %v6985
        %v7139 = vpack.c.b16 %v6995, %v6986
        %v7140 = vpack.c.b16 %v6996, %v6987
        %v7141 = vpack.c.b16 %v7006, %v6997
        %v7142 = vpack.c.b16 %v7007, %v6998
        %v7143 = vpack.c.b16 %v7008, %v6999
        %v7144 = vpack.c.b16 %v7009, %v7000
        %v7145 = vpack.c.b16 %v7010, %v7001
        %v7146 = vpack.c.b16 %v7011, %v7002
        %v7147 = vpack.c.b16 %v7012, %v7003
        %v7148 = vpack.c.b16 %v7013, %v7004
        %v7149 = vpack.c.b16 %v7014, %v7005
        %v7150 = vpack.c.b16 %v7024, %v7015
        %v7151 = vpack.c.b16 %v7025, %v7016
        %v7152 = vpack.c.b16 %v7026, %v7017
        %v7153 = vpack.c.b16 %v7027, %v7018
        %v7154 = vpack.c.b16 %v7028, %v7019
        %v7155 = vpack.c.b16 %v7029, %v7020
        %v7156 = vpack.c.b16 %v7030, %v7021
        %v7157 = vpack.c.b16 %v7031, %v7022
        %v7158 = vpack.c.b16 %v7032, %v7023
        %v7159 = vpack.c.b16 %v7042, %v7033
        %v7160 = vpack.c.b16 %v7043, %v7034
        %v7161 = vpack.c.b16 %v7044, %v7035
        %v7162 = vpack.c.b16 %v7045, %v7036
        %v7163 = vpack.c.b16 %v7046, %v7037
        %v7164 = vpack.c.b16 %v7047, %v7038
        %v7165 = vpack.c.b16 %v7048, %v7039
        %v7166 = vpack.c.b16 %v7049, %v7040
        %v7167 = vpack.c.b16 %v7050, %v7041
        %v7168 = vpack.c.b16 %v7060, %v7051
        %v7169 = vpack.c.b16 %v7061, %v7052
        %v7170 = vpack.c.b16 %v7062, %v7053
        %v7171 = vpack.c.b16 %v7063, %v7054
        %v7172 = vpack.c.b16 %v7064, %v7055
        %v7173 = vpack.c.b16 %v7065, %v7056
        %v7174 = vpack.c.b16 %v7066, %v7057
        %v7175 = vpack.c.b16 %v7067, %v7058
        %v7176 = vpack.c.b16 %v7068, %v7059
        %v7286 = vsel %vm1393, %v5557, 0
        %v7289 = vsel %vm1393, %v5559, 0
        %v7292 = vsel %vm1393, %v5561, 0
        %v7295 = vsel %vm1393, %v5563, 0
        %7297 = vmatprep.subr.bf16.mxu0 %v7070
        %7298 = vmatpush1.bf16.msra.mxu0 %v7069
        %7299 = vmatprep.subr.bf16.mxu0 %v7079
        %7300 = vmatpush1.bf16.msra.mxu0 %v7078
        %7301 = vmatprep.subr.bf16.mxu0 %v7088
        %7302 = vmatpush1.bf16.msra.mxu0 %v7087
        %7303 = vmatprep.subr.bf16.mxu0 %v7097
        %7304 = vmatpush1.bf16.msra.mxu0 %v7096
        %7305 = vmatprep.subr.bf16.mxu0 %v7106
        %7306 = vmatpush1.bf16.msra.mxu0 %v7105
        %7307 = vmatprep.subr.bf16.mxu0 %v7115
        %7308 = vmatpush1.bf16.msra.mxu0 %v7114
        %7309 = vmatprep.subr.bf16.mxu0 %v7124
        %7310 = vmatpush1.bf16.msra.mxu0 %v7123
        %7311 = vmatprep.subr.bf16.mxu0 %v7133
        %7312 = vmatpush1.bf16.msra.mxu0 %v7132
        %7313 = vmatprep.subr.bf16.mxu0 %v7142
        %7314 = vmatpush1.bf16.msra.mxu0 %v7141
        %7315 = vmatprep.subr.bf16.mxu0 %v7151
        %7316 = vmatpush1.bf16.msra.mxu0 %v7150
        %7317 = vmatprep.subr.bf16.mxu0 %v7160
        %7318 = vmatpush1.bf16.msra.mxu0 %v7159
        %7319 = vmatprep.subr.bf16.mxu0 %v7169
        %7320 = vmatpush1.bf16.msra.mxu0 %v7168
        %7321 = vmatprep.subr.bf16.mxu0 0
        %7322 = vmatpush1.bf16.msra.mxu0 0
        %7323 = vmatprep.subr.bf16.mxu0 0
        %7324 = vmatpush1.bf16.msra.mxu0 0
        %7325 = vmatprep.subr.bf16.mxu0 0
        %7326 = vmatpush1.bf16.msra.mxu0 0
        %7327 = vmatprep.subr.bf16.mxu0 0
        %7328 = vmatpush1.bf16.msra.mxu0 0
        %7329 = vmatprep.mubr.bf16.mxu0 %v7286
        %7330 = vmatmul.mubr.bf16.gmra.mrb[0].mxu0 %v5556
        %v7331 = vpop.f32.mrb[0].mxu0
        %v7332 = vadd.f32 %v6411, %v7331
        %v7333 = vpop.f32.mrb[0].mxu0
        %v7334 = vadd.f32 %v6413, %v7333
        %v7335 = vpop.f32.mrb[0].mxu0
        %v7336 = vadd.f32 %v6415, %v7335
        %v7337 = vpop.f32.mrb[0].mxu0
        %v7338 = vadd.f32 %v6417, %v7337
        %7339 = vmatprep.mubr.bf16.mxu0 %v7289
        %7340 = vmatmul.mubr.bf16.gmra.mrb[0].mxu0 %v5558
        %v7341 = vpop.f32.mrb[0].mxu0
        %v7342 = vadd.f32 %v6421, %v7341
        %v7343 = vpop.f32.mrb[0].mxu0
        %v7344 = vadd.f32 %v6423, %v7343
        %v7345 = vpop.f32.mrb[0].mxu0
        %v7346 = vadd.f32 %v6425, %v7345
        %v7347 = vpop.f32.mrb[0].mxu0
        %v7348 = vadd.f32 %v6427, %v7347
        %7349 = vmatprep.mubr.bf16.mxu0 %v7292
        %7350 = vmatmul.mubr.bf16.gmra.mrb[0].mxu0 %v5560
        %v7351 = vpop.f32.mrb[0].mxu0
        %v7352 = vadd.f32 %v6431, %v7351
        %v7353 = vpop.f32.mrb[0].mxu0
        %v7354 = vadd.f32 %v6433, %v7353
        %v7355 = vpop.f32.mrb[0].mxu0
        %v7356 = vadd.f32 %v6435, %v7355
        %v7357 = vpop.f32.mrb[0].mxu0
        %v7358 = vadd.f32 %v6437, %v7357
        %7359 = vmatprep.mubr.bf16.mxu0 %v7295
        %7360 = vmatmul.mubr.bf16.gmra.mrb[0].mxu0 %v5562
        %v7361 = vpop.f32.mrb[0].mxu0
        %v7362 = vadd.f32 %v6441, %v7361
        %v7363 = vpop.f32.mrb[0].mxu0
        %v7364 = vadd.f32 %v6443, %v7363
        %v7365 = vpop.f32.mrb[0].mxu0
        %v7366 = vadd.f32 %v6445, %v7365
        %v7367 = vpop.f32.mrb[0].mxu0
        %v7368 = vadd.f32 %v6447, %v7367
        %7369 = vdwg.mxu0
        %7370 = vmatprep.subr.bf16.mxu0 %v7072
        %7371 = vmatpush1.bf16.msra.mxu0 %v7071
        %7372 = vmatprep.subr.bf16.mxu0 %v7081
        %7373 = vmatpush1.bf16.msra.mxu0 %v7080
        %7374 = vmatprep.subr.bf16.mxu0 %v7090
        %7375 = vmatpush1.bf16.msra.mxu0 %v7089
        %7376 = vmatprep.subr.bf16.mxu0 %v7099
        %7377 = vmatpush1.bf16.msra.mxu0 %v7098
        %7378 = vmatprep.subr.bf16.mxu0 %v7108
        %7379 = vmatpush1.bf16.msra.mxu0 %v7107
        %7380 = vmatprep.subr.bf16.mxu0 %v7117
        %7381 = vmatpush1.bf16.msra.mxu0 %v7116
        %7382 = vmatprep.subr.bf16.mxu0 %v7126
        %7383 = vmatpush1.bf16.msra.mxu0 %v7125
        %7384 = vmatprep.subr.bf16.mxu0 %v7135
        %7385 = vmatpush1.bf16.msra.mxu0 %v7134
        %7386 = vmatprep.subr.bf16.mxu0 %v7144
        %7387 = vmatpush1.bf16.msra.mxu0 %v7143
        %7388 = vmatprep.subr.bf16.mxu0 %v7153
        %7389 = vmatpush1.bf16.msra.mxu0 %v7152
        %7390 = vmatprep.subr.bf16.mxu0 %v7162
        %7391 = vmatpush1.bf16.msra.mxu0 %v7161
        %7392 = vmatprep.subr.bf16.mxu0 %v7171
        %7393 = vmatpush1.bf16.msra.mxu0 %v7170
        %7394 = vmatprep.subr.bf16.mxu0 0
        %7395 = vmatpush1.bf16.msra.mxu0 0
        %7396 = vmatprep.subr.bf16.mxu0 0
        %7397 = vmatpush1.bf16.msra.mxu0 0
        %7398 = vmatprep.subr.bf16.mxu0 0
        %7399 = vmatpush1.bf16.msra.mxu0 0
        %7400 = vmatprep.subr.bf16.mxu0 0
        %7401 = vmatpush1.bf16.msra.mxu0 0
        %7402 = vmatprep.mubr.bf16.mxu0 %v7286
        %7403 = vmatmul.mubr.bf16.gmra.mrb[0].mxu0 %v5556
        %v7404 = vpop.f32.mrb[0].mxu0
        %v7405 = vadd.f32 %v6484, %v7404
        %v7406 = vpop.f32.mrb[0].mxu0
        %v7407 = vadd.f32 %v6486, %v7406
        %v7408 = vpop.f32.mrb[0].mxu0
        %v7409 = vadd.f32 %v6488, %v7408
        %v7410 = vpop.f32.mrb[0].mxu0
        %v7411 = vadd.f32 %v6490, %v7410
        %7412 = vmatprep.mubr.bf16.mxu0 %v7289
        %7413 = vmatmul.mubr.bf16.gmra.mrb[0].mxu0 %v5558
        %v7414 = vpop.f32.mrb[0].mxu0
        %v7415 = vadd.f32 %v6494, %v7414
        %v7416 = vpop.f32.mrb[0].mxu0
        %v7417 = vadd.f32 %v6496, %v7416
        %v7418 = vpop.f32.mrb[0].mxu0
        %v7419 = vadd.f32 %v6498, %v7418
        %v7420 = vpop.f32.mrb[0].mxu0
        %v7421 = vadd.f32 %v6500, %v7420
        %7422 = vmatprep.mubr.bf16.mxu0 %v7292
        %7423 = vmatmul.mubr.bf16.gmra.mrb[0].mxu0 %v5560
        %v7424 = vpop.f32.mrb[0].mxu0
        %v7425 = vadd.f32 %v6504, %v7424
        %v7426 = vpop.f32.mrb[0].mxu0
        %v7427 = vadd.f32 %v6506, %v7426
        %v7428 = vpop.f32.mrb[0].mxu0
        %v7429 = vadd.f32 %v6508, %v7428
        %v7430 = vpop.f32.mrb[0].mxu0
        %v7431 = vadd.f32 %v6510, %v7430
        %7432 = vmatprep.mubr.bf16.mxu0 %v7295
        %7433 = vmatmul.mubr.bf16.gmra.mrb[0].mxu0 %v5562
        %v7434 = vpop.f32.mrb[0].mxu0
        %v7435 = vadd.f32 %v6514, %v7434
        %v7436 = vpop.f32.mrb[0].mxu0
        %v7437 = vadd.f32 %v6516, %v7436
        %v7438 = vpop.f32.mrb[0].mxu0
        %v7439 = vadd.f32 %v6518, %v7438
        %v7440 = vpop.f32.mrb[0].mxu0
        %v7441 = vadd.f32 %v6520, %v7440
        %7442 = vdwg.mxu0
        %7443 = vmatprep.subr.bf16.mxu0 %v7074
        %7444 = vmatpush1.bf16.msra.mxu0 %v7073
        %7445 = vmatprep.subr.bf16.mxu0 %v7083
        %7446 = vmatpush1.bf16.msra.mxu0 %v7082
        %7447 = vmatprep.subr.bf16.mxu0 %v7092
        %7448 = vmatpush1.bf16.msra.mxu0 %v7091
        %7449 = vmatprep.subr.bf16.mxu0 %v7101
        %7450 = vmatpush1.bf16.msra.mxu0 %v7100
        %7451 = vmatprep.subr.bf16.mxu0 %v7110
        %7452 = vmatpush1.bf16.msra.mxu0 %v7109
        %7453 = vmatprep.subr.bf16.mxu0 %v7119
        %7454 = vmatpush1.bf16.msra.mxu0 %v7118
        %7455 = vmatprep.subr.bf16.mxu0 %v7128
        %7456 = vmatpush1.bf16.msra.mxu0 %v7127
        %7457 = vmatprep.subr.bf16.mxu0 %v7137
        %7458 = vmatpush1.bf16.msra.mxu0 %v7136
        %7459 = vmatprep.subr.bf16.mxu0 %v7146
        %7460 = vmatpush1.bf16.msra.mxu0 %v7145
        %7461 = vmatprep.subr.bf16.mxu0 %v7155
        %7462 = vmatpush1.bf16.msra.mxu0 %v7154
        %7463 = vmatprep.subr.bf16.mxu0 %v7164
        %7464 = vmatpush1.bf16.msra.mxu0 %v7163
        %7465 = vmatprep.subr.bf16.mxu0 %v7173
        %7466 = vmatpush1.bf16.msra.mxu0 %v7172
        %7467 = vmatprep.subr.bf16.mxu0 0
        %7468 = vmatpush1.bf16.msra.mxu0 0
        %7469 = vmatprep.subr.bf16.mxu0 0
        %7470 = vmatpush1.bf16.msra.mxu0 0
        %7471 = vmatprep.subr.bf16.mxu0 0
        %7472 = vmatpush1.bf16.msra.mxu0 0
        %7473 = vmatprep.subr.bf16.mxu0 0
        %7474 = vmatpush1.bf16.msra.mxu0 0
        %7475 = vmatprep.mubr.bf16.mxu0 %v7286
        %7476 = vmatmul.mubr.bf16.gmra.mrb[0].mxu0 %v5556
        %v7477 = vpop.f32.mrb[0].mxu0
        %v7478 = vadd.f32 %v6557, %v7477
        %v7479 = vpop.f32.mrb[0].mxu0
        %v7480 = vadd.f32 %v6559, %v7479
        %v7481 = vpop.f32.mrb[0].mxu0
        %v7482 = vadd.f32 %v6561, %v7481
        %v7483 = vpop.f32.mrb[0].mxu0
        %v7484 = vadd.f32 %v6563, %v7483
        %7485 = vmatprep.mubr.bf16.mxu0 %v7289
        %7486 = vmatmul.mubr.bf16.gmra.mrb[0].mxu0 %v5558
        %v7487 = vpop.f32.mrb[0].mxu0
        %v7488 = vadd.f32 %v6567, %v7487
        %v7489 = vpop.f32.mrb[0].mxu0
        %v7490 = vadd.f32 %v6569, %v7489
        %v7491 = vpop.f32.mrb[0].mxu0
        %v7492 = vadd.f32 %v6571, %v7491
        %v7493 = vpop.f32.mrb[0].mxu0
        %v7494 = vadd.f32 %v6573, %v7493
        %7495 = vmatprep.mubr.bf16.mxu0 %v7292
        %7496 = vmatmul.mubr.bf16.gmra.mrb[0].mxu0 %v5560
        %v7497 = vpop.f32.mrb[0].mxu0
        %v7498 = vadd.f32 %v6577, %v7497
        %v7499 = vpop.f32.mrb[0].mxu0
        %v7500 = vadd.f32 %v6579, %v7499
        %v7501 = vpop.f32.mrb[0].mxu0
        %v7502 = vadd.f32 %v6581, %v7501
        %v7503 = vpop.f32.mrb[0].mxu0
        %v7504 = vadd.f32 %v6583, %v7503
        %7505 = vmatprep.mubr.bf16.mxu0 %v7295
        %7506 = vmatmul.mubr.bf16.gmra.mrb[0].mxu0 %v5562
        %v7507 = vpop.f32.mrb[0].mxu0
        %v7508 = vadd.f32 %v6587, %v7507
        %v7509 = vpop.f32.mrb[0].mxu0
        %v7510 = vadd.f32 %v6589, %v7509
        %v7511 = vpop.f32.mrb[0].mxu0
        %v7512 = vadd.f32 %v6591, %v7511
        %v7513 = vpop.f32.mrb[0].mxu0
        %v7514 = vadd.f32 %v6593, %v7513
        %7515 = vdwg.mxu0
        %7516 = vmatprep.subr.bf16.mxu0 %v7076
        %7517 = vmatpush1.bf16.msra.mxu0 %v7075
        %7518 = vmatprep.subr.bf16.mxu0 %v7085
        %7519 = vmatpush1.bf16.msra.mxu0 %v7084
        %7520 = vmatprep.subr.bf16.mxu0 %v7094
        %7521 = vmatpush1.bf16.msra.mxu0 %v7093
        %7522 = vmatprep.subr.bf16.mxu0 %v7103
        %7523 = vmatpush1.bf16.msra.mxu0 %v7102
        %7524 = vmatprep.subr.bf16.mxu0 %v7112
        %7525 = vmatpush1.bf16.msra.mxu0 %v7111
        %7526 = vmatprep.subr.bf16.mxu0 %v7121
        %7527 = vmatpush1.bf16.msra.mxu0 %v7120
        %7528 = vmatprep.subr.bf16.mxu0 %v7130
        %7529 = vmatpush1.bf16.msra.mxu0 %v7129
        %7530 = vmatprep.subr.bf16.mxu0 %v7139
        %7531 = vmatpush1.bf16.msra.mxu0 %v7138
        %7532 = vmatprep.subr.bf16.mxu0 %v7148
        %7533 = vmatpush1.bf16.msra.mxu0 %v7147
        %7534 = vmatprep.subr.bf16.mxu0 %v7157
        %7535 = vmatpush1.bf16.msra.mxu0 %v7156
        %7536 = vmatprep.subr.bf16.mxu0 %v7166
        %7537 = vmatpush1.bf16.msra.mxu0 %v7165
        %7538 = vmatprep.subr.bf16.mxu0 %v7175
        %7539 = vmatpush1.bf16.msra.mxu0 %v7174
        %7540 = vmatprep.subr.bf16.mxu0 0
        %7541 = vmatpush1.bf16.msra.mxu0 0
        %7542 = vmatprep.subr.bf16.mxu0 0
        %7543 = vmatpush1.bf16.msra.mxu0 0
        %7544 = vmatprep.subr.bf16.mxu0 0
        %7545 = vmatpush1.bf16.msra.mxu0 0
        %7546 = vmatprep.subr.bf16.mxu0 0
        %7547 = vmatpush1.bf16.msra.mxu0 0
        %7548 = vmatprep.mubr.bf16.mxu0 %v7286
        %7549 = vmatmul.mubr.bf16.gmra.mrb[0].mxu0 %v5556
        %v7550 = vpop.f32.mrb[0].mxu0
        %v7551 = vadd.f32 %v6630, %v7550
        %v7552 = vpop.f32.mrb[0].mxu0
        %v7553 = vadd.f32 %v6632, %v7552
        %v7554 = vpop.f32.mrb[0].mxu0
        %v7555 = vadd.f32 %v6634, %v7554
        %v7556 = vpop.f32.mrb[0].mxu0
        %v7557 = vadd.f32 %v6636, %v7556
        %7558 = vmatprep.mubr.bf16.mxu0 %v7289
        %7559 = vmatmul.mubr.bf16.gmra.mrb[0].mxu0 %v5558
        %v7560 = vpop.f32.mrb[0].mxu0
        %v7561 = vadd.f32 %v6640, %v7560
        %v7562 = vpop.f32.mrb[0].mxu0
        %v7563 = vadd.f32 %v6642, %v7562
        %v7564 = vpop.f32.mrb[0].mxu0
        %v7565 = vadd.f32 %v6644, %v7564
        %v7566 = vpop.f32.mrb[0].mxu0
        %v7567 = vadd.f32 %v6646, %v7566
        %7568 = vmatprep.mubr.bf16.mxu0 %v7292
        %7569 = vmatmul.mubr.bf16.gmra.mrb[0].mxu0 %v5560
        %v7570 = vpop.f32.mrb[0].mxu0
        %v7571 = vadd.f32 %v6650, %v7570
        %v7572 = vpop.f32.mrb[0].mxu0
        %v7573 = vadd.f32 %v6652, %v7572
        %v7574 = vpop.f32.mrb[0].mxu0
        %v7575 = vadd.f32 %v6654, %v7574
        %v7576 = vpop.f32.mrb[0].mxu0
        %v7577 = vadd.f32 %v6656, %v7576
        %7578 = vmatprep.mubr.bf16.mxu0 %v7295
        %7579 = vmatmul.mubr.bf16.gmra.mrb[0].mxu0 %v5562
        %v7580 = vpop.f32.mrb[0].mxu0
        %v7581 = vadd.f32 %v6660, %v7580
        %v7582 = vpop.f32.mrb[0].mxu0
        %v7583 = vadd.f32 %v6662, %v7582
        %v7584 = vpop.f32.mrb[0].mxu0
        %v7585 = vadd.f32 %v6664, %v7584
        %v7586 = vpop.f32.mrb[0].mxu0
        %v7587 = vadd.f32 %v6666, %v7586
        %7588 = vdwg.mxu0
        %7589 = vmatprep.subr.bf16.mxu0 0
        %7590 = vmatpush1.bf16.msra.mxu0 %v7077
        %7591 = vmatprep.subr.bf16.mxu0 0
        %7592 = vmatpush1.bf16.msra.mxu0 %v7086
        %7593 = vmatprep.subr.bf16.mxu0 0
        %7594 = vmatpush1.bf16.msra.mxu0 %v7095
        %7595 = vmatprep.subr.bf16.mxu0 0
        %7596 = vmatpush1.bf16.msra.mxu0 %v7104
        %7597 = vmatprep.subr.bf16.mxu0 0
        %7598 = vmatpush1.bf16.msra.mxu0 %v7113
        %7599 = vmatprep.subr.bf16.mxu0 0
        %7600 = vmatpush1.bf16.msra.mxu0 %v7122
        %7601 = vmatprep.subr.bf16.mxu0 0
        %7602 = vmatpush1.bf16.msra.mxu0 %v7131
        %7603 = vmatprep.subr.bf16.mxu0 0
        %7604 = vmatpush1.bf16.msra.mxu0 %v7140
        %7605 = vmatprep.subr.bf16.mxu0 0
        %7606 = vmatpush1.bf16.msra.mxu0 %v7149
        %7607 = vmatprep.subr.bf16.mxu0 0
        %7608 = vmatpush1.bf16.msra.mxu0 %v7158
        %7609 = vmatprep.subr.bf16.mxu0 0
        %7610 = vmatpush1.bf16.msra.mxu0 %v7167
        %7611 = vmatprep.subr.bf16.mxu0 0
        %7612 = vmatpush1.bf16.msra.mxu0 %v7176
        %7613 = vmatprep.subr.bf16.mxu0 0
        %7614 = vmatpush1.bf16.msra.mxu0 0
        %7615 = vmatprep.subr.bf16.mxu0 0
        %7616 = vmatpush1.bf16.msra.mxu0 0
        %7617 = vmatprep.subr.bf16.mxu0 0
        %7618 = vmatpush1.bf16.msra.mxu0 0
        %7619 = vmatprep.subr.bf16.mxu0 0
        %7620 = vmatpush1.bf16.msra.mxu0 0
        %7621 = vmatprep.mubr.bf16.mxu0 %v7286
        %7622 = vmatmul.mubr.bf16.gmra.mrb[0].mxu0 %v5556
        %v7623 = vpop.f32.mrb[0].mxu0
        %v7624 = vadd.f32 %v6703, %v7623
        %v7625 = vpop.f32.mrb[0].mxu0
        %v7626 = vpop.f32.mrb[0].mxu0
        %v7627 = vadd.f32 %v6706, %v7626
        %v7628 = vpop.f32.mrb[0].mxu0
        %7629 = vmatprep.mubr.bf16.mxu0 %v7289
        %7630 = vmatmul.mubr.bf16.gmra.mrb[0].mxu0 %v5558
        %v7631 = vpop.f32.mrb[0].mxu0
        %v7632 = vadd.f32 %v6711, %v7631
        %v7633 = vpop.f32.mrb[0].mxu0
        %v7634 = vpop.f32.mrb[0].mxu0
        %v7635 = vadd.f32 %v6714, %v7634
        %v7636 = vpop.f32.mrb[0].mxu0
        %7637 = vmatprep.mubr.bf16.mxu0 %v7292
        %7638 = vmatmul.mubr.bf16.gmra.mrb[0].mxu0 %v5560
        %v7639 = vpop.f32.mrb[0].mxu0
        %v7640 = vadd.f32 %v6719, %v7639
        %v7641 = vpop.f32.mrb[0].mxu0
        %v7642 = vpop.f32.mrb[0].mxu0
        %v7643 = vadd.f32 %v6722, %v7642
        %v7644 = vpop.f32.mrb[0].mxu0
        %7645 = vmatprep.mubr.bf16.mxu0 %v7295
        %7646 = vmatmul.mubr.bf16.gmra.mrb[0].mxu0 %v5562
        %v7647 = vpop.f32.mrb[0].mxu0
        %v7648 = vadd.f32 %v6727, %v7647
        %v7649 = vpop.f32.mrb[0].mxu0
        %v7650 = vpop.f32.mrb[0].mxu0
        %v7651 = vadd.f32 %v6730, %v7650
        %v7652 = vpop.f32.mrb[0].mxu0
        %7653 = vdwg.mxu0
        %v7654 = vld [vmem:[%s11] sm:$0xff]
        %v7655 = vld [vmem:[%s11 + $0x8] sm:$0x1]
        %v7658 = vlaneseq
        %v7659 = vshrl.u32 %v7658, 7
        %v7660 = vsub.s32 0, %v7659
        %v7661 = vrot.slane %v7654, %v7660
        %v7662 = vlaneseq
        %v7663 = vshrl.u32 %v7662, 7
        %v7664 = vsub.s32 1, %v7663
        %v7665 = vrot.slane %v7654, %v7664
        %v7666 = vlaneseq
        %v7667 = vshrl.u32 %v7666, 7
        %v7668 = vsub.s32 2, %v7667
        %v7669 = vrot.slane %v7654, %v7668
        %v7670 = vlaneseq
        %v7671 = vshrl.u32 %v7670, 7
        %v7672 = vsub.s32 3, %v7671
        %v7673 = vrot.slane %v7654, %v7672
        %v7674 = vlaneseq
        %v7675 = vshrl.u32 %v7674, 7
        %v7676 = vsub.s32 4, %v7675
        %v7677 = vrot.slane %v7654, %v7676
        %v7678 = vlaneseq
        %v7679 = vshrl.u32 %v7678, 7
        %v7680 = vsub.s32 5, %v7679
        %v7681 = vrot.slane %v7654, %v7680
        %v7682 = vlaneseq
        %v7683 = vshrl.u32 %v7682, 7
        %v7684 = vsub.s32 6, %v7683
        %v7685 = vrot.slane %v7654, %v7684
        %v7686 = vlaneseq
        %v7687 = vshrl.u32 %v7686, 7
        %v7688 = vsub.s32 7, %v7687
        %v7689 = vrot.slane %v7654, %v7688
        %v7690 = vlaneseq
        %v7691 = vshrl.u32 %v7690, 7
        %v7692 = vsub.s32 0, %v7691
        %v7693 = vrot.slane %v7655, %v7692
        %v7703 = vadd.f32 %v7332, %v7661
        %v7704 = vadd.f32 %v7334, %v7665
        %v7705 = vadd.f32 %v7405, %v7669
        %v7706 = vadd.f32 %v7407, %v7673
        %v7707 = vadd.f32 %v7478, %v7677
        %v7708 = vadd.f32 %v7480, %v7681
        %v7709 = vadd.f32 %v7551, %v7685
        %v7710 = vadd.f32 %v7553, %v7689
        %v7711 = vadd.f32 %v7624, %v7693
        %v7712 = vadd.f32 %v7336, %v7661
        %v7713 = vadd.f32 %v7338, %v7665
        %v7714 = vadd.f32 %v7409, %v7669
        %v7715 = vadd.f32 %v7411, %v7673
        %v7716 = vadd.f32 %v7482, %v7677
        %v7717 = vadd.f32 %v7484, %v7681
        %v7718 = vadd.f32 %v7555, %v7685
        %v7719 = vadd.f32 %v7557, %v7689
        %v7720 = vadd.f32 %v7627, %v7693
        %v7721 = vadd.f32 %v7342, %v7661
        %v7722 = vadd.f32 %v7344, %v7665
        %v7723 = vadd.f32 %v7415, %v7669
        %v7724 = vadd.f32 %v7417, %v7673
        %v7725 = vadd.f32 %v7488, %v7677
        %v7726 = vadd.f32 %v7490, %v7681
        %v7727 = vadd.f32 %v7561, %v7685
        %v7728 = vadd.f32 %v7563, %v7689
        %v7729 = vadd.f32 %v7632, %v7693
        %v7730 = vadd.f32 %v7346, %v7661
        %v7731 = vadd.f32 %v7348, %v7665
        %v7732 = vadd.f32 %v7419, %v7669
        %v7733 = vadd.f32 %v7421, %v7673
        %v7734 = vadd.f32 %v7492, %v7677
        %v7735 = vadd.f32 %v7494, %v7681
        %v7736 = vadd.f32 %v7565, %v7685
        %v7737 = vadd.f32 %v7567, %v7689
        %v7738 = vadd.f32 %v7635, %v7693
        %v7739 = vadd.f32 %v7352, %v7661
        %v7740 = vadd.f32 %v7354, %v7665
        %v7741 = vadd.f32 %v7425, %v7669
        %v7742 = vadd.f32 %v7427, %v7673
        %v7743 = vadd.f32 %v7498, %v7677
        %v7744 = vadd.f32 %v7500, %v7681
        %v7745 = vadd.f32 %v7571, %v7685
        %v7746 = vadd.f32 %v7573, %v7689
        %v7747 = vadd.f32 %v7640, %v7693
        %v7748 = vadd.f32 %v7356, %v7661
        %v7749 = vadd.f32 %v7358, %v7665
        %v7750 = vadd.f32 %v7429, %v7669
        %v7751 = vadd.f32 %v7431, %v7673
        %v7752 = vadd.f32 %v7502, %v7677
        %v7753 = vadd.f32 %v7504, %v7681
        %v7754 = vadd.f32 %v7575, %v7685
        %v7755 = vadd.f32 %v7577, %v7689
        %v7756 = vadd.f32 %v7643, %v7693
        %v7757 = vadd.f32 %v7362, %v7661
        %v7758 = vadd.f32 %v7364, %v7665
        %v7759 = vadd.f32 %v7435, %v7669
        %v7760 = vadd.f32 %v7437, %v7673
        %v7761 = vadd.f32 %v7508, %v7677
        %v7762 = vadd.f32 %v7510, %v7681
        %v7763 = vadd.f32 %v7581, %v7685
        %v7764 = vadd.f32 %v7583, %v7689
        %v7765 = vadd.f32 %v7648, %v7693
        %v7766 = vadd.f32 %v7366, %v7661
        %v7767 = vadd.f32 %v7368, %v7665
        %v7768 = vadd.f32 %v7439, %v7669
        %v7769 = vadd.f32 %v7441, %v7673
        %v7770 = vadd.f32 %v7512, %v7677
        %v7771 = vadd.f32 %v7514, %v7681
        %v7772 = vadd.f32 %v7585, %v7685
        %v7773 = vadd.f32 %v7587, %v7689
        %v7774 = vadd.f32 %v7651, %v7693
        %v7775 = vmul.f32 %v7703, 0.17
        %v7776 = vmul.f32 %v7704, 0.17
        %v7777 = vmul.f32 %v7705, 0.17
        %v7778 = vmul.f32 %v7706, 0.17
        %v7779 = vmul.f32 %v7707, 0.17
        %v7780 = vmul.f32 %v7708, 0.17
        %v7781 = vmul.f32 %v7709, 0.17
        %v7782 = vmul.f32 %v7710, 0.17
        %v7783 = vmul.f32 %v7711, 0.17
        %v7784 = vmul.f32 %v7712, 0.17
        %v7785 = vmul.f32 %v7713, 0.17
        %v7786 = vmul.f32 %v7714, 0.17
        %v7787 = vmul.f32 %v7715, 0.17
        %v7788 = vmul.f32 %v7716, 0.17
        %v7789 = vmul.f32 %v7717, 0.17
        %v7790 = vmul.f32 %v7718, 0.17
        %v7791 = vmul.f32 %v7719, 0.17
        %v7792 = vmul.f32 %v7720, 0.17
        %v7793 = vmul.f32 %v7721, 0.17
        %v7794 = vmul.f32 %v7722, 0.17
        %v7795 = vmul.f32 %v7723, 0.17
        %v7796 = vmul.f32 %v7724, 0.17
        %v7797 = vmul.f32 %v7725, 0.17
        %v7798 = vmul.f32 %v7726, 0.17
        %v7799 = vmul.f32 %v7727, 0.17
        %v7800 = vmul.f32 %v7728, 0.17
        %v7801 = vmul.f32 %v7729, 0.17
        %v7802 = vmul.f32 %v7730, 0.17
        %v7803 = vmul.f32 %v7731, 0.17
        %v7804 = vmul.f32 %v7732, 0.17
        %v7805 = vmul.f32 %v7733, 0.17
        %v7806 = vmul.f32 %v7734, 0.17
        %v7807 = vmul.f32 %v7735, 0.17
        %v7808 = vmul.f32 %v7736, 0.17
        %v7809 = vmul.f32 %v7737, 0.17
        %v7810 = vmul.f32 %v7738, 0.17
        %v7811 = vmul.f32 %v7739, 0.17
        %v7812 = vmul.f32 %v7740, 0.17
        %v7813 = vmul.f32 %v7741, 0.17
        %v7814 = vmul.f32 %v7742, 0.17
        %v7815 = vmul.f32 %v7743, 0.17
        %v7816 = vmul.f32 %v7744, 0.17
        %v7817 = vmul.f32 %v7745, 0.17
        %v7818 = vmul.f32 %v7746, 0.17
        %v7819 = vmul.f32 %v7747, 0.17
        %v7820 = vmul.f32 %v7748, 0.17
        %v7821 = vmul.f32 %v7749, 0.17
        %v7822 = vmul.f32 %v7750, 0.17
        %v7823 = vmul.f32 %v7751, 0.17
        %v7824 = vmul.f32 %v7752, 0.17
        %v7825 = vmul.f32 %v7753, 0.17
        %v7826 = vmul.f32 %v7754, 0.17
        %v7827 = vmul.f32 %v7755, 0.17
        %v7828 = vmul.f32 %v7756, 0.17
        %v7829 = vmul.f32 %v7757, 0.17
        %v7830 = vmul.f32 %v7758, 0.17
        %v7831 = vmul.f32 %v7759, 0.17
        %v7832 = vmul.f32 %v7760, 0.17
        %v7833 = vmul.f32 %v7761, 0.17
        %v7834 = vmul.f32 %v7762, 0.17
        %v7835 = vmul.f32 %v7763, 0.17
        %v7836 = vmul.f32 %v7764, 0.17
        %v7837 = vmul.f32 %v7765, 0.17
        %v7838 = vmul.f32 %v7766, 0.17
        %v7839 = vmul.f32 %v7767, 0.17
        %v7840 = vmul.f32 %v7768, 0.17
        %v7841 = vmul.f32 %v7769, 0.17
        %v7842 = vmul.f32 %v7770, 0.17
        %v7843 = vmul.f32 %v7771, 0.17
        %v7844 = vmul.f32 %v7772, 0.17
        %v7845 = vmul.f32 %v7773, 0.17
        %v7846 = vmul.f32 %v7774, 0.17
        %v7847 = vld [vmem:[%s455] sm:$0xff]
        %v7848 = vld [vmem:[%s455 + $0x8] sm:$0xff]
        %v7849 = vld [vmem:[%s455 + $0x10] sm:$0xff]
        %v7850 = vld [vmem:[%s455 + $0x18] sm:$0xff]
        %v7851 = vld [vmem:[%s455 + $0x20] sm:$0xff]
        %v7852 = vld [vmem:[%s455 + $0x28] sm:$0xff]
        %v7853 = vld [vmem:[%s455 + $0x30] sm:$0xff]
        %v7854 = vld [vmem:[%s455 + $0x38] sm:$0xff]
        %v7855 = vld [vmem:[%s455 + $0x40] sm:$0xff]
        %v7856 = vld [vmem:[%s455 + $0x48] sm:$0xff]
        %v7857 = vld [vmem:[%s455 + $0x50] sm:$0xff]
        %v7858 = vld [vmem:[%s455 + $0x58] sm:$0xff]
        %v7859 = vld [vmem:[%s455 + $0x60] sm:$0xff]
        %v7860 = vld [vmem:[%s455 + $0x68] sm:$0xff]
        %v7861 = vld [vmem:[%s455 + $0x70] sm:$0xff]
        %v7862 = vld [vmem:[%s455 + $0x78] sm:$0xff]
        %v7863 = vld [vmem:[%s455 + $0x80] sm:$0xff]
        %v7864 = vld [vmem:[%s455 + $0x88] sm:$0xff]
        %v7865 = vld [vmem:[%s455 + $0x90] sm:$0xff]
        %v7866 = vld [vmem:[%s455 + $0x98] sm:$0xff]
        %v7867 = vld [vmem:[%s455 + $0xa0] sm:$0xff]
        %v7868 = vld [vmem:[%s455 + $0xa8] sm:$0xff]
        %v7869 = vld [vmem:[%s455 + $0xb0] sm:$0xff]
        %v7870 = vld [vmem:[%s455 + $0xb8] sm:$0xff]
        %v7871 = vld [vmem:[%s455 + $0xc0] sm:$0xff]
        %v7872 = vld [vmem:[%s455 + $0xc8] sm:$0xff]
        %v7873 = vld [vmem:[%s455 + $0xd0] sm:$0xff]
        %v7874 = vld [vmem:[%s455 + $0xd8] sm:$0xff]
        %v7875 = vld [vmem:[%s455 + $0xe0] sm:$0xff]
        %v7876 = vld [vmem:[%s455 + $0xe8] sm:$0xff]
        %v7877 = vld [vmem:[%s455 + $0xf0] sm:$0xff]
        %v7878 = vld [vmem:[%s455 + $0xf8] sm:$0xff]
        %v7879 = vld [vmem:[%s455 + $0x100] sm:$0xff]
        %v7880 = vld [vmem:[%s455 + $0x108] sm:$0xff]
        %v7881 = vld [vmem:[%s455 + $0x110] sm:$0xff]
        %v7882 = vld [vmem:[%s455 + $0x118] sm:$0xff]
        %v7883 = vld [vmem:[%s455 + $0x120] sm:$0xff]
        %v7884 = vld [vmem:[%s455 + $0x128] sm:$0xff]
        %v7885 = vld [vmem:[%s455 + $0x130] sm:$0xff]
        %v7886 = vld [vmem:[%s455 + $0x138] sm:$0xff]
        %v7887 = vld [vmem:[%s455 + $0x140] sm:$0xff]
        %v7888 = vld [vmem:[%s455 + $0x148] sm:$0xff]
        %v7889 = vld [vmem:[%s455 + $0x150] sm:$0xff]
        %v7890 = vld [vmem:[%s455 + $0x158] sm:$0xff]
        %v7891 = vld [vmem:[%s455 + $0x160] sm:$0xff]
        %v7892 = vld [vmem:[%s455 + $0x168] sm:$0xff]
        %v7893 = vld [vmem:[%s455 + $0x170] sm:$0xff]
        %v7894 = vld [vmem:[%s455 + $0x178] sm:$0xff]
        %v7895 = vld [vmem:[%s455 + $0x180] sm:$0xff]
        %v7896 = vld [vmem:[%s455 + $0x188] sm:$0xff]
        %v7897 = vld [vmem:[%s455 + $0x190] sm:$0xff]
        %v7898 = vld [vmem:[%s455 + $0x198] sm:$0xff]
        %v7899 = vld [vmem:[%s455 + $0x1a0] sm:$0xff]
        %v7900 = vld [vmem:[%s455 + $0x1a8] sm:$0xff]
        %v7901 = vld [vmem:[%s455 + $0x1b0] sm:$0xff]
        %v7902 = vld [vmem:[%s455 + $0x1b8] sm:$0xff]
        %v7903 = vld [vmem:[%s455 + $0x1c0] sm:$0xff]
        %v7904 = vld [vmem:[%s455 + $0x1c8] sm:$0xff]
        %v7905 = vld [vmem:[%s455 + $0x1d0] sm:$0xff]
        %v7906 = vld [vmem:[%s455 + $0x1d8] sm:$0xff]
        %v7907 = vld [vmem:[%s455 + $0x1e0] sm:$0xff]
        %v7908 = vld [vmem:[%s455 + $0x1e8] sm:$0xff]
        %v7909 = vld [vmem:[%s455 + $0x1f0] sm:$0xff]
        %v7910 = vld [vmem:[%s455 + $0x1f8] sm:$0xff]
        %v7911 = vld [vmem:[%s455 + $0x200] sm:$0xff]
        %v7912 = vld [vmem:[%s455 + $0x208] sm:$0xff]
        %v7913 = vld [vmem:[%s455 + $0x210] sm:$0xff]
        %v7914 = vld [vmem:[%s455 + $0x218] sm:$0xff]
        %v7915 = vld [vmem:[%s455 + $0x220] sm:$0xff]
        %v7916 = vld [vmem:[%s455 + $0x228] sm:$0xff]
        %v7917 = vld [vmem:[%s455 + $0x230] sm:$0xff]
        %v7918 = vld [vmem:[%s455 + $0x238] sm:$0xff]
        %v7919 = vadd.f32 %v7775, %v7847
        %v7920 = vadd.f32 %v7776, %v7848
        %v7921 = vadd.f32 %v7777, %v7849
        %v7922 = vadd.f32 %v7778, %v7850
        %v7923 = vadd.f32 %v7779, %v7851
        %v7924 = vadd.f32 %v7780, %v7852
        %v7925 = vadd.f32 %v7781, %v7853
        %v7926 = vadd.f32 %v7782, %v7854
        %v7927 = vadd.f32 %v7783, %v7855
        %v7928 = vadd.f32 %v7784, %v7856
        %v7929 = vadd.f32 %v7785, %v7857
        %v7930 = vadd.f32 %v7786, %v7858
        %v7931 = vadd.f32 %v7787, %v7859
        %v7932 = vadd.f32 %v7788, %v7860
        %v7933 = vadd.f32 %v7789, %v7861
        %v7934 = vadd.f32 %v7790, %v7862
        %v7935 = vadd.f32 %v7791, %v7863
        %v7936 = vadd.f32 %v7792, %v7864
        %v7937 = vadd.f32 %v7793, %v7865
        %v7938 = vadd.f32 %v7794, %v7866
        %v7939 = vadd.f32 %v7795, %v7867
        %v7940 = vadd.f32 %v7796, %v7868
        %v7941 = vadd.f32 %v7797, %v7869
        %v7942 = vadd.f32 %v7798, %v7870
        %v7943 = vadd.f32 %v7799, %v7871
        %v7944 = vadd.f32 %v7800, %v7872
        %v7945 = vadd.f32 %v7801, %v7873
        %v7946 = vadd.f32 %v7802, %v7874
        %v7947 = vadd.f32 %v7803, %v7875
        %v7948 = vadd.f32 %v7804, %v7876
        %v7949 = vadd.f32 %v7805, %v7877
        %v7950 = vadd.f32 %v7806, %v7878
        %v7951 = vadd.f32 %v7807, %v7879
        %v7952 = vadd.f32 %v7808, %v7880
        %v7953 = vadd.f32 %v7809, %v7881
        %v7954 = vadd.f32 %v7810, %v7882
        %v7955 = vadd.f32 %v7811, %v7883
        %v7956 = vadd.f32 %v7812, %v7884
        %v7957 = vadd.f32 %v7813, %v7885
        %v7958 = vadd.f32 %v7814, %v7886
        %v7959 = vadd.f32 %v7815, %v7887
        %v7960 = vadd.f32 %v7816, %v7888
        %v7961 = vadd.f32 %v7817, %v7889
        %v7962 = vadd.f32 %v7818, %v7890
        %v7963 = vadd.f32 %v7819, %v7891
        %v7964 = vadd.f32 %v7820, %v7892
        %v7965 = vadd.f32 %v7821, %v7893
        %v7966 = vadd.f32 %v7822, %v7894
        %v7967 = vadd.f32 %v7823, %v7895
        %v7968 = vadd.f32 %v7824, %v7896
        %v7969 = vadd.f32 %v7825, %v7897
        %v7970 = vadd.f32 %v7826, %v7898
        %v7971 = vadd.f32 %v7827, %v7899
        %v7972 = vadd.f32 %v7828, %v7900
        %v7973 = vadd.f32 %v7829, %v7901
        %v7974 = vadd.f32 %v7830, %v7902
        %v7975 = vadd.f32 %v7831, %v7903
        %v7976 = vadd.f32 %v7832, %v7904
        %v7977 = vadd.f32 %v7833, %v7905
        %v7978 = vadd.f32 %v7834, %v7906
        %v7979 = vadd.f32 %v7835, %v7907
        %v7980 = vadd.f32 %v7836, %v7908
        %v7981 = vadd.f32 %v7837, %v7909
        %v7982 = vadd.f32 %v7838, %v7910
        %v7983 = vadd.f32 %v7839, %v7911
        %v7984 = vadd.f32 %v7840, %v7912
        %v7985 = vadd.f32 %v7841, %v7913
        %v7986 = vadd.f32 %v7842, %v7914
        %v7987 = vadd.f32 %v7843, %v7915
        %v7988 = vadd.f32 %v7844, %v7916
        %v7989 = vadd.f32 %v7845, %v7917
        %v7990 = vadd.f32 %v7846, %v7918
        %v7991 = vmax.f32 %v7919, 0.0
        %v7992 = vmax.f32 %v7920, 0.0
        %v7993 = vmax.f32 %v7921, 0.0
        %v7994 = vmax.f32 %v7922, 0.0
        %v7995 = vmax.f32 %v7923, 0.0
        %v7996 = vmax.f32 %v7924, 0.0
        %v7997 = vmax.f32 %v7925, 0.0
        %v7998 = vmax.f32 %v7926, 0.0
        %v7999 = vmax.f32 %v7927, 0.0
        %v8000 = vmax.f32 %v7928, 0.0
        %v8001 = vmax.f32 %v7929, 0.0
        %v8002 = vmax.f32 %v7930, 0.0
        %v8003 = vmax.f32 %v7931, 0.0
        %v8004 = vmax.f32 %v7932, 0.0
        %v8005 = vmax.f32 %v7933, 0.0
        %v8006 = vmax.f32 %v7934, 0.0
        %v8007 = vmax.f32 %v7935, 0.0
        %v8008 = vmax.f32 %v7936, 0.0
        %v8009 = vmax.f32 %v7937, 0.0
        %v8010 = vmax.f32 %v7938, 0.0
        %v8011 = vmax.f32 %v7939, 0.0
        %v8012 = vmax.f32 %v7940, 0.0
        %v8013 = vmax.f32 %v7941, 0.0
        %v8014 = vmax.f32 %v7942, 0.0
        %v8015 = vmax.f32 %v7943, 0.0
        %v8016 = vmax.f32 %v7944, 0.0
        %v8017 = vmax.f32 %v7945, 0.0
        %v8018 = vmax.f32 %v7946, 0.0
        %v8019 = vmax.f32 %v7947, 0.0
        %v8020 = vmax.f32 %v7948, 0.0
        %v8021 = vmax.f32 %v7949, 0.0
        %v8022 = vmax.f32 %v7950, 0.0
        %v8023 = vmax.f32 %v7951, 0.0
        %v8024 = vmax.f32 %v7952, 0.0
        %v8025 = vmax.f32 %v7953, 0.0
        %v8026 = vmax.f32 %v7954, 0.0
        %v8027 = vmax.f32 %v7955, 0.0
        %v8028 = vmax.f32 %v7956, 0.0
        %v8029 = vmax.f32 %v7957, 0.0
        %v8030 = vmax.f32 %v7958, 0.0
        %v8031 = vmax.f32 %v7959, 0.0
        %v8032 = vmax.f32 %v7960, 0.0
        %v8033 = vmax.f32 %v7961, 0.0
        %v8034 = vmax.f32 %v7962, 0.0
        %v8035 = vmax.f32 %v7963, 0.0
        %v8036 = vmax.f32 %v7964, 0.0
        %v8037 = vmax.f32 %v7965, 0.0
        %v8038 = vmax.f32 %v7966, 0.0
        %v8039 = vmax.f32 %v7967, 0.0
        %v8040 = vmax.f32 %v7968, 0.0
        %v8041 = vmax.f32 %v7969, 0.0
        %v8042 = vmax.f32 %v7970, 0.0
        %v8043 = vmax.f32 %v7971, 0.0
        %v8044 = vmax.f32 %v7972, 0.0
        %v8045 = vmax.f32 %v7973, 0.0
        %v8046 = vmax.f32 %v7974, 0.0
        %v8047 = vmax.f32 %v7975, 0.0
        %v8048 = vmax.f32 %v7976, 0.0
        %v8049 = vmax.f32 %v7977, 0.0
        %v8050 = vmax.f32 %v7978, 0.0
        %v8051 = vmax.f32 %v7979, 0.0
        %v8052 = vmax.f32 %v7980, 0.0
        %v8053 = vmax.f32 %v7981, 0.0
        %v8054 = vmax.f32 %v7982, 0.0
        %v8055 = vmax.f32 %v7983, 0.0
        %v8056 = vmax.f32 %v7984, 0.0
        %v8057 = vmax.f32 %v7985, 0.0
        %v8058 = vmax.f32 %v7986, 0.0
        %v8059 = vmax.f32 %v7987, 0.0
        %v8060 = vmax.f32 %v7988, 0.0
        %v8061 = vmax.f32 %v7989, 0.0
        %v8062 = vmax.f32 %v7990, 0.0
        %8063 = vst [vmem:[%s450] sm:$0xff] %v7991
        %8064 = vst [vmem:[%s450 + $0x8] sm:$0xff] %v7992
        %8065 = vst [vmem:[%s450 + $0x10] sm:$0xff] %v7993
        %8066 = vst [vmem:[%s450 + $0x18] sm:$0xff] %v7994
        %8067 = vst [vmem:[%s450 + $0x20] sm:$0xff] %v7995
        %8068 = vst [vmem:[%s450 + $0x28] sm:$0xff] %v7996
        %8069 = vst [vmem:[%s450 + $0x30] sm:$0xff] %v7997
        %8070 = vst [vmem:[%s450 + $0x38] sm:$0xff] %v7998
        %8071 = vst.msk [vmem:[%s450 + $0x40] sm:$0xff] %vm1393, %v7999
        %8072 = vst [vmem:[%s450 + $0x48] sm:$0xff] %v8000
        %8073 = vst [vmem:[%s450 + $0x50] sm:$0xff] %v8001
        %8074 = vst [vmem:[%s450 + $0x58] sm:$0xff] %v8002
        %8075 = vst [vmem:[%s450 + $0x60] sm:$0xff] %v8003
        %8076 = vst [vmem:[%s450 + $0x68] sm:$0xff] %v8004
        %8077 = vst [vmem:[%s450 + $0x70] sm:$0xff] %v8005
        %8078 = vst [vmem:[%s450 + $0x78] sm:$0xff] %v8006
        %8079 = vst [vmem:[%s450 + $0x80] sm:$0xff] %v8007
        %8080 = vst.msk [vmem:[%s450 + $0x88] sm:$0xff] %vm1393, %v8008
        %8081 = vst [vmem:[%s450 + $0x90] sm:$0xff] %v8009
        %8082 = vst [vmem:[%s450 + $0x98] sm:$0xff] %v8010
        %8083 = vst [vmem:[%s450 + $0xa0] sm:$0xff] %v8011
        %8084 = vst [vmem:[%s450 + $0xa8] sm:$0xff] %v8012
        %8085 = vst [vmem:[%s450 + $0xb0] sm:$0xff] %v8013
        %8086 = vst [vmem:[%s450 + $0xb8] sm:$0xff] %v8014
        %8087 = vst [vmem:[%s450 + $0xc0] sm:$0xff] %v8015
        %8088 = vst [vmem:[%s450 + $0xc8] sm:$0xff] %v8016
        %8089 = vst.msk [vmem:[%s450 + $0xd0] sm:$0xff] %vm1393, %v8017
        %8090 = vst [vmem:[%s450 + $0xd8] sm:$0xff] %v8018
        %8091 = vst [vmem:[%s450 + $0xe0] sm:$0xff] %v8019
        %8092 = vst [vmem:[%s450 + $0xe8] sm:$0xff] %v8020
        %8093 = vst [vmem:[%s450 + $0xf0] sm:$0xff] %v8021
        %8094 = vst [vmem:[%s450 + $0xf8] sm:$0xff] %v8022
        %8095 = vst [vmem:[%s450 + $0x100] sm:$0xff] %v8023
        %8096 = vst [vmem:[%s450 + $0x108] sm:$0xff] %v8024
        %8097 = vst [vmem:[%s450 + $0x110] sm:$0xff] %v8025
        %8098 = vst.msk [vmem:[%s450 + $0x118] sm:$0xff] %vm1393, %v8026
        %8099 = vst [vmem:[%s450 + $0x120] sm:$0xff] %v8027
        %8100 = vst [vmem:[%s450 + $0x128] sm:$0xff] %v8028
        %8101 = vst [vmem:[%s450 + $0x130] sm:$0xff] %v8029
        %8102 = vst [vmem:[%s450 + $0x138] sm:$0xff] %v8030
        %8103 = vst [vmem:[%s450 + $0x140] sm:$0xff] %v8031
        %8104 = vst [vmem:[%s450 + $0x148] sm:$0xff] %v8032
        %8105 = vst [vmem:[%s450 + $0x150] sm:$0xff] %v8033
        %8106 = vst [vmem:[%s450 + $0x158] sm:$0xff] %v8034
        %8107 = vst.msk [vmem:[%s450 + $0x160] sm:$0xff] %vm1393, %v8035
        %8108 = vst [vmem:[%s450 + $0x168] sm:$0xff] %v8036
        %8109 = vst [vmem:[%s450 + $0x170] sm:$0xff] %v8037
        %8110 = vst [vmem:[%s450 + $0x178] sm:$0xff] %v8038
        %8111 = vst [vmem:[%s450 + $0x180] sm:$0xff] %v8039
        %8112 = vst [vmem:[%s450 + $0x188] sm:$0xff] %v8040
        %8113 = vst [vmem:[%s450 + $0x190] sm:$0xff] %v8041
        %8114 = vst [vmem:[%s450 + $0x198] sm:$0xff] %v8042
        %8115 = vst [vmem:[%s450 + $0x1a0] sm:$0xff] %v8043
        %8116 = vst.msk [vmem:[%s450 + $0x1a8] sm:$0xff] %vm1393, %v8044
        %8117 = vst [vmem:[%s450 + $0x1b0] sm:$0xff] %v8045
        %8118 = vst [vmem:[%s450 + $0x1b8] sm:$0xff] %v8046
        %8119 = vst [vmem:[%s450 + $0x1c0] sm:$0xff] %v8047
        %8120 = vst [vmem:[%s450 + $0x1c8] sm:$0xff] %v8048
        %8121 = vst [vmem:[%s450 + $0x1d0] sm:$0xff] %v8049
        %8122 = vst [vmem:[%s450 + $0x1d8] sm:$0xff] %v8050
        %8123 = vst [vmem:[%s450 + $0x1e0] sm:$0xff] %v8051
        %8124 = vst [vmem:[%s450 + $0x1e8] sm:$0xff] %v8052
        %8125 = vst.msk [vmem:[%s450 + $0x1f0] sm:$0xff] %vm1393, %v8053
        %8126 = vst [vmem:[%s450 + $0x1f8] sm:$0xff] %v8054
        %8127 = vst [vmem:[%s450 + $0x200] sm:$0xff] %v8055
        %8128 = vst [vmem:[%s450 + $0x208] sm:$0xff] %v8056
        %8129 = vst [vmem:[%s450 + $0x210] sm:$0xff] %v8057
        %8130 = vst [vmem:[%s450 + $0x218] sm:$0xff] %v8058
        %8131 = vst [vmem:[%s450 + $0x220] sm:$0xff] %v8059
        %8132 = vst [vmem:[%s450 + $0x228] sm:$0xff] %v8060
        %8133 = vst [vmem:[%s450 + $0x230] sm:$0xff] %v8061
        %8134 = vst.msk [vmem:[%s450 + $0x238] sm:$0xff] %vm1393, %v8062
        %s8135 = sand.u32 %s293, 1
        %s8136 = scalar_lea.sflag [#allocation6], %s8135
        %s8137 = sand.u32 %s293, 1
        %s8138 = smul.addr %s8137, 576
        %s8139 = scalar_lea.vmem [#allocation10], %s8138
        // Predicated region
        $region81: #{tpu_custom_call.1} parent=67 // pred_check
          %p8140 = pneg %p303
        $region82: #{tpu_custom_call.1} parent=67 // pred_check_branch
          %8142 = sbr.rel (%p8140) target = $region84
        $region83: #{tpu_custom_call.1} parent=67 // pred_region
          %s8144 = ssub.s32 9216, 9216
          %8145 = vsyncadd %s8136, %s8144
          %s8146 = smul.addr %s28, 72
          %s8147 = smul.addr %s8146, 128
          %s8148 = scalar_lea.hbm %s12, %s8147
          %s8149 = sshll.u32 %s8139, 4
          %s8150 = int_to_ptr.vmem [resolvable:$true] %s8149
          %8155 = dma.vmem_to_hbm [thread:$0]  %s8150, 9216, %s8148, %s8136, 1152, 1152, 72
        $region84: #{tpu_custom_call.1} parent=67 // pred_fallthru
          _
      $region68: #{tpu_custom_call.1} parent=5 // pred_fallthru
        _
      %p8156 = scmp.le.s32.totalorder 2, %s23
      // Predicated region
      $region85: #{tpu_custom_call.1} parent=5 // pred_check
        %p8157 = pneg %p8156
      $region86: #{tpu_custom_call.1} parent=5 // pred_check_branch
        %8159 = sbr.rel (%p8157) target = $region88
      $region87: #{tpu_custom_call.1} parent=5 // pred_region
        %s8160 = ssub.s32 %s23, 2
        // Predicated region
        $region89: #{tpu_custom_call.1} parent=87 // pred_check
          %p8161 = pneg %p309
        $region90: #{tpu_custom_call.1} parent=87 // pred_check_branch
          %8163 = sbr.rel (%p8161) target = $region92
        $region91: #{tpu_custom_call.1} parent=87 // pred_region
          %s8164 = sand.u32 %s294, 1
          %s8165 = scalar_lea.sflag [#allocation6], %s8164
          %s8166 = sand.u32 %s294, 1
          %s8167 = smul.addr %s8166, 576
          %s8168 = scalar_lea.vmem [#allocation10], %s8167
          %8169 = dma.done %s8165, 9216
        $region92: #{tpu_custom_call.1} parent=87 // pred_fallthru
          _
      $region88: #{tpu_custom_call.1} parent=5 // pred_fallthru
        _
    $region6: #{tpu_custom_call.1} parent=1 // loop_footer
      %s27 = sadd.s32 1, %s23
    $region7: #{tpu_custom_call.1} parent=1 // loop_footer_branch
      %22 = sbr.rel target = $region3
    $region8: #{tpu_custom_call.1} parent=1 // loop_exit
      _
    %8170 = vsyncpa [#allocation5], 1
    %s8171 = scalar_lea.sflag [#allocation5], 1
    %8172 = vsyncpa %s8171, 1
    %8173 = vsyncpa [#allocation8], 1
    %8174 = vsyncpa [#allocation6], 1
    %s8175 = scalar_lea.sflag [#allocation6], 1
    %8176 = vsyncpa %s8175, 1

</llo_original>
